<compile_context>
chip_gen: v5e
topology: v5e:2x2
jax: 0.10.0
libtpu: 0.0.40
codegen_flags: <defaults>
</compile_context>

<pallas_src>
import functools

import jax
import jax.numpy as jnp
from jax.experimental import pallas as pl
from jax.experimental.pallas import tpu as pltpu

WIN_SIZE = 11
WIN_SIGMA = 1.5
K1 = 0.01
K2 = 0.03
DATA_RANGE = 1.0
MATMUL_PRECISION = jax.lax.Precision.HIGHEST


def _round_up(x: int, m: int) -> int:
    return (x + m - 1) // m * m


def _gaussian_1d(win_size: int, sigma: float) -> jnp.ndarray:
    coords = jnp.arange(win_size, dtype=jnp.float32) - (win_size - 1) / 2.0
    g = jnp.exp(-(coords ** 2) / (2.0 * sigma ** 2))
    return g / jnp.sum(g)


def _vmem_capacity_bytes() -> int:
    """Physical VMEM per core (128 MiB on v5e/v6e, 64 MiB on v7x)."""
    try:
        cap = int(getattr(pltpu.get_tpu_info(), "vmem_capacity_bytes", 0))
        if cap > 0:
            return cap
    except Exception:
        pass
    return 64 * 1024 * 1024  # conservative default (v7x per-core VMEM)


def _ssim_block_kernel(x_ref, y_ref, gv_ref, gh_ref, out_ref, *,
                       b, h_pad, w_pad, ho, wo, ho_pad, wo_pad, nc, nc_pad):
    """One grid step = B channel-images.

    x_ref/y_ref: (B, H_pad, W_pad)   VMEM input tiles (f32, zero-padded)
    gv_ref:      (Ho_pad, H_pad)     vertical Gaussian filter matrix
    gh_ref:      (W_pad, Wo_pad)     horizontal Gaussian filter matrix
    out_ref:     (1, 8, Wo_pad)      per-step per-lane partial sums of the SSIM map
    """
    i = pl.program_id(0)

    gh = gh_ref[...]                                  # (W_pad, Wo_pad)
    gv = gv_ref[...]                                  # (Ho_pad, H_pad)

    # Tile-aligned views (H_pad % 8 == 0, W_pad % 128 == 0): free reshapes.
    x = x_ref[...].reshape(b * h_pad, w_pad)
    y = y_ref[...].reshape(b * h_pad, w_pad)

    dot = functools.partial(jnp.dot, preferred_element_type=jnp.float32,
                            precision=MATMUL_PRECISION)

    # Horizontal Gaussian pass: five dots sharing the resident RHS (gh).
    # No concat copy; the x*x / y*y / x*y products feed the MXU directly.
    t1 = dot(x, gh)                                   # (B*H_pad, Wo_pad)
    t2 = dot(y, gh)
    t11 = dot(x * x, gh)
    t22 = dot(y * y, gh)
    t12 = dot(x * y, gh)

    c1 = (K1 * DATA_RANGE) ** 2
    c2 = (K2 * DATA_RANGE) ** 2

    acc = jnp.zeros((ho_pad, wo_pad), jnp.float32)

    # Vertical pass + SSIM map, one image at a time.  gv stays the shared MXU
    # operand; no (5B, Ho_pad, H) broadcast of the filter is materialised.
    for j in range(b):
        lo, hi = j * h_pad, (j + 1) * h_pad           # static, 8-aligned slices
        mu1 = dot(gv, t1[lo:hi])                      # (Ho_pad, Wo_pad)
        mu2 = dot(gv, t2[lo:hi])
        exx = dot(gv, t11[lo:hi])
        eyy = dot(gv, t22[lo:hi])
        exy = dot(gv, t12[lo:hi])

        mu1_sq = mu1 * mu1
        mu2_sq = mu2 * mu2
        mu12 = mu1 * mu2
        s11 = exx - mu1_sq
        s22 = eyy - mu2_sq
        s12 = exy - mu12

        num = (2.0 * mu12 + c1) * (2.0 * s12 + c2)
        den = (mu1_sq + mu2_sq + c1) * (s11 + s22 + c2)

        # EUP reciprocal + one Newton refinement (keeps 1e-5 parity w/ divide).
        r = pl.reciprocal(den, approx=True)
        r = r * (2.0 - den * r)
        ssim_map = num * r                            # (Ho_pad, Wo_pad)

        if nc_pad != nc:
            # Scalar validity weight for channel-axis padding (only the last
            # grid step can contain padded images): one vmul, no 3-D iotas.
            wgt = jnp.where(i * b + j < nc, 1.0, 0.0).astype(jnp.float32)
            acc = acc + ssim_map * wgt
        else:
            acc = acc + ssim_map

    # Mask padded output rows/cols once per step (two small 2-D iotas).
    if ho != ho_pad or wo != wo_pad:
        row = jax.lax.broadcasted_iota(jnp.int32, (ho_pad, wo_pad), 0)
        col = jax.lax.broadcasted_iota(jnp.int32, (ho_pad, wo_pad), 1)
        acc = jnp.where((row < ho) & (col < wo), acc, 0.0)

    # Deferred reduction: sublane fold only; the single cross-lane reduce
    # happens once in the wrapper over the tiny (grid, 8, Wo_pad) partials.
    out_ref[0] = acc.reshape(ho_pad // 8, 8, wo_pad).sum(axis=0)


def ssim_loss(output: jnp.ndarray, target: jnp.ndarray) -> jnp.ndarray:
    """1 - SSIM(output, target), data_range=1.0.  Inputs are NCHW."""
    assert output.shape == target.shape and output.ndim == 4
    n, c, h, w = output.shape
    ho = h - WIN_SIZE + 1
    wo = w - WIN_SIZE + 1
    assert ho > 0 and wo > 0, "spatial dims must be > win_size-1 = 10"

    nc = n * c
    h_pad = _round_up(h, 8)
    w_pad = _round_up(w, 128)
    ho_pad = _round_up(ho, 8)
    wo_pad = _round_up(wo, 128)

    # ---- generation-aware VMEM budgeting --------------------------------
    vmem_cap = _vmem_capacity_bytes()
    vmem_limit = max(32 * 1024 * 1024,
                     min(96 * 1024 * 1024, (vmem_cap * 3) // 4))
    budget = vmem_limit - 2 * 1024 * 1024            # scheduling headroom

    f32 = 4
    fixed = (ho_pad * h_pad + w_pad * wo_pad) * f32  # filter matrices
    fixed += 12 * ho_pad * wo_pad * f32              # per-image SSIM temps + acc
    # Per image: 2 inputs x 2 pipeline buffers + product temp headroom (~6x
    # H_pad*W_pad) plus the five horizontal results that stay live (5x H_pad*Wo_pad).
    per_img = (6 * h_pad * w_pad + 5 * h_pad * wo_pad) * f32
    if fixed + per_img > budget:
        # TODO(synk): band/halo W-tiling (128-lane output tiles, 10-px halo,
        # banded K slabs) for very large images; whole-row layout exceeds VMEM.
        raise NotImplementedError(
            "SSIM Pallas kernel: image too large for single-block layout "
            f"(needs ~{(fixed + per_img) >> 20} MiB > {budget >> 20} MiB VMEM)")

    b = int(max(1, min(nc, (budget - fixed) // per_img)))
    b = min(b, 8)                                    # keep the static loop short
    if nc >= 2:
        b = min(b, -(-nc // 2))                      # grid >= 2: both v7x cores busy
    nc_pad = _round_up(nc, b)
    grid = nc_pad // b

    x = output.reshape(nc, h, w).astype(jnp.float32)
    y = target.reshape(nc, h, w).astype(jnp.float32)
    pad = ((0, nc_pad - nc), (0, h_pad - h), (0, w_pad - w))
    if any(p[1] for p in pad):
        x = jnp.pad(x, pad)
        y = jnp.pad(y, pad)

    # Separable Gaussian as banded filter matrices (valid conv), zero-padded to
    # lane/sublane friendly sizes; padded rows/cols are masked in-kernel.
    g = _gaussian_1d(WIN_SIZE, WIN_SIGMA)                                   # (11,)
    idx_v = jnp.arange(ho)[:, None] + jnp.arange(WIN_SIZE)[None, :]         # (Ho, 11)
    gv = jnp.zeros((ho_pad, h_pad), jnp.float32).at[
        jnp.arange(ho)[:, None], idx_v].add(g[None, :])                     # (Ho_pad, H_pad)
    idx_h = jnp.arange(wo)[:, None] + jnp.arange(WIN_SIZE)[None, :]         # (Wo, 11)
    gh = jnp.zeros((wo_pad, w_pad), jnp.float32).at[
        jnp.arange(wo)[:, None], idx_h].add(g[None, :]).T                   # (W_pad, Wo_pad)

    kernel = functools.partial(
        _ssim_block_kernel, b=b, h_pad=h_pad, w_pad=w_pad, ho=ho, wo=wo,
        ho_pad=ho_pad, wo_pad=wo_pad, nc=nc, nc_pad=nc_pad)

    partials = pl.pallas_call(
        kernel,
        out_shape=jax.ShapeDtypeStruct((grid, 8, wo_pad), jnp.float32),
        grid_spec=pltpu.PrefetchScalarGridSpec(
            num_scalar_prefetch=0,
            grid=(grid,),
            in_specs=[
                pl.BlockSpec((b, h_pad, w_pad), lambda i: (i, 0, 0)),
                pl.BlockSpec((b, h_pad, w_pad), lambda i: (i, 0, 0)),
                pl.BlockSpec((ho_pad, h_pad), lambda i: (0, 0)),
                pl.BlockSpec((w_pad, wo_pad), lambda i: (0, 0)),
            ],
            out_specs=pl.BlockSpec((1, 8, wo_pad), lambda i: (i, 0, 0)),
        ),
        compiler_params=pltpu.CompilerParams(
            dimension_semantics=("parallel",),
            vmem_limit_bytes=vmem_limit),
    )(x, y, gv, gh)

    total = jnp.sum(partials)
    return 1.0 - total / (nc * ho * wo)


def _ssim_loss_ref(output, target):
    """Pure-JAX reference (same math) for a sanity check."""
    n, c, h, w = output.shape
    g = _gaussian_1d(WIN_SIZE, WIN_SIGMA)
    win2d = g[:, None] * g[None, :]

    def filt(a):  # valid depthwise conv, per (n*c) image
        a = a.reshape(n * c, 1, h, w)
        k = win2d[None, None, :, :]
        o = jax.lax.conv_general_dilated(a, k, (1, 1), "VALID",
                                         precision=MATMUL_PRECISION)
        return o.reshape(n, c, h - WIN_SIZE + 1, w - WIN_SIZE + 1)

    x = output.astype(jnp.float32)
    y = target.astype(jnp.float32)
    mu1, mu2 = filt(x), filt(y)
    s11 = filt(x * x) - mu1 * mu1
    s22 = filt(y * y) - mu2 * mu2
    s12 = filt(x * y) - mu1 * mu2
    c1 = (K1 * DATA_RANGE) ** 2
    c2 = (K2 * DATA_RANGE) ** 2
    ssim_map = ((2 * mu1 * mu2 + c1) * (2 * s12 + c2)) / (
        (mu1 * mu1 + mu2 * mu2 + c1) * (s11 + s22 + c2))
    return 1.0 - jnp.mean(ssim_map)


if __name__ == "__main__":
    key = jax.random.PRNGKey(0)
    k1, k2 = jax.random.split(key)
    # Small shapes consistent with the module's 4-D NCHW image inputs.
    output = jax.random.uniform(k1, (2, 4, 16, 16), dtype=jnp.float32)
    target = jax.random.uniform(k2, (2, 4, 16, 16), dtype=jnp.float32)

    loss = jax.block_until_ready(ssim_loss(output, target))
    ref = jax.block_until_ready(_ssim_loss_ref(output, target))
    assert jnp.allclose(loss, ref, atol=1e-5, rtol=1e-5), (loss, ref)
    print("KERNEL_OK")
</pallas_src>

<mosaic_0001>
module attributes {stable_mosaic.version = 11 : i64} {
  func.func @_ssim_block_kernel(%arg0: i32, %arg1: memref<4x16x128xf32, #tpu.memory_space<vmem>>, %arg2: memref<4x16x128xf32, #tpu.memory_space<vmem>>, %arg3: memref<8x16xf32, #tpu.memory_space<vmem>>, %arg4: memref<128x128xf32, #tpu.memory_space<vmem>>, %arg5: memref<1x8x128xf32, #tpu.memory_space<vmem>>) attributes {dimension_semantics = [#tpu.dimension_semantics<parallel>], iteration_bounds = array<i64: 2>, scalar_prefetch = 0 : i64, scratch_operands = 0 : i64, tpu.core_type = #tpu.core_type<tc>, window_params = [{transform_indices = @transform_0, window_bounds = array<i64: 4, 16, 128>}, {transform_indices = @transform_1, window_bounds = array<i64: 4, 16, 128>}, {pipeline_mode = #tpu.pipeline_mode<synchronous>, transform_indices = @transform_2, window_bounds = array<i64: 8, 16>}, {pipeline_mode = #tpu.pipeline_mode<synchronous>, transform_indices = @transform_3, window_bounds = array<i64: 128, 128>}, {transform_indices = @transform_4, window_bounds = array<i64: 1, 8, 128>}]} {
    %c0 = arith.constant 0 : index
    %c0_0 = arith.constant 0 : index
    %0 = vector.load %arg4[%c0, %c0_0] : memref<128x128xf32, #tpu.memory_space<vmem>>, vector<128x128xf32>
    %c0_1 = arith.constant 0 : index
    %c0_2 = arith.constant 0 : index
    %1 = vector.load %arg3[%c0_1, %c0_2] : memref<8x16xf32, #tpu.memory_space<vmem>>, vector<8x16xf32>
    %c0_3 = arith.constant 0 : index
    %c0_4 = arith.constant 0 : index
    %c0_5 = arith.constant 0 : index
    %2 = vector.load %arg1[%c0_3, %c0_4, %c0_5] : memref<4x16x128xf32, #tpu.memory_space<vmem>>, vector<4x16x128xf32>
    %3 = vector.shape_cast %2 : vector<4x16x128xf32> to vector<64x128xf32>
    %c0_6 = arith.constant 0 : index
    %c0_7 = arith.constant 0 : index
    %c0_8 = arith.constant 0 : index
    %4 = vector.load %arg2[%c0_6, %c0_7, %c0_8] : memref<4x16x128xf32, #tpu.memory_space<vmem>>, vector<4x16x128xf32>
    %5 = vector.shape_cast %4 : vector<4x16x128xf32> to vector<64x128xf32>
    %cst = arith.constant dense<0.000000e+00> : vector<64x128xf32>
    %6 = tpu.matmul %3, %0, %cst {dimension_numbers = #tpu.dot_dimension_numbers<[1], [0], [0], [1], [0, 0, 1, 1], [], []>, precision = #tpu.contract_precision<fp32>} : vector<64x128xf32>, vector<128x128xf32>, vector<64x128xf32> -> vector<64x128xf32>
    %cst_9 = arith.constant dense<0.000000e+00> : vector<64x128xf32>
    %7 = tpu.matmul %5, %0, %cst_9 {dimension_numbers = #tpu.dot_dimension_numbers<[1], [0], [0], [1], [0, 0, 1, 1], [], []>, precision = #tpu.contract_precision<fp32>} : vector<64x128xf32>, vector<128x128xf32>, vector<64x128xf32> -> vector<64x128xf32>
    %8 = arith.mulf %3, %3 : vector<64x128xf32>
    %cst_10 = arith.constant dense<0.000000e+00> : vector<64x128xf32>
    %9 = tpu.matmul %8, %0, %cst_10 {dimension_numbers = #tpu.dot_dimension_numbers<[1], [0], [0], [1], [0, 0, 1, 1], [], []>, precision = #tpu.contract_precision<fp32>} : vector<64x128xf32>, vector<128x128xf32>, vector<64x128xf32> -> vector<64x128xf32>
    %10 = arith.mulf %5, %5 : vector<64x128xf32>
    %cst_11 = arith.constant dense<0.000000e+00> : vector<64x128xf32>
    %11 = tpu.matmul %10, %0, %cst_11 {dimension_numbers = #tpu.dot_dimension_numbers<[1], [0], [0], [1], [0, 0, 1, 1], [], []>, precision = #tpu.contract_precision<fp32>} : vector<64x128xf32>, vector<128x128xf32>, vector<64x128xf32> -> vector<64x128xf32>
    %12 = arith.mulf %3, %5 : vector<64x128xf32>
    %cst_12 = arith.constant dense<0.000000e+00> : vector<64x128xf32>
    %13 = tpu.matmul %12, %0, %cst_12 {dimension_numbers = #tpu.dot_dimension_numbers<[1], [0], [0], [1], [0, 0, 1, 1], [], []>, precision = #tpu.contract_precision<fp32>} : vector<64x128xf32>, vector<128x128xf32>, vector<64x128xf32> -> vector<64x128xf32>
    %cst_13 = arith.constant 0.000000e+00 : f32
    %14 = vector.broadcast %cst_13 : f32 to vector<8x128xf32>
    %15 = vector.extract_strided_slice %6 {offsets = [0, 0], sizes = [16, 128], strides = [1, 1]} : vector<64x128xf32> to vector<16x128xf32>
    %cst_14 = arith.constant dense<0.000000e+00> : vector<8x128xf32>
    %16 = tpu.matmul %1, %15, %cst_14 {dimension_numbers = #tpu.dot_dimension_numbers<[1], [0], [0], [1], [0, 0, 1, 1], [], []>, precision = #tpu.contract_precision<fp32>} : vector<8x16xf32>, vector<16x128xf32>, vector<8x128xf32> -> vector<8x128xf32>
    %17 = vector.extract_strided_slice %7 {offsets = [0, 0], sizes = [16, 128], strides = [1, 1]} : vector<64x128xf32> to vector<16x128xf32>
    %cst_15 = arith.constant dense<0.000000e+00> : vector<8x128xf32>
    %18 = tpu.matmul %1, %17, %cst_15 {dimension_numbers = #tpu.dot_dimension_numbers<[1], [0], [0], [1], [0, 0, 1, 1], [], []>, precision = #tpu.contract_precision<fp32>} : vector<8x16xf32>, vector<16x128xf32>, vector<8x128xf32> -> vector<8x128xf32>
    %19 = vector.extract_strided_slice %9 {offsets = [0, 0], sizes = [16, 128], strides = [1, 1]} : vector<64x128xf32> to vector<16x128xf32>
    %cst_16 = arith.constant dense<0.000000e+00> : vector<8x128xf32>
    %20 = tpu.matmul %1, %19, %cst_16 {dimension_numbers = #tpu.dot_dimension_numbers<[1], [0], [0], [1], [0, 0, 1, 1], [], []>, precision = #tpu.contract_precision<fp32>} : vector<8x16xf32>, vector<16x128xf32>, vector<8x128xf32> -> vector<8x128xf32>
    %21 = vector.extract_strided_slice %11 {offsets = [0, 0], sizes = [16, 128], strides = [1, 1]} : vector<64x128xf32> to vector<16x128xf32>
    %cst_17 = arith.constant dense<0.000000e+00> : vector<8x128xf32>
    %22 = tpu.matmul %1, %21, %cst_17 {dimension_numbers = #tpu.dot_dimension_numbers<[1], [0], [0], [1], [0, 0, 1, 1], [], []>, precision = #tpu.contract_precision<fp32>} : vector<8x16xf32>, vector<16x128xf32>, vector<8x128xf32> -> vector<8x128xf32>
    %23 = vector.extract_strided_slice %13 {offsets = [0, 0], sizes = [16, 128], strides = [1, 1]} : vector<64x128xf32> to vector<16x128xf32>
    %cst_18 = arith.constant dense<0.000000e+00> : vector<8x128xf32>
    %24 = tpu.matmul %1, %23, %cst_18 {dimension_numbers = #tpu.dot_dimension_numbers<[1], [0], [0], [1], [0, 0, 1, 1], [], []>, precision = #tpu.contract_precision<fp32>} : vector<8x16xf32>, vector<16x128xf32>, vector<8x128xf32> -> vector<8x128xf32>
    %25 = arith.mulf %16, %16 : vector<8x128xf32>
    %26 = arith.mulf %18, %18 : vector<8x128xf32>
    %27 = arith.mulf %16, %18 : vector<8x128xf32>
    %28 = arith.subf %20, %25 : vector<8x128xf32>
    %29 = arith.subf %22, %26 : vector<8x128xf32>
    %30 = arith.subf %24, %27 : vector<8x128xf32>
    %cst_19 = arith.constant 2.000000e+00 : f32
    %31 = vector.broadcast %cst_19 : f32 to vector<8x128xf32>
    %32 = arith.mulf %31, %27 : vector<8x128xf32>
    %cst_20 = arith.constant 9.99999974E-5 : f32
    %33 = vector.broadcast %cst_20 : f32 to vector<8x128xf32>
    %34 = arith.addf %32, %33 : vector<8x128xf32>
    %cst_21 = arith.constant 2.000000e+00 : f32
    %35 = vector.broadcast %cst_21 : f32 to vector<8x128xf32>
    %36 = arith.mulf %35, %30 : vector<8x128xf32>
    %cst_22 = arith.constant 8.99999984E-4 : f32
    %37 = vector.broadcast %cst_22 : f32 to vector<8x128xf32>
    %38 = arith.addf %36, %37 : vector<8x128xf32>
    %39 = arith.mulf %34, %38 : vector<8x128xf32>
    %40 = arith.addf %25, %26 : vector<8x128xf32>
    %cst_23 = arith.constant 9.99999974E-5 : f32
    %41 = vector.broadcast %cst_23 : f32 to vector<8x128xf32>
    %42 = arith.addf %40, %41 : vector<8x128xf32>
    %43 = arith.addf %28, %29 : vector<8x128xf32>
    %cst_24 = arith.constant 8.99999984E-4 : f32
    %44 = vector.broadcast %cst_24 : f32 to vector<8x128xf32>
    %45 = arith.addf %43, %44 : vector<8x128xf32>
    %46 = arith.mulf %42, %45 : vector<8x128xf32>
    %47 = tpu.reciprocal %46 {approx = true} : vector<8x128xf32> -> vector<8x128xf32>
    %48 = arith.mulf %46, %47 : vector<8x128xf32>
    %cst_25 = arith.constant 2.000000e+00 : f32
    %49 = vector.broadcast %cst_25 : f32 to vector<8x128xf32>
    %50 = arith.subf %49, %48 : vector<8x128xf32>
    %51 = arith.mulf %47, %50 : vector<8x128xf32>
    %52 = arith.mulf %39, %51 : vector<8x128xf32>
    %53 = arith.addf %14, %52 : vector<8x128xf32>
    %54 = vector.extract_strided_slice %6 {offsets = [16, 0], sizes = [16, 128], strides = [1, 1]} : vector<64x128xf32> to vector<16x128xf32>
    %cst_26 = arith.constant dense<0.000000e+00> : vector<8x128xf32>
    %55 = tpu.matmul %1, %54, %cst_26 {dimension_numbers = #tpu.dot_dimension_numbers<[1], [0], [0], [1], [0, 0, 1, 1], [], []>, precision = #tpu.contract_precision<fp32>} : vector<8x16xf32>, vector<16x128xf32>, vector<8x128xf32> -> vector<8x128xf32>
    %56 = vector.extract_strided_slice %7 {offsets = [16, 0], sizes = [16, 128], strides = [1, 1]} : vector<64x128xf32> to vector<16x128xf32>
    %cst_27 = arith.constant dense<0.000000e+00> : vector<8x128xf32>
    %57 = tpu.matmul %1, %56, %cst_27 {dimension_numbers = #tpu.dot_dimension_numbers<[1], [0], [0], [1], [0, 0, 1, 1], [], []>, precision = #tpu.contract_precision<fp32>} : vector<8x16xf32>, vector<16x128xf32>, vector<8x128xf32> -> vector<8x128xf32>
    %58 = vector.extract_strided_slice %9 {offsets = [16, 0], sizes = [16, 128], strides = [1, 1]} : vector<64x128xf32> to vector<16x128xf32>
    %cst_28 = arith.constant dense<0.000000e+00> : vector<8x128xf32>
    %59 = tpu.matmul %1, %58, %cst_28 {dimension_numbers = #tpu.dot_dimension_numbers<[1], [0], [0], [1], [0, 0, 1, 1], [], []>, precision = #tpu.contract_precision<fp32>} : vector<8x16xf32>, vector<16x128xf32>, vector<8x128xf32> -> vector<8x128xf32>
    %60 = vector.extract_strided_slice %11 {offsets = [16, 0], sizes = [16, 128], strides = [1, 1]} : vector<64x128xf32> to vector<16x128xf32>
    %cst_29 = arith.constant dense<0.000000e+00> : vector<8x128xf32>
    %61 = tpu.matmul %1, %60, %cst_29 {dimension_numbers = #tpu.dot_dimension_numbers<[1], [0], [0], [1], [0, 0, 1, 1], [], []>, precision = #tpu.contract_precision<fp32>} : vector<8x16xf32>, vector<16x128xf32>, vector<8x128xf32> -> vector<8x128xf32>
    %62 = vector.extract_strided_slice %13 {offsets = [16, 0], sizes = [16, 128], strides = [1, 1]} : vector<64x128xf32> to vector<16x128xf32>
    %cst_30 = arith.constant dense<0.000000e+00> : vector<8x128xf32>
    %63 = tpu.matmul %1, %62, %cst_30 {dimension_numbers = #tpu.dot_dimension_numbers<[1], [0], [0], [1], [0, 0, 1, 1], [], []>, precision = #tpu.contract_precision<fp32>} : vector<8x16xf32>, vector<16x128xf32>, vector<8x128xf32> -> vector<8x128xf32>
    %64 = arith.mulf %55, %55 : vector<8x128xf32>
    %65 = arith.mulf %57, %57 : vector<8x128xf32>
    %66 = arith.mulf %55, %57 : vector<8x128xf32>
    %67 = arith.subf %59, %64 : vector<8x128xf32>
    %68 = arith.subf %61, %65 : vector<8x128xf32>
    %69 = arith.subf %63, %66 : vector<8x128xf32>
    %cst_31 = arith.constant 2.000000e+00 : f32
    %70 = vector.broadcast %cst_31 : f32 to vector<8x128xf32>
    %71 = arith.mulf %70, %66 : vector<8x128xf32>
    %cst_32 = arith.constant 9.99999974E-5 : f32
    %72 = vector.broadcast %cst_32 : f32 to vector<8x128xf32>
    %73 = arith.addf %71, %72 : vector<8x128xf32>
    %cst_33 = arith.constant 2.000000e+00 : f32
    %74 = vector.broadcast %cst_33 : f32 to vector<8x128xf32>
    %75 = arith.mulf %74, %69 : vector<8x128xf32>
    %cst_34 = arith.constant 8.99999984E-4 : f32
    %76 = vector.broadcast %cst_34 : f32 to vector<8x128xf32>
    %77 = arith.addf %75, %76 : vector<8x128xf32>
    %78 = arith.mulf %73, %77 : vector<8x128xf32>
    %79 = arith.addf %64, %65 : vector<8x128xf32>
    %cst_35 = arith.constant 9.99999974E-5 : f32
    %80 = vector.broadcast %cst_35 : f32 to vector<8x128xf32>
    %81 = arith.addf %79, %80 : vector<8x128xf32>
    %82 = arith.addf %67, %68 : vector<8x128xf32>
    %cst_36 = arith.constant 8.99999984E-4 : f32
    %83 = vector.broadcast %cst_36 : f32 to vector<8x128xf32>
    %84 = arith.addf %82, %83 : vector<8x128xf32>
    %85 = arith.mulf %81, %84 : vector<8x128xf32>
    %86 = tpu.reciprocal %85 {approx = true} : vector<8x128xf32> -> vector<8x128xf32>
    %87 = arith.mulf %85, %86 : vector<8x128xf32>
    %cst_37 = arith.constant 2.000000e+00 : f32
    %88 = vector.broadcast %cst_37 : f32 to vector<8x128xf32>
    %89 = arith.subf %88, %87 : vector<8x128xf32>
    %90 = arith.mulf %86, %89 : vector<8x128xf32>
    %91 = arith.mulf %78, %90 : vector<8x128xf32>
    %92 = arith.addf %53, %91 : vector<8x128xf32>
    %93 = vector.extract_strided_slice %6 {offsets = [32, 0], sizes = [16, 128], strides = [1, 1]} : vector<64x128xf32> to vector<16x128xf32>
    %cst_38 = arith.constant dense<0.000000e+00> : vector<8x128xf32>
    %94 = tpu.matmul %1, %93, %cst_38 {dimension_numbers = #tpu.dot_dimension_numbers<[1], [0], [0], [1], [0, 0, 1, 1], [], []>, precision = #tpu.contract_precision<fp32>} : vector<8x16xf32>, vector<16x128xf32>, vector<8x128xf32> -> vector<8x128xf32>
    %95 = vector.extract_strided_slice %7 {offsets = [32, 0], sizes = [16, 128], strides = [1, 1]} : vector<64x128xf32> to vector<16x128xf32>
    %cst_39 = arith.constant dense<0.000000e+00> : vector<8x128xf32>
    %96 = tpu.matmul %1, %95, %cst_39 {dimension_numbers = #tpu.dot_dimension_numbers<[1], [0], [0], [1], [0, 0, 1, 1], [], []>, precision = #tpu.contract_precision<fp32>} : vector<8x16xf32>, vector<16x128xf32>, vector<8x128xf32> -> vector<8x128xf32>
    %97 = vector.extract_strided_slice %9 {offsets = [32, 0], sizes = [16, 128], strides = [1, 1]} : vector<64x128xf32> to vector<16x128xf32>
    %cst_40 = arith.constant dense<0.000000e+00> : vector<8x128xf32>
    %98 = tpu.matmul %1, %97, %cst_40 {dimension_numbers = #tpu.dot_dimension_numbers<[1], [0], [0], [1], [0, 0, 1, 1], [], []>, precision = #tpu.contract_precision<fp32>} : vector<8x16xf32>, vector<16x128xf32>, vector<8x128xf32> -> vector<8x128xf32>
    %99 = vector.extract_strided_slice %11 {offsets = [32, 0], sizes = [16, 128], strides = [1, 1]} : vector<64x128xf32> to vector<16x128xf32>
    %cst_41 = arith.constant dense<0.000000e+00> : vector<8x128xf32>
    %100 = tpu.matmul %1, %99, %cst_41 {dimension_numbers = #tpu.dot_dimension_numbers<[1], [0], [0], [1], [0, 0, 1, 1], [], []>, precision = #tpu.contract_precision<fp32>} : vector<8x16xf32>, vector<16x128xf32>, vector<8x128xf32> -> vector<8x128xf32>
    %101 = vector.extract_strided_slice %13 {offsets = [32, 0], sizes = [16, 128], strides = [1, 1]} : vector<64x128xf32> to vector<16x128xf32>
    %cst_42 = arith.constant dense<0.000000e+00> : vector<8x128xf32>
    %102 = tpu.matmul %1, %101, %cst_42 {dimension_numbers = #tpu.dot_dimension_numbers<[1], [0], [0], [1], [0, 0, 1, 1], [], []>, precision = #tpu.contract_precision<fp32>} : vector<8x16xf32>, vector<16x128xf32>, vector<8x128xf32> -> vector<8x128xf32>
    %103 = arith.mulf %94, %94 : vector<8x128xf32>
    %104 = arith.mulf %96, %96 : vector<8x128xf32>
    %105 = arith.mulf %94, %96 : vector<8x128xf32>
    %106 = arith.subf %98, %103 : vector<8x128xf32>
    %107 = arith.subf %100, %104 : vector<8x128xf32>
    %108 = arith.subf %102, %105 : vector<8x128xf32>
    %cst_43 = arith.constant 2.000000e+00 : f32
    %109 = vector.broadcast %cst_43 : f32 to vector<8x128xf32>
    %110 = arith.mulf %109, %105 : vector<8x128xf32>
    %cst_44 = arith.constant 9.99999974E-5 : f32
    %111 = vector.broadcast %cst_44 : f32 to vector<8x128xf32>
    %112 = arith.addf %110, %111 : vector<8x128xf32>
    %cst_45 = arith.constant 2.000000e+00 : f32
    %113 = vector.broadcast %cst_45 : f32 to vector<8x128xf32>
    %114 = arith.mulf %113, %108 : vector<8x128xf32>
    %cst_46 = arith.constant 8.99999984E-4 : f32
    %115 = vector.broadcast %cst_46 : f32 to vector<8x128xf32>
    %116 = arith.addf %114, %115 : vector<8x128xf32>
    %117 = arith.mulf %112, %116 : vector<8x128xf32>
    %118 = arith.addf %103, %104 : vector<8x128xf32>
    %cst_47 = arith.constant 9.99999974E-5 : f32
    %119 = vector.broadcast %cst_47 : f32 to vector<8x128xf32>
    %120 = arith.addf %118, %119 : vector<8x128xf32>
    %121 = arith.addf %106, %107 : vector<8x128xf32>
    %cst_48 = arith.constant 8.99999984E-4 : f32
    %122 = vector.broadcast %cst_48 : f32 to vector<8x128xf32>
    %123 = arith.addf %121, %122 : vector<8x128xf32>
    %124 = arith.mulf %120, %123 : vector<8x128xf32>
    %125 = tpu.reciprocal %124 {approx = true} : vector<8x128xf32> -> vector<8x128xf32>
    %126 = arith.mulf %124, %125 : vector<8x128xf32>
    %cst_49 = arith.constant 2.000000e+00 : f32
    %127 = vector.broadcast %cst_49 : f32 to vector<8x128xf32>
    %128 = arith.subf %127, %126 : vector<8x128xf32>
    %129 = arith.mulf %125, %128 : vector<8x128xf32>
    %130 = arith.mulf %117, %129 : vector<8x128xf32>
    %131 = arith.addf %92, %130 : vector<8x128xf32>
    %132 = vector.extract_strided_slice %6 {offsets = [48, 0], sizes = [16, 128], strides = [1, 1]} : vector<64x128xf32> to vector<16x128xf32>
    %cst_50 = arith.constant dense<0.000000e+00> : vector<8x128xf32>
    %133 = tpu.matmul %1, %132, %cst_50 {dimension_numbers = #tpu.dot_dimension_numbers<[1], [0], [0], [1], [0, 0, 1, 1], [], []>, precision = #tpu.contract_precision<fp32>} : vector<8x16xf32>, vector<16x128xf32>, vector<8x128xf32> -> vector<8x128xf32>
    %134 = vector.extract_strided_slice %7 {offsets = [48, 0], sizes = [16, 128], strides = [1, 1]} : vector<64x128xf32> to vector<16x128xf32>
    %cst_51 = arith.constant dense<0.000000e+00> : vector<8x128xf32>
    %135 = tpu.matmul %1, %134, %cst_51 {dimension_numbers = #tpu.dot_dimension_numbers<[1], [0], [0], [1], [0, 0, 1, 1], [], []>, precision = #tpu.contract_precision<fp32>} : vector<8x16xf32>, vector<16x128xf32>, vector<8x128xf32> -> vector<8x128xf32>
    %136 = vector.extract_strided_slice %9 {offsets = [48, 0], sizes = [16, 128], strides = [1, 1]} : vector<64x128xf32> to vector<16x128xf32>
    %cst_52 = arith.constant dense<0.000000e+00> : vector<8x128xf32>
    %137 = tpu.matmul %1, %136, %cst_52 {dimension_numbers = #tpu.dot_dimension_numbers<[1], [0], [0], [1], [0, 0, 1, 1], [], []>, precision = #tpu.contract_precision<fp32>} : vector<8x16xf32>, vector<16x128xf32>, vector<8x128xf32> -> vector<8x128xf32>
    %138 = vector.extract_strided_slice %11 {offsets = [48, 0], sizes = [16, 128], strides = [1, 1]} : vector<64x128xf32> to vector<16x128xf32>
    %cst_53 = arith.constant dense<0.000000e+00> : vector<8x128xf32>
    %139 = tpu.matmul %1, %138, %cst_53 {dimension_numbers = #tpu.dot_dimension_numbers<[1], [0], [0], [1], [0, 0, 1, 1], [], []>, precision = #tpu.contract_precision<fp32>} : vector<8x16xf32>, vector<16x128xf32>, vector<8x128xf32> -> vector<8x128xf32>
    %140 = vector.extract_strided_slice %13 {offsets = [48, 0], sizes = [16, 128], strides = [1, 1]} : vector<64x128xf32> to vector<16x128xf32>
    %cst_54 = arith.constant dense<0.000000e+00> : vector<8x128xf32>
    %141 = tpu.matmul %1, %140, %cst_54 {dimension_numbers = #tpu.dot_dimension_numbers<[1], [0], [0], [1], [0, 0, 1, 1], [], []>, precision = #tpu.contract_precision<fp32>} : vector<8x16xf32>, vector<16x128xf32>, vector<8x128xf32> -> vector<8x128xf32>
    %142 = arith.mulf %133, %133 : vector<8x128xf32>
    %143 = arith.mulf %135, %135 : vector<8x128xf32>
    %144 = arith.mulf %133, %135 : vector<8x128xf32>
    %145 = arith.subf %137, %142 : vector<8x128xf32>
    %146 = arith.subf %139, %143 : vector<8x128xf32>
    %147 = arith.subf %141, %144 : vector<8x128xf32>
    %cst_55 = arith.constant 2.000000e+00 : f32
    %148 = vector.broadcast %cst_55 : f32 to vector<8x128xf32>
    %149 = arith.mulf %148, %144 : vector<8x128xf32>
    %cst_56 = arith.constant 9.99999974E-5 : f32
    %150 = vector.broadcast %cst_56 : f32 to vector<8x128xf32>
    %151 = arith.addf %149, %150 : vector<8x128xf32>
    %cst_57 = arith.constant 2.000000e+00 : f32
    %152 = vector.broadcast %cst_57 : f32 to vector<8x128xf32>
    %153 = arith.mulf %152, %147 : vector<8x128xf32>
    %cst_58 = arith.constant 8.99999984E-4 : f32
    %154 = vector.broadcast %cst_58 : f32 to vector<8x128xf32>
    %155 = arith.addf %153, %154 : vector<8x128xf32>
    %156 = arith.mulf %151, %155 : vector<8x128xf32>
    %157 = arith.addf %142, %143 : vector<8x128xf32>
    %cst_59 = arith.constant 9.99999974E-5 : f32
    %158 = vector.broadcast %cst_59 : f32 to vector<8x128xf32>
    %159 = arith.addf %157, %158 : vector<8x128xf32>
    %160 = arith.addf %145, %146 : vector<8x128xf32>
    %cst_60 = arith.constant 8.99999984E-4 : f32
    %161 = vector.broadcast %cst_60 : f32 to vector<8x128xf32>
    %162 = arith.addf %160, %161 : vector<8x128xf32>
    %163 = arith.mulf %159, %162 : vector<8x128xf32>
    %164 = tpu.reciprocal %163 {approx = true} : vector<8x128xf32> -> vector<8x128xf32>
    %165 = arith.mulf %163, %164 : vector<8x128xf32>
    %cst_61 = arith.constant 2.000000e+00 : f32
    %166 = vector.broadcast %cst_61 : f32 to vector<8x128xf32>
    %167 = arith.subf %166, %165 : vector<8x128xf32>
    %168 = arith.mulf %164, %167 : vector<8x128xf32>
    %169 = arith.mulf %156, %168 : vector<8x128xf32>
    %170 = arith.addf %131, %169 : vector<8x128xf32>
    %171 = tpu.iota {dimensions = array<i32: 0>} : vector<8x128xi32>
    %172 = tpu.iota {dimensions = array<i32: 1>} : vector<8x128xi32>
    %c6_i32 = arith.constant 6 : i32
    %173 = vector.broadcast %c6_i32 : i32 to vector<8x128xi32>
    %174 = arith.cmpi slt, %171, %173 : vector<8x128xi32>
    %c6_i32_62 = arith.constant 6 : i32
    %175 = vector.broadcast %c6_i32_62 : i32 to vector<8x128xi32>
    %176 = arith.cmpi slt, %172, %175 : vector<8x128xi32>
    %177 = arith.andi %174, %176 : vector<8x128xi1>
    %cst_63 = arith.constant 0.000000e+00 : f32
    %178 = vector.broadcast %cst_63 : f32 to vector<8x128xf32>
    %179 = arith.select %177, %170, %178 : vector<8x128xi1>, vector<8x128xf32>
    %180 = vector.shape_cast %179 : vector<8x128xf32> to vector<1x8x128xf32>
    %cst_64 = arith.constant dense<0.000000e+00> : vector<8x128xf32>
    %181 = vector.multi_reduction <add>, %180, %cst_64 [0] : vector<1x8x128xf32> to vector<8x128xf32>
    %c0_65 = arith.constant 0 : index
    %c0_66 = arith.constant 0 : index
    %c0_67 = arith.constant 0 : index
    %182 = vector.load %arg5[%c0_65, %c0_66, %c0_67] : memref<1x8x128xf32, #tpu.memory_space<vmem>>, vector<1x8x128xf32>
    %183 = vector.shape_cast %182 : vector<1x8x128xf32> to vector<8x128xf32>
    %184 = vector.shape_cast %181 : vector<8x128xf32> to vector<1x8x128xf32>
    tpu.vector_store %arg5[%c0_65, %c0_66, %c0_67], %184 {strides = array<i32>} : memref<1x8x128xf32, #tpu.memory_space<vmem>>, vector<1x8x128xf32>,
    return
  }
  func.func @transform_0(%arg0: i32) -> (i32, i32, i32) {
    %c0_i32 = arith.constant 0 : i32
    %c0_i32_0 = arith.constant 0 : i32
    %c0_i32_1 = arith.constant 0 : i32
    return %arg0, %c0_i32, %c0_i32_0 : i32, i32, i32
  }
  func.func @transform_1(%arg0: i32) -> (i32, i32, i32) {
    %c0_i32 = arith.constant 0 : i32
    %c0_i32_0 = arith.constant 0 : i32
    %c0_i32_1 = arith.constant 0 : i32
    return %arg0, %c0_i32, %c0_i32_0 : i32, i32, i32
  }
  func.func @transform_2(%arg0: i32) -> (i32, i32) {
    %c0_i32 = arith.constant 0 : i32
    %c0_i32_0 = arith.constant 0 : i32
    %c0_i32_1 = arith.constant 0 : i32
    return %c0_i32, %c0_i32_0 : i32, i32
  }
  func.func @transform_3(%arg0: i32) -> (i32, i32) {
    %c0_i32 = arith.constant 0 : i32
    %c0_i32_0 = arith.constant 0 : i32
    %c0_i32_1 = arith.constant 0 : i32
    return %c0_i32, %c0_i32_0 : i32, i32
  }
  func.func @transform_4(%arg0: i32) -> (i32, i32, i32) {
    %c0_i32 = arith.constant 0 : i32
    %c0_i32_0 = arith.constant 0 : i32
    %c0_i32_1 = arith.constant 0 : i32
    return %arg0, %c0_i32, %c0_i32_0 : i32, i32, i32
  }
}

</mosaic_0001>

<llo_original>
// kernel: tpu_custom_call.1
$region0: #{tpu_custom_call.1}
  #allocation0 [shape = 'u32[]', space=smem, size = 0x4, offset = 0x4, fixed_abs, tag = 'smem constant byte address 0x4 - core index']
  #allocation1 [shape = 'u32[72,128]{1,0:T(1,128)}', space=vmem, size = 0x9000, scoped, tag = 'internal scratch']
  %s0 = inlined_call_operand.hbm [shape: f32[8,16,128], index: 0, kind: input, shape index: {}]
  %s1 = inlined_call_operand.hbm [shape: f32[8,16,128], index: 1, kind: input, shape index: {}]
  %s2 = inlined_call_operand.hbm [shape: f32[8,16], index: 2, kind: input, shape index: {}]
  %s3 = inlined_call_operand.hbm [shape: f32[128,128], index: 3, kind: input, shape index: {}]
  %s4 = inlined_call_operand.hbm [shape: f32[2,8,128], index: 4, kind: output, shape index: {}]
  %s5 = sld [smem:[#allocation0]]
  $region65: #{tpu_custom_call.1} parent=0
    _
  %s7 = ssub.s32 1, %s5
  %s8 = scalar_select 0, %s7, %s5
  $region1: #{tpu_custom_call.1} parent=0
    #allocation2 [shape = 'u8[65536]{0}', space=vmem, size = 0x10000, scoped, tag = 'input window, operand 0']
    #allocation3 [shape = 's32[2]{0}', space=sflag, size = 0x8, scoped, tag = 'scoped memory for tpu_custom_call.1']
    #allocation4 [shape = 's32[2]{0}', space=sflag, size = 0x8, scoped, tag = 'scoped memory for tpu_custom_call.1']
    #allocation5 [shape = 'u8[65536]{0}', space=vmem, size = 0x10000, scoped, tag = 'input window, operand 1']
    #allocation6 [shape = 's32[2]{0}', space=sflag, size = 0x8, scoped, tag = 'scoped memory for tpu_custom_call.1']
    #allocation7 [shape = 'u8[4096]{0}', space=vmem, size = 0x1000, scoped, tag = 'input window, operand 2, single buffered']
    #allocation8 [shape = 'u8[65536]{0}', space=vmem, size = 0x10000, scoped, tag = 'input window, operand 3, single buffered']
    #allocation9 [shape = 's32[1]{0}', space=sflag, size = 0x4, scoped, tag = 'scoped memory for tpu_custom_call.1']
    #allocation10 [shape = 'u8[8192]{0}', space=vmem, size = 0x2000, scoped, tag = 'output window, operand 0']
    %9 = vsyncpa [#allocation3], 0
    %s10 = scalar_lea.sflag [#allocation3], 1
    %11 = vsyncpa %s10, 0
    %12 = vsyncpa [#allocation6], 0
    %s13 = scalar_lea.sflag [#allocation6], 1
    %14 = vsyncpa %s13, 0
    %15 = vsyncpa [#allocation9], 0
    %16 = vsyncpa [#allocation4], 0
    %s17 = scalar_lea.sflag [#allocation4], 1
    %18 = vsyncpa %s17, 0
    loop: start=0, step=1, limit=4
    $region2: #{tpu_custom_call.1} parent=1 // loop_pre_header
      _
    $region3: #{tpu_custom_call.1} parent=1 // loop_header
      %s20 = sphi 0, %s24
      %p21 = scmp.ge.s32.totalorder %s20, 4
      %s30 = sphi 0, %s32
      %s33 = sphi 0, %s30
      %s34 = sphi 0, %s33
      %s50 = sphi 0, %s34
      %s56 = sphi 0, %s58
      %s59 = sphi 0, %s56
      %s60 = sphi 0, %s59
      %s76 = sphi 0, %s60
      %s80 = sphi 0, %s80
      %s82 = sphi 0, %s80
      %s83 = sphi 0, %s82
      %s97 = sphi 0, %s83
      %s101 = sphi 0, %s101
      %s103 = sphi 0, %s101
      %s104 = sphi 0, %s103
      %s118 = sphi 0, %s104
      %s124 = sphi 0, %s126
      %s127 = sphi 0, %s124
      %s128 = sphi 0, %s127
      %s144 = sphi 0, %s128
    $region4: #{tpu_custom_call.1} parent=1 // loop_header_branch
      %23 = sbr.rel (%p21) target = $region8
    $region5: #{tpu_custom_call.1} parent=1 // loop_body
      %s25 = ssub.s32 %s20, 1
      %s26 = ssub.s32 %s20, 2
      %s27 = sadd.s32 %s20, 1
      %s28 = ssub.s32 %s20, %s27
      %p29 = scmp.eq.s32.totalorder %s28, 0
      %s31 = sadd.s32 %s30, 1
      %s32 = scalar_select %p29, %s30, %s31
      %p35 = pneg %p29
      %p36 = scmp.eq.s32.totalorder %s20, 1
      %p37 = por %p35, %p36
      %p38 = scmp.ne.s32.totalorder %s30, %s33
      %p39 = scmp.eq.s32.totalorder %s20, 0
      %p40 = por %p38, %p39
      %p41 = scmp.ne.s32.totalorder %s30, %s33
      %p42 = scmp.eq.s32.totalorder %s25, 1
      %p43 = por %p41, %p42
      %p44 = scmp.ne.s32.totalorder %s33, %s34
      %p45 = scmp.eq.s32.totalorder %s25, 0
      %p46 = por %p44, %p45
      %p47 = scmp.ne.s32.totalorder %s33, %s34
      %p48 = scmp.eq.s32.totalorder %s26, 1
      %p49 = por %p47, %p48
      %p51 = scmp.ne.s32.totalorder %s34, %s50
      %p52 = scmp.eq.s32.totalorder %s26, 0
      %p53 = por %p51, %p52
      %s54 = ssub.s32 %s20, %s27
      %p55 = scmp.eq.s32.totalorder %s54, 0
      %s57 = sadd.s32 %s56, 1
      %s58 = scalar_select %p55, %s56, %s57
      %p61 = pneg %p55
      %p62 = scmp.eq.s32.totalorder %s20, 1
      %p63 = por %p61, %p62
      %p64 = scmp.ne.s32.totalorder %s56, %s59
      %p65 = scmp.eq.s32.totalorder %s20, 0
      %p66 = por %p64, %p65
      %p67 = scmp.ne.s32.totalorder %s56, %s59
      %p68 = scmp.eq.s32.totalorder %s25, 1
      %p69 = por %p67, %p68
      %p70 = scmp.ne.s32.totalorder %s59, %s60
      %p71 = scmp.eq.s32.totalorder %s25, 0
      %p72 = por %p70, %p71
      %p73 = scmp.ne.s32.totalorder %s59, %s60
      %p74 = scmp.eq.s32.totalorder %s26, 1
      %p75 = por %p73, %p74
      %p77 = scmp.ne.s32.totalorder %s60, %s76
      %p78 = scmp.eq.s32.totalorder %s26, 0
      %p79 = por %p77, %p78
      %s81 = sadd.s32 %s80, 1
      %p84 = scmp.eq.s32.totalorder %s20, 1
      %p85 = scmp.ne.s32.totalorder %s80, %s82
      %p86 = scmp.eq.s32.totalorder %s20, 0
      %p87 = por %p85, %p86
      %p88 = scmp.ne.s32.totalorder %s80, %s82
      %p89 = scmp.eq.s32.totalorder %s25, 1
      %p90 = por %p88, %p89
      %p91 = scmp.ne.s32.totalorder %s82, %s83
      %p92 = scmp.eq.s32.totalorder %s25, 0
      %p93 = por %p91, %p92
      %p94 = scmp.ne.s32.totalorder %s82, %s83
      %p95 = scmp.eq.s32.totalorder %s26, 1
      %p96 = por %p94, %p95
      %p98 = scmp.ne.s32.totalorder %s83, %s97
      %p99 = scmp.eq.s32.totalorder %s26, 0
      %p100 = por %p98, %p99
      %s102 = sadd.s32 %s101, 1
      %p105 = scmp.eq.s32.totalorder %s20, 1
      %p106 = scmp.ne.s32.totalorder %s101, %s103
      %p107 = scmp.eq.s32.totalorder %s20, 0
      %p108 = por %p106, %p107
      %p109 = scmp.ne.s32.totalorder %s101, %s103
      %p110 = scmp.eq.s32.totalorder %s25, 1
      %p111 = por %p109, %p110
      %p112 = scmp.ne.s32.totalorder %s103, %s104
      %p113 = scmp.eq.s32.totalorder %s25, 0
      %p114 = por %p112, %p113
      %p115 = scmp.ne.s32.totalorder %s103, %s104
      %p116 = scmp.eq.s32.totalorder %s26, 1
      %p117 = por %p115, %p116
      %p119 = scmp.ne.s32.totalorder %s104, %s118
      %p120 = scmp.eq.s32.totalorder %s26, 0
      %p121 = por %p119, %p120
      %s122 = ssub.s32 %s20, %s27
      %p123 = scmp.eq.s32.totalorder %s122, 0
      %s125 = sadd.s32 %s124, 1
      %s126 = scalar_select %p123, %s124, %s125
      %p129 = pneg %p123
      %p130 = scmp.eq.s32.totalorder %s20, 1
      %p131 = por %p129, %p130
      %p132 = scmp.ne.s32.totalorder %s124, %s127
      %p133 = scmp.eq.s32.totalorder %s20, 0
      %p134 = por %p132, %p133
      %p135 = scmp.ne.s32.totalorder %s124, %s127
      %p136 = scmp.eq.s32.totalorder %s25, 1
      %p137 = por %p135, %p136
      %p138 = scmp.ne.s32.totalorder %s127, %s128
      %p139 = scmp.eq.s32.totalorder %s25, 0
      %p140 = por %p138, %p139
      %p141 = scmp.ne.s32.totalorder %s127, %s128
      %p142 = scmp.eq.s32.totalorder %s26, 1
      %p143 = por %p141, %p142
      %p145 = scmp.ne.s32.totalorder %s128, %s144
      %p146 = scmp.eq.s32.totalorder %s26, 0
      %p147 = por %p145, %p146
      %p148 = scmp.le.s32.totalorder 1, %s20
      %p149 = scmp.lt.s32.totalorder %s20, 3
      %p150 = pnand %p148, %p149
      %p151 = pneg %p150
      // Predicated region
      $region9: #{tpu_custom_call.1} parent=5 // pred_check
        _
      $region10: #{tpu_custom_call.1} parent=5 // pred_check_branch
        %153 = sbr.rel (%p150) target = $region12
      $region11: #{tpu_custom_call.1} parent=5 // pred_region
        %s154 = ssub.s32 %s20, 1
        // Predicated region
        $region13: #{tpu_custom_call.1} parent=11 // pred_check
          %p155 = pneg %p93
        $region14: #{tpu_custom_call.1} parent=11 // pred_check_branch
          %157 = sbr.rel (%p155) target = $region16
        $region15: #{tpu_custom_call.1} parent=11 // pred_region
          %159 = vsyncadd [#allocation6], 0
          %s161 = sshll.u32 %s2, 4
          %s162 = int_to_ptr.hbm [resolvable:$true] %s161
          %s163 = sshll.u32 [#allocation7], 4
          %s164 = int_to_ptr.vmem [resolvable:$true] %s163
          %166 = dma.hbm_to_vmem [thread:$0]  %s162, 128, %s164, [#allocation6]
        $region16: #{tpu_custom_call.1} parent=11 // pred_fallthru
          _
        // Predicated region
        $region17: #{tpu_custom_call.1} parent=11 // pred_check
          %p167 = pneg %p114
        $region18: #{tpu_custom_call.1} parent=11 // pred_check_branch
          %169 = sbr.rel (%p167) target = $region20
        $region19: #{tpu_custom_call.1} parent=11 // pred_region
          %171 = vsyncadd [#allocation9], 0
          %s172 = sshll.u32 %s3, 4
          %s173 = int_to_ptr.hbm [resolvable:$true] %s172
          %s174 = sshll.u32 [#allocation8], 4
          %s175 = int_to_ptr.vmem [resolvable:$true] %s174
          %180 = dma.hbm_to_vmem [thread:$0]  %s173, 2048, %s175, [#allocation9], 128, 128, 8
        $region20: #{tpu_custom_call.1} parent=11 // pred_fallthru
          _
      $region12: #{tpu_custom_call.1} parent=5 // pred_fallthru
        _
      %p181 = scmp.lt.s32.totalorder %s20, 2
      // Predicated region
      $region21: #{tpu_custom_call.1} parent=5 // pred_check
        %p182 = pneg %p181
      $region22: #{tpu_custom_call.1} parent=5 // pred_check_branch
        %184 = sbr.rel (%p182) target = $region24
      $region23: #{tpu_custom_call.1} parent=5 // pred_region
        // Predicated region
        $region25: #{tpu_custom_call.1} parent=23 // pred_check
          %p185 = pneg %p40
        $region26: #{tpu_custom_call.1} parent=23 // pred_check_branch
          %187 = sbr.rel (%p185) target = $region28
        $region27: #{tpu_custom_call.1} parent=23 // pred_region
          %s188 = sand.u32 %s30, 1
          %s189 = scalar_lea.sflag [#allocation3], %s188
          %s190 = sand.u32 %s30, 1
          %s191 = smul.addr %s190, 64
          %s192 = scalar_lea.vmem [#allocation2], %s191
          %s193 = smul.u32 4, %s20
          %195 = vsyncadd %s189, 0
          %s196 = smul.addr %s193, 2
          %s197 = smul.addr %s196, 8
          %s198 = scalar_lea.hbm %s0, %s197
          %s199 = sshll.u32 %s198, 4
          %s200 = int_to_ptr.hbm [resolvable:$true] %s199
          %s201 = sshll.u32 %s192, 4
          %s202 = int_to_ptr.vmem [resolvable:$true] %s201
          %207 = dma.hbm_to_vmem [thread:$0]  %s200, 1024, %s202, %s189, 128, 128, 8
        $region28: #{tpu_custom_call.1} parent=23 // pred_fallthru
          _
        // Predicated region
        $region29: #{tpu_custom_call.1} parent=23 // pred_check
          %p208 = pneg %p66
        $region30: #{tpu_custom_call.1} parent=23 // pred_check_branch
          %210 = sbr.rel (%p208) target = $region32
        $region31: #{tpu_custom_call.1} parent=23 // pred_region
          %s211 = sand.u32 %s20, 1
          %s212 = scalar_lea.sflag [#allocation6], %s211
          %s213 = sand.u32 %s56, 1
          %s214 = smul.addr %s213, 64
          %s215 = scalar_lea.vmem [#allocation5], %s214
          %s216 = smul.u32 4, %s20
          %218 = vsyncadd %s212, 0
          %s219 = smul.addr %s216, 2
          %s220 = smul.addr %s219, 8
          %s221 = scalar_lea.hbm %s1, %s220
          %s222 = sshll.u32 %s221, 4
          %s223 = int_to_ptr.hbm [resolvable:$true] %s222
          %s224 = sshll.u32 %s215, 4
          %s225 = int_to_ptr.vmem [resolvable:$true] %s224
          %230 = dma.hbm_to_vmem [thread:$0]  %s223, 1024, %s225, %s212, 128, 128, 8
        $region32: #{tpu_custom_call.1} parent=23 // pred_fallthru
          _
      $region24: #{tpu_custom_call.1} parent=5 // pred_fallthru
        _
      %p231 = scmp.le.s32.totalorder 1, %s20
      %p232 = scmp.lt.s32.totalorder %s20, 3
      %p233 = pnand %p231, %p232
      %p234 = pneg %p233
      // Predicated region
      $region33: #{tpu_custom_call.1} parent=5 // pred_check
        _
      $region34: #{tpu_custom_call.1} parent=5 // pred_check_branch
        %236 = sbr.rel (%p233) target = $region36
      $region35: #{tpu_custom_call.1} parent=5 // pred_region
        %s237 = ssub.s32 %s20, 1
        %s238 = sand.u32 %s33, 1
        %s239 = scalar_lea.sflag [#allocation3], %s238
        %s240 = sand.u32 %s33, 1
        %s241 = smul.addr %s240, 64
        %s242 = scalar_lea.vmem [#allocation2], %s241
        // Predicated region
        $region37: #{tpu_custom_call.1} parent=35 // pred_check
          %p243 = pneg %p46
        $region38: #{tpu_custom_call.1} parent=35 // pred_check_branch
          %245 = sbr.rel (%p243) target = $region40
        $region39: #{tpu_custom_call.1} parent=35 // pred_region
          %247 = dma.done %s239, 1024
        $region40: #{tpu_custom_call.1} parent=35 // pred_fallthru
          _
        %s248 = sand.u32 %s25, 1
        %s249 = scalar_lea.sflag [#allocation6], %s248
        %s250 = sand.u32 %s59, 1
        %s251 = smul.addr %s250, 64
        %s252 = scalar_lea.vmem [#allocation5], %s251
        // Predicated region
        $region41: #{tpu_custom_call.1} parent=35 // pred_check
          %p253 = pneg %p72
        $region42: #{tpu_custom_call.1} parent=35 // pred_check_branch
          %255 = sbr.rel (%p253) target = $region44
        $region43: #{tpu_custom_call.1} parent=35 // pred_region
          %257 = dma.done %s249, 1024
        $region44: #{tpu_custom_call.1} parent=35 // pred_fallthru
          _
        // Predicated region
        $region45: #{tpu_custom_call.1} parent=35 // pred_check
          %p258 = pneg %p93
        $region46: #{tpu_custom_call.1} parent=35 // pred_check_branch
          %260 = sbr.rel (%p258) target = $region48
        $region47: #{tpu_custom_call.1} parent=35 // pred_region
          %262 = dma.done [#allocation6], 128
        $region48: #{tpu_custom_call.1} parent=35 // pred_fallthru
          _
        // Predicated region
        $region49: #{tpu_custom_call.1} parent=35 // pred_check
          %p263 = pneg %p114
        $region50: #{tpu_custom_call.1} parent=35 // pred_check_branch
          %265 = sbr.rel (%p263) target = $region52
        $region51: #{tpu_custom_call.1} parent=35 // pred_region
          %267 = dma.done [#allocation9], 2048
        $region52: #{tpu_custom_call.1} parent=35 // pred_fallthru
          _
        %s268 = sand.u32 %s33, 1
        %s269 = scalar_lea.sflag [#allocation3], %s268
        %s270 = sand.u32 %s33, 1
        %s271 = smul.addr %s270, 64
        %s272 = scalar_lea.vmem [#allocation2], %s271
        %p273 = pneg %p46
        %p274 = pneg %p43
        %s275 = sand.u32 %s25, 1
        %s276 = scalar_lea.sflag [#allocation6], %s275
        %s277 = sand.u32 %s59, 1
        %s278 = smul.addr %s277, 64
        %s279 = scalar_lea.vmem [#allocation5], %s278
        %p280 = pneg %p72
        %p281 = pneg %p69
        %p282 = pneg %p93
        %p283 = pneg %p90
        %p284 = pneg %p114
        %p285 = pneg %p111
        %p286 = pneg %p140
        %p287 = pneg %p137
        %s288 = sand.u32 %s127, 1
        %s289 = scalar_lea.sflag [#allocation4], %s288
        %s290 = sand.u32 %s127, 1
        %s291 = smul.addr %s290, 8
        %s292 = scalar_lea.vmem [#allocation10], %s291
        %s293 = smul.u32 4, %s25
        %s294 = smul.u32 4, %s25
        %v295 = vld [vmem:[#allocation8] sm:$0xff]
        %v296 = vld [vmem:[#allocation8 + $0x8] sm:$0xff]
        %v297 = vld [vmem:[#allocation8 + $0x10] sm:$0xff]
        %v298 = vld [vmem:[#allocation8 + $0x18] sm:$0xff]
        %v299 = vld [vmem:[#allocation8 + $0x20] sm:$0xff]
        %v300 = vld [vmem:[#allocation8 + $0x28] sm:$0xff]
        %v301 = vld [vmem:[#allocation8 + $0x30] sm:$0xff]
        %v302 = vld [vmem:[#allocation8 + $0x38] sm:$0xff]
        %v303 = vld [vmem:[#allocation8 + $0x40] sm:$0xff]
        %v304 = vld [vmem:[#allocation8 + $0x48] sm:$0xff]
        %v305 = vld [vmem:[#allocation8 + $0x50] sm:$0xff]
        %v306 = vld [vmem:[#allocation8 + $0x58] sm:$0xff]
        %v307 = vld [vmem:[#allocation8 + $0x60] sm:$0xff]
        %v308 = vld [vmem:[#allocation8 + $0x68] sm:$0xff]
        %v309 = vld [vmem:[#allocation8 + $0x70] sm:$0xff]
        %v310 = vld [vmem:[#allocation8 + $0x78] sm:$0xff]
        %v311 = vld [vmem:[#allocation7] sm:$0xff]
        %v312 = vld [vmem:[%s242] sm:$0xff]
        %v313 = vld [vmem:[%s242 + $0x8] sm:$0xff]
        %v314 = vld [vmem:[%s242 + $0x10] sm:$0xff]
        %v315 = vld [vmem:[%s242 + $0x18] sm:$0xff]
        %v316 = vld [vmem:[%s242 + $0x20] sm:$0xff]
        %v317 = vld [vmem:[%s242 + $0x28] sm:$0xff]
        %v318 = vld [vmem:[%s242 + $0x30] sm:$0xff]
        %v319 = vld [vmem:[%s242 + $0x38] sm:$0xff]
        %v320 = vld [vmem:[%s252] sm:$0xff]
        %v321 = vld [vmem:[%s252 + $0x8] sm:$0xff]
        %v322 = vld [vmem:[%s252 + $0x10] sm:$0xff]
        %v323 = vld [vmem:[%s252 + $0x18] sm:$0xff]
        %v324 = vld [vmem:[%s252 + $0x20] sm:$0xff]
        %v325 = vld [vmem:[%s252 + $0x28] sm:$0xff]
        %v326 = vld [vmem:[%s252 + $0x30] sm:$0xff]
        %v327 = vld [vmem:[%s252 + $0x38] sm:$0xff]
        %v328 = vand.u32 %v310, 4294901760
        %329 = vmatpush.msra.mxu0 %v328
        %v330 = vand.u32 %v309, 4294901760
        %331 = vmatpush.msra.mxu0 %v330
        %v332 = vand.u32 %v308, 4294901760
        %333 = vmatpush.msra.mxu0 %v332
        %v334 = vand.u32 %v307, 4294901760
        %335 = vmatpush.msra.mxu0 %v334
        %v336 = vand.u32 %v306, 4294901760
        %337 = vmatpush.msra.mxu0 %v336
        %v338 = vand.u32 %v305, 4294901760
        %339 = vmatpush.msra.mxu0 %v338
        %v340 = vand.u32 %v304, 4294901760
        %341 = vmatpush.msra.mxu0 %v340
        %v342 = vand.u32 %v303, 4294901760
        %343 = vmatpush.msra.mxu0 %v342
        %v344 = vand.u32 %v302, 4294901760
        %345 = vmatpush.msra.mxu0 %v344
        %v346 = vand.u32 %v301, 4294901760
        %347 = vmatpush.msra.mxu0 %v346
        %v348 = vand.u32 %v300, 4294901760
        %349 = vmatpush.msra.mxu0 %v348
        %v350 = vand.u32 %v299, 4294901760
        %351 = vmatpush.msra.mxu0 %v350
        %v352 = vand.u32 %v298, 4294901760
        %353 = vmatpush.msra.mxu0 %v352
        %v354 = vand.u32 %v297, 4294901760
        %355 = vmatpush.msra.mxu0 %v354
        %v356 = vand.u32 %v296, 4294901760
        %357 = vmatpush.msra.mxu0 %v356
        %v358 = vand.u32 %v295, 4294901760
        %359 = vmatpush.msra.mxu0 %v358
        %v360 = vand.u32 %v312, 4294901760
        %v361 = vsub.f32 %v312, %v360
        %v362 = vand.u32 %v361, 4294901760
        %v363 = vsub.f32 %v361, %v362
        %v364 = vand.u32 %v363, 4294901760
        %365 = vmatmul.f32.gmra.mxu0 %v364
        %v366 = vpop.f32.mrf.mxu0
        %v367 = vadd.f32 0.0, %v366
        %v368 = vand.u32 %v313, 4294901760
        %v369 = vsub.f32 %v313, %v368
        %v370 = vand.u32 %v369, 4294901760
        %v371 = vsub.f32 %v369, %v370
        %v372 = vand.u32 %v371, 4294901760
        %373 = vmatmul.f32.gmra.mxu0 %v372
        %v374 = vpop.f32.mrf.mxu0
        %v375 = vadd.f32 0.0, %v374
        %v376 = vand.u32 %v314, 4294901760
        %v377 = vsub.f32 %v314, %v376
        %v378 = vand.u32 %v377, 4294901760
        %v379 = vsub.f32 %v377, %v378
        %v380 = vand.u32 %v379, 4294901760
        %381 = vmatmul.f32.gmra.mxu0 %v380
        %v382 = vpop.f32.mrf.mxu0
        %v383 = vadd.f32 0.0, %v382
        %v384 = vand.u32 %v315, 4294901760
        %v385 = vsub.f32 %v315, %v384
        %v386 = vand.u32 %v385, 4294901760
        %v387 = vsub.f32 %v385, %v386
        %v388 = vand.u32 %v387, 4294901760
        %389 = vmatmul.f32.gmra.mxu0 %v388
        %v390 = vpop.f32.mrf.mxu0
        %v391 = vadd.f32 0.0, %v390
        %v392 = vand.u32 %v316, 4294901760
        %v393 = vsub.f32 %v316, %v392
        %v394 = vand.u32 %v393, 4294901760
        %v395 = vsub.f32 %v393, %v394
        %v396 = vand.u32 %v395, 4294901760
        %397 = vmatmul.f32.gmra.mxu0 %v396
        %v398 = vpop.f32.mrf.mxu0
        %v399 = vadd.f32 0.0, %v398
        %v400 = vand.u32 %v317, 4294901760
        %v401 = vsub.f32 %v317, %v400
        %v402 = vand.u32 %v401, 4294901760
        %v403 = vsub.f32 %v401, %v402
        %v404 = vand.u32 %v403, 4294901760
        %405 = vmatmul.f32.gmra.mxu0 %v404
        %v406 = vpop.f32.mrf.mxu0
        %v407 = vadd.f32 0.0, %v406
        %v408 = vand.u32 %v318, 4294901760
        %v409 = vsub.f32 %v318, %v408
        %v410 = vand.u32 %v409, 4294901760
        %v411 = vsub.f32 %v409, %v410
        %v412 = vand.u32 %v411, 4294901760
        %413 = vmatmul.f32.gmra.mxu0 %v412
        %v414 = vpop.f32.mrf.mxu0
        %v415 = vadd.f32 0.0, %v414
        %v416 = vand.u32 %v319, 4294901760
        %v417 = vsub.f32 %v319, %v416
        %v418 = vand.u32 %v417, 4294901760
        %v419 = vsub.f32 %v417, %v418
        %v420 = vand.u32 %v419, 4294901760
        %421 = vmatmul.f32.gmra.mxu0 %v420
        %v422 = vpop.f32.mrf.mxu0
        %v423 = vadd.f32 0.0, %v422
        %424 = vdwg.mxu0
        %v425 = vand.u32 %v310, 4294901760
        %v426 = vsub.f32 %v310, %v425
        %v427 = vand.u32 %v426, 4294901760
        %v428 = vsub.f32 %v426, %v427
        %v429 = vand.u32 %v428, 4294901760
        %430 = vmatpush.msra.mxu0 %v429
        %v431 = vand.u32 %v309, 4294901760
        %v432 = vsub.f32 %v309, %v431
        %v433 = vand.u32 %v432, 4294901760
        %v434 = vsub.f32 %v432, %v433
        %v435 = vand.u32 %v434, 4294901760
        %436 = vmatpush.msra.mxu0 %v435
        %v437 = vand.u32 %v308, 4294901760
        %v438 = vsub.f32 %v308, %v437
        %v439 = vand.u32 %v438, 4294901760
        %v440 = vsub.f32 %v438, %v439
        %v441 = vand.u32 %v440, 4294901760
        %442 = vmatpush.msra.mxu0 %v441
        %v443 = vand.u32 %v307, 4294901760
        %v444 = vsub.f32 %v307, %v443
        %v445 = vand.u32 %v444, 4294901760
        %v446 = vsub.f32 %v444, %v445
        %v447 = vand.u32 %v446, 4294901760
        %448 = vmatpush.msra.mxu0 %v447
        %v449 = vand.u32 %v306, 4294901760
        %v450 = vsub.f32 %v306, %v449
        %v451 = vand.u32 %v450, 4294901760
        %v452 = vsub.f32 %v450, %v451
        %v453 = vand.u32 %v452, 4294901760
        %454 = vmatpush.msra.mxu0 %v453
        %v455 = vand.u32 %v305, 4294901760
        %v456 = vsub.f32 %v305, %v455
        %v457 = vand.u32 %v456, 4294901760
        %v458 = vsub.f32 %v456, %v457
        %v459 = vand.u32 %v458, 4294901760
        %460 = vmatpush.msra.mxu0 %v459
        %v461 = vand.u32 %v304, 4294901760
        %v462 = vsub.f32 %v304, %v461
        %v463 = vand.u32 %v462, 4294901760
        %v464 = vsub.f32 %v462, %v463
        %v465 = vand.u32 %v464, 4294901760
        %466 = vmatpush.msra.mxu0 %v465
        %v467 = vand.u32 %v303, 4294901760
        %v468 = vsub.f32 %v303, %v467
        %v469 = vand.u32 %v468, 4294901760
        %v470 = vsub.f32 %v468, %v469
        %v471 = vand.u32 %v470, 4294901760
        %472 = vmatpush.msra.mxu0 %v471
        %v473 = vand.u32 %v302, 4294901760
        %v474 = vsub.f32 %v302, %v473
        %v475 = vand.u32 %v474, 4294901760
        %v476 = vsub.f32 %v474, %v475
        %v477 = vand.u32 %v476, 4294901760
        %478 = vmatpush.msra.mxu0 %v477
        %v479 = vand.u32 %v301, 4294901760
        %v480 = vsub.f32 %v301, %v479
        %v481 = vand.u32 %v480, 4294901760
        %v482 = vsub.f32 %v480, %v481
        %v483 = vand.u32 %v482, 4294901760
        %484 = vmatpush.msra.mxu0 %v483
        %v485 = vand.u32 %v300, 4294901760
        %v486 = vsub.f32 %v300, %v485
        %v487 = vand.u32 %v486, 4294901760
        %v488 = vsub.f32 %v486, %v487
        %v489 = vand.u32 %v488, 4294901760
        %490 = vmatpush.msra.mxu0 %v489
        %v491 = vand.u32 %v299, 4294901760
        %v492 = vsub.f32 %v299, %v491
        %v493 = vand.u32 %v492, 4294901760
        %v494 = vsub.f32 %v492, %v493
        %v495 = vand.u32 %v494, 4294901760
        %496 = vmatpush.msra.mxu0 %v495
        %v497 = vand.u32 %v298, 4294901760
        %v498 = vsub.f32 %v298, %v497
        %v499 = vand.u32 %v498, 4294901760
        %v500 = vsub.f32 %v498, %v499
        %v501 = vand.u32 %v500, 4294901760
        %502 = vmatpush.msra.mxu0 %v501
        %v503 = vand.u32 %v297, 4294901760
        %v504 = vsub.f32 %v297, %v503
        %v505 = vand.u32 %v504, 4294901760
        %v506 = vsub.f32 %v504, %v505
        %v507 = vand.u32 %v506, 4294901760
        %508 = vmatpush.msra.mxu0 %v507
        %v509 = vand.u32 %v296, 4294901760
        %v510 = vsub.f32 %v296, %v509
        %v511 = vand.u32 %v510, 4294901760
        %v512 = vsub.f32 %v510, %v511
        %v513 = vand.u32 %v512, 4294901760
        %514 = vmatpush.msra.mxu0 %v513
        %v515 = vand.u32 %v295, 4294901760
        %v516 = vsub.f32 %v295, %v515
        %v517 = vand.u32 %v516, 4294901760
        %v518 = vsub.f32 %v516, %v517
        %v519 = vand.u32 %v518, 4294901760
        %520 = vmatpush.msra.mxu0 %v519
        %v521 = vand.u32 %v312, 4294901760
        %522 = vmatmul.f32.gmra.mxu0 %v521
        %v523 = vpop.f32.mrf.mxu0
        %v524 = vadd.f32 %v367, %v523
        %v525 = vand.u32 %v313, 4294901760
        %526 = vmatmul.f32.gmra.mxu0 %v525
        %v527 = vpop.f32.mrf.mxu0
        %v528 = vadd.f32 %v375, %v527
        %v529 = vand.u32 %v314, 4294901760
        %530 = vmatmul.f32.gmra.mxu0 %v529
        %v531 = vpop.f32.mrf.mxu0
        %v532 = vadd.f32 %v383, %v531
        %v533 = vand.u32 %v315, 4294901760
        %534 = vmatmul.f32.gmra.mxu0 %v533
        %v535 = vpop.f32.mrf.mxu0
        %v536 = vadd.f32 %v391, %v535
        %v537 = vand.u32 %v316, 4294901760
        %538 = vmatmul.f32.gmra.mxu0 %v537
        %v539 = vpop.f32.mrf.mxu0
        %v540 = vadd.f32 %v399, %v539
        %v541 = vand.u32 %v317, 4294901760
        %542 = vmatmul.f32.gmra.mxu0 %v541
        %v543 = vpop.f32.mrf.mxu0
        %v544 = vadd.f32 %v407, %v543
        %v545 = vand.u32 %v318, 4294901760
        %546 = vmatmul.f32.gmra.mxu0 %v545
        %v547 = vpop.f32.mrf.mxu0
        %v548 = vadd.f32 %v415, %v547
        %v549 = vand.u32 %v319, 4294901760
        %550 = vmatmul.f32.gmra.mxu0 %v549
        %v551 = vpop.f32.mrf.mxu0
        %v552 = vadd.f32 %v423, %v551
        %553 = vdwg.mxu0
        %v554 = vand.u32 %v310, 4294901760
        %v555 = vsub.f32 %v310, %v554
        %556 = vmatpush.msra.mxu0 %v555
        %v557 = vand.u32 %v309, 4294901760
        %v558 = vsub.f32 %v309, %v557
        %559 = vmatpush.msra.mxu0 %v558
        %v560 = vand.u32 %v308, 4294901760
        %v561 = vsub.f32 %v308, %v560
        %562 = vmatpush.msra.mxu0 %v561
        %v563 = vand.u32 %v307, 4294901760
        %v564 = vsub.f32 %v307, %v563
        %565 = vmatpush.msra.mxu0 %v564
        %v566 = vand.u32 %v306, 4294901760
        %v567 = vsub.f32 %v306, %v566
        %568 = vmatpush.msra.mxu0 %v567
        %v569 = vand.u32 %v305, 4294901760
        %v570 = vsub.f32 %v305, %v569
        %571 = vmatpush.msra.mxu0 %v570
        %v572 = vand.u32 %v304, 4294901760
        %v573 = vsub.f32 %v304, %v572
        %574 = vmatpush.msra.mxu0 %v573
        %v575 = vand.u32 %v303, 4294901760
        %v576 = vsub.f32 %v303, %v575
        %577 = vmatpush.msra.mxu0 %v576
        %v578 = vand.u32 %v302, 4294901760
        %v579 = vsub.f32 %v302, %v578
        %580 = vmatpush.msra.mxu0 %v579
        %v581 = vand.u32 %v301, 4294901760
        %v582 = vsub.f32 %v301, %v581
        %583 = vmatpush.msra.mxu0 %v582
        %v584 = vand.u32 %v300, 4294901760
        %v585 = vsub.f32 %v300, %v584
        %586 = vmatpush.msra.mxu0 %v585
        %v587 = vand.u32 %v299, 4294901760
        %v588 = vsub.f32 %v299, %v587
        %589 = vmatpush.msra.mxu0 %v588
        %v590 = vand.u32 %v298, 4294901760
        %v591 = vsub.f32 %v298, %v590
        %592 = vmatpush.msra.mxu0 %v591
        %v593 = vand.u32 %v297, 4294901760
        %v594 = vsub.f32 %v297, %v593
        %595 = vmatpush.msra.mxu0 %v594
        %v596 = vand.u32 %v296, 4294901760
        %v597 = vsub.f32 %v296, %v596
        %598 = vmatpush.msra.mxu0 %v597
        %v599 = vand.u32 %v295, 4294901760
        %v600 = vsub.f32 %v295, %v599
        %601 = vmatpush.msra.mxu0 %v600
        %v602 = vand.u32 %v312, 4294901760
        %v603 = vsub.f32 %v312, %v602
        %604 = vmatmul.f32.gmra.mxu0 %v603
        %v605 = vpop.f32.mrf.mxu0
        %v606 = vadd.f32 %v524, %v605
        %v607 = vand.u32 %v313, 4294901760
        %v608 = vsub.f32 %v313, %v607
        %609 = vmatmul.f32.gmra.mxu0 %v608
        %v610 = vpop.f32.mrf.mxu0
        %v611 = vadd.f32 %v528, %v610
        %v612 = vand.u32 %v314, 4294901760
        %v613 = vsub.f32 %v314, %v612
        %614 = vmatmul.f32.gmra.mxu0 %v613
        %v615 = vpop.f32.mrf.mxu0
        %v616 = vadd.f32 %v532, %v615
        %v617 = vand.u32 %v315, 4294901760
        %v618 = vsub.f32 %v315, %v617
        %619 = vmatmul.f32.gmra.mxu0 %v618
        %v620 = vpop.f32.mrf.mxu0
        %v621 = vadd.f32 %v536, %v620
        %v622 = vand.u32 %v316, 4294901760
        %v623 = vsub.f32 %v316, %v622
        %624 = vmatmul.f32.gmra.mxu0 %v623
        %v625 = vpop.f32.mrf.mxu0
        %v626 = vadd.f32 %v540, %v625
        %v627 = vand.u32 %v317, 4294901760
        %v628 = vsub.f32 %v317, %v627
        %629 = vmatmul.f32.gmra.mxu0 %v628
        %v630 = vpop.f32.mrf.mxu0
        %v631 = vadd.f32 %v544, %v630
        %v632 = vand.u32 %v318, 4294901760
        %v633 = vsub.f32 %v318, %v632
        %634 = vmatmul.f32.gmra.mxu0 %v633
        %v635 = vpop.f32.mrf.mxu0
        %v636 = vadd.f32 %v548, %v635
        %v637 = vand.u32 %v319, 4294901760
        %v638 = vsub.f32 %v319, %v637
        %639 = vmatmul.f32.gmra.mxu0 %v638
        %v640 = vpop.f32.mrf.mxu0
        %v641 = vadd.f32 %v552, %v640
        %642 = vdwg.mxu0
        %v643 = vand.u32 %v310, 4294901760
        %644 = vmatpush.msra.mxu0 %v643
        %v645 = vand.u32 %v309, 4294901760
        %646 = vmatpush.msra.mxu0 %v645
        %v647 = vand.u32 %v308, 4294901760
        %648 = vmatpush.msra.mxu0 %v647
        %v649 = vand.u32 %v307, 4294901760
        %650 = vmatpush.msra.mxu0 %v649
        %v651 = vand.u32 %v306, 4294901760
        %652 = vmatpush.msra.mxu0 %v651
        %v653 = vand.u32 %v305, 4294901760
        %654 = vmatpush.msra.mxu0 %v653
        %v655 = vand.u32 %v304, 4294901760
        %656 = vmatpush.msra.mxu0 %v655
        %v657 = vand.u32 %v303, 4294901760
        %658 = vmatpush.msra.mxu0 %v657
        %v659 = vand.u32 %v302, 4294901760
        %660 = vmatpush.msra.mxu0 %v659
        %v661 = vand.u32 %v301, 4294901760
        %662 = vmatpush.msra.mxu0 %v661
        %v663 = vand.u32 %v300, 4294901760
        %664 = vmatpush.msra.mxu0 %v663
        %v665 = vand.u32 %v299, 4294901760
        %666 = vmatpush.msra.mxu0 %v665
        %v667 = vand.u32 %v298, 4294901760
        %668 = vmatpush.msra.mxu0 %v667
        %v669 = vand.u32 %v297, 4294901760
        %670 = vmatpush.msra.mxu0 %v669
        %v671 = vand.u32 %v296, 4294901760
        %672 = vmatpush.msra.mxu0 %v671
        %v673 = vand.u32 %v295, 4294901760
        %674 = vmatpush.msra.mxu0 %v673
        %v675 = vand.u32 %v312, 4294901760
        %v676 = vsub.f32 %v312, %v675
        %v677 = vand.u32 %v676, 4294901760
        %678 = vmatmul.f32.gmra.mxu0 %v677
        %v679 = vpop.f32.mrf.mxu0
        %v680 = vadd.f32 %v606, %v679
        %v681 = vand.u32 %v313, 4294901760
        %v682 = vsub.f32 %v313, %v681
        %v683 = vand.u32 %v682, 4294901760
        %684 = vmatmul.f32.gmra.mxu0 %v683
        %v685 = vpop.f32.mrf.mxu0
        %v686 = vadd.f32 %v611, %v685
        %v687 = vand.u32 %v314, 4294901760
        %v688 = vsub.f32 %v314, %v687
        %v689 = vand.u32 %v688, 4294901760
        %690 = vmatmul.f32.gmra.mxu0 %v689
        %v691 = vpop.f32.mrf.mxu0
        %v692 = vadd.f32 %v616, %v691
        %v693 = vand.u32 %v315, 4294901760
        %v694 = vsub.f32 %v315, %v693
        %v695 = vand.u32 %v694, 4294901760
        %696 = vmatmul.f32.gmra.mxu0 %v695
        %v697 = vpop.f32.mrf.mxu0
        %v698 = vadd.f32 %v621, %v697
        %v699 = vand.u32 %v316, 4294901760
        %v700 = vsub.f32 %v316, %v699
        %v701 = vand.u32 %v700, 4294901760
        %702 = vmatmul.f32.gmra.mxu0 %v701
        %v703 = vpop.f32.mrf.mxu0
        %v704 = vadd.f32 %v626, %v703
        %v705 = vand.u32 %v317, 4294901760
        %v706 = vsub.f32 %v317, %v705
        %v707 = vand.u32 %v706, 4294901760
        %708 = vmatmul.f32.gmra.mxu0 %v707
        %v709 = vpop.f32.mrf.mxu0
        %v710 = vadd.f32 %v631, %v709
        %v711 = vand.u32 %v318, 4294901760
        %v712 = vsub.f32 %v318, %v711
        %v713 = vand.u32 %v712, 4294901760
        %714 = vmatmul.f32.gmra.mxu0 %v713
        %v715 = vpop.f32.mrf.mxu0
        %v716 = vadd.f32 %v636, %v715
        %v717 = vand.u32 %v319, 4294901760
        %v718 = vsub.f32 %v319, %v717
        %v719 = vand.u32 %v718, 4294901760
        %720 = vmatmul.f32.gmra.mxu0 %v719
        %v721 = vpop.f32.mrf.mxu0
        %v722 = vadd.f32 %v641, %v721
        %723 = vdwg.mxu0
        %v724 = vand.u32 %v310, 4294901760
        %v725 = vsub.f32 %v310, %v724
        %v726 = vand.u32 %v725, 4294901760
        %727 = vmatpush.msra.mxu0 %v726
        %v728 = vand.u32 %v309, 4294901760
        %v729 = vsub.f32 %v309, %v728
        %v730 = vand.u32 %v729, 4294901760
        %731 = vmatpush.msra.mxu0 %v730
        %v732 = vand.u32 %v308, 4294901760
        %v733 = vsub.f32 %v308, %v732
        %v734 = vand.u32 %v733, 4294901760
        %735 = vmatpush.msra.mxu0 %v734
        %v736 = vand.u32 %v307, 4294901760
        %v737 = vsub.f32 %v307, %v736
        %v738 = vand.u32 %v737, 4294901760
        %739 = vmatpush.msra.mxu0 %v738
        %v740 = vand.u32 %v306, 4294901760
        %v741 = vsub.f32 %v306, %v740
        %v742 = vand.u32 %v741, 4294901760
        %743 = vmatpush.msra.mxu0 %v742
        %v744 = vand.u32 %v305, 4294901760
        %v745 = vsub.f32 %v305, %v744
        %v746 = vand.u32 %v745, 4294901760
        %747 = vmatpush.msra.mxu0 %v746
        %v748 = vand.u32 %v304, 4294901760
        %v749 = vsub.f32 %v304, %v748
        %v750 = vand.u32 %v749, 4294901760
        %751 = vmatpush.msra.mxu0 %v750
        %v752 = vand.u32 %v303, 4294901760
        %v753 = vsub.f32 %v303, %v752
        %v754 = vand.u32 %v753, 4294901760
        %755 = vmatpush.msra.mxu0 %v754
        %v756 = vand.u32 %v302, 4294901760
        %v757 = vsub.f32 %v302, %v756
        %v758 = vand.u32 %v757, 4294901760
        %759 = vmatpush.msra.mxu0 %v758
        %v760 = vand.u32 %v301, 4294901760
        %v761 = vsub.f32 %v301, %v760
        %v762 = vand.u32 %v761, 4294901760
        %763 = vmatpush.msra.mxu0 %v762
        %v764 = vand.u32 %v300, 4294901760
        %v765 = vsub.f32 %v300, %v764
        %v766 = vand.u32 %v765, 4294901760
        %767 = vmatpush.msra.mxu0 %v766
        %v768 = vand.u32 %v299, 4294901760
        %v769 = vsub.f32 %v299, %v768
        %v770 = vand.u32 %v769, 4294901760
        %771 = vmatpush.msra.mxu0 %v770
        %v772 = vand.u32 %v298, 4294901760
        %v773 = vsub.f32 %v298, %v772
        %v774 = vand.u32 %v773, 4294901760
        %775 = vmatpush.msra.mxu0 %v774
        %v776 = vand.u32 %v297, 4294901760
        %v777 = vsub.f32 %v297, %v776
        %v778 = vand.u32 %v777, 4294901760
        %779 = vmatpush.msra.mxu0 %v778
        %v780 = vand.u32 %v296, 4294901760
        %v781 = vsub.f32 %v296, %v780
        %v782 = vand.u32 %v781, 4294901760
        %783 = vmatpush.msra.mxu0 %v782
        %v784 = vand.u32 %v295, 4294901760
        %v785 = vsub.f32 %v295, %v784
        %v786 = vand.u32 %v785, 4294901760
        %787 = vmatpush.msra.mxu0 %v786
        %v788 = vand.u32 %v312, 4294901760
        %789 = vmatmul.f32.gmra.mxu0 %v788
        %v790 = vpop.f32.mrf.mxu0
        %v791 = vadd.f32 %v680, %v790
        %v792 = vand.u32 %v313, 4294901760
        %793 = vmatmul.f32.gmra.mxu0 %v792
        %v794 = vpop.f32.mrf.mxu0
        %v795 = vadd.f32 %v686, %v794
        %v796 = vand.u32 %v314, 4294901760
        %797 = vmatmul.f32.gmra.mxu0 %v796
        %v798 = vpop.f32.mrf.mxu0
        %v799 = vadd.f32 %v692, %v798
        %v800 = vand.u32 %v315, 4294901760
        %801 = vmatmul.f32.gmra.mxu0 %v800
        %v802 = vpop.f32.mrf.mxu0
        %v803 = vadd.f32 %v698, %v802
        %v804 = vand.u32 %v316, 4294901760
        %805 = vmatmul.f32.gmra.mxu0 %v804
        %v806 = vpop.f32.mrf.mxu0
        %v807 = vadd.f32 %v704, %v806
        %v808 = vand.u32 %v317, 4294901760
        %809 = vmatmul.f32.gmra.mxu0 %v808
        %v810 = vpop.f32.mrf.mxu0
        %v811 = vadd.f32 %v710, %v810
        %v812 = vand.u32 %v318, 4294901760
        %813 = vmatmul.f32.gmra.mxu0 %v812
        %v814 = vpop.f32.mrf.mxu0
        %v815 = vadd.f32 %v716, %v814
        %v816 = vand.u32 %v319, 4294901760
        %817 = vmatmul.f32.gmra.mxu0 %v816
        %v818 = vpop.f32.mrf.mxu0
        %v819 = vadd.f32 %v722, %v818
        %820 = vdwg.mxu0
        %v821 = vand.u32 %v310, 4294901760
        %822 = vmatpush.msra.mxu0 %v821
        %v823 = vand.u32 %v309, 4294901760
        %824 = vmatpush.msra.mxu0 %v823
        %v825 = vand.u32 %v308, 4294901760
        %826 = vmatpush.msra.mxu0 %v825
        %v827 = vand.u32 %v307, 4294901760
        %828 = vmatpush.msra.mxu0 %v827
        %v829 = vand.u32 %v306, 4294901760
        %830 = vmatpush.msra.mxu0 %v829
        %v831 = vand.u32 %v305, 4294901760
        %832 = vmatpush.msra.mxu0 %v831
        %v833 = vand.u32 %v304, 4294901760
        %834 = vmatpush.msra.mxu0 %v833
        %v835 = vand.u32 %v303, 4294901760
        %836 = vmatpush.msra.mxu0 %v835
        %v837 = vand.u32 %v302, 4294901760
        %838 = vmatpush.msra.mxu0 %v837
        %v839 = vand.u32 %v301, 4294901760
        %840 = vmatpush.msra.mxu0 %v839
        %v841 = vand.u32 %v300, 4294901760
        %842 = vmatpush.msra.mxu0 %v841
        %v843 = vand.u32 %v299, 4294901760
        %844 = vmatpush.msra.mxu0 %v843
        %v845 = vand.u32 %v298, 4294901760
        %846 = vmatpush.msra.mxu0 %v845
        %v847 = vand.u32 %v297, 4294901760
        %848 = vmatpush.msra.mxu0 %v847
        %v849 = vand.u32 %v296, 4294901760
        %850 = vmatpush.msra.mxu0 %v849
        %v851 = vand.u32 %v295, 4294901760
        %852 = vmatpush.msra.mxu0 %v851
        %v853 = vand.u32 %v312, 4294901760
        %854 = vmatmul.f32.gmra.mxu0 %v853
        %v855 = vpop.f32.mrf.mxu0
        %v856 = vadd.f32 %v791, %v855
        %v857 = vand.u32 %v313, 4294901760
        %858 = vmatmul.f32.gmra.mxu0 %v857
        %v859 = vpop.f32.mrf.mxu0
        %v860 = vadd.f32 %v795, %v859
        %v861 = vand.u32 %v314, 4294901760
        %862 = vmatmul.f32.gmra.mxu0 %v861
        %v863 = vpop.f32.mrf.mxu0
        %v864 = vadd.f32 %v799, %v863
        %v865 = vand.u32 %v315, 4294901760
        %866 = vmatmul.f32.gmra.mxu0 %v865
        %v867 = vpop.f32.mrf.mxu0
        %v868 = vadd.f32 %v803, %v867
        %v869 = vand.u32 %v316, 4294901760
        %870 = vmatmul.f32.gmra.mxu0 %v869
        %v871 = vpop.f32.mrf.mxu0
        %v872 = vadd.f32 %v807, %v871
        %v873 = vand.u32 %v317, 4294901760
        %874 = vmatmul.f32.gmra.mxu0 %v873
        %v875 = vpop.f32.mrf.mxu0
        %v876 = vadd.f32 %v811, %v875
        %v877 = vand.u32 %v318, 4294901760
        %878 = vmatmul.f32.gmra.mxu0 %v877
        %v879 = vpop.f32.mrf.mxu0
        %v880 = vadd.f32 %v815, %v879
        %v881 = vand.u32 %v319, 4294901760
        %882 = vmatmul.f32.gmra.mxu0 %v881
        %v883 = vpop.f32.mrf.mxu0
        %v884 = vadd.f32 %v819, %v883
        %885 = vdwg.mxu0
        %v886 = vand.u32 %v310, 4294901760
        %887 = vmatpush.msra.mxu0 %v886
        %v888 = vand.u32 %v309, 4294901760
        %889 = vmatpush.msra.mxu0 %v888
        %v890 = vand.u32 %v308, 4294901760
        %891 = vmatpush.msra.mxu0 %v890
        %v892 = vand.u32 %v307, 4294901760
        %893 = vmatpush.msra.mxu0 %v892
        %v894 = vand.u32 %v306, 4294901760
        %895 = vmatpush.msra.mxu0 %v894
        %v896 = vand.u32 %v305, 4294901760
        %897 = vmatpush.msra.mxu0 %v896
        %v898 = vand.u32 %v304, 4294901760
        %899 = vmatpush.msra.mxu0 %v898
        %v900 = vand.u32 %v303, 4294901760
        %901 = vmatpush.msra.mxu0 %v900
        %v902 = vand.u32 %v302, 4294901760
        %903 = vmatpush.msra.mxu0 %v902
        %v904 = vand.u32 %v301, 4294901760
        %905 = vmatpush.msra.mxu0 %v904
        %v906 = vand.u32 %v300, 4294901760
        %907 = vmatpush.msra.mxu0 %v906
        %v908 = vand.u32 %v299, 4294901760
        %909 = vmatpush.msra.mxu0 %v908
        %v910 = vand.u32 %v298, 4294901760
        %911 = vmatpush.msra.mxu0 %v910
        %v912 = vand.u32 %v297, 4294901760
        %913 = vmatpush.msra.mxu0 %v912
        %v914 = vand.u32 %v296, 4294901760
        %915 = vmatpush.msra.mxu0 %v914
        %v916 = vand.u32 %v295, 4294901760
        %917 = vmatpush.msra.mxu0 %v916
        %v918 = vand.u32 %v320, 4294901760
        %v919 = vsub.f32 %v320, %v918
        %v920 = vand.u32 %v919, 4294901760
        %v921 = vsub.f32 %v919, %v920
        %v922 = vand.u32 %v921, 4294901760
        %923 = vmatmul.f32.gmra.mxu0 %v922
        %v924 = vpop.f32.mrf.mxu0
        %v925 = vadd.f32 0.0, %v924
        %v926 = vand.u32 %v321, 4294901760
        %v927 = vsub.f32 %v321, %v926
        %v928 = vand.u32 %v927, 4294901760
        %v929 = vsub.f32 %v927, %v928
        %v930 = vand.u32 %v929, 4294901760
        %931 = vmatmul.f32.gmra.mxu0 %v930
        %v932 = vpop.f32.mrf.mxu0
        %v933 = vadd.f32 0.0, %v932
        %v934 = vand.u32 %v322, 4294901760
        %v935 = vsub.f32 %v322, %v934
        %v936 = vand.u32 %v935, 4294901760
        %v937 = vsub.f32 %v935, %v936
        %v938 = vand.u32 %v937, 4294901760
        %939 = vmatmul.f32.gmra.mxu0 %v938
        %v940 = vpop.f32.mrf.mxu0
        %v941 = vadd.f32 0.0, %v940
        %v942 = vand.u32 %v323, 4294901760
        %v943 = vsub.f32 %v323, %v942
        %v944 = vand.u32 %v943, 4294901760
        %v945 = vsub.f32 %v943, %v944
        %v946 = vand.u32 %v945, 4294901760
        %947 = vmatmul.f32.gmra.mxu0 %v946
        %v948 = vpop.f32.mrf.mxu0
        %v949 = vadd.f32 0.0, %v948
        %v950 = vand.u32 %v324, 4294901760
        %v951 = vsub.f32 %v324, %v950
        %v952 = vand.u32 %v951, 4294901760
        %v953 = vsub.f32 %v951, %v952
        %v954 = vand.u32 %v953, 4294901760
        %955 = vmatmul.f32.gmra.mxu0 %v954
        %v956 = vpop.f32.mrf.mxu0
        %v957 = vadd.f32 0.0, %v956
        %v958 = vand.u32 %v325, 4294901760
        %v959 = vsub.f32 %v325, %v958
        %v960 = vand.u32 %v959, 4294901760
        %v961 = vsub.f32 %v959, %v960
        %v962 = vand.u32 %v961, 4294901760
        %963 = vmatmul.f32.gmra.mxu0 %v962
        %v964 = vpop.f32.mrf.mxu0
        %v965 = vadd.f32 0.0, %v964
        %v966 = vand.u32 %v326, 4294901760
        %v967 = vsub.f32 %v326, %v966
        %v968 = vand.u32 %v967, 4294901760
        %v969 = vsub.f32 %v967, %v968
        %v970 = vand.u32 %v969, 4294901760
        %971 = vmatmul.f32.gmra.mxu0 %v970
        %v972 = vpop.f32.mrf.mxu0
        %v973 = vadd.f32 0.0, %v972
        %v974 = vand.u32 %v327, 4294901760
        %v975 = vsub.f32 %v327, %v974
        %v976 = vand.u32 %v975, 4294901760
        %v977 = vsub.f32 %v975, %v976
        %v978 = vand.u32 %v977, 4294901760
        %979 = vmatmul.f32.gmra.mxu0 %v978
        %v980 = vpop.f32.mrf.mxu0
        %v981 = vadd.f32 0.0, %v980
        %982 = vdwg.mxu0
        %v983 = vand.u32 %v310, 4294901760
        %v984 = vsub.f32 %v310, %v983
        %v985 = vand.u32 %v984, 4294901760
        %v986 = vsub.f32 %v984, %v985
        %v987 = vand.u32 %v986, 4294901760
        %988 = vmatpush.msra.mxu0 %v987
        %v989 = vand.u32 %v309, 4294901760
        %v990 = vsub.f32 %v309, %v989
        %v991 = vand.u32 %v990, 4294901760
        %v992 = vsub.f32 %v990, %v991
        %v993 = vand.u32 %v992, 4294901760
        %994 = vmatpush.msra.mxu0 %v993
        %v995 = vand.u32 %v308, 4294901760
        %v996 = vsub.f32 %v308, %v995
        %v997 = vand.u32 %v996, 4294901760
        %v998 = vsub.f32 %v996, %v997
        %v999 = vand.u32 %v998, 4294901760
        %1000 = vmatpush.msra.mxu0 %v999
        %v1001 = vand.u32 %v307, 4294901760
        %v1002 = vsub.f32 %v307, %v1001
        %v1003 = vand.u32 %v1002, 4294901760
        %v1004 = vsub.f32 %v1002, %v1003
        %v1005 = vand.u32 %v1004, 4294901760
        %1006 = vmatpush.msra.mxu0 %v1005
        %v1007 = vand.u32 %v306, 4294901760
        %v1008 = vsub.f32 %v306, %v1007
        %v1009 = vand.u32 %v1008, 4294901760
        %v1010 = vsub.f32 %v1008, %v1009
        %v1011 = vand.u32 %v1010, 4294901760
        %1012 = vmatpush.msra.mxu0 %v1011
        %v1013 = vand.u32 %v305, 4294901760
        %v1014 = vsub.f32 %v305, %v1013
        %v1015 = vand.u32 %v1014, 4294901760
        %v1016 = vsub.f32 %v1014, %v1015
        %v1017 = vand.u32 %v1016, 4294901760
        %1018 = vmatpush.msra.mxu0 %v1017
        %v1019 = vand.u32 %v304, 4294901760
        %v1020 = vsub.f32 %v304, %v1019
        %v1021 = vand.u32 %v1020, 4294901760
        %v1022 = vsub.f32 %v1020, %v1021
        %v1023 = vand.u32 %v1022, 4294901760
        %1024 = vmatpush.msra.mxu0 %v1023
        %v1025 = vand.u32 %v303, 4294901760
        %v1026 = vsub.f32 %v303, %v1025
        %v1027 = vand.u32 %v1026, 4294901760
        %v1028 = vsub.f32 %v1026, %v1027
        %v1029 = vand.u32 %v1028, 4294901760
        %1030 = vmatpush.msra.mxu0 %v1029
        %v1031 = vand.u32 %v302, 4294901760
        %v1032 = vsub.f32 %v302, %v1031
        %v1033 = vand.u32 %v1032, 4294901760
        %v1034 = vsub.f32 %v1032, %v1033
        %v1035 = vand.u32 %v1034, 4294901760
        %1036 = vmatpush.msra.mxu0 %v1035
        %v1037 = vand.u32 %v301, 4294901760
        %v1038 = vsub.f32 %v301, %v1037
        %v1039 = vand.u32 %v1038, 4294901760
        %v1040 = vsub.f32 %v1038, %v1039
        %v1041 = vand.u32 %v1040, 4294901760
        %1042 = vmatpush.msra.mxu0 %v1041
        %v1043 = vand.u32 %v300, 4294901760
        %v1044 = vsub.f32 %v300, %v1043
        %v1045 = vand.u32 %v1044, 4294901760
        %v1046 = vsub.f32 %v1044, %v1045
        %v1047 = vand.u32 %v1046, 4294901760
        %1048 = vmatpush.msra.mxu0 %v1047
        %v1049 = vand.u32 %v299, 4294901760
        %v1050 = vsub.f32 %v299, %v1049
        %v1051 = vand.u32 %v1050, 4294901760
        %v1052 = vsub.f32 %v1050, %v1051
        %v1053 = vand.u32 %v1052, 4294901760
        %1054 = vmatpush.msra.mxu0 %v1053
        %v1055 = vand.u32 %v298, 4294901760
        %v1056 = vsub.f32 %v298, %v1055
        %v1057 = vand.u32 %v1056, 4294901760
        %v1058 = vsub.f32 %v1056, %v1057
        %v1059 = vand.u32 %v1058, 4294901760
        %1060 = vmatpush.msra.mxu0 %v1059
        %v1061 = vand.u32 %v297, 4294901760
        %v1062 = vsub.f32 %v297, %v1061
        %v1063 = vand.u32 %v1062, 4294901760
        %v1064 = vsub.f32 %v1062, %v1063
        %v1065 = vand.u32 %v1064, 4294901760
        %1066 = vmatpush.msra.mxu0 %v1065
        %v1067 = vand.u32 %v296, 4294901760
        %v1068 = vsub.f32 %v296, %v1067
        %v1069 = vand.u32 %v1068, 4294901760
        %v1070 = vsub.f32 %v1068, %v1069
        %v1071 = vand.u32 %v1070, 4294901760
        %1072 = vmatpush.msra.mxu0 %v1071
        %v1073 = vand.u32 %v295, 4294901760
        %v1074 = vsub.f32 %v295, %v1073
        %v1075 = vand.u32 %v1074, 4294901760
        %v1076 = vsub.f32 %v1074, %v1075
        %v1077 = vand.u32 %v1076, 4294901760
        %1078 = vmatpush.msra.mxu0 %v1077
        %v1079 = vand.u32 %v320, 4294901760
        %1080 = vmatmul.f32.gmra.mxu0 %v1079
        %v1081 = vpop.f32.mrf.mxu0
        %v1082 = vadd.f32 %v925, %v1081
        %v1083 = vand.u32 %v321, 4294901760
        %1084 = vmatmul.f32.gmra.mxu0 %v1083
        %v1085 = vpop.f32.mrf.mxu0
        %v1086 = vadd.f32 %v933, %v1085
        %v1087 = vand.u32 %v322, 4294901760
        %1088 = vmatmul.f32.gmra.mxu0 %v1087
        %v1089 = vpop.f32.mrf.mxu0
        %v1090 = vadd.f32 %v941, %v1089
        %v1091 = vand.u32 %v323, 4294901760
        %1092 = vmatmul.f32.gmra.mxu0 %v1091
        %v1093 = vpop.f32.mrf.mxu0
        %v1094 = vadd.f32 %v949, %v1093
        %v1095 = vand.u32 %v324, 4294901760
        %1096 = vmatmul.f32.gmra.mxu0 %v1095
        %v1097 = vpop.f32.mrf.mxu0
        %v1098 = vadd.f32 %v957, %v1097
        %v1099 = vand.u32 %v325, 4294901760
        %1100 = vmatmul.f32.gmra.mxu0 %v1099
        %v1101 = vpop.f32.mrf.mxu0
        %v1102 = vadd.f32 %v965, %v1101
        %v1103 = vand.u32 %v326, 4294901760
        %1104 = vmatmul.f32.gmra.mxu0 %v1103
        %v1105 = vpop.f32.mrf.mxu0
        %v1106 = vadd.f32 %v973, %v1105
        %v1107 = vand.u32 %v327, 4294901760
        %1108 = vmatmul.f32.gmra.mxu0 %v1107
        %v1109 = vpop.f32.mrf.mxu0
        %v1110 = vadd.f32 %v981, %v1109
        %1111 = vdwg.mxu0
        %v1112 = vand.u32 %v310, 4294901760
        %v1113 = vsub.f32 %v310, %v1112
        %1114 = vmatpush.msra.mxu0 %v1113
        %v1115 = vand.u32 %v309, 4294901760
        %v1116 = vsub.f32 %v309, %v1115
        %1117 = vmatpush.msra.mxu0 %v1116
        %v1118 = vand.u32 %v308, 4294901760
        %v1119 = vsub.f32 %v308, %v1118
        %1120 = vmatpush.msra.mxu0 %v1119
        %v1121 = vand.u32 %v307, 4294901760
        %v1122 = vsub.f32 %v307, %v1121
        %1123 = vmatpush.msra.mxu0 %v1122
        %v1124 = vand.u32 %v306, 4294901760
        %v1125 = vsub.f32 %v306, %v1124
        %1126 = vmatpush.msra.mxu0 %v1125
        %v1127 = vand.u32 %v305, 4294901760
        %v1128 = vsub.f32 %v305, %v1127
        %1129 = vmatpush.msra.mxu0 %v1128
        %v1130 = vand.u32 %v304, 4294901760
        %v1131 = vsub.f32 %v304, %v1130
        %1132 = vmatpush.msra.mxu0 %v1131
        %v1133 = vand.u32 %v303, 4294901760
        %v1134 = vsub.f32 %v303, %v1133
        %1135 = vmatpush.msra.mxu0 %v1134
        %v1136 = vand.u32 %v302, 4294901760
        %v1137 = vsub.f32 %v302, %v1136
        %1138 = vmatpush.msra.mxu0 %v1137
        %v1139 = vand.u32 %v301, 4294901760
        %v1140 = vsub.f32 %v301, %v1139
        %1141 = vmatpush.msra.mxu0 %v1140
        %v1142 = vand.u32 %v300, 4294901760
        %v1143 = vsub.f32 %v300, %v1142
        %1144 = vmatpush.msra.mxu0 %v1143
        %v1145 = vand.u32 %v299, 4294901760
        %v1146 = vsub.f32 %v299, %v1145
        %1147 = vmatpush.msra.mxu0 %v1146
        %v1148 = vand.u32 %v298, 4294901760
        %v1149 = vsub.f32 %v298, %v1148
        %1150 = vmatpush.msra.mxu0 %v1149
        %v1151 = vand.u32 %v297, 4294901760
        %v1152 = vsub.f32 %v297, %v1151
        %1153 = vmatpush.msra.mxu0 %v1152
        %v1154 = vand.u32 %v296, 4294901760
        %v1155 = vsub.f32 %v296, %v1154
        %1156 = vmatpush.msra.mxu0 %v1155
        %v1157 = vand.u32 %v295, 4294901760
        %v1158 = vsub.f32 %v295, %v1157
        %1159 = vmatpush.msra.mxu0 %v1158
        %v1160 = vand.u32 %v320, 4294901760
        %v1161 = vsub.f32 %v320, %v1160
        %1162 = vmatmul.f32.gmra.mxu0 %v1161
        %v1163 = vpop.f32.mrf.mxu0
        %v1164 = vadd.f32 %v1082, %v1163
        %v1165 = vand.u32 %v321, 4294901760
        %v1166 = vsub.f32 %v321, %v1165
        %1167 = vmatmul.f32.gmra.mxu0 %v1166
        %v1168 = vpop.f32.mrf.mxu0
        %v1169 = vadd.f32 %v1086, %v1168
        %v1170 = vand.u32 %v322, 4294901760
        %v1171 = vsub.f32 %v322, %v1170
        %1172 = vmatmul.f32.gmra.mxu0 %v1171
        %v1173 = vpop.f32.mrf.mxu0
        %v1174 = vadd.f32 %v1090, %v1173
        %v1175 = vand.u32 %v323, 4294901760
        %v1176 = vsub.f32 %v323, %v1175
        %1177 = vmatmul.f32.gmra.mxu0 %v1176
        %v1178 = vpop.f32.mrf.mxu0
        %v1179 = vadd.f32 %v1094, %v1178
        %v1180 = vand.u32 %v324, 4294901760
        %v1181 = vsub.f32 %v324, %v1180
        %1182 = vmatmul.f32.gmra.mxu0 %v1181
        %v1183 = vpop.f32.mrf.mxu0
        %v1184 = vadd.f32 %v1098, %v1183
        %v1185 = vand.u32 %v325, 4294901760
        %v1186 = vsub.f32 %v325, %v1185
        %1187 = vmatmul.f32.gmra.mxu0 %v1186
        %v1188 = vpop.f32.mrf.mxu0
        %v1189 = vadd.f32 %v1102, %v1188
        %v1190 = vand.u32 %v326, 4294901760
        %v1191 = vsub.f32 %v326, %v1190
        %1192 = vmatmul.f32.gmra.mxu0 %v1191
        %v1193 = vpop.f32.mrf.mxu0
        %v1194 = vadd.f32 %v1106, %v1193
        %v1195 = vand.u32 %v327, 4294901760
        %v1196 = vsub.f32 %v327, %v1195
        %1197 = vmatmul.f32.gmra.mxu0 %v1196
        %v1198 = vpop.f32.mrf.mxu0
        %v1199 = vadd.f32 %v1110, %v1198
        %1200 = vdwg.mxu0
        %v1201 = vand.u32 %v310, 4294901760
        %1202 = vmatpush.msra.mxu0 %v1201
        %v1203 = vand.u32 %v309, 4294901760
        %1204 = vmatpush.msra.mxu0 %v1203
        %v1205 = vand.u32 %v308, 4294901760
        %1206 = vmatpush.msra.mxu0 %v1205
        %v1207 = vand.u32 %v307, 4294901760
        %1208 = vmatpush.msra.mxu0 %v1207
        %v1209 = vand.u32 %v306, 4294901760
        %1210 = vmatpush.msra.mxu0 %v1209
        %v1211 = vand.u32 %v305, 4294901760
        %1212 = vmatpush.msra.mxu0 %v1211
        %v1213 = vand.u32 %v304, 4294901760
        %1214 = vmatpush.msra.mxu0 %v1213
        %v1215 = vand.u32 %v303, 4294901760
        %1216 = vmatpush.msra.mxu0 %v1215
        %v1217 = vand.u32 %v302, 4294901760
        %1218 = vmatpush.msra.mxu0 %v1217
        %v1219 = vand.u32 %v301, 4294901760
        %1220 = vmatpush.msra.mxu0 %v1219
        %v1221 = vand.u32 %v300, 4294901760
        %1222 = vmatpush.msra.mxu0 %v1221
        %v1223 = vand.u32 %v299, 4294901760
        %1224 = vmatpush.msra.mxu0 %v1223
        %v1225 = vand.u32 %v298, 4294901760
        %1226 = vmatpush.msra.mxu0 %v1225
        %v1227 = vand.u32 %v297, 4294901760
        %1228 = vmatpush.msra.mxu0 %v1227
        %v1229 = vand.u32 %v296, 4294901760
        %1230 = vmatpush.msra.mxu0 %v1229
        %v1231 = vand.u32 %v295, 4294901760
        %1232 = vmatpush.msra.mxu0 %v1231
        %v1233 = vand.u32 %v320, 4294901760
        %v1234 = vsub.f32 %v320, %v1233
        %v1235 = vand.u32 %v1234, 4294901760
        %1236 = vmatmul.f32.gmra.mxu0 %v1235
        %v1237 = vpop.f32.mrf.mxu0
        %v1238 = vadd.f32 %v1164, %v1237
        %v1239 = vand.u32 %v321, 4294901760
        %v1240 = vsub.f32 %v321, %v1239
        %v1241 = vand.u32 %v1240, 4294901760
        %1242 = vmatmul.f32.gmra.mxu0 %v1241
        %v1243 = vpop.f32.mrf.mxu0
        %v1244 = vadd.f32 %v1169, %v1243
        %v1245 = vand.u32 %v322, 4294901760
        %v1246 = vsub.f32 %v322, %v1245
        %v1247 = vand.u32 %v1246, 4294901760
        %1248 = vmatmul.f32.gmra.mxu0 %v1247
        %v1249 = vpop.f32.mrf.mxu0
        %v1250 = vadd.f32 %v1174, %v1249
        %v1251 = vand.u32 %v323, 4294901760
        %v1252 = vsub.f32 %v323, %v1251
        %v1253 = vand.u32 %v1252, 4294901760
        %1254 = vmatmul.f32.gmra.mxu0 %v1253
        %v1255 = vpop.f32.mrf.mxu0
        %v1256 = vadd.f32 %v1179, %v1255
        %v1257 = vand.u32 %v324, 4294901760
        %v1258 = vsub.f32 %v324, %v1257
        %v1259 = vand.u32 %v1258, 4294901760
        %1260 = vmatmul.f32.gmra.mxu0 %v1259
        %v1261 = vpop.f32.mrf.mxu0
        %v1262 = vadd.f32 %v1184, %v1261
        %v1263 = vand.u32 %v325, 4294901760
        %v1264 = vsub.f32 %v325, %v1263
        %v1265 = vand.u32 %v1264, 4294901760
        %1266 = vmatmul.f32.gmra.mxu0 %v1265
        %v1267 = vpop.f32.mrf.mxu0
        %v1268 = vadd.f32 %v1189, %v1267
        %v1269 = vand.u32 %v326, 4294901760
        %v1270 = vsub.f32 %v326, %v1269
        %v1271 = vand.u32 %v1270, 4294901760
        %1272 = vmatmul.f32.gmra.mxu0 %v1271
        %v1273 = vpop.f32.mrf.mxu0
        %v1274 = vadd.f32 %v1194, %v1273
        %v1275 = vand.u32 %v327, 4294901760
        %v1276 = vsub.f32 %v327, %v1275
        %v1277 = vand.u32 %v1276, 4294901760
        %1278 = vmatmul.f32.gmra.mxu0 %v1277
        %v1279 = vpop.f32.mrf.mxu0
        %v1280 = vadd.f32 %v1199, %v1279
        %1281 = vdwg.mxu0
        %v1282 = vand.u32 %v310, 4294901760
        %v1283 = vsub.f32 %v310, %v1282
        %v1284 = vand.u32 %v1283, 4294901760
        %1285 = vmatpush.msra.mxu0 %v1284
        %v1286 = vand.u32 %v309, 4294901760
        %v1287 = vsub.f32 %v309, %v1286
        %v1288 = vand.u32 %v1287, 4294901760
        %1289 = vmatpush.msra.mxu0 %v1288
        %v1290 = vand.u32 %v308, 4294901760
        %v1291 = vsub.f32 %v308, %v1290
        %v1292 = vand.u32 %v1291, 4294901760
        %1293 = vmatpush.msra.mxu0 %v1292
        %v1294 = vand.u32 %v307, 4294901760
        %v1295 = vsub.f32 %v307, %v1294
        %v1296 = vand.u32 %v1295, 4294901760
        %1297 = vmatpush.msra.mxu0 %v1296
        %v1298 = vand.u32 %v306, 4294901760
        %v1299 = vsub.f32 %v306, %v1298
        %v1300 = vand.u32 %v1299, 4294901760
        %1301 = vmatpush.msra.mxu0 %v1300
        %v1302 = vand.u32 %v305, 4294901760
        %v1303 = vsub.f32 %v305, %v1302
        %v1304 = vand.u32 %v1303, 4294901760
        %1305 = vmatpush.msra.mxu0 %v1304
        %v1306 = vand.u32 %v304, 4294901760
        %v1307 = vsub.f32 %v304, %v1306
        %v1308 = vand.u32 %v1307, 4294901760
        %1309 = vmatpush.msra.mxu0 %v1308
        %v1310 = vand.u32 %v303, 4294901760
        %v1311 = vsub.f32 %v303, %v1310
        %v1312 = vand.u32 %v1311, 4294901760
        %1313 = vmatpush.msra.mxu0 %v1312
        %v1314 = vand.u32 %v302, 4294901760
        %v1315 = vsub.f32 %v302, %v1314
        %v1316 = vand.u32 %v1315, 4294901760
        %1317 = vmatpush.msra.mxu0 %v1316
        %v1318 = vand.u32 %v301, 4294901760
        %v1319 = vsub.f32 %v301, %v1318
        %v1320 = vand.u32 %v1319, 4294901760
        %1321 = vmatpush.msra.mxu0 %v1320
        %v1322 = vand.u32 %v300, 4294901760
        %v1323 = vsub.f32 %v300, %v1322
        %v1324 = vand.u32 %v1323, 4294901760
        %1325 = vmatpush.msra.mxu0 %v1324
        %v1326 = vand.u32 %v299, 4294901760
        %v1327 = vsub.f32 %v299, %v1326
        %v1328 = vand.u32 %v1327, 4294901760
        %1329 = vmatpush.msra.mxu0 %v1328
        %v1330 = vand.u32 %v298, 4294901760
        %v1331 = vsub.f32 %v298, %v1330
        %v1332 = vand.u32 %v1331, 4294901760
        %1333 = vmatpush.msra.mxu0 %v1332
        %v1334 = vand.u32 %v297, 4294901760
        %v1335 = vsub.f32 %v297, %v1334
        %v1336 = vand.u32 %v1335, 4294901760
        %1337 = vmatpush.msra.mxu0 %v1336
        %v1338 = vand.u32 %v296, 4294901760
        %v1339 = vsub.f32 %v296, %v1338
        %v1340 = vand.u32 %v1339, 4294901760
        %1341 = vmatpush.msra.mxu0 %v1340
        %v1342 = vand.u32 %v295, 4294901760
        %v1343 = vsub.f32 %v295, %v1342
        %v1344 = vand.u32 %v1343, 4294901760
        %1345 = vmatpush.msra.mxu0 %v1344
        %v1346 = vand.u32 %v320, 4294901760
        %1347 = vmatmul.f32.gmra.mxu0 %v1346
        %v1348 = vpop.f32.mrf.mxu0
        %v1349 = vadd.f32 %v1238, %v1348
        %v1350 = vand.u32 %v321, 4294901760
        %1351 = vmatmul.f32.gmra.mxu0 %v1350
        %v1352 = vpop.f32.mrf.mxu0
        %v1353 = vadd.f32 %v1244, %v1352
        %v1354 = vand.u32 %v322, 4294901760
        %1355 = vmatmul.f32.gmra.mxu0 %v1354
        %v1356 = vpop.f32.mrf.mxu0
        %v1357 = vadd.f32 %v1250, %v1356
        %v1358 = vand.u32 %v323, 4294901760
        %1359 = vmatmul.f32.gmra.mxu0 %v1358
        %v1360 = vpop.f32.mrf.mxu0
        %v1361 = vadd.f32 %v1256, %v1360
        %v1362 = vand.u32 %v324, 4294901760
        %1363 = vmatmul.f32.gmra.mxu0 %v1362
        %v1364 = vpop.f32.mrf.mxu0
        %v1365 = vadd.f32 %v1262, %v1364
        %v1366 = vand.u32 %v325, 4294901760
        %1367 = vmatmul.f32.gmra.mxu0 %v1366
        %v1368 = vpop.f32.mrf.mxu0
        %v1369 = vadd.f32 %v1268, %v1368
        %v1370 = vand.u32 %v326, 4294901760
        %1371 = vmatmul.f32.gmra.mxu0 %v1370
        %v1372 = vpop.f32.mrf.mxu0
        %v1373 = vadd.f32 %v1274, %v1372
        %v1374 = vand.u32 %v327, 4294901760
        %1375 = vmatmul.f32.gmra.mxu0 %v1374
        %v1376 = vpop.f32.mrf.mxu0
        %v1377 = vadd.f32 %v1280, %v1376
        %1378 = vdwg.mxu0
        %v1379 = vand.u32 %v310, 4294901760
        %1380 = vmatpush.msra.mxu0 %v1379
        %v1381 = vand.u32 %v309, 4294901760
        %1382 = vmatpush.msra.mxu0 %v1381
        %v1383 = vand.u32 %v308, 4294901760
        %1384 = vmatpush.msra.mxu0 %v1383
        %v1385 = vand.u32 %v307, 4294901760
        %1386 = vmatpush.msra.mxu0 %v1385
        %v1387 = vand.u32 %v306, 4294901760
        %1388 = vmatpush.msra.mxu0 %v1387
        %v1389 = vand.u32 %v305, 4294901760
        %1390 = vmatpush.msra.mxu0 %v1389
        %v1391 = vand.u32 %v304, 4294901760
        %1392 = vmatpush.msra.mxu0 %v1391
        %v1393 = vand.u32 %v303, 4294901760
        %1394 = vmatpush.msra.mxu0 %v1393
        %v1395 = vand.u32 %v302, 4294901760
        %1396 = vmatpush.msra.mxu0 %v1395
        %v1397 = vand.u32 %v301, 4294901760
        %1398 = vmatpush.msra.mxu0 %v1397
        %v1399 = vand.u32 %v300, 4294901760
        %1400 = vmatpush.msra.mxu0 %v1399
        %v1401 = vand.u32 %v299, 4294901760
        %1402 = vmatpush.msra.mxu0 %v1401
        %v1403 = vand.u32 %v298, 4294901760
        %1404 = vmatpush.msra.mxu0 %v1403
        %v1405 = vand.u32 %v297, 4294901760
        %1406 = vmatpush.msra.mxu0 %v1405
        %v1407 = vand.u32 %v296, 4294901760
        %1408 = vmatpush.msra.mxu0 %v1407
        %v1409 = vand.u32 %v295, 4294901760
        %1410 = vmatpush.msra.mxu0 %v1409
        %v1411 = vand.u32 %v320, 4294901760
        %1412 = vmatmul.f32.gmra.mxu0 %v1411
        %v1413 = vpop.f32.mrf.mxu0
        %v1414 = vadd.f32 %v1349, %v1413
        %v1415 = vand.u32 %v321, 4294901760
        %1416 = vmatmul.f32.gmra.mxu0 %v1415
        %v1417 = vpop.f32.mrf.mxu0
        %v1418 = vadd.f32 %v1353, %v1417
        %v1419 = vand.u32 %v322, 4294901760
        %1420 = vmatmul.f32.gmra.mxu0 %v1419
        %v1421 = vpop.f32.mrf.mxu0
        %v1422 = vadd.f32 %v1357, %v1421
        %v1423 = vand.u32 %v323, 4294901760
        %1424 = vmatmul.f32.gmra.mxu0 %v1423
        %v1425 = vpop.f32.mrf.mxu0
        %v1426 = vadd.f32 %v1361, %v1425
        %v1427 = vand.u32 %v324, 4294901760
        %1428 = vmatmul.f32.gmra.mxu0 %v1427
        %v1429 = vpop.f32.mrf.mxu0
        %v1430 = vadd.f32 %v1365, %v1429
        %v1431 = vand.u32 %v325, 4294901760
        %1432 = vmatmul.f32.gmra.mxu0 %v1431
        %v1433 = vpop.f32.mrf.mxu0
        %v1434 = vadd.f32 %v1369, %v1433
        %v1435 = vand.u32 %v326, 4294901760
        %1436 = vmatmul.f32.gmra.mxu0 %v1435
        %v1437 = vpop.f32.mrf.mxu0
        %v1438 = vadd.f32 %v1373, %v1437
        %v1439 = vand.u32 %v327, 4294901760
        %1440 = vmatmul.f32.gmra.mxu0 %v1439
        %v1441 = vpop.f32.mrf.mxu0
        %v1442 = vadd.f32 %v1377, %v1441
        %1443 = vdwg.mxu0
        %v1444 = vmul.f32 %v312, %v312
        %v1445 = vmul.f32 %v313, %v313
        %v1446 = vmul.f32 %v314, %v314
        %v1447 = vmul.f32 %v315, %v315
        %v1448 = vmul.f32 %v316, %v316
        %v1449 = vmul.f32 %v317, %v317
        %v1450 = vmul.f32 %v318, %v318
        %v1451 = vmul.f32 %v319, %v319
        %v1452 = vand.u32 %v310, 4294901760
        %1453 = vmatpush.msra.mxu0 %v1452
        %v1454 = vand.u32 %v309, 4294901760
        %1455 = vmatpush.msra.mxu0 %v1454
        %v1456 = vand.u32 %v308, 4294901760
        %1457 = vmatpush.msra.mxu0 %v1456
        %v1458 = vand.u32 %v307, 4294901760
        %1459 = vmatpush.msra.mxu0 %v1458
        %v1460 = vand.u32 %v306, 4294901760
        %1461 = vmatpush.msra.mxu0 %v1460
        %v1462 = vand.u32 %v305, 4294901760
        %1463 = vmatpush.msra.mxu0 %v1462
        %v1464 = vand.u32 %v304, 4294901760
        %1465 = vmatpush.msra.mxu0 %v1464
        %v1466 = vand.u32 %v303, 4294901760
        %1467 = vmatpush.msra.mxu0 %v1466
        %v1468 = vand.u32 %v302, 4294901760
        %1469 = vmatpush.msra.mxu0 %v1468
        %v1470 = vand.u32 %v301, 4294901760
        %1471 = vmatpush.msra.mxu0 %v1470
        %v1472 = vand.u32 %v300, 4294901760
        %1473 = vmatpush.msra.mxu0 %v1472
        %v1474 = vand.u32 %v299, 4294901760
        %1475 = vmatpush.msra.mxu0 %v1474
        %v1476 = vand.u32 %v298, 4294901760
        %1477 = vmatpush.msra.mxu0 %v1476
        %v1478 = vand.u32 %v297, 4294901760
        %1479 = vmatpush.msra.mxu0 %v1478
        %v1480 = vand.u32 %v296, 4294901760
        %1481 = vmatpush.msra.mxu0 %v1480
        %v1482 = vand.u32 %v295, 4294901760
        %1483 = vmatpush.msra.mxu0 %v1482
        %v1484 = vand.u32 %v1444, 4294901760
        %v1485 = vsub.f32 %v1444, %v1484
        %v1486 = vand.u32 %v1485, 4294901760
        %v1487 = vsub.f32 %v1485, %v1486
        %v1488 = vand.u32 %v1487, 4294901760
        %1489 = vmatmul.f32.gmra.mxu0 %v1488
        %v1490 = vpop.f32.mrf.mxu0
        %v1491 = vadd.f32 0.0, %v1490
        %v1492 = vand.u32 %v1445, 4294901760
        %v1493 = vsub.f32 %v1445, %v1492
        %v1494 = vand.u32 %v1493, 4294901760
        %v1495 = vsub.f32 %v1493, %v1494
        %v1496 = vand.u32 %v1495, 4294901760
        %1497 = vmatmul.f32.gmra.mxu0 %v1496
        %v1498 = vpop.f32.mrf.mxu0
        %v1499 = vadd.f32 0.0, %v1498
        %v1500 = vand.u32 %v1446, 4294901760
        %v1501 = vsub.f32 %v1446, %v1500
        %v1502 = vand.u32 %v1501, 4294901760
        %v1503 = vsub.f32 %v1501, %v1502
        %v1504 = vand.u32 %v1503, 4294901760
        %1505 = vmatmul.f32.gmra.mxu0 %v1504
        %v1506 = vpop.f32.mrf.mxu0
        %v1507 = vadd.f32 0.0, %v1506
        %v1508 = vand.u32 %v1447, 4294901760
        %v1509 = vsub.f32 %v1447, %v1508
        %v1510 = vand.u32 %v1509, 4294901760
        %v1511 = vsub.f32 %v1509, %v1510
        %v1512 = vand.u32 %v1511, 4294901760
        %1513 = vmatmul.f32.gmra.mxu0 %v1512
        %v1514 = vpop.f32.mrf.mxu0
        %v1515 = vadd.f32 0.0, %v1514
        %v1516 = vand.u32 %v1448, 4294901760
        %v1517 = vsub.f32 %v1448, %v1516
        %v1518 = vand.u32 %v1517, 4294901760
        %v1519 = vsub.f32 %v1517, %v1518
        %v1520 = vand.u32 %v1519, 4294901760
        %1521 = vmatmul.f32.gmra.mxu0 %v1520
        %v1522 = vpop.f32.mrf.mxu0
        %v1523 = vadd.f32 0.0, %v1522
        %v1524 = vand.u32 %v1449, 4294901760
        %v1525 = vsub.f32 %v1449, %v1524
        %v1526 = vand.u32 %v1525, 4294901760
        %v1527 = vsub.f32 %v1525, %v1526
        %v1528 = vand.u32 %v1527, 4294901760
        %1529 = vmatmul.f32.gmra.mxu0 %v1528
        %v1530 = vpop.f32.mrf.mxu0
        %v1531 = vadd.f32 0.0, %v1530
        %v1532 = vand.u32 %v1450, 4294901760
        %v1533 = vsub.f32 %v1450, %v1532
        %v1534 = vand.u32 %v1533, 4294901760
        %v1535 = vsub.f32 %v1533, %v1534
        %v1536 = vand.u32 %v1535, 4294901760
        %1537 = vmatmul.f32.gmra.mxu0 %v1536
        %v1538 = vpop.f32.mrf.mxu0
        %v1539 = vadd.f32 0.0, %v1538
        %v1540 = vand.u32 %v1451, 4294901760
        %v1541 = vsub.f32 %v1451, %v1540
        %v1542 = vand.u32 %v1541, 4294901760
        %v1543 = vsub.f32 %v1541, %v1542
        %v1544 = vand.u32 %v1543, 4294901760
        %1545 = vmatmul.f32.gmra.mxu0 %v1544
        %v1546 = vpop.f32.mrf.mxu0
        %v1547 = vadd.f32 0.0, %v1546
        %1548 = vdwg.mxu0
        %v1549 = vand.u32 %v310, 4294901760
        %v1550 = vsub.f32 %v310, %v1549
        %v1551 = vand.u32 %v1550, 4294901760
        %v1552 = vsub.f32 %v1550, %v1551
        %v1553 = vand.u32 %v1552, 4294901760
        %1554 = vmatpush.msra.mxu0 %v1553
        %v1555 = vand.u32 %v309, 4294901760
        %v1556 = vsub.f32 %v309, %v1555
        %v1557 = vand.u32 %v1556, 4294901760
        %v1558 = vsub.f32 %v1556, %v1557
        %v1559 = vand.u32 %v1558, 4294901760
        %1560 = vmatpush.msra.mxu0 %v1559
        %v1561 = vand.u32 %v308, 4294901760
        %v1562 = vsub.f32 %v308, %v1561
        %v1563 = vand.u32 %v1562, 4294901760
        %v1564 = vsub.f32 %v1562, %v1563
        %v1565 = vand.u32 %v1564, 4294901760
        %1566 = vmatpush.msra.mxu0 %v1565
        %v1567 = vand.u32 %v307, 4294901760
        %v1568 = vsub.f32 %v307, %v1567
        %v1569 = vand.u32 %v1568, 4294901760
        %v1570 = vsub.f32 %v1568, %v1569
        %v1571 = vand.u32 %v1570, 4294901760
        %1572 = vmatpush.msra.mxu0 %v1571
        %v1573 = vand.u32 %v306, 4294901760
        %v1574 = vsub.f32 %v306, %v1573
        %v1575 = vand.u32 %v1574, 4294901760
        %v1576 = vsub.f32 %v1574, %v1575
        %v1577 = vand.u32 %v1576, 4294901760
        %1578 = vmatpush.msra.mxu0 %v1577
        %v1579 = vand.u32 %v305, 4294901760
        %v1580 = vsub.f32 %v305, %v1579
        %v1581 = vand.u32 %v1580, 4294901760
        %v1582 = vsub.f32 %v1580, %v1581
        %v1583 = vand.u32 %v1582, 4294901760
        %1584 = vmatpush.msra.mxu0 %v1583
        %v1585 = vand.u32 %v304, 4294901760
        %v1586 = vsub.f32 %v304, %v1585
        %v1587 = vand.u32 %v1586, 4294901760
        %v1588 = vsub.f32 %v1586, %v1587
        %v1589 = vand.u32 %v1588, 4294901760
        %1590 = vmatpush.msra.mxu0 %v1589
        %v1591 = vand.u32 %v303, 4294901760
        %v1592 = vsub.f32 %v303, %v1591
        %v1593 = vand.u32 %v1592, 4294901760
        %v1594 = vsub.f32 %v1592, %v1593
        %v1595 = vand.u32 %v1594, 4294901760
        %1596 = vmatpush.msra.mxu0 %v1595
        %v1597 = vand.u32 %v302, 4294901760
        %v1598 = vsub.f32 %v302, %v1597
        %v1599 = vand.u32 %v1598, 4294901760
        %v1600 = vsub.f32 %v1598, %v1599
        %v1601 = vand.u32 %v1600, 4294901760
        %1602 = vmatpush.msra.mxu0 %v1601
        %v1603 = vand.u32 %v301, 4294901760
        %v1604 = vsub.f32 %v301, %v1603
        %v1605 = vand.u32 %v1604, 4294901760
        %v1606 = vsub.f32 %v1604, %v1605
        %v1607 = vand.u32 %v1606, 4294901760
        %1608 = vmatpush.msra.mxu0 %v1607
        %v1609 = vand.u32 %v300, 4294901760
        %v1610 = vsub.f32 %v300, %v1609
        %v1611 = vand.u32 %v1610, 4294901760
        %v1612 = vsub.f32 %v1610, %v1611
        %v1613 = vand.u32 %v1612, 4294901760
        %1614 = vmatpush.msra.mxu0 %v1613
        %v1615 = vand.u32 %v299, 4294901760
        %v1616 = vsub.f32 %v299, %v1615
        %v1617 = vand.u32 %v1616, 4294901760
        %v1618 = vsub.f32 %v1616, %v1617
        %v1619 = vand.u32 %v1618, 4294901760
        %1620 = vmatpush.msra.mxu0 %v1619
        %v1621 = vand.u32 %v298, 4294901760
        %v1622 = vsub.f32 %v298, %v1621
        %v1623 = vand.u32 %v1622, 4294901760
        %v1624 = vsub.f32 %v1622, %v1623
        %v1625 = vand.u32 %v1624, 4294901760
        %1626 = vmatpush.msra.mxu0 %v1625
        %v1627 = vand.u32 %v297, 4294901760
        %v1628 = vsub.f32 %v297, %v1627
        %v1629 = vand.u32 %v1628, 4294901760
        %v1630 = vsub.f32 %v1628, %v1629
        %v1631 = vand.u32 %v1630, 4294901760
        %1632 = vmatpush.msra.mxu0 %v1631
        %v1633 = vand.u32 %v296, 4294901760
        %v1634 = vsub.f32 %v296, %v1633
        %v1635 = vand.u32 %v1634, 4294901760
        %v1636 = vsub.f32 %v1634, %v1635
        %v1637 = vand.u32 %v1636, 4294901760
        %1638 = vmatpush.msra.mxu0 %v1637
        %v1639 = vand.u32 %v295, 4294901760
        %v1640 = vsub.f32 %v295, %v1639
        %v1641 = vand.u32 %v1640, 4294901760
        %v1642 = vsub.f32 %v1640, %v1641
        %v1643 = vand.u32 %v1642, 4294901760
        %1644 = vmatpush.msra.mxu0 %v1643
        %v1645 = vand.u32 %v1444, 4294901760
        %1646 = vmatmul.f32.gmra.mxu0 %v1645
        %v1647 = vpop.f32.mrf.mxu0
        %v1648 = vadd.f32 %v1491, %v1647
        %v1649 = vand.u32 %v1445, 4294901760
        %1650 = vmatmul.f32.gmra.mxu0 %v1649
        %v1651 = vpop.f32.mrf.mxu0
        %v1652 = vadd.f32 %v1499, %v1651
        %v1653 = vand.u32 %v1446, 4294901760
        %1654 = vmatmul.f32.gmra.mxu0 %v1653
        %v1655 = vpop.f32.mrf.mxu0
        %v1656 = vadd.f32 %v1507, %v1655
        %v1657 = vand.u32 %v1447, 4294901760
        %1658 = vmatmul.f32.gmra.mxu0 %v1657
        %v1659 = vpop.f32.mrf.mxu0
        %v1660 = vadd.f32 %v1515, %v1659
        %v1661 = vand.u32 %v1448, 4294901760
        %1662 = vmatmul.f32.gmra.mxu0 %v1661
        %v1663 = vpop.f32.mrf.mxu0
        %v1664 = vadd.f32 %v1523, %v1663
        %v1665 = vand.u32 %v1449, 4294901760
        %1666 = vmatmul.f32.gmra.mxu0 %v1665
        %v1667 = vpop.f32.mrf.mxu0
        %v1668 = vadd.f32 %v1531, %v1667
        %v1669 = vand.u32 %v1450, 4294901760
        %1670 = vmatmul.f32.gmra.mxu0 %v1669
        %v1671 = vpop.f32.mrf.mxu0
        %v1672 = vadd.f32 %v1539, %v1671
        %v1673 = vand.u32 %v1451, 4294901760
        %1674 = vmatmul.f32.gmra.mxu0 %v1673
        %v1675 = vpop.f32.mrf.mxu0
        %v1676 = vadd.f32 %v1547, %v1675
        %1677 = vdwg.mxu0
        %v1678 = vand.u32 %v310, 4294901760
        %v1679 = vsub.f32 %v310, %v1678
        %1680 = vmatpush.msra.mxu0 %v1679
        %v1681 = vand.u32 %v309, 4294901760
        %v1682 = vsub.f32 %v309, %v1681
        %1683 = vmatpush.msra.mxu0 %v1682
        %v1684 = vand.u32 %v308, 4294901760
        %v1685 = vsub.f32 %v308, %v1684
        %1686 = vmatpush.msra.mxu0 %v1685
        %v1687 = vand.u32 %v307, 4294901760
        %v1688 = vsub.f32 %v307, %v1687
        %1689 = vmatpush.msra.mxu0 %v1688
        %v1690 = vand.u32 %v306, 4294901760
        %v1691 = vsub.f32 %v306, %v1690
        %1692 = vmatpush.msra.mxu0 %v1691
        %v1693 = vand.u32 %v305, 4294901760
        %v1694 = vsub.f32 %v305, %v1693
        %1695 = vmatpush.msra.mxu0 %v1694
        %v1696 = vand.u32 %v304, 4294901760
        %v1697 = vsub.f32 %v304, %v1696
        %1698 = vmatpush.msra.mxu0 %v1697
        %v1699 = vand.u32 %v303, 4294901760
        %v1700 = vsub.f32 %v303, %v1699
        %1701 = vmatpush.msra.mxu0 %v1700
        %v1702 = vand.u32 %v302, 4294901760
        %v1703 = vsub.f32 %v302, %v1702
        %1704 = vmatpush.msra.mxu0 %v1703
        %v1705 = vand.u32 %v301, 4294901760
        %v1706 = vsub.f32 %v301, %v1705
        %1707 = vmatpush.msra.mxu0 %v1706
        %v1708 = vand.u32 %v300, 4294901760
        %v1709 = vsub.f32 %v300, %v1708
        %1710 = vmatpush.msra.mxu0 %v1709
        %v1711 = vand.u32 %v299, 4294901760
        %v1712 = vsub.f32 %v299, %v1711
        %1713 = vmatpush.msra.mxu0 %v1712
        %v1714 = vand.u32 %v298, 4294901760
        %v1715 = vsub.f32 %v298, %v1714
        %1716 = vmatpush.msra.mxu0 %v1715
        %v1717 = vand.u32 %v297, 4294901760
        %v1718 = vsub.f32 %v297, %v1717
        %1719 = vmatpush.msra.mxu0 %v1718
        %v1720 = vand.u32 %v296, 4294901760
        %v1721 = vsub.f32 %v296, %v1720
        %1722 = vmatpush.msra.mxu0 %v1721
        %v1723 = vand.u32 %v295, 4294901760
        %v1724 = vsub.f32 %v295, %v1723
        %1725 = vmatpush.msra.mxu0 %v1724
        %v1726 = vand.u32 %v1444, 4294901760
        %v1727 = vsub.f32 %v1444, %v1726
        %1728 = vmatmul.f32.gmra.mxu0 %v1727
        %v1729 = vpop.f32.mrf.mxu0
        %v1730 = vadd.f32 %v1648, %v1729
        %v1731 = vand.u32 %v1445, 4294901760
        %v1732 = vsub.f32 %v1445, %v1731
        %1733 = vmatmul.f32.gmra.mxu0 %v1732
        %v1734 = vpop.f32.mrf.mxu0
        %v1735 = vadd.f32 %v1652, %v1734
        %v1736 = vand.u32 %v1446, 4294901760
        %v1737 = vsub.f32 %v1446, %v1736
        %1738 = vmatmul.f32.gmra.mxu0 %v1737
        %v1739 = vpop.f32.mrf.mxu0
        %v1740 = vadd.f32 %v1656, %v1739
        %v1741 = vand.u32 %v1447, 4294901760
        %v1742 = vsub.f32 %v1447, %v1741
        %1743 = vmatmul.f32.gmra.mxu0 %v1742
        %v1744 = vpop.f32.mrf.mxu0
        %v1745 = vadd.f32 %v1660, %v1744
        %v1746 = vand.u32 %v1448, 4294901760
        %v1747 = vsub.f32 %v1448, %v1746
        %1748 = vmatmul.f32.gmra.mxu0 %v1747
        %v1749 = vpop.f32.mrf.mxu0
        %v1750 = vadd.f32 %v1664, %v1749
        %v1751 = vand.u32 %v1449, 4294901760
        %v1752 = vsub.f32 %v1449, %v1751
        %1753 = vmatmul.f32.gmra.mxu0 %v1752
        %v1754 = vpop.f32.mrf.mxu0
        %v1755 = vadd.f32 %v1668, %v1754
        %v1756 = vand.u32 %v1450, 4294901760
        %v1757 = vsub.f32 %v1450, %v1756
        %1758 = vmatmul.f32.gmra.mxu0 %v1757
        %v1759 = vpop.f32.mrf.mxu0
        %v1760 = vadd.f32 %v1672, %v1759
        %v1761 = vand.u32 %v1451, 4294901760
        %v1762 = vsub.f32 %v1451, %v1761
        %1763 = vmatmul.f32.gmra.mxu0 %v1762
        %v1764 = vpop.f32.mrf.mxu0
        %v1765 = vadd.f32 %v1676, %v1764
        %1766 = vdwg.mxu0
        %v1767 = vand.u32 %v310, 4294901760
        %1768 = vmatpush.msra.mxu0 %v1767
        %v1769 = vand.u32 %v309, 4294901760
        %1770 = vmatpush.msra.mxu0 %v1769
        %v1771 = vand.u32 %v308, 4294901760
        %1772 = vmatpush.msra.mxu0 %v1771
        %v1773 = vand.u32 %v307, 4294901760
        %1774 = vmatpush.msra.mxu0 %v1773
        %v1775 = vand.u32 %v306, 4294901760
        %1776 = vmatpush.msra.mxu0 %v1775
        %v1777 = vand.u32 %v305, 4294901760
        %1778 = vmatpush.msra.mxu0 %v1777
        %v1779 = vand.u32 %v304, 4294901760
        %1780 = vmatpush.msra.mxu0 %v1779
        %v1781 = vand.u32 %v303, 4294901760
        %1782 = vmatpush.msra.mxu0 %v1781
        %v1783 = vand.u32 %v302, 4294901760
        %1784 = vmatpush.msra.mxu0 %v1783
        %v1785 = vand.u32 %v301, 4294901760
        %1786 = vmatpush.msra.mxu0 %v1785
        %v1787 = vand.u32 %v300, 4294901760
        %1788 = vmatpush.msra.mxu0 %v1787
        %v1789 = vand.u32 %v299, 4294901760
        %1790 = vmatpush.msra.mxu0 %v1789
        %v1791 = vand.u32 %v298, 4294901760
        %1792 = vmatpush.msra.mxu0 %v1791
        %v1793 = vand.u32 %v297, 4294901760
        %1794 = vmatpush.msra.mxu0 %v1793
        %v1795 = vand.u32 %v296, 4294901760
        %1796 = vmatpush.msra.mxu0 %v1795
        %v1797 = vand.u32 %v295, 4294901760
        %1798 = vmatpush.msra.mxu0 %v1797
        %v1799 = vand.u32 %v1444, 4294901760
        %v1800 = vsub.f32 %v1444, %v1799
        %v1801 = vand.u32 %v1800, 4294901760
        %1802 = vmatmul.f32.gmra.mxu0 %v1801
        %v1803 = vpop.f32.mrf.mxu0
        %v1804 = vadd.f32 %v1730, %v1803
        %v1805 = vand.u32 %v1445, 4294901760
        %v1806 = vsub.f32 %v1445, %v1805
        %v1807 = vand.u32 %v1806, 4294901760
        %1808 = vmatmul.f32.gmra.mxu0 %v1807
        %v1809 = vpop.f32.mrf.mxu0
        %v1810 = vadd.f32 %v1735, %v1809
        %v1811 = vand.u32 %v1446, 4294901760
        %v1812 = vsub.f32 %v1446, %v1811
        %v1813 = vand.u32 %v1812, 4294901760
        %1814 = vmatmul.f32.gmra.mxu0 %v1813
        %v1815 = vpop.f32.mrf.mxu0
        %v1816 = vadd.f32 %v1740, %v1815
        %v1817 = vand.u32 %v1447, 4294901760
        %v1818 = vsub.f32 %v1447, %v1817
        %v1819 = vand.u32 %v1818, 4294901760
        %1820 = vmatmul.f32.gmra.mxu0 %v1819
        %v1821 = vpop.f32.mrf.mxu0
        %v1822 = vadd.f32 %v1745, %v1821
        %v1823 = vand.u32 %v1448, 4294901760
        %v1824 = vsub.f32 %v1448, %v1823
        %v1825 = vand.u32 %v1824, 4294901760
        %1826 = vmatmul.f32.gmra.mxu0 %v1825
        %v1827 = vpop.f32.mrf.mxu0
        %v1828 = vadd.f32 %v1750, %v1827
        %v1829 = vand.u32 %v1449, 4294901760
        %v1830 = vsub.f32 %v1449, %v1829
        %v1831 = vand.u32 %v1830, 4294901760
        %1832 = vmatmul.f32.gmra.mxu0 %v1831
        %v1833 = vpop.f32.mrf.mxu0
        %v1834 = vadd.f32 %v1755, %v1833
        %v1835 = vand.u32 %v1450, 4294901760
        %v1836 = vsub.f32 %v1450, %v1835
        %v1837 = vand.u32 %v1836, 4294901760
        %1838 = vmatmul.f32.gmra.mxu0 %v1837
        %v1839 = vpop.f32.mrf.mxu0
        %v1840 = vadd.f32 %v1760, %v1839
        %v1841 = vand.u32 %v1451, 4294901760
        %v1842 = vsub.f32 %v1451, %v1841
        %v1843 = vand.u32 %v1842, 4294901760
        %1844 = vmatmul.f32.gmra.mxu0 %v1843
        %v1845 = vpop.f32.mrf.mxu0
        %v1846 = vadd.f32 %v1765, %v1845
        %1847 = vdwg.mxu0
        %v1848 = vand.u32 %v310, 4294901760
        %v1849 = vsub.f32 %v310, %v1848
        %v1850 = vand.u32 %v1849, 4294901760
        %1851 = vmatpush.msra.mxu0 %v1850
        %v1852 = vand.u32 %v309, 4294901760
        %v1853 = vsub.f32 %v309, %v1852
        %v1854 = vand.u32 %v1853, 4294901760
        %1855 = vmatpush.msra.mxu0 %v1854
        %v1856 = vand.u32 %v308, 4294901760
        %v1857 = vsub.f32 %v308, %v1856
        %v1858 = vand.u32 %v1857, 4294901760
        %1859 = vmatpush.msra.mxu0 %v1858
        %v1860 = vand.u32 %v307, 4294901760
        %v1861 = vsub.f32 %v307, %v1860
        %v1862 = vand.u32 %v1861, 4294901760
        %1863 = vmatpush.msra.mxu0 %v1862
        %v1864 = vand.u32 %v306, 4294901760
        %v1865 = vsub.f32 %v306, %v1864
        %v1866 = vand.u32 %v1865, 4294901760
        %1867 = vmatpush.msra.mxu0 %v1866
        %v1868 = vand.u32 %v305, 4294901760
        %v1869 = vsub.f32 %v305, %v1868
        %v1870 = vand.u32 %v1869, 4294901760
        %1871 = vmatpush.msra.mxu0 %v1870
        %v1872 = vand.u32 %v304, 4294901760
        %v1873 = vsub.f32 %v304, %v1872
        %v1874 = vand.u32 %v1873, 4294901760
        %1875 = vmatpush.msra.mxu0 %v1874
        %v1876 = vand.u32 %v303, 4294901760
        %v1877 = vsub.f32 %v303, %v1876
        %v1878 = vand.u32 %v1877, 4294901760
        %1879 = vmatpush.msra.mxu0 %v1878
        %v1880 = vand.u32 %v302, 4294901760
        %v1881 = vsub.f32 %v302, %v1880
        %v1882 = vand.u32 %v1881, 4294901760
        %1883 = vmatpush.msra.mxu0 %v1882
        %v1884 = vand.u32 %v301, 4294901760
        %v1885 = vsub.f32 %v301, %v1884
        %v1886 = vand.u32 %v1885, 4294901760
        %1887 = vmatpush.msra.mxu0 %v1886
        %v1888 = vand.u32 %v300, 4294901760
        %v1889 = vsub.f32 %v300, %v1888
        %v1890 = vand.u32 %v1889, 4294901760
        %1891 = vmatpush.msra.mxu0 %v1890
        %v1892 = vand.u32 %v299, 4294901760
        %v1893 = vsub.f32 %v299, %v1892
        %v1894 = vand.u32 %v1893, 4294901760
        %1895 = vmatpush.msra.mxu0 %v1894
        %v1896 = vand.u32 %v298, 4294901760
        %v1897 = vsub.f32 %v298, %v1896
        %v1898 = vand.u32 %v1897, 4294901760
        %1899 = vmatpush.msra.mxu0 %v1898
        %v1900 = vand.u32 %v297, 4294901760
        %v1901 = vsub.f32 %v297, %v1900
        %v1902 = vand.u32 %v1901, 4294901760
        %1903 = vmatpush.msra.mxu0 %v1902
        %v1904 = vand.u32 %v296, 4294901760
        %v1905 = vsub.f32 %v296, %v1904
        %v1906 = vand.u32 %v1905, 4294901760
        %1907 = vmatpush.msra.mxu0 %v1906
        %v1908 = vand.u32 %v295, 4294901760
        %v1909 = vsub.f32 %v295, %v1908
        %v1910 = vand.u32 %v1909, 4294901760
        %1911 = vmatpush.msra.mxu0 %v1910
        %v1912 = vand.u32 %v1444, 4294901760
        %1913 = vmatmul.f32.gmra.mxu0 %v1912
        %v1914 = vpop.f32.mrf.mxu0
        %v1915 = vadd.f32 %v1804, %v1914
        %v1916 = vand.u32 %v1445, 4294901760
        %1917 = vmatmul.f32.gmra.mxu0 %v1916
        %v1918 = vpop.f32.mrf.mxu0
        %v1919 = vadd.f32 %v1810, %v1918
        %v1920 = vand.u32 %v1446, 4294901760
        %1921 = vmatmul.f32.gmra.mxu0 %v1920
        %v1922 = vpop.f32.mrf.mxu0
        %v1923 = vadd.f32 %v1816, %v1922
        %v1924 = vand.u32 %v1447, 4294901760
        %1925 = vmatmul.f32.gmra.mxu0 %v1924
        %v1926 = vpop.f32.mrf.mxu0
        %v1927 = vadd.f32 %v1822, %v1926
        %v1928 = vand.u32 %v1448, 4294901760
        %1929 = vmatmul.f32.gmra.mxu0 %v1928
        %v1930 = vpop.f32.mrf.mxu0
        %v1931 = vadd.f32 %v1828, %v1930
        %v1932 = vand.u32 %v1449, 4294901760
        %1933 = vmatmul.f32.gmra.mxu0 %v1932
        %v1934 = vpop.f32.mrf.mxu0
        %v1935 = vadd.f32 %v1834, %v1934
        %v1936 = vand.u32 %v1450, 4294901760
        %1937 = vmatmul.f32.gmra.mxu0 %v1936
        %v1938 = vpop.f32.mrf.mxu0
        %v1939 = vadd.f32 %v1840, %v1938
        %v1940 = vand.u32 %v1451, 4294901760
        %1941 = vmatmul.f32.gmra.mxu0 %v1940
        %v1942 = vpop.f32.mrf.mxu0
        %v1943 = vadd.f32 %v1846, %v1942
        %1944 = vdwg.mxu0
        %v1945 = vand.u32 %v310, 4294901760
        %1946 = vmatpush.msra.mxu0 %v1945
        %v1947 = vand.u32 %v309, 4294901760
        %1948 = vmatpush.msra.mxu0 %v1947
        %v1949 = vand.u32 %v308, 4294901760
        %1950 = vmatpush.msra.mxu0 %v1949
        %v1951 = vand.u32 %v307, 4294901760
        %1952 = vmatpush.msra.mxu0 %v1951
        %v1953 = vand.u32 %v306, 4294901760
        %1954 = vmatpush.msra.mxu0 %v1953
        %v1955 = vand.u32 %v305, 4294901760
        %1956 = vmatpush.msra.mxu0 %v1955
        %v1957 = vand.u32 %v304, 4294901760
        %1958 = vmatpush.msra.mxu0 %v1957
        %v1959 = vand.u32 %v303, 4294901760
        %1960 = vmatpush.msra.mxu0 %v1959
        %v1961 = vand.u32 %v302, 4294901760
        %1962 = vmatpush.msra.mxu0 %v1961
        %v1963 = vand.u32 %v301, 4294901760
        %1964 = vmatpush.msra.mxu0 %v1963
        %v1965 = vand.u32 %v300, 4294901760
        %1966 = vmatpush.msra.mxu0 %v1965
        %v1967 = vand.u32 %v299, 4294901760
        %1968 = vmatpush.msra.mxu0 %v1967
        %v1969 = vand.u32 %v298, 4294901760
        %1970 = vmatpush.msra.mxu0 %v1969
        %v1971 = vand.u32 %v297, 4294901760
        %1972 = vmatpush.msra.mxu0 %v1971
        %v1973 = vand.u32 %v296, 4294901760
        %1974 = vmatpush.msra.mxu0 %v1973
        %v1975 = vand.u32 %v295, 4294901760
        %1976 = vmatpush.msra.mxu0 %v1975
        %v1977 = vand.u32 %v1444, 4294901760
        %1978 = vmatmul.f32.gmra.mxu0 %v1977
        %v1979 = vpop.f32.mrf.mxu0
        %v1980 = vadd.f32 %v1915, %v1979
        %v1981 = vand.u32 %v1445, 4294901760
        %1982 = vmatmul.f32.gmra.mxu0 %v1981
        %v1983 = vpop.f32.mrf.mxu0
        %v1984 = vadd.f32 %v1919, %v1983
        %v1985 = vand.u32 %v1446, 4294901760
        %1986 = vmatmul.f32.gmra.mxu0 %v1985
        %v1987 = vpop.f32.mrf.mxu0
        %v1988 = vadd.f32 %v1923, %v1987
        %v1989 = vand.u32 %v1447, 4294901760
        %1990 = vmatmul.f32.gmra.mxu0 %v1989
        %v1991 = vpop.f32.mrf.mxu0
        %v1992 = vadd.f32 %v1927, %v1991
        %v1993 = vand.u32 %v1448, 4294901760
        %1994 = vmatmul.f32.gmra.mxu0 %v1993
        %v1995 = vpop.f32.mrf.mxu0
        %v1996 = vadd.f32 %v1931, %v1995
        %v1997 = vand.u32 %v1449, 4294901760
        %1998 = vmatmul.f32.gmra.mxu0 %v1997
        %v1999 = vpop.f32.mrf.mxu0
        %v2000 = vadd.f32 %v1935, %v1999
        %v2001 = vand.u32 %v1450, 4294901760
        %2002 = vmatmul.f32.gmra.mxu0 %v2001
        %v2003 = vpop.f32.mrf.mxu0
        %v2004 = vadd.f32 %v1939, %v2003
        %v2005 = vand.u32 %v1451, 4294901760
        %2006 = vmatmul.f32.gmra.mxu0 %v2005
        %v2007 = vpop.f32.mrf.mxu0
        %v2008 = vadd.f32 %v1943, %v2007
        %2009 = vdwg.mxu0
        %v2010 = vmul.f32 %v320, %v320
        %v2011 = vmul.f32 %v321, %v321
        %v2012 = vmul.f32 %v322, %v322
        %v2013 = vmul.f32 %v323, %v323
        %v2014 = vmul.f32 %v324, %v324
        %v2015 = vmul.f32 %v325, %v325
        %v2016 = vmul.f32 %v326, %v326
        %v2017 = vmul.f32 %v327, %v327
        %v2018 = vand.u32 %v310, 4294901760
        %2019 = vmatpush.msra.mxu0 %v2018
        %v2020 = vand.u32 %v309, 4294901760
        %2021 = vmatpush.msra.mxu0 %v2020
        %v2022 = vand.u32 %v308, 4294901760
        %2023 = vmatpush.msra.mxu0 %v2022
        %v2024 = vand.u32 %v307, 4294901760
        %2025 = vmatpush.msra.mxu0 %v2024
        %v2026 = vand.u32 %v306, 4294901760
        %2027 = vmatpush.msra.mxu0 %v2026
        %v2028 = vand.u32 %v305, 4294901760
        %2029 = vmatpush.msra.mxu0 %v2028
        %v2030 = vand.u32 %v304, 4294901760
        %2031 = vmatpush.msra.mxu0 %v2030
        %v2032 = vand.u32 %v303, 4294901760
        %2033 = vmatpush.msra.mxu0 %v2032
        %v2034 = vand.u32 %v302, 4294901760
        %2035 = vmatpush.msra.mxu0 %v2034
        %v2036 = vand.u32 %v301, 4294901760
        %2037 = vmatpush.msra.mxu0 %v2036
        %v2038 = vand.u32 %v300, 4294901760
        %2039 = vmatpush.msra.mxu0 %v2038
        %v2040 = vand.u32 %v299, 4294901760
        %2041 = vmatpush.msra.mxu0 %v2040
        %v2042 = vand.u32 %v298, 4294901760
        %2043 = vmatpush.msra.mxu0 %v2042
        %v2044 = vand.u32 %v297, 4294901760
        %2045 = vmatpush.msra.mxu0 %v2044
        %v2046 = vand.u32 %v296, 4294901760
        %2047 = vmatpush.msra.mxu0 %v2046
        %v2048 = vand.u32 %v295, 4294901760
        %2049 = vmatpush.msra.mxu0 %v2048
        %v2050 = vand.u32 %v2010, 4294901760
        %v2051 = vsub.f32 %v2010, %v2050
        %v2052 = vand.u32 %v2051, 4294901760
        %v2053 = vsub.f32 %v2051, %v2052
        %v2054 = vand.u32 %v2053, 4294901760
        %2055 = vmatmul.f32.gmra.mxu0 %v2054
        %v2056 = vpop.f32.mrf.mxu0
        %v2057 = vadd.f32 0.0, %v2056
        %v2058 = vand.u32 %v2011, 4294901760
        %v2059 = vsub.f32 %v2011, %v2058
        %v2060 = vand.u32 %v2059, 4294901760
        %v2061 = vsub.f32 %v2059, %v2060
        %v2062 = vand.u32 %v2061, 4294901760
        %2063 = vmatmul.f32.gmra.mxu0 %v2062
        %v2064 = vpop.f32.mrf.mxu0
        %v2065 = vadd.f32 0.0, %v2064
        %v2066 = vand.u32 %v2012, 4294901760
        %v2067 = vsub.f32 %v2012, %v2066
        %v2068 = vand.u32 %v2067, 4294901760
        %v2069 = vsub.f32 %v2067, %v2068
        %v2070 = vand.u32 %v2069, 4294901760
        %2071 = vmatmul.f32.gmra.mxu0 %v2070
        %v2072 = vpop.f32.mrf.mxu0
        %v2073 = vadd.f32 0.0, %v2072
        %v2074 = vand.u32 %v2013, 4294901760
        %v2075 = vsub.f32 %v2013, %v2074
        %v2076 = vand.u32 %v2075, 4294901760
        %v2077 = vsub.f32 %v2075, %v2076
        %v2078 = vand.u32 %v2077, 4294901760
        %2079 = vmatmul.f32.gmra.mxu0 %v2078
        %v2080 = vpop.f32.mrf.mxu0
        %v2081 = vadd.f32 0.0, %v2080
        %v2082 = vand.u32 %v2014, 4294901760
        %v2083 = vsub.f32 %v2014, %v2082
        %v2084 = vand.u32 %v2083, 4294901760
        %v2085 = vsub.f32 %v2083, %v2084
        %v2086 = vand.u32 %v2085, 4294901760
        %2087 = vmatmul.f32.gmra.mxu0 %v2086
        %v2088 = vpop.f32.mrf.mxu0
        %v2089 = vadd.f32 0.0, %v2088
        %v2090 = vand.u32 %v2015, 4294901760
        %v2091 = vsub.f32 %v2015, %v2090
        %v2092 = vand.u32 %v2091, 4294901760
        %v2093 = vsub.f32 %v2091, %v2092
        %v2094 = vand.u32 %v2093, 4294901760
        %2095 = vmatmul.f32.gmra.mxu0 %v2094
        %v2096 = vpop.f32.mrf.mxu0
        %v2097 = vadd.f32 0.0, %v2096
        %v2098 = vand.u32 %v2016, 4294901760
        %v2099 = vsub.f32 %v2016, %v2098
        %v2100 = vand.u32 %v2099, 4294901760
        %v2101 = vsub.f32 %v2099, %v2100
        %v2102 = vand.u32 %v2101, 4294901760
        %2103 = vmatmul.f32.gmra.mxu0 %v2102
        %v2104 = vpop.f32.mrf.mxu0
        %v2105 = vadd.f32 0.0, %v2104
        %v2106 = vand.u32 %v2017, 4294901760
        %v2107 = vsub.f32 %v2017, %v2106
        %v2108 = vand.u32 %v2107, 4294901760
        %v2109 = vsub.f32 %v2107, %v2108
        %v2110 = vand.u32 %v2109, 4294901760
        %2111 = vmatmul.f32.gmra.mxu0 %v2110
        %v2112 = vpop.f32.mrf.mxu0
        %v2113 = vadd.f32 0.0, %v2112
        %2114 = vdwg.mxu0
        %v2115 = vand.u32 %v310, 4294901760
        %v2116 = vsub.f32 %v310, %v2115
        %v2117 = vand.u32 %v2116, 4294901760
        %v2118 = vsub.f32 %v2116, %v2117
        %v2119 = vand.u32 %v2118, 4294901760
        %2120 = vmatpush.msra.mxu0 %v2119
        %v2121 = vand.u32 %v309, 4294901760
        %v2122 = vsub.f32 %v309, %v2121
        %v2123 = vand.u32 %v2122, 4294901760
        %v2124 = vsub.f32 %v2122, %v2123
        %v2125 = vand.u32 %v2124, 4294901760
        %2126 = vmatpush.msra.mxu0 %v2125
        %v2127 = vand.u32 %v308, 4294901760
        %v2128 = vsub.f32 %v308, %v2127
        %v2129 = vand.u32 %v2128, 4294901760
        %v2130 = vsub.f32 %v2128, %v2129
        %v2131 = vand.u32 %v2130, 4294901760
        %2132 = vmatpush.msra.mxu0 %v2131
        %v2133 = vand.u32 %v307, 4294901760
        %v2134 = vsub.f32 %v307, %v2133
        %v2135 = vand.u32 %v2134, 4294901760
        %v2136 = vsub.f32 %v2134, %v2135
        %v2137 = vand.u32 %v2136, 4294901760
        %2138 = vmatpush.msra.mxu0 %v2137
        %v2139 = vand.u32 %v306, 4294901760
        %v2140 = vsub.f32 %v306, %v2139
        %v2141 = vand.u32 %v2140, 4294901760
        %v2142 = vsub.f32 %v2140, %v2141
        %v2143 = vand.u32 %v2142, 4294901760
        %2144 = vmatpush.msra.mxu0 %v2143
        %v2145 = vand.u32 %v305, 4294901760
        %v2146 = vsub.f32 %v305, %v2145
        %v2147 = vand.u32 %v2146, 4294901760
        %v2148 = vsub.f32 %v2146, %v2147
        %v2149 = vand.u32 %v2148, 4294901760
        %2150 = vmatpush.msra.mxu0 %v2149
        %v2151 = vand.u32 %v304, 4294901760
        %v2152 = vsub.f32 %v304, %v2151
        %v2153 = vand.u32 %v2152, 4294901760
        %v2154 = vsub.f32 %v2152, %v2153
        %v2155 = vand.u32 %v2154, 4294901760
        %2156 = vmatpush.msra.mxu0 %v2155
        %v2157 = vand.u32 %v303, 4294901760
        %v2158 = vsub.f32 %v303, %v2157
        %v2159 = vand.u32 %v2158, 4294901760
        %v2160 = vsub.f32 %v2158, %v2159
        %v2161 = vand.u32 %v2160, 4294901760
        %2162 = vmatpush.msra.mxu0 %v2161
        %v2163 = vand.u32 %v302, 4294901760
        %v2164 = vsub.f32 %v302, %v2163
        %v2165 = vand.u32 %v2164, 4294901760
        %v2166 = vsub.f32 %v2164, %v2165
        %v2167 = vand.u32 %v2166, 4294901760
        %2168 = vmatpush.msra.mxu0 %v2167
        %v2169 = vand.u32 %v301, 4294901760
        %v2170 = vsub.f32 %v301, %v2169
        %v2171 = vand.u32 %v2170, 4294901760
        %v2172 = vsub.f32 %v2170, %v2171
        %v2173 = vand.u32 %v2172, 4294901760
        %2174 = vmatpush.msra.mxu0 %v2173
        %v2175 = vand.u32 %v300, 4294901760
        %v2176 = vsub.f32 %v300, %v2175
        %v2177 = vand.u32 %v2176, 4294901760
        %v2178 = vsub.f32 %v2176, %v2177
        %v2179 = vand.u32 %v2178, 4294901760
        %2180 = vmatpush.msra.mxu0 %v2179
        %v2181 = vand.u32 %v299, 4294901760
        %v2182 = vsub.f32 %v299, %v2181
        %v2183 = vand.u32 %v2182, 4294901760
        %v2184 = vsub.f32 %v2182, %v2183
        %v2185 = vand.u32 %v2184, 4294901760
        %2186 = vmatpush.msra.mxu0 %v2185
        %v2187 = vand.u32 %v298, 4294901760
        %v2188 = vsub.f32 %v298, %v2187
        %v2189 = vand.u32 %v2188, 4294901760
        %v2190 = vsub.f32 %v2188, %v2189
        %v2191 = vand.u32 %v2190, 4294901760
        %2192 = vmatpush.msra.mxu0 %v2191
        %v2193 = vand.u32 %v297, 4294901760
        %v2194 = vsub.f32 %v297, %v2193
        %v2195 = vand.u32 %v2194, 4294901760
        %v2196 = vsub.f32 %v2194, %v2195
        %v2197 = vand.u32 %v2196, 4294901760
        %2198 = vmatpush.msra.mxu0 %v2197
        %v2199 = vand.u32 %v296, 4294901760
        %v2200 = vsub.f32 %v296, %v2199
        %v2201 = vand.u32 %v2200, 4294901760
        %v2202 = vsub.f32 %v2200, %v2201
        %v2203 = vand.u32 %v2202, 4294901760
        %2204 = vmatpush.msra.mxu0 %v2203
        %v2205 = vand.u32 %v295, 4294901760
        %v2206 = vsub.f32 %v295, %v2205
        %v2207 = vand.u32 %v2206, 4294901760
        %v2208 = vsub.f32 %v2206, %v2207
        %v2209 = vand.u32 %v2208, 4294901760
        %2210 = vmatpush.msra.mxu0 %v2209
        %v2211 = vand.u32 %v2010, 4294901760
        %2212 = vmatmul.f32.gmra.mxu0 %v2211
        %v2213 = vpop.f32.mrf.mxu0
        %v2214 = vadd.f32 %v2057, %v2213
        %v2215 = vand.u32 %v2011, 4294901760
        %2216 = vmatmul.f32.gmra.mxu0 %v2215
        %v2217 = vpop.f32.mrf.mxu0
        %v2218 = vadd.f32 %v2065, %v2217
        %v2219 = vand.u32 %v2012, 4294901760
        %2220 = vmatmul.f32.gmra.mxu0 %v2219
        %v2221 = vpop.f32.mrf.mxu0
        %v2222 = vadd.f32 %v2073, %v2221
        %v2223 = vand.u32 %v2013, 4294901760
        %2224 = vmatmul.f32.gmra.mxu0 %v2223
        %v2225 = vpop.f32.mrf.mxu0
        %v2226 = vadd.f32 %v2081, %v2225
        %v2227 = vand.u32 %v2014, 4294901760
        %2228 = vmatmul.f32.gmra.mxu0 %v2227
        %v2229 = vpop.f32.mrf.mxu0
        %v2230 = vadd.f32 %v2089, %v2229
        %v2231 = vand.u32 %v2015, 4294901760
        %2232 = vmatmul.f32.gmra.mxu0 %v2231
        %v2233 = vpop.f32.mrf.mxu0
        %v2234 = vadd.f32 %v2097, %v2233
        %v2235 = vand.u32 %v2016, 4294901760
        %2236 = vmatmul.f32.gmra.mxu0 %v2235
        %v2237 = vpop.f32.mrf.mxu0
        %v2238 = vadd.f32 %v2105, %v2237
        %v2239 = vand.u32 %v2017, 4294901760
        %2240 = vmatmul.f32.gmra.mxu0 %v2239
        %v2241 = vpop.f32.mrf.mxu0
        %v2242 = vadd.f32 %v2113, %v2241
        %2243 = vdwg.mxu0
        %v2244 = vand.u32 %v310, 4294901760
        %v2245 = vsub.f32 %v310, %v2244
        %2246 = vmatpush.msra.mxu0 %v2245
        %v2247 = vand.u32 %v309, 4294901760
        %v2248 = vsub.f32 %v309, %v2247
        %2249 = vmatpush.msra.mxu0 %v2248
        %v2250 = vand.u32 %v308, 4294901760
        %v2251 = vsub.f32 %v308, %v2250
        %2252 = vmatpush.msra.mxu0 %v2251
        %v2253 = vand.u32 %v307, 4294901760
        %v2254 = vsub.f32 %v307, %v2253
        %2255 = vmatpush.msra.mxu0 %v2254
        %v2256 = vand.u32 %v306, 4294901760
        %v2257 = vsub.f32 %v306, %v2256
        %2258 = vmatpush.msra.mxu0 %v2257
        %v2259 = vand.u32 %v305, 4294901760
        %v2260 = vsub.f32 %v305, %v2259
        %2261 = vmatpush.msra.mxu0 %v2260
        %v2262 = vand.u32 %v304, 4294901760
        %v2263 = vsub.f32 %v304, %v2262
        %2264 = vmatpush.msra.mxu0 %v2263
        %v2265 = vand.u32 %v303, 4294901760
        %v2266 = vsub.f32 %v303, %v2265
        %2267 = vmatpush.msra.mxu0 %v2266
        %v2268 = vand.u32 %v302, 4294901760
        %v2269 = vsub.f32 %v302, %v2268
        %2270 = vmatpush.msra.mxu0 %v2269
        %v2271 = vand.u32 %v301, 4294901760
        %v2272 = vsub.f32 %v301, %v2271
        %2273 = vmatpush.msra.mxu0 %v2272
        %v2274 = vand.u32 %v300, 4294901760
        %v2275 = vsub.f32 %v300, %v2274
        %2276 = vmatpush.msra.mxu0 %v2275
        %v2277 = vand.u32 %v299, 4294901760
        %v2278 = vsub.f32 %v299, %v2277
        %2279 = vmatpush.msra.mxu0 %v2278
        %v2280 = vand.u32 %v298, 4294901760
        %v2281 = vsub.f32 %v298, %v2280
        %2282 = vmatpush.msra.mxu0 %v2281
        %v2283 = vand.u32 %v297, 4294901760
        %v2284 = vsub.f32 %v297, %v2283
        %2285 = vmatpush.msra.mxu0 %v2284
        %v2286 = vand.u32 %v296, 4294901760
        %v2287 = vsub.f32 %v296, %v2286
        %2288 = vmatpush.msra.mxu0 %v2287
        %v2289 = vand.u32 %v295, 4294901760
        %v2290 = vsub.f32 %v295, %v2289
        %2291 = vmatpush.msra.mxu0 %v2290
        %v2292 = vand.u32 %v2010, 4294901760
        %v2293 = vsub.f32 %v2010, %v2292
        %2294 = vmatmul.f32.gmra.mxu0 %v2293
        %v2295 = vpop.f32.mrf.mxu0
        %v2296 = vadd.f32 %v2214, %v2295
        %v2297 = vand.u32 %v2011, 4294901760
        %v2298 = vsub.f32 %v2011, %v2297
        %2299 = vmatmul.f32.gmra.mxu0 %v2298
        %v2300 = vpop.f32.mrf.mxu0
        %v2301 = vadd.f32 %v2218, %v2300
        %v2302 = vand.u32 %v2012, 4294901760
        %v2303 = vsub.f32 %v2012, %v2302
        %2304 = vmatmul.f32.gmra.mxu0 %v2303
        %v2305 = vpop.f32.mrf.mxu0
        %v2306 = vadd.f32 %v2222, %v2305
        %v2307 = vand.u32 %v2013, 4294901760
        %v2308 = vsub.f32 %v2013, %v2307
        %2309 = vmatmul.f32.gmra.mxu0 %v2308
        %v2310 = vpop.f32.mrf.mxu0
        %v2311 = vadd.f32 %v2226, %v2310
        %v2312 = vand.u32 %v2014, 4294901760
        %v2313 = vsub.f32 %v2014, %v2312
        %2314 = vmatmul.f32.gmra.mxu0 %v2313
        %v2315 = vpop.f32.mrf.mxu0
        %v2316 = vadd.f32 %v2230, %v2315
        %v2317 = vand.u32 %v2015, 4294901760
        %v2318 = vsub.f32 %v2015, %v2317
        %2319 = vmatmul.f32.gmra.mxu0 %v2318
        %v2320 = vpop.f32.mrf.mxu0
        %v2321 = vadd.f32 %v2234, %v2320
        %v2322 = vand.u32 %v2016, 4294901760
        %v2323 = vsub.f32 %v2016, %v2322
        %2324 = vmatmul.f32.gmra.mxu0 %v2323
        %v2325 = vpop.f32.mrf.mxu0
        %v2326 = vadd.f32 %v2238, %v2325
        %v2327 = vand.u32 %v2017, 4294901760
        %v2328 = vsub.f32 %v2017, %v2327
        %2329 = vmatmul.f32.gmra.mxu0 %v2328
        %v2330 = vpop.f32.mrf.mxu0
        %v2331 = vadd.f32 %v2242, %v2330
        %2332 = vdwg.mxu0
        %v2333 = vand.u32 %v310, 4294901760
        %2334 = vmatpush.msra.mxu0 %v2333
        %v2335 = vand.u32 %v309, 4294901760
        %2336 = vmatpush.msra.mxu0 %v2335
        %v2337 = vand.u32 %v308, 4294901760
        %2338 = vmatpush.msra.mxu0 %v2337
        %v2339 = vand.u32 %v307, 4294901760
        %2340 = vmatpush.msra.mxu0 %v2339
        %v2341 = vand.u32 %v306, 4294901760
        %2342 = vmatpush.msra.mxu0 %v2341
        %v2343 = vand.u32 %v305, 4294901760
        %2344 = vmatpush.msra.mxu0 %v2343
        %v2345 = vand.u32 %v304, 4294901760
        %2346 = vmatpush.msra.mxu0 %v2345
        %v2347 = vand.u32 %v303, 4294901760
        %2348 = vmatpush.msra.mxu0 %v2347
        %v2349 = vand.u32 %v302, 4294901760
        %2350 = vmatpush.msra.mxu0 %v2349
        %v2351 = vand.u32 %v301, 4294901760
        %2352 = vmatpush.msra.mxu0 %v2351
        %v2353 = vand.u32 %v300, 4294901760
        %2354 = vmatpush.msra.mxu0 %v2353
        %v2355 = vand.u32 %v299, 4294901760
        %2356 = vmatpush.msra.mxu0 %v2355
        %v2357 = vand.u32 %v298, 4294901760
        %2358 = vmatpush.msra.mxu0 %v2357
        %v2359 = vand.u32 %v297, 4294901760
        %2360 = vmatpush.msra.mxu0 %v2359
        %v2361 = vand.u32 %v296, 4294901760
        %2362 = vmatpush.msra.mxu0 %v2361
        %v2363 = vand.u32 %v295, 4294901760
        %2364 = vmatpush.msra.mxu0 %v2363
        %v2365 = vand.u32 %v2010, 4294901760
        %v2366 = vsub.f32 %v2010, %v2365
        %v2367 = vand.u32 %v2366, 4294901760
        %2368 = vmatmul.f32.gmra.mxu0 %v2367
        %v2369 = vpop.f32.mrf.mxu0
        %v2370 = vadd.f32 %v2296, %v2369
        %v2371 = vand.u32 %v2011, 4294901760
        %v2372 = vsub.f32 %v2011, %v2371
        %v2373 = vand.u32 %v2372, 4294901760
        %2374 = vmatmul.f32.gmra.mxu0 %v2373
        %v2375 = vpop.f32.mrf.mxu0
        %v2376 = vadd.f32 %v2301, %v2375
        %v2377 = vand.u32 %v2012, 4294901760
        %v2378 = vsub.f32 %v2012, %v2377
        %v2379 = vand.u32 %v2378, 4294901760
        %2380 = vmatmul.f32.gmra.mxu0 %v2379
        %v2381 = vpop.f32.mrf.mxu0
        %v2382 = vadd.f32 %v2306, %v2381
        %v2383 = vand.u32 %v2013, 4294901760
        %v2384 = vsub.f32 %v2013, %v2383
        %v2385 = vand.u32 %v2384, 4294901760
        %2386 = vmatmul.f32.gmra.mxu0 %v2385
        %v2387 = vpop.f32.mrf.mxu0
        %v2388 = vadd.f32 %v2311, %v2387
        %v2389 = vand.u32 %v2014, 4294901760
        %v2390 = vsub.f32 %v2014, %v2389
        %v2391 = vand.u32 %v2390, 4294901760
        %2392 = vmatmul.f32.gmra.mxu0 %v2391
        %v2393 = vpop.f32.mrf.mxu0
        %v2394 = vadd.f32 %v2316, %v2393
        %v2395 = vand.u32 %v2015, 4294901760
        %v2396 = vsub.f32 %v2015, %v2395
        %v2397 = vand.u32 %v2396, 4294901760
        %2398 = vmatmul.f32.gmra.mxu0 %v2397
        %v2399 = vpop.f32.mrf.mxu0
        %v2400 = vadd.f32 %v2321, %v2399
        %v2401 = vand.u32 %v2016, 4294901760
        %v2402 = vsub.f32 %v2016, %v2401
        %v2403 = vand.u32 %v2402, 4294901760
        %2404 = vmatmul.f32.gmra.mxu0 %v2403
        %v2405 = vpop.f32.mrf.mxu0
        %v2406 = vadd.f32 %v2326, %v2405
        %v2407 = vand.u32 %v2017, 4294901760
        %v2408 = vsub.f32 %v2017, %v2407
        %v2409 = vand.u32 %v2408, 4294901760
        %2410 = vmatmul.f32.gmra.mxu0 %v2409
        %v2411 = vpop.f32.mrf.mxu0
        %v2412 = vadd.f32 %v2331, %v2411
        %2413 = vdwg.mxu0
        %v2414 = vand.u32 %v310, 4294901760
        %v2415 = vsub.f32 %v310, %v2414
        %v2416 = vand.u32 %v2415, 4294901760
        %2417 = vmatpush.msra.mxu0 %v2416
        %v2418 = vand.u32 %v309, 4294901760
        %v2419 = vsub.f32 %v309, %v2418
        %v2420 = vand.u32 %v2419, 4294901760
        %2421 = vmatpush.msra.mxu0 %v2420
        %v2422 = vand.u32 %v308, 4294901760
        %v2423 = vsub.f32 %v308, %v2422
        %v2424 = vand.u32 %v2423, 4294901760
        %2425 = vmatpush.msra.mxu0 %v2424
        %v2426 = vand.u32 %v307, 4294901760
        %v2427 = vsub.f32 %v307, %v2426
        %v2428 = vand.u32 %v2427, 4294901760
        %2429 = vmatpush.msra.mxu0 %v2428
        %v2430 = vand.u32 %v306, 4294901760
        %v2431 = vsub.f32 %v306, %v2430
        %v2432 = vand.u32 %v2431, 4294901760
        %2433 = vmatpush.msra.mxu0 %v2432
        %v2434 = vand.u32 %v305, 4294901760
        %v2435 = vsub.f32 %v305, %v2434
        %v2436 = vand.u32 %v2435, 4294901760
        %2437 = vmatpush.msra.mxu0 %v2436
        %v2438 = vand.u32 %v304, 4294901760
        %v2439 = vsub.f32 %v304, %v2438
        %v2440 = vand.u32 %v2439, 4294901760
        %2441 = vmatpush.msra.mxu0 %v2440
        %v2442 = vand.u32 %v303, 4294901760
        %v2443 = vsub.f32 %v303, %v2442
        %v2444 = vand.u32 %v2443, 4294901760
        %2445 = vmatpush.msra.mxu0 %v2444
        %v2446 = vand.u32 %v302, 4294901760
        %v2447 = vsub.f32 %v302, %v2446
        %v2448 = vand.u32 %v2447, 4294901760
        %2449 = vmatpush.msra.mxu0 %v2448
        %v2450 = vand.u32 %v301, 4294901760
        %v2451 = vsub.f32 %v301, %v2450
        %v2452 = vand.u32 %v2451, 4294901760
        %2453 = vmatpush.msra.mxu0 %v2452
        %v2454 = vand.u32 %v300, 4294901760
        %v2455 = vsub.f32 %v300, %v2454
        %v2456 = vand.u32 %v2455, 4294901760
        %2457 = vmatpush.msra.mxu0 %v2456
        %v2458 = vand.u32 %v299, 4294901760
        %v2459 = vsub.f32 %v299, %v2458
        %v2460 = vand.u32 %v2459, 4294901760
        %2461 = vmatpush.msra.mxu0 %v2460
        %v2462 = vand.u32 %v298, 4294901760
        %v2463 = vsub.f32 %v298, %v2462
        %v2464 = vand.u32 %v2463, 4294901760
        %2465 = vmatpush.msra.mxu0 %v2464
        %v2466 = vand.u32 %v297, 4294901760
        %v2467 = vsub.f32 %v297, %v2466
        %v2468 = vand.u32 %v2467, 4294901760
        %2469 = vmatpush.msra.mxu0 %v2468
        %v2470 = vand.u32 %v296, 4294901760
        %v2471 = vsub.f32 %v296, %v2470
        %v2472 = vand.u32 %v2471, 4294901760
        %2473 = vmatpush.msra.mxu0 %v2472
        %v2474 = vand.u32 %v295, 4294901760
        %v2475 = vsub.f32 %v295, %v2474
        %v2476 = vand.u32 %v2475, 4294901760
        %2477 = vmatpush.msra.mxu0 %v2476
        %v2478 = vand.u32 %v2010, 4294901760
        %2479 = vmatmul.f32.gmra.mxu0 %v2478
        %v2480 = vpop.f32.mrf.mxu0
        %v2481 = vadd.f32 %v2370, %v2480
        %v2482 = vand.u32 %v2011, 4294901760
        %2483 = vmatmul.f32.gmra.mxu0 %v2482
        %v2484 = vpop.f32.mrf.mxu0
        %v2485 = vadd.f32 %v2376, %v2484
        %v2486 = vand.u32 %v2012, 4294901760
        %2487 = vmatmul.f32.gmra.mxu0 %v2486
        %v2488 = vpop.f32.mrf.mxu0
        %v2489 = vadd.f32 %v2382, %v2488
        %v2490 = vand.u32 %v2013, 4294901760
        %2491 = vmatmul.f32.gmra.mxu0 %v2490
        %v2492 = vpop.f32.mrf.mxu0
        %v2493 = vadd.f32 %v2388, %v2492
        %v2494 = vand.u32 %v2014, 4294901760
        %2495 = vmatmul.f32.gmra.mxu0 %v2494
        %v2496 = vpop.f32.mrf.mxu0
        %v2497 = vadd.f32 %v2394, %v2496
        %v2498 = vand.u32 %v2015, 4294901760
        %2499 = vmatmul.f32.gmra.mxu0 %v2498
        %v2500 = vpop.f32.mrf.mxu0
        %v2501 = vadd.f32 %v2400, %v2500
        %v2502 = vand.u32 %v2016, 4294901760
        %2503 = vmatmul.f32.gmra.mxu0 %v2502
        %v2504 = vpop.f32.mrf.mxu0
        %v2505 = vadd.f32 %v2406, %v2504
        %v2506 = vand.u32 %v2017, 4294901760
        %2507 = vmatmul.f32.gmra.mxu0 %v2506
        %v2508 = vpop.f32.mrf.mxu0
        %v2509 = vadd.f32 %v2412, %v2508
        %2510 = vdwg.mxu0
        %v2511 = vand.u32 %v310, 4294901760
        %2512 = vmatpush.msra.mxu0 %v2511
        %v2513 = vand.u32 %v309, 4294901760
        %2514 = vmatpush.msra.mxu0 %v2513
        %v2515 = vand.u32 %v308, 4294901760
        %2516 = vmatpush.msra.mxu0 %v2515
        %v2517 = vand.u32 %v307, 4294901760
        %2518 = vmatpush.msra.mxu0 %v2517
        %v2519 = vand.u32 %v306, 4294901760
        %2520 = vmatpush.msra.mxu0 %v2519
        %v2521 = vand.u32 %v305, 4294901760
        %2522 = vmatpush.msra.mxu0 %v2521
        %v2523 = vand.u32 %v304, 4294901760
        %2524 = vmatpush.msra.mxu0 %v2523
        %v2525 = vand.u32 %v303, 4294901760
        %2526 = vmatpush.msra.mxu0 %v2525
        %v2527 = vand.u32 %v302, 4294901760
        %2528 = vmatpush.msra.mxu0 %v2527
        %v2529 = vand.u32 %v301, 4294901760
        %2530 = vmatpush.msra.mxu0 %v2529
        %v2531 = vand.u32 %v300, 4294901760
        %2532 = vmatpush.msra.mxu0 %v2531
        %v2533 = vand.u32 %v299, 4294901760
        %2534 = vmatpush.msra.mxu0 %v2533
        %v2535 = vand.u32 %v298, 4294901760
        %2536 = vmatpush.msra.mxu0 %v2535
        %v2537 = vand.u32 %v297, 4294901760
        %2538 = vmatpush.msra.mxu0 %v2537
        %v2539 = vand.u32 %v296, 4294901760
        %2540 = vmatpush.msra.mxu0 %v2539
        %v2541 = vand.u32 %v295, 4294901760
        %2542 = vmatpush.msra.mxu0 %v2541
        %v2543 = vand.u32 %v2010, 4294901760
        %2544 = vmatmul.f32.gmra.mxu0 %v2543
        %v2545 = vpop.f32.mrf.mxu0
        %v2546 = vadd.f32 %v2481, %v2545
        %v2547 = vand.u32 %v2011, 4294901760
        %2548 = vmatmul.f32.gmra.mxu0 %v2547
        %v2549 = vpop.f32.mrf.mxu0
        %v2550 = vadd.f32 %v2485, %v2549
        %v2551 = vand.u32 %v2012, 4294901760
        %2552 = vmatmul.f32.gmra.mxu0 %v2551
        %v2553 = vpop.f32.mrf.mxu0
        %v2554 = vadd.f32 %v2489, %v2553
        %v2555 = vand.u32 %v2013, 4294901760
        %2556 = vmatmul.f32.gmra.mxu0 %v2555
        %v2557 = vpop.f32.mrf.mxu0
        %v2558 = vadd.f32 %v2493, %v2557
        %v2559 = vand.u32 %v2014, 4294901760
        %2560 = vmatmul.f32.gmra.mxu0 %v2559
        %v2561 = vpop.f32.mrf.mxu0
        %v2562 = vadd.f32 %v2497, %v2561
        %v2563 = vand.u32 %v2015, 4294901760
        %2564 = vmatmul.f32.gmra.mxu0 %v2563
        %v2565 = vpop.f32.mrf.mxu0
        %v2566 = vadd.f32 %v2501, %v2565
        %v2567 = vand.u32 %v2016, 4294901760
        %2568 = vmatmul.f32.gmra.mxu0 %v2567
        %v2569 = vpop.f32.mrf.mxu0
        %v2570 = vadd.f32 %v2505, %v2569
        %v2571 = vand.u32 %v2017, 4294901760
        %2572 = vmatmul.f32.gmra.mxu0 %v2571
        %v2573 = vpop.f32.mrf.mxu0
        %v2574 = vadd.f32 %v2509, %v2573
        %2575 = vdwg.mxu0
        %v2576 = vmul.f32 %v312, %v320
        %v2577 = vmul.f32 %v313, %v321
        %v2578 = vmul.f32 %v314, %v322
        %v2579 = vmul.f32 %v315, %v323
        %v2580 = vmul.f32 %v316, %v324
        %v2581 = vmul.f32 %v317, %v325
        %v2582 = vmul.f32 %v318, %v326
        %v2583 = vmul.f32 %v319, %v327
        %v2584 = vand.u32 %v310, 4294901760
        %2585 = vmatpush.msra.mxu0 %v2584
        %v2586 = vand.u32 %v309, 4294901760
        %2587 = vmatpush.msra.mxu0 %v2586
        %v2588 = vand.u32 %v308, 4294901760
        %2589 = vmatpush.msra.mxu0 %v2588
        %v2590 = vand.u32 %v307, 4294901760
        %2591 = vmatpush.msra.mxu0 %v2590
        %v2592 = vand.u32 %v306, 4294901760
        %2593 = vmatpush.msra.mxu0 %v2592
        %v2594 = vand.u32 %v305, 4294901760
        %2595 = vmatpush.msra.mxu0 %v2594
        %v2596 = vand.u32 %v304, 4294901760
        %2597 = vmatpush.msra.mxu0 %v2596
        %v2598 = vand.u32 %v303, 4294901760
        %2599 = vmatpush.msra.mxu0 %v2598
        %v2600 = vand.u32 %v302, 4294901760
        %2601 = vmatpush.msra.mxu0 %v2600
        %v2602 = vand.u32 %v301, 4294901760
        %2603 = vmatpush.msra.mxu0 %v2602
        %v2604 = vand.u32 %v300, 4294901760
        %2605 = vmatpush.msra.mxu0 %v2604
        %v2606 = vand.u32 %v299, 4294901760
        %2607 = vmatpush.msra.mxu0 %v2606
        %v2608 = vand.u32 %v298, 4294901760
        %2609 = vmatpush.msra.mxu0 %v2608
        %v2610 = vand.u32 %v297, 4294901760
        %2611 = vmatpush.msra.mxu0 %v2610
        %v2612 = vand.u32 %v296, 4294901760
        %2613 = vmatpush.msra.mxu0 %v2612
        %v2614 = vand.u32 %v295, 4294901760
        %2615 = vmatpush.msra.mxu0 %v2614
        %v2616 = vand.u32 %v2576, 4294901760
        %v2617 = vsub.f32 %v2576, %v2616
        %v2618 = vand.u32 %v2617, 4294901760
        %v2619 = vsub.f32 %v2617, %v2618
        %v2620 = vand.u32 %v2619, 4294901760
        %2621 = vmatmul.f32.gmra.mxu0 %v2620
        %v2622 = vpop.f32.mrf.mxu0
        %v2623 = vadd.f32 0.0, %v2622
        %v2624 = vand.u32 %v2577, 4294901760
        %v2625 = vsub.f32 %v2577, %v2624
        %v2626 = vand.u32 %v2625, 4294901760
        %v2627 = vsub.f32 %v2625, %v2626
        %v2628 = vand.u32 %v2627, 4294901760
        %2629 = vmatmul.f32.gmra.mxu0 %v2628
        %v2630 = vpop.f32.mrf.mxu0
        %v2631 = vadd.f32 0.0, %v2630
        %v2632 = vand.u32 %v2578, 4294901760
        %v2633 = vsub.f32 %v2578, %v2632
        %v2634 = vand.u32 %v2633, 4294901760
        %v2635 = vsub.f32 %v2633, %v2634
        %v2636 = vand.u32 %v2635, 4294901760
        %2637 = vmatmul.f32.gmra.mxu0 %v2636
        %v2638 = vpop.f32.mrf.mxu0
        %v2639 = vadd.f32 0.0, %v2638
        %v2640 = vand.u32 %v2579, 4294901760
        %v2641 = vsub.f32 %v2579, %v2640
        %v2642 = vand.u32 %v2641, 4294901760
        %v2643 = vsub.f32 %v2641, %v2642
        %v2644 = vand.u32 %v2643, 4294901760
        %2645 = vmatmul.f32.gmra.mxu0 %v2644
        %v2646 = vpop.f32.mrf.mxu0
        %v2647 = vadd.f32 0.0, %v2646
        %v2648 = vand.u32 %v2580, 4294901760
        %v2649 = vsub.f32 %v2580, %v2648
        %v2650 = vand.u32 %v2649, 4294901760
        %v2651 = vsub.f32 %v2649, %v2650
        %v2652 = vand.u32 %v2651, 4294901760
        %2653 = vmatmul.f32.gmra.mxu0 %v2652
        %v2654 = vpop.f32.mrf.mxu0
        %v2655 = vadd.f32 0.0, %v2654
        %v2656 = vand.u32 %v2581, 4294901760
        %v2657 = vsub.f32 %v2581, %v2656
        %v2658 = vand.u32 %v2657, 4294901760
        %v2659 = vsub.f32 %v2657, %v2658
        %v2660 = vand.u32 %v2659, 4294901760
        %2661 = vmatmul.f32.gmra.mxu0 %v2660
        %v2662 = vpop.f32.mrf.mxu0
        %v2663 = vadd.f32 0.0, %v2662
        %v2664 = vand.u32 %v2582, 4294901760
        %v2665 = vsub.f32 %v2582, %v2664
        %v2666 = vand.u32 %v2665, 4294901760
        %v2667 = vsub.f32 %v2665, %v2666
        %v2668 = vand.u32 %v2667, 4294901760
        %2669 = vmatmul.f32.gmra.mxu0 %v2668
        %v2670 = vpop.f32.mrf.mxu0
        %v2671 = vadd.f32 0.0, %v2670
        %v2672 = vand.u32 %v2583, 4294901760
        %v2673 = vsub.f32 %v2583, %v2672
        %v2674 = vand.u32 %v2673, 4294901760
        %v2675 = vsub.f32 %v2673, %v2674
        %v2676 = vand.u32 %v2675, 4294901760
        %2677 = vmatmul.f32.gmra.mxu0 %v2676
        %v2678 = vpop.f32.mrf.mxu0
        %v2679 = vadd.f32 0.0, %v2678
        %2680 = vdwg.mxu0
        %v2681 = vand.u32 %v310, 4294901760
        %v2682 = vsub.f32 %v310, %v2681
        %v2683 = vand.u32 %v2682, 4294901760
        %v2684 = vsub.f32 %v2682, %v2683
        %v2685 = vand.u32 %v2684, 4294901760
        %2686 = vmatpush.msra.mxu0 %v2685
        %v2687 = vand.u32 %v309, 4294901760
        %v2688 = vsub.f32 %v309, %v2687
        %v2689 = vand.u32 %v2688, 4294901760
        %v2690 = vsub.f32 %v2688, %v2689
        %v2691 = vand.u32 %v2690, 4294901760
        %2692 = vmatpush.msra.mxu0 %v2691
        %v2693 = vand.u32 %v308, 4294901760
        %v2694 = vsub.f32 %v308, %v2693
        %v2695 = vand.u32 %v2694, 4294901760
        %v2696 = vsub.f32 %v2694, %v2695
        %v2697 = vand.u32 %v2696, 4294901760
        %2698 = vmatpush.msra.mxu0 %v2697
        %v2699 = vand.u32 %v307, 4294901760
        %v2700 = vsub.f32 %v307, %v2699
        %v2701 = vand.u32 %v2700, 4294901760
        %v2702 = vsub.f32 %v2700, %v2701
        %v2703 = vand.u32 %v2702, 4294901760
        %2704 = vmatpush.msra.mxu0 %v2703
        %v2705 = vand.u32 %v306, 4294901760
        %v2706 = vsub.f32 %v306, %v2705
        %v2707 = vand.u32 %v2706, 4294901760
        %v2708 = vsub.f32 %v2706, %v2707
        %v2709 = vand.u32 %v2708, 4294901760
        %2710 = vmatpush.msra.mxu0 %v2709
        %v2711 = vand.u32 %v305, 4294901760
        %v2712 = vsub.f32 %v305, %v2711
        %v2713 = vand.u32 %v2712, 4294901760
        %v2714 = vsub.f32 %v2712, %v2713
        %v2715 = vand.u32 %v2714, 4294901760
        %2716 = vmatpush.msra.mxu0 %v2715
        %v2717 = vand.u32 %v304, 4294901760
        %v2718 = vsub.f32 %v304, %v2717
        %v2719 = vand.u32 %v2718, 4294901760
        %v2720 = vsub.f32 %v2718, %v2719
        %v2721 = vand.u32 %v2720, 4294901760
        %2722 = vmatpush.msra.mxu0 %v2721
        %v2723 = vand.u32 %v303, 4294901760
        %v2724 = vsub.f32 %v303, %v2723
        %v2725 = vand.u32 %v2724, 4294901760
        %v2726 = vsub.f32 %v2724, %v2725
        %v2727 = vand.u32 %v2726, 4294901760
        %2728 = vmatpush.msra.mxu0 %v2727
        %v2729 = vand.u32 %v302, 4294901760
        %v2730 = vsub.f32 %v302, %v2729
        %v2731 = vand.u32 %v2730, 4294901760
        %v2732 = vsub.f32 %v2730, %v2731
        %v2733 = vand.u32 %v2732, 4294901760
        %2734 = vmatpush.msra.mxu0 %v2733
        %v2735 = vand.u32 %v301, 4294901760
        %v2736 = vsub.f32 %v301, %v2735
        %v2737 = vand.u32 %v2736, 4294901760
        %v2738 = vsub.f32 %v2736, %v2737
        %v2739 = vand.u32 %v2738, 4294901760
        %2740 = vmatpush.msra.mxu0 %v2739
        %v2741 = vand.u32 %v300, 4294901760
        %v2742 = vsub.f32 %v300, %v2741
        %v2743 = vand.u32 %v2742, 4294901760
        %v2744 = vsub.f32 %v2742, %v2743
        %v2745 = vand.u32 %v2744, 4294901760
        %2746 = vmatpush.msra.mxu0 %v2745
        %v2747 = vand.u32 %v299, 4294901760
        %v2748 = vsub.f32 %v299, %v2747
        %v2749 = vand.u32 %v2748, 4294901760
        %v2750 = vsub.f32 %v2748, %v2749
        %v2751 = vand.u32 %v2750, 4294901760
        %2752 = vmatpush.msra.mxu0 %v2751
        %v2753 = vand.u32 %v298, 4294901760
        %v2754 = vsub.f32 %v298, %v2753
        %v2755 = vand.u32 %v2754, 4294901760
        %v2756 = vsub.f32 %v2754, %v2755
        %v2757 = vand.u32 %v2756, 4294901760
        %2758 = vmatpush.msra.mxu0 %v2757
        %v2759 = vand.u32 %v297, 4294901760
        %v2760 = vsub.f32 %v297, %v2759
        %v2761 = vand.u32 %v2760, 4294901760
        %v2762 = vsub.f32 %v2760, %v2761
        %v2763 = vand.u32 %v2762, 4294901760
        %2764 = vmatpush.msra.mxu0 %v2763
        %v2765 = vand.u32 %v296, 4294901760
        %v2766 = vsub.f32 %v296, %v2765
        %v2767 = vand.u32 %v2766, 4294901760
        %v2768 = vsub.f32 %v2766, %v2767
        %v2769 = vand.u32 %v2768, 4294901760
        %2770 = vmatpush.msra.mxu0 %v2769
        %v2771 = vand.u32 %v295, 4294901760
        %v2772 = vsub.f32 %v295, %v2771
        %v2773 = vand.u32 %v2772, 4294901760
        %v2774 = vsub.f32 %v2772, %v2773
        %v2775 = vand.u32 %v2774, 4294901760
        %2776 = vmatpush.msra.mxu0 %v2775
        %v2777 = vand.u32 %v2576, 4294901760
        %2778 = vmatmul.f32.gmra.mxu0 %v2777
        %v2779 = vpop.f32.mrf.mxu0
        %v2780 = vadd.f32 %v2623, %v2779
        %v2781 = vand.u32 %v2577, 4294901760
        %2782 = vmatmul.f32.gmra.mxu0 %v2781
        %v2783 = vpop.f32.mrf.mxu0
        %v2784 = vadd.f32 %v2631, %v2783
        %v2785 = vand.u32 %v2578, 4294901760
        %2786 = vmatmul.f32.gmra.mxu0 %v2785
        %v2787 = vpop.f32.mrf.mxu0
        %v2788 = vadd.f32 %v2639, %v2787
        %v2789 = vand.u32 %v2579, 4294901760
        %2790 = vmatmul.f32.gmra.mxu0 %v2789
        %v2791 = vpop.f32.mrf.mxu0
        %v2792 = vadd.f32 %v2647, %v2791
        %v2793 = vand.u32 %v2580, 4294901760
        %2794 = vmatmul.f32.gmra.mxu0 %v2793
        %v2795 = vpop.f32.mrf.mxu0
        %v2796 = vadd.f32 %v2655, %v2795
        %v2797 = vand.u32 %v2581, 4294901760
        %2798 = vmatmul.f32.gmra.mxu0 %v2797
        %v2799 = vpop.f32.mrf.mxu0
        %v2800 = vadd.f32 %v2663, %v2799
        %v2801 = vand.u32 %v2582, 4294901760
        %2802 = vmatmul.f32.gmra.mxu0 %v2801
        %v2803 = vpop.f32.mrf.mxu0
        %v2804 = vadd.f32 %v2671, %v2803
        %v2805 = vand.u32 %v2583, 4294901760
        %2806 = vmatmul.f32.gmra.mxu0 %v2805
        %v2807 = vpop.f32.mrf.mxu0
        %v2808 = vadd.f32 %v2679, %v2807
        %2809 = vdwg.mxu0
        %v2810 = vand.u32 %v310, 4294901760
        %v2811 = vsub.f32 %v310, %v2810
        %2812 = vmatpush.msra.mxu0 %v2811
        %v2813 = vand.u32 %v309, 4294901760
        %v2814 = vsub.f32 %v309, %v2813
        %2815 = vmatpush.msra.mxu0 %v2814
        %v2816 = vand.u32 %v308, 4294901760
        %v2817 = vsub.f32 %v308, %v2816
        %2818 = vmatpush.msra.mxu0 %v2817
        %v2819 = vand.u32 %v307, 4294901760
        %v2820 = vsub.f32 %v307, %v2819
        %2821 = vmatpush.msra.mxu0 %v2820
        %v2822 = vand.u32 %v306, 4294901760
        %v2823 = vsub.f32 %v306, %v2822
        %2824 = vmatpush.msra.mxu0 %v2823
        %v2825 = vand.u32 %v305, 4294901760
        %v2826 = vsub.f32 %v305, %v2825
        %2827 = vmatpush.msra.mxu0 %v2826
        %v2828 = vand.u32 %v304, 4294901760
        %v2829 = vsub.f32 %v304, %v2828
        %2830 = vmatpush.msra.mxu0 %v2829
        %v2831 = vand.u32 %v303, 4294901760
        %v2832 = vsub.f32 %v303, %v2831
        %2833 = vmatpush.msra.mxu0 %v2832
        %v2834 = vand.u32 %v302, 4294901760
        %v2835 = vsub.f32 %v302, %v2834
        %2836 = vmatpush.msra.mxu0 %v2835
        %v2837 = vand.u32 %v301, 4294901760
        %v2838 = vsub.f32 %v301, %v2837
        %2839 = vmatpush.msra.mxu0 %v2838
        %v2840 = vand.u32 %v300, 4294901760
        %v2841 = vsub.f32 %v300, %v2840
        %2842 = vmatpush.msra.mxu0 %v2841
        %v2843 = vand.u32 %v299, 4294901760
        %v2844 = vsub.f32 %v299, %v2843
        %2845 = vmatpush.msra.mxu0 %v2844
        %v2846 = vand.u32 %v298, 4294901760
        %v2847 = vsub.f32 %v298, %v2846
        %2848 = vmatpush.msra.mxu0 %v2847
        %v2849 = vand.u32 %v297, 4294901760
        %v2850 = vsub.f32 %v297, %v2849
        %2851 = vmatpush.msra.mxu0 %v2850
        %v2852 = vand.u32 %v296, 4294901760
        %v2853 = vsub.f32 %v296, %v2852
        %2854 = vmatpush.msra.mxu0 %v2853
        %v2855 = vand.u32 %v295, 4294901760
        %v2856 = vsub.f32 %v295, %v2855
        %2857 = vmatpush.msra.mxu0 %v2856
        %v2858 = vand.u32 %v2576, 4294901760
        %v2859 = vsub.f32 %v2576, %v2858
        %2860 = vmatmul.f32.gmra.mxu0 %v2859
        %v2861 = vpop.f32.mrf.mxu0
        %v2862 = vadd.f32 %v2780, %v2861
        %v2863 = vand.u32 %v2577, 4294901760
        %v2864 = vsub.f32 %v2577, %v2863
        %2865 = vmatmul.f32.gmra.mxu0 %v2864
        %v2866 = vpop.f32.mrf.mxu0
        %v2867 = vadd.f32 %v2784, %v2866
        %v2868 = vand.u32 %v2578, 4294901760
        %v2869 = vsub.f32 %v2578, %v2868
        %2870 = vmatmul.f32.gmra.mxu0 %v2869
        %v2871 = vpop.f32.mrf.mxu0
        %v2872 = vadd.f32 %v2788, %v2871
        %v2873 = vand.u32 %v2579, 4294901760
        %v2874 = vsub.f32 %v2579, %v2873
        %2875 = vmatmul.f32.gmra.mxu0 %v2874
        %v2876 = vpop.f32.mrf.mxu0
        %v2877 = vadd.f32 %v2792, %v2876
        %v2878 = vand.u32 %v2580, 4294901760
        %v2879 = vsub.f32 %v2580, %v2878
        %2880 = vmatmul.f32.gmra.mxu0 %v2879
        %v2881 = vpop.f32.mrf.mxu0
        %v2882 = vadd.f32 %v2796, %v2881
        %v2883 = vand.u32 %v2581, 4294901760
        %v2884 = vsub.f32 %v2581, %v2883
        %2885 = vmatmul.f32.gmra.mxu0 %v2884
        %v2886 = vpop.f32.mrf.mxu0
        %v2887 = vadd.f32 %v2800, %v2886
        %v2888 = vand.u32 %v2582, 4294901760
        %v2889 = vsub.f32 %v2582, %v2888
        %2890 = vmatmul.f32.gmra.mxu0 %v2889
        %v2891 = vpop.f32.mrf.mxu0
        %v2892 = vadd.f32 %v2804, %v2891
        %v2893 = vand.u32 %v2583, 4294901760
        %v2894 = vsub.f32 %v2583, %v2893
        %2895 = vmatmul.f32.gmra.mxu0 %v2894
        %v2896 = vpop.f32.mrf.mxu0
        %v2897 = vadd.f32 %v2808, %v2896
        %2898 = vdwg.mxu0
        %v2899 = vand.u32 %v310, 4294901760
        %2900 = vmatpush.msra.mxu0 %v2899
        %v2901 = vand.u32 %v309, 4294901760
        %2902 = vmatpush.msra.mxu0 %v2901
        %v2903 = vand.u32 %v308, 4294901760
        %2904 = vmatpush.msra.mxu0 %v2903
        %v2905 = vand.u32 %v307, 4294901760
        %2906 = vmatpush.msra.mxu0 %v2905
        %v2907 = vand.u32 %v306, 4294901760
        %2908 = vmatpush.msra.mxu0 %v2907
        %v2909 = vand.u32 %v305, 4294901760
        %2910 = vmatpush.msra.mxu0 %v2909
        %v2911 = vand.u32 %v304, 4294901760
        %2912 = vmatpush.msra.mxu0 %v2911
        %v2913 = vand.u32 %v303, 4294901760
        %2914 = vmatpush.msra.mxu0 %v2913
        %v2915 = vand.u32 %v302, 4294901760
        %2916 = vmatpush.msra.mxu0 %v2915
        %v2917 = vand.u32 %v301, 4294901760
        %2918 = vmatpush.msra.mxu0 %v2917
        %v2919 = vand.u32 %v300, 4294901760
        %2920 = vmatpush.msra.mxu0 %v2919
        %v2921 = vand.u32 %v299, 4294901760
        %2922 = vmatpush.msra.mxu0 %v2921
        %v2923 = vand.u32 %v298, 4294901760
        %2924 = vmatpush.msra.mxu0 %v2923
        %v2925 = vand.u32 %v297, 4294901760
        %2926 = vmatpush.msra.mxu0 %v2925
        %v2927 = vand.u32 %v296, 4294901760
        %2928 = vmatpush.msra.mxu0 %v2927
        %v2929 = vand.u32 %v295, 4294901760
        %2930 = vmatpush.msra.mxu0 %v2929
        %v2931 = vand.u32 %v2576, 4294901760
        %v2932 = vsub.f32 %v2576, %v2931
        %v2933 = vand.u32 %v2932, 4294901760
        %2934 = vmatmul.f32.gmra.mxu0 %v2933
        %v2935 = vpop.f32.mrf.mxu0
        %v2936 = vadd.f32 %v2862, %v2935
        %v2937 = vand.u32 %v2577, 4294901760
        %v2938 = vsub.f32 %v2577, %v2937
        %v2939 = vand.u32 %v2938, 4294901760
        %2940 = vmatmul.f32.gmra.mxu0 %v2939
        %v2941 = vpop.f32.mrf.mxu0
        %v2942 = vadd.f32 %v2867, %v2941
        %v2943 = vand.u32 %v2578, 4294901760
        %v2944 = vsub.f32 %v2578, %v2943
        %v2945 = vand.u32 %v2944, 4294901760
        %2946 = vmatmul.f32.gmra.mxu0 %v2945
        %v2947 = vpop.f32.mrf.mxu0
        %v2948 = vadd.f32 %v2872, %v2947
        %v2949 = vand.u32 %v2579, 4294901760
        %v2950 = vsub.f32 %v2579, %v2949
        %v2951 = vand.u32 %v2950, 4294901760
        %2952 = vmatmul.f32.gmra.mxu0 %v2951
        %v2953 = vpop.f32.mrf.mxu0
        %v2954 = vadd.f32 %v2877, %v2953
        %v2955 = vand.u32 %v2580, 4294901760
        %v2956 = vsub.f32 %v2580, %v2955
        %v2957 = vand.u32 %v2956, 4294901760
        %2958 = vmatmul.f32.gmra.mxu0 %v2957
        %v2959 = vpop.f32.mrf.mxu0
        %v2960 = vadd.f32 %v2882, %v2959
        %v2961 = vand.u32 %v2581, 4294901760
        %v2962 = vsub.f32 %v2581, %v2961
        %v2963 = vand.u32 %v2962, 4294901760
        %2964 = vmatmul.f32.gmra.mxu0 %v2963
        %v2965 = vpop.f32.mrf.mxu0
        %v2966 = vadd.f32 %v2887, %v2965
        %v2967 = vand.u32 %v2582, 4294901760
        %v2968 = vsub.f32 %v2582, %v2967
        %v2969 = vand.u32 %v2968, 4294901760
        %2970 = vmatmul.f32.gmra.mxu0 %v2969
        %v2971 = vpop.f32.mrf.mxu0
        %v2972 = vadd.f32 %v2892, %v2971
        %v2973 = vand.u32 %v2583, 4294901760
        %v2974 = vsub.f32 %v2583, %v2973
        %v2975 = vand.u32 %v2974, 4294901760
        %2976 = vmatmul.f32.gmra.mxu0 %v2975
        %v2977 = vpop.f32.mrf.mxu0
        %v2978 = vadd.f32 %v2897, %v2977
        %2979 = vdwg.mxu0
        %v2980 = vand.u32 %v310, 4294901760
        %v2981 = vsub.f32 %v310, %v2980
        %v2982 = vand.u32 %v2981, 4294901760
        %2983 = vmatpush.msra.mxu0 %v2982
        %v2984 = vand.u32 %v309, 4294901760
        %v2985 = vsub.f32 %v309, %v2984
        %v2986 = vand.u32 %v2985, 4294901760
        %2987 = vmatpush.msra.mxu0 %v2986
        %v2988 = vand.u32 %v308, 4294901760
        %v2989 = vsub.f32 %v308, %v2988
        %v2990 = vand.u32 %v2989, 4294901760
        %2991 = vmatpush.msra.mxu0 %v2990
        %v2992 = vand.u32 %v307, 4294901760
        %v2993 = vsub.f32 %v307, %v2992
        %v2994 = vand.u32 %v2993, 4294901760
        %2995 = vmatpush.msra.mxu0 %v2994
        %v2996 = vand.u32 %v306, 4294901760
        %v2997 = vsub.f32 %v306, %v2996
        %v2998 = vand.u32 %v2997, 4294901760
        %2999 = vmatpush.msra.mxu0 %v2998
        %v3000 = vand.u32 %v305, 4294901760
        %v3001 = vsub.f32 %v305, %v3000
        %v3002 = vand.u32 %v3001, 4294901760
        %3003 = vmatpush.msra.mxu0 %v3002
        %v3004 = vand.u32 %v304, 4294901760
        %v3005 = vsub.f32 %v304, %v3004
        %v3006 = vand.u32 %v3005, 4294901760
        %3007 = vmatpush.msra.mxu0 %v3006
        %v3008 = vand.u32 %v303, 4294901760
        %v3009 = vsub.f32 %v303, %v3008
        %v3010 = vand.u32 %v3009, 4294901760
        %3011 = vmatpush.msra.mxu0 %v3010
        %v3012 = vand.u32 %v302, 4294901760
        %v3013 = vsub.f32 %v302, %v3012
        %v3014 = vand.u32 %v3013, 4294901760
        %3015 = vmatpush.msra.mxu0 %v3014
        %v3016 = vand.u32 %v301, 4294901760
        %v3017 = vsub.f32 %v301, %v3016
        %v3018 = vand.u32 %v3017, 4294901760
        %3019 = vmatpush.msra.mxu0 %v3018
        %v3020 = vand.u32 %v300, 4294901760
        %v3021 = vsub.f32 %v300, %v3020
        %v3022 = vand.u32 %v3021, 4294901760
        %3023 = vmatpush.msra.mxu0 %v3022
        %v3024 = vand.u32 %v299, 4294901760
        %v3025 = vsub.f32 %v299, %v3024
        %v3026 = vand.u32 %v3025, 4294901760
        %3027 = vmatpush.msra.mxu0 %v3026
        %v3028 = vand.u32 %v298, 4294901760
        %v3029 = vsub.f32 %v298, %v3028
        %v3030 = vand.u32 %v3029, 4294901760
        %3031 = vmatpush.msra.mxu0 %v3030
        %v3032 = vand.u32 %v297, 4294901760
        %v3033 = vsub.f32 %v297, %v3032
        %v3034 = vand.u32 %v3033, 4294901760
        %3035 = vmatpush.msra.mxu0 %v3034
        %v3036 = vand.u32 %v296, 4294901760
        %v3037 = vsub.f32 %v296, %v3036
        %v3038 = vand.u32 %v3037, 4294901760
        %3039 = vmatpush.msra.mxu0 %v3038
        %v3040 = vand.u32 %v295, 4294901760
        %v3041 = vsub.f32 %v295, %v3040
        %v3042 = vand.u32 %v3041, 4294901760
        %3043 = vmatpush.msra.mxu0 %v3042
        %v3044 = vand.u32 %v2576, 4294901760
        %3045 = vmatmul.f32.gmra.mxu0 %v3044
        %v3046 = vpop.f32.mrf.mxu0
        %v3047 = vadd.f32 %v2936, %v3046
        %v3048 = vand.u32 %v2577, 4294901760
        %3049 = vmatmul.f32.gmra.mxu0 %v3048
        %v3050 = vpop.f32.mrf.mxu0
        %v3051 = vadd.f32 %v2942, %v3050
        %v3052 = vand.u32 %v2578, 4294901760
        %3053 = vmatmul.f32.gmra.mxu0 %v3052
        %v3054 = vpop.f32.mrf.mxu0
        %v3055 = vadd.f32 %v2948, %v3054
        %v3056 = vand.u32 %v2579, 4294901760
        %3057 = vmatmul.f32.gmra.mxu0 %v3056
        %v3058 = vpop.f32.mrf.mxu0
        %v3059 = vadd.f32 %v2954, %v3058
        %v3060 = vand.u32 %v2580, 4294901760
        %3061 = vmatmul.f32.gmra.mxu0 %v3060
        %v3062 = vpop.f32.mrf.mxu0
        %v3063 = vadd.f32 %v2960, %v3062
        %v3064 = vand.u32 %v2581, 4294901760
        %3065 = vmatmul.f32.gmra.mxu0 %v3064
        %v3066 = vpop.f32.mrf.mxu0
        %v3067 = vadd.f32 %v2966, %v3066
        %v3068 = vand.u32 %v2582, 4294901760
        %3069 = vmatmul.f32.gmra.mxu0 %v3068
        %v3070 = vpop.f32.mrf.mxu0
        %v3071 = vadd.f32 %v2972, %v3070
        %v3072 = vand.u32 %v2583, 4294901760
        %3073 = vmatmul.f32.gmra.mxu0 %v3072
        %v3074 = vpop.f32.mrf.mxu0
        %v3075 = vadd.f32 %v2978, %v3074
        %3076 = vdwg.mxu0
        %v3077 = vand.u32 %v310, 4294901760
        %3078 = vmatpush.msra.mxu0 %v3077
        %v3079 = vand.u32 %v309, 4294901760
        %3080 = vmatpush.msra.mxu0 %v3079
        %v3081 = vand.u32 %v308, 4294901760
        %3082 = vmatpush.msra.mxu0 %v3081
        %v3083 = vand.u32 %v307, 4294901760
        %3084 = vmatpush.msra.mxu0 %v3083
        %v3085 = vand.u32 %v306, 4294901760
        %3086 = vmatpush.msra.mxu0 %v3085
        %v3087 = vand.u32 %v305, 4294901760
        %3088 = vmatpush.msra.mxu0 %v3087
        %v3089 = vand.u32 %v304, 4294901760
        %3090 = vmatpush.msra.mxu0 %v3089
        %v3091 = vand.u32 %v303, 4294901760
        %3092 = vmatpush.msra.mxu0 %v3091
        %v3093 = vand.u32 %v302, 4294901760
        %3094 = vmatpush.msra.mxu0 %v3093
        %v3095 = vand.u32 %v301, 4294901760
        %3096 = vmatpush.msra.mxu0 %v3095
        %v3097 = vand.u32 %v300, 4294901760
        %3098 = vmatpush.msra.mxu0 %v3097
        %v3099 = vand.u32 %v299, 4294901760
        %3100 = vmatpush.msra.mxu0 %v3099
        %v3101 = vand.u32 %v298, 4294901760
        %3102 = vmatpush.msra.mxu0 %v3101
        %v3103 = vand.u32 %v297, 4294901760
        %3104 = vmatpush.msra.mxu0 %v3103
        %v3105 = vand.u32 %v296, 4294901760
        %3106 = vmatpush.msra.mxu0 %v3105
        %v3107 = vand.u32 %v295, 4294901760
        %3108 = vmatpush.msra.mxu0 %v3107
        %v3109 = vand.u32 %v2576, 4294901760
        %3110 = vmatmul.f32.gmra.mxu0 %v3109
        %v3111 = vpop.f32.mrf.mxu0
        %v3112 = vadd.f32 %v3047, %v3111
        %v3113 = vand.u32 %v2577, 4294901760
        %3114 = vmatmul.f32.gmra.mxu0 %v3113
        %v3115 = vpop.f32.mrf.mxu0
        %v3116 = vadd.f32 %v3051, %v3115
        %v3117 = vand.u32 %v2578, 4294901760
        %3118 = vmatmul.f32.gmra.mxu0 %v3117
        %v3119 = vpop.f32.mrf.mxu0
        %v3120 = vadd.f32 %v3055, %v3119
        %v3121 = vand.u32 %v2579, 4294901760
        %3122 = vmatmul.f32.gmra.mxu0 %v3121
        %v3123 = vpop.f32.mrf.mxu0
        %v3124 = vadd.f32 %v3059, %v3123
        %v3125 = vand.u32 %v2580, 4294901760
        %3126 = vmatmul.f32.gmra.mxu0 %v3125
        %v3127 = vpop.f32.mrf.mxu0
        %v3128 = vadd.f32 %v3063, %v3127
        %v3129 = vand.u32 %v2581, 4294901760
        %3130 = vmatmul.f32.gmra.mxu0 %v3129
        %v3131 = vpop.f32.mrf.mxu0
        %v3132 = vadd.f32 %v3067, %v3131
        %v3133 = vand.u32 %v2582, 4294901760
        %3134 = vmatmul.f32.gmra.mxu0 %v3133
        %v3135 = vpop.f32.mrf.mxu0
        %v3136 = vadd.f32 %v3071, %v3135
        %v3137 = vand.u32 %v2583, 4294901760
        %3138 = vmatmul.f32.gmra.mxu0 %v3137
        %v3139 = vpop.f32.mrf.mxu0
        %v3140 = vadd.f32 %v3075, %v3139
        %3141 = vdwg.mxu0
        %vm3142 = vcmask 130048
        %v3144 = vsel %vm3142, %v311, 0
        %3146 = vmatpush.msra.mxu0 0.0
        %3147 = vmatpush.msra.mxu0 0.0
        %3148 = vmatpush.msra.mxu0 0.0
        %3149 = vmatpush.msra.mxu0 0.0
        %3150 = vmatpush.msra.mxu0 0.0
        %3151 = vmatpush.msra.mxu0 0.0
        %3152 = vmatpush.msra.mxu0 0.0
        %3153 = vmatpush.msra.mxu0 0.0
        %3154 = vmatpush.msra.mxu0 0.0
        %3155 = vmatpush.msra.mxu0 0.0
        %3156 = vmatpush.msra.mxu0 0.0
        %3157 = vmatpush.msra.mxu0 0.0
        %3158 = vmatpush.msra.mxu0 0.0
        %3159 = vmatpush.msra.mxu0 0.0
        %v3160 = vand.u32 %v860, 4294901760
        %3161 = vmatpush.msra.mxu0 %v3160
        %v3162 = vand.u32 %v856, 4294901760
        %3163 = vmatpush.msra.mxu0 %v3162
        %v3164 = vand.u32 %v3144, 4294901760
        %v3165 = vsub.f32 %v3144, %v3164
        %v3166 = vand.u32 %v3165, 4294901760
        %v3167 = vsub.f32 %v3165, %v3166
        %v3168 = vand.u32 %v3167, 4294901760
        %3169 = vmatmul.f32.gmra.mxu0 %v3168
        %v3170 = vpop.f32.mrf.mxu0
        %v3171 = vadd.f32 0.0, %v3170
        %3172 = vdwg.mxu0
        %3173 = vmatpush.msra.mxu0 0.0
        %3174 = vmatpush.msra.mxu0 0.0
        %3175 = vmatpush.msra.mxu0 0.0
        %3176 = vmatpush.msra.mxu0 0.0
        %3177 = vmatpush.msra.mxu0 0.0
        %3178 = vmatpush.msra.mxu0 0.0
        %3179 = vmatpush.msra.mxu0 0.0
        %3180 = vmatpush.msra.mxu0 0.0
        %3181 = vmatpush.msra.mxu0 0.0
        %3182 = vmatpush.msra.mxu0 0.0
        %3183 = vmatpush.msra.mxu0 0.0
        %3184 = vmatpush.msra.mxu0 0.0
        %3185 = vmatpush.msra.mxu0 0.0
        %3186 = vmatpush.msra.mxu0 0.0
        %v3187 = vand.u32 %v860, 4294901760
        %v3188 = vsub.f32 %v860, %v3187
        %v3189 = vand.u32 %v3188, 4294901760
        %v3190 = vsub.f32 %v3188, %v3189
        %v3191 = vand.u32 %v3190, 4294901760
        %3192 = vmatpush.msra.mxu0 %v3191
        %v3193 = vand.u32 %v856, 4294901760
        %v3194 = vsub.f32 %v856, %v3193
        %v3195 = vand.u32 %v3194, 4294901760
        %v3196 = vsub.f32 %v3194, %v3195
        %v3197 = vand.u32 %v3196, 4294901760
        %3198 = vmatpush.msra.mxu0 %v3197
        %v3199 = vand.u32 %v3144, 4294901760
        %3200 = vmatmul.f32.gmra.mxu0 %v3199
        %v3201 = vpop.f32.mrf.mxu0
        %v3202 = vadd.f32 %v3171, %v3201
        %3203 = vdwg.mxu0
        %3204 = vmatpush.msra.mxu0 0.0
        %3205 = vmatpush.msra.mxu0 0.0
        %3206 = vmatpush.msra.mxu0 0.0
        %3207 = vmatpush.msra.mxu0 0.0
        %3208 = vmatpush.msra.mxu0 0.0
        %3209 = vmatpush.msra.mxu0 0.0
        %3210 = vmatpush.msra.mxu0 0.0
        %3211 = vmatpush.msra.mxu0 0.0
        %3212 = vmatpush.msra.mxu0 0.0
        %3213 = vmatpush.msra.mxu0 0.0
        %3214 = vmatpush.msra.mxu0 0.0
        %3215 = vmatpush.msra.mxu0 0.0
        %3216 = vmatpush.msra.mxu0 0.0
        %3217 = vmatpush.msra.mxu0 0.0
        %v3218 = vand.u32 %v860, 4294901760
        %v3219 = vsub.f32 %v860, %v3218
        %3220 = vmatpush.msra.mxu0 %v3219
        %v3221 = vand.u32 %v856, 4294901760
        %v3222 = vsub.f32 %v856, %v3221
        %3223 = vmatpush.msra.mxu0 %v3222
        %v3224 = vand.u32 %v3144, 4294901760
        %v3225 = vsub.f32 %v3144, %v3224
        %3226 = vmatmul.f32.gmra.mxu0 %v3225
        %v3227 = vpop.f32.mrf.mxu0
        %v3228 = vadd.f32 %v3202, %v3227
        %3229 = vdwg.mxu0
        %3230 = vmatpush.msra.mxu0 0.0
        %3231 = vmatpush.msra.mxu0 0.0
        %3232 = vmatpush.msra.mxu0 0.0
        %3233 = vmatpush.msra.mxu0 0.0
        %3234 = vmatpush.msra.mxu0 0.0
        %3235 = vmatpush.msra.mxu0 0.0
        %3236 = vmatpush.msra.mxu0 0.0
        %3237 = vmatpush.msra.mxu0 0.0
        %3238 = vmatpush.msra.mxu0 0.0
        %3239 = vmatpush.msra.mxu0 0.0
        %3240 = vmatpush.msra.mxu0 0.0
        %3241 = vmatpush.msra.mxu0 0.0
        %3242 = vmatpush.msra.mxu0 0.0
        %3243 = vmatpush.msra.mxu0 0.0
        %v3244 = vand.u32 %v860, 4294901760
        %3245 = vmatpush.msra.mxu0 %v3244
        %v3246 = vand.u32 %v856, 4294901760
        %3247 = vmatpush.msra.mxu0 %v3246
        %v3248 = vand.u32 %v3144, 4294901760
        %v3249 = vsub.f32 %v3144, %v3248
        %v3250 = vand.u32 %v3249, 4294901760
        %3251 = vmatmul.f32.gmra.mxu0 %v3250
        %v3252 = vpop.f32.mrf.mxu0
        %v3253 = vadd.f32 %v3228, %v3252
        %3254 = vdwg.mxu0
        %3255 = vmatpush.msra.mxu0 0.0
        %3256 = vmatpush.msra.mxu0 0.0
        %3257 = vmatpush.msra.mxu0 0.0
        %3258 = vmatpush.msra.mxu0 0.0
        %3259 = vmatpush.msra.mxu0 0.0
        %3260 = vmatpush.msra.mxu0 0.0
        %3261 = vmatpush.msra.mxu0 0.0
        %3262 = vmatpush.msra.mxu0 0.0
        %3263 = vmatpush.msra.mxu0 0.0
        %3264 = vmatpush.msra.mxu0 0.0
        %3265 = vmatpush.msra.mxu0 0.0
        %3266 = vmatpush.msra.mxu0 0.0
        %3267 = vmatpush.msra.mxu0 0.0
        %3268 = vmatpush.msra.mxu0 0.0
        %v3269 = vand.u32 %v860, 4294901760
        %v3270 = vsub.f32 %v860, %v3269
        %v3271 = vand.u32 %v3270, 4294901760
        %3272 = vmatpush.msra.mxu0 %v3271
        %v3273 = vand.u32 %v856, 4294901760
        %v3274 = vsub.f32 %v856, %v3273
        %v3275 = vand.u32 %v3274, 4294901760
        %3276 = vmatpush.msra.mxu0 %v3275
        %v3277 = vand.u32 %v3144, 4294901760
        %3278 = vmatmul.f32.gmra.mxu0 %v3277
        %v3279 = vpop.f32.mrf.mxu0
        %v3280 = vadd.f32 %v3253, %v3279
        %3281 = vdwg.mxu0
        %3282 = vmatpush.msra.mxu0 0.0
        %3283 = vmatpush.msra.mxu0 0.0
        %3284 = vmatpush.msra.mxu0 0.0
        %3285 = vmatpush.msra.mxu0 0.0
        %3286 = vmatpush.msra.mxu0 0.0
        %3287 = vmatpush.msra.mxu0 0.0
        %3288 = vmatpush.msra.mxu0 0.0
        %3289 = vmatpush.msra.mxu0 0.0
        %3290 = vmatpush.msra.mxu0 0.0
        %3291 = vmatpush.msra.mxu0 0.0
        %3292 = vmatpush.msra.mxu0 0.0
        %3293 = vmatpush.msra.mxu0 0.0
        %3294 = vmatpush.msra.mxu0 0.0
        %3295 = vmatpush.msra.mxu0 0.0
        %v3296 = vand.u32 %v860, 4294901760
        %3297 = vmatpush.msra.mxu0 %v3296
        %v3298 = vand.u32 %v856, 4294901760
        %3299 = vmatpush.msra.mxu0 %v3298
        %v3300 = vand.u32 %v3144, 4294901760
        %3301 = vmatmul.f32.gmra.mxu0 %v3300
        %v3302 = vpop.f32.mrf.mxu0
        %v3303 = vadd.f32 %v3280, %v3302
        %3304 = vdwg.mxu0
        %3305 = vmatpush.msra.mxu0 0.0
        %3306 = vmatpush.msra.mxu0 0.0
        %3307 = vmatpush.msra.mxu0 0.0
        %3308 = vmatpush.msra.mxu0 0.0
        %3309 = vmatpush.msra.mxu0 0.0
        %3310 = vmatpush.msra.mxu0 0.0
        %3311 = vmatpush.msra.mxu0 0.0
        %3312 = vmatpush.msra.mxu0 0.0
        %3313 = vmatpush.msra.mxu0 0.0
        %3314 = vmatpush.msra.mxu0 0.0
        %3315 = vmatpush.msra.mxu0 0.0
        %3316 = vmatpush.msra.mxu0 0.0
        %3317 = vmatpush.msra.mxu0 0.0
        %3318 = vmatpush.msra.mxu0 0.0
        %v3319 = vand.u32 %v1418, 4294901760
        %3320 = vmatpush.msra.mxu0 %v3319
        %v3321 = vand.u32 %v1414, 4294901760
        %3322 = vmatpush.msra.mxu0 %v3321
        %v3323 = vand.u32 %v3144, 4294901760
        %v3324 = vsub.f32 %v3144, %v3323
        %v3325 = vand.u32 %v3324, 4294901760
        %v3326 = vsub.f32 %v3324, %v3325
        %v3327 = vand.u32 %v3326, 4294901760
        %3328 = vmatmul.f32.gmra.mxu0 %v3327
        %v3329 = vpop.f32.mrf.mxu0
        %v3330 = vadd.f32 0.0, %v3329
        %3331 = vdwg.mxu0
        %3332 = vmatpush.msra.mxu0 0.0
        %3333 = vmatpush.msra.mxu0 0.0
        %3334 = vmatpush.msra.mxu0 0.0
        %3335 = vmatpush.msra.mxu0 0.0
        %3336 = vmatpush.msra.mxu0 0.0
        %3337 = vmatpush.msra.mxu0 0.0
        %3338 = vmatpush.msra.mxu0 0.0
        %3339 = vmatpush.msra.mxu0 0.0
        %3340 = vmatpush.msra.mxu0 0.0
        %3341 = vmatpush.msra.mxu0 0.0
        %3342 = vmatpush.msra.mxu0 0.0
        %3343 = vmatpush.msra.mxu0 0.0
        %3344 = vmatpush.msra.mxu0 0.0
        %3345 = vmatpush.msra.mxu0 0.0
        %v3346 = vand.u32 %v1418, 4294901760
        %v3347 = vsub.f32 %v1418, %v3346
        %v3348 = vand.u32 %v3347, 4294901760
        %v3349 = vsub.f32 %v3347, %v3348
        %v3350 = vand.u32 %v3349, 4294901760
        %3351 = vmatpush.msra.mxu0 %v3350
        %v3352 = vand.u32 %v1414, 4294901760
        %v3353 = vsub.f32 %v1414, %v3352
        %v3354 = vand.u32 %v3353, 4294901760
        %v3355 = vsub.f32 %v3353, %v3354
        %v3356 = vand.u32 %v3355, 4294901760
        %3357 = vmatpush.msra.mxu0 %v3356
        %v3358 = vand.u32 %v3144, 4294901760
        %3359 = vmatmul.f32.gmra.mxu0 %v3358
        %v3360 = vpop.f32.mrf.mxu0
        %v3361 = vadd.f32 %v3330, %v3360
        %3362 = vdwg.mxu0
        %3363 = vmatpush.msra.mxu0 0.0
        %3364 = vmatpush.msra.mxu0 0.0
        %3365 = vmatpush.msra.mxu0 0.0
        %3366 = vmatpush.msra.mxu0 0.0
        %3367 = vmatpush.msra.mxu0 0.0
        %3368 = vmatpush.msra.mxu0 0.0
        %3369 = vmatpush.msra.mxu0 0.0
        %3370 = vmatpush.msra.mxu0 0.0
        %3371 = vmatpush.msra.mxu0 0.0
        %3372 = vmatpush.msra.mxu0 0.0
        %3373 = vmatpush.msra.mxu0 0.0
        %3374 = vmatpush.msra.mxu0 0.0
        %3375 = vmatpush.msra.mxu0 0.0
        %3376 = vmatpush.msra.mxu0 0.0
        %v3377 = vand.u32 %v1418, 4294901760
        %v3378 = vsub.f32 %v1418, %v3377
        %3379 = vmatpush.msra.mxu0 %v3378
        %v3380 = vand.u32 %v1414, 4294901760
        %v3381 = vsub.f32 %v1414, %v3380
        %3382 = vmatpush.msra.mxu0 %v3381
        %v3383 = vand.u32 %v3144, 4294901760
        %v3384 = vsub.f32 %v3144, %v3383
        %3385 = vmatmul.f32.gmra.mxu0 %v3384
        %v3386 = vpop.f32.mrf.mxu0
        %v3387 = vadd.f32 %v3361, %v3386
        %3388 = vdwg.mxu0
        %3389 = vmatpush.msra.mxu0 0.0
        %3390 = vmatpush.msra.mxu0 0.0
        %3391 = vmatpush.msra.mxu0 0.0
        %3392 = vmatpush.msra.mxu0 0.0
        %3393 = vmatpush.msra.mxu0 0.0
        %3394 = vmatpush.msra.mxu0 0.0
        %3395 = vmatpush.msra.mxu0 0.0
        %3396 = vmatpush.msra.mxu0 0.0
        %3397 = vmatpush.msra.mxu0 0.0
        %3398 = vmatpush.msra.mxu0 0.0
        %3399 = vmatpush.msra.mxu0 0.0
        %3400 = vmatpush.msra.mxu0 0.0
        %3401 = vmatpush.msra.mxu0 0.0
        %3402 = vmatpush.msra.mxu0 0.0
        %v3403 = vand.u32 %v1418, 4294901760
        %3404 = vmatpush.msra.mxu0 %v3403
        %v3405 = vand.u32 %v1414, 4294901760
        %3406 = vmatpush.msra.mxu0 %v3405
        %v3407 = vand.u32 %v3144, 4294901760
        %v3408 = vsub.f32 %v3144, %v3407
        %v3409 = vand.u32 %v3408, 4294901760
        %3410 = vmatmul.f32.gmra.mxu0 %v3409
        %v3411 = vpop.f32.mrf.mxu0
        %v3412 = vadd.f32 %v3387, %v3411
        %3413 = vdwg.mxu0
        %3414 = vmatpush.msra.mxu0 0.0
        %3415 = vmatpush.msra.mxu0 0.0
        %3416 = vmatpush.msra.mxu0 0.0
        %3417 = vmatpush.msra.mxu0 0.0
        %3418 = vmatpush.msra.mxu0 0.0
        %3419 = vmatpush.msra.mxu0 0.0
        %3420 = vmatpush.msra.mxu0 0.0
        %3421 = vmatpush.msra.mxu0 0.0
        %3422 = vmatpush.msra.mxu0 0.0
        %3423 = vmatpush.msra.mxu0 0.0
        %3424 = vmatpush.msra.mxu0 0.0
        %3425 = vmatpush.msra.mxu0 0.0
        %3426 = vmatpush.msra.mxu0 0.0
        %3427 = vmatpush.msra.mxu0 0.0
        %v3428 = vand.u32 %v1418, 4294901760
        %v3429 = vsub.f32 %v1418, %v3428
        %v3430 = vand.u32 %v3429, 4294901760
        %3431 = vmatpush.msra.mxu0 %v3430
        %v3432 = vand.u32 %v1414, 4294901760
        %v3433 = vsub.f32 %v1414, %v3432
        %v3434 = vand.u32 %v3433, 4294901760
        %3435 = vmatpush.msra.mxu0 %v3434
        %v3436 = vand.u32 %v3144, 4294901760
        %3437 = vmatmul.f32.gmra.mxu0 %v3436
        %v3438 = vpop.f32.mrf.mxu0
        %v3439 = vadd.f32 %v3412, %v3438
        %3440 = vdwg.mxu0
        %3441 = vmatpush.msra.mxu0 0.0
        %3442 = vmatpush.msra.mxu0 0.0
        %3443 = vmatpush.msra.mxu0 0.0
        %3444 = vmatpush.msra.mxu0 0.0
        %3445 = vmatpush.msra.mxu0 0.0
        %3446 = vmatpush.msra.mxu0 0.0
        %3447 = vmatpush.msra.mxu0 0.0
        %3448 = vmatpush.msra.mxu0 0.0
        %3449 = vmatpush.msra.mxu0 0.0
        %3450 = vmatpush.msra.mxu0 0.0
        %3451 = vmatpush.msra.mxu0 0.0
        %3452 = vmatpush.msra.mxu0 0.0
        %3453 = vmatpush.msra.mxu0 0.0
        %3454 = vmatpush.msra.mxu0 0.0
        %v3455 = vand.u32 %v1418, 4294901760
        %3456 = vmatpush.msra.mxu0 %v3455
        %v3457 = vand.u32 %v1414, 4294901760
        %3458 = vmatpush.msra.mxu0 %v3457
        %v3459 = vand.u32 %v3144, 4294901760
        %3460 = vmatmul.f32.gmra.mxu0 %v3459
        %v3461 = vpop.f32.mrf.mxu0
        %v3462 = vadd.f32 %v3439, %v3461
        %3463 = vdwg.mxu0
        %3464 = vmatpush.msra.mxu0 0.0
        %3465 = vmatpush.msra.mxu0 0.0
        %3466 = vmatpush.msra.mxu0 0.0
        %3467 = vmatpush.msra.mxu0 0.0
        %3468 = vmatpush.msra.mxu0 0.0
        %3469 = vmatpush.msra.mxu0 0.0
        %3470 = vmatpush.msra.mxu0 0.0
        %3471 = vmatpush.msra.mxu0 0.0
        %3472 = vmatpush.msra.mxu0 0.0
        %3473 = vmatpush.msra.mxu0 0.0
        %3474 = vmatpush.msra.mxu0 0.0
        %3475 = vmatpush.msra.mxu0 0.0
        %3476 = vmatpush.msra.mxu0 0.0
        %3477 = vmatpush.msra.mxu0 0.0
        %v3478 = vand.u32 %v1984, 4294901760
        %3479 = vmatpush.msra.mxu0 %v3478
        %v3480 = vand.u32 %v1980, 4294901760
        %3481 = vmatpush.msra.mxu0 %v3480
        %v3482 = vand.u32 %v3144, 4294901760
        %v3483 = vsub.f32 %v3144, %v3482
        %v3484 = vand.u32 %v3483, 4294901760
        %v3485 = vsub.f32 %v3483, %v3484
        %v3486 = vand.u32 %v3485, 4294901760
        %3487 = vmatmul.f32.gmra.mxu0 %v3486
        %v3488 = vpop.f32.mrf.mxu0
        %v3489 = vadd.f32 0.0, %v3488
        %3490 = vdwg.mxu0
        %3491 = vmatpush.msra.mxu0 0.0
        %3492 = vmatpush.msra.mxu0 0.0
        %3493 = vmatpush.msra.mxu0 0.0
        %3494 = vmatpush.msra.mxu0 0.0
        %3495 = vmatpush.msra.mxu0 0.0
        %3496 = vmatpush.msra.mxu0 0.0
        %3497 = vmatpush.msra.mxu0 0.0
        %3498 = vmatpush.msra.mxu0 0.0
        %3499 = vmatpush.msra.mxu0 0.0
        %3500 = vmatpush.msra.mxu0 0.0
        %3501 = vmatpush.msra.mxu0 0.0
        %3502 = vmatpush.msra.mxu0 0.0
        %3503 = vmatpush.msra.mxu0 0.0
        %3504 = vmatpush.msra.mxu0 0.0
        %v3505 = vand.u32 %v1984, 4294901760
        %v3506 = vsub.f32 %v1984, %v3505
        %v3507 = vand.u32 %v3506, 4294901760
        %v3508 = vsub.f32 %v3506, %v3507
        %v3509 = vand.u32 %v3508, 4294901760
        %3510 = vmatpush.msra.mxu0 %v3509
        %v3511 = vand.u32 %v1980, 4294901760
        %v3512 = vsub.f32 %v1980, %v3511
        %v3513 = vand.u32 %v3512, 4294901760
        %v3514 = vsub.f32 %v3512, %v3513
        %v3515 = vand.u32 %v3514, 4294901760
        %3516 = vmatpush.msra.mxu0 %v3515
        %v3517 = vand.u32 %v3144, 4294901760
        %3518 = vmatmul.f32.gmra.mxu0 %v3517
        %v3519 = vpop.f32.mrf.mxu0
        %v3520 = vadd.f32 %v3489, %v3519
        %3521 = vdwg.mxu0
        %3522 = vmatpush.msra.mxu0 0.0
        %3523 = vmatpush.msra.mxu0 0.0
        %3524 = vmatpush.msra.mxu0 0.0
        %3525 = vmatpush.msra.mxu0 0.0
        %3526 = vmatpush.msra.mxu0 0.0
        %3527 = vmatpush.msra.mxu0 0.0
        %3528 = vmatpush.msra.mxu0 0.0
        %3529 = vmatpush.msra.mxu0 0.0
        %3530 = vmatpush.msra.mxu0 0.0
        %3531 = vmatpush.msra.mxu0 0.0
        %3532 = vmatpush.msra.mxu0 0.0
        %3533 = vmatpush.msra.mxu0 0.0
        %3534 = vmatpush.msra.mxu0 0.0
        %3535 = vmatpush.msra.mxu0 0.0
        %v3536 = vand.u32 %v1984, 4294901760
        %v3537 = vsub.f32 %v1984, %v3536
        %3538 = vmatpush.msra.mxu0 %v3537
        %v3539 = vand.u32 %v1980, 4294901760
        %v3540 = vsub.f32 %v1980, %v3539
        %3541 = vmatpush.msra.mxu0 %v3540
        %v3542 = vand.u32 %v3144, 4294901760
        %v3543 = vsub.f32 %v3144, %v3542
        %3544 = vmatmul.f32.gmra.mxu0 %v3543
        %v3545 = vpop.f32.mrf.mxu0
        %v3546 = vadd.f32 %v3520, %v3545
        %3547 = vdwg.mxu0
        %3548 = vmatpush.msra.mxu0 0.0
        %3549 = vmatpush.msra.mxu0 0.0
        %3550 = vmatpush.msra.mxu0 0.0
        %3551 = vmatpush.msra.mxu0 0.0
        %3552 = vmatpush.msra.mxu0 0.0
        %3553 = vmatpush.msra.mxu0 0.0
        %3554 = vmatpush.msra.mxu0 0.0
        %3555 = vmatpush.msra.mxu0 0.0
        %3556 = vmatpush.msra.mxu0 0.0
        %3557 = vmatpush.msra.mxu0 0.0
        %3558 = vmatpush.msra.mxu0 0.0
        %3559 = vmatpush.msra.mxu0 0.0
        %3560 = vmatpush.msra.mxu0 0.0
        %3561 = vmatpush.msra.mxu0 0.0
        %v3562 = vand.u32 %v1984, 4294901760
        %3563 = vmatpush.msra.mxu0 %v3562
        %v3564 = vand.u32 %v1980, 4294901760
        %3565 = vmatpush.msra.mxu0 %v3564
        %v3566 = vand.u32 %v3144, 4294901760
        %v3567 = vsub.f32 %v3144, %v3566
        %v3568 = vand.u32 %v3567, 4294901760
        %3569 = vmatmul.f32.gmra.mxu0 %v3568
        %v3570 = vpop.f32.mrf.mxu0
        %v3571 = vadd.f32 %v3546, %v3570
        %3572 = vdwg.mxu0
        %3573 = vmatpush.msra.mxu0 0.0
        %3574 = vmatpush.msra.mxu0 0.0
        %3575 = vmatpush.msra.mxu0 0.0
        %3576 = vmatpush.msra.mxu0 0.0
        %3577 = vmatpush.msra.mxu0 0.0
        %3578 = vmatpush.msra.mxu0 0.0
        %3579 = vmatpush.msra.mxu0 0.0
        %3580 = vmatpush.msra.mxu0 0.0
        %3581 = vmatpush.msra.mxu0 0.0
        %3582 = vmatpush.msra.mxu0 0.0
        %3583 = vmatpush.msra.mxu0 0.0
        %3584 = vmatpush.msra.mxu0 0.0
        %3585 = vmatpush.msra.mxu0 0.0
        %3586 = vmatpush.msra.mxu0 0.0
        %v3587 = vand.u32 %v1984, 4294901760
        %v3588 = vsub.f32 %v1984, %v3587
        %v3589 = vand.u32 %v3588, 4294901760
        %3590 = vmatpush.msra.mxu0 %v3589
        %v3591 = vand.u32 %v1980, 4294901760
        %v3592 = vsub.f32 %v1980, %v3591
        %v3593 = vand.u32 %v3592, 4294901760
        %3594 = vmatpush.msra.mxu0 %v3593
        %v3595 = vand.u32 %v3144, 4294901760
        %3596 = vmatmul.f32.gmra.mxu0 %v3595
        %v3597 = vpop.f32.mrf.mxu0
        %v3598 = vadd.f32 %v3571, %v3597
        %3599 = vdwg.mxu0
        %3600 = vmatpush.msra.mxu0 0.0
        %3601 = vmatpush.msra.mxu0 0.0
        %3602 = vmatpush.msra.mxu0 0.0
        %3603 = vmatpush.msra.mxu0 0.0
        %3604 = vmatpush.msra.mxu0 0.0
        %3605 = vmatpush.msra.mxu0 0.0
        %3606 = vmatpush.msra.mxu0 0.0
        %3607 = vmatpush.msra.mxu0 0.0
        %3608 = vmatpush.msra.mxu0 0.0
        %3609 = vmatpush.msra.mxu0 0.0
        %3610 = vmatpush.msra.mxu0 0.0
        %3611 = vmatpush.msra.mxu0 0.0
        %3612 = vmatpush.msra.mxu0 0.0
        %3613 = vmatpush.msra.mxu0 0.0
        %v3614 = vand.u32 %v1984, 4294901760
        %3615 = vmatpush.msra.mxu0 %v3614
        %v3616 = vand.u32 %v1980, 4294901760
        %3617 = vmatpush.msra.mxu0 %v3616
        %v3618 = vand.u32 %v3144, 4294901760
        %3619 = vmatmul.f32.gmra.mxu0 %v3618
        %v3620 = vpop.f32.mrf.mxu0
        %v3621 = vadd.f32 %v3598, %v3620
        %3622 = vdwg.mxu0
        %3623 = vmatpush.msra.mxu0 0.0
        %3624 = vmatpush.msra.mxu0 0.0
        %3625 = vmatpush.msra.mxu0 0.0
        %3626 = vmatpush.msra.mxu0 0.0
        %3627 = vmatpush.msra.mxu0 0.0
        %3628 = vmatpush.msra.mxu0 0.0
        %3629 = vmatpush.msra.mxu0 0.0
        %3630 = vmatpush.msra.mxu0 0.0
        %3631 = vmatpush.msra.mxu0 0.0
        %3632 = vmatpush.msra.mxu0 0.0
        %3633 = vmatpush.msra.mxu0 0.0
        %3634 = vmatpush.msra.mxu0 0.0
        %3635 = vmatpush.msra.mxu0 0.0
        %3636 = vmatpush.msra.mxu0 0.0
        %v3637 = vand.u32 %v2550, 4294901760
        %3638 = vmatpush.msra.mxu0 %v3637
        %v3639 = vand.u32 %v2546, 4294901760
        %3640 = vmatpush.msra.mxu0 %v3639
        %v3641 = vand.u32 %v3144, 4294901760
        %v3642 = vsub.f32 %v3144, %v3641
        %v3643 = vand.u32 %v3642, 4294901760
        %v3644 = vsub.f32 %v3642, %v3643
        %v3645 = vand.u32 %v3644, 4294901760
        %3646 = vmatmul.f32.gmra.mxu0 %v3645
        %v3647 = vpop.f32.mrf.mxu0
        %v3648 = vadd.f32 0.0, %v3647
        %3649 = vdwg.mxu0
        %3650 = vmatpush.msra.mxu0 0.0
        %3651 = vmatpush.msra.mxu0 0.0
        %3652 = vmatpush.msra.mxu0 0.0
        %3653 = vmatpush.msra.mxu0 0.0
        %3654 = vmatpush.msra.mxu0 0.0
        %3655 = vmatpush.msra.mxu0 0.0
        %3656 = vmatpush.msra.mxu0 0.0
        %3657 = vmatpush.msra.mxu0 0.0
        %3658 = vmatpush.msra.mxu0 0.0
        %3659 = vmatpush.msra.mxu0 0.0
        %3660 = vmatpush.msra.mxu0 0.0
        %3661 = vmatpush.msra.mxu0 0.0
        %3662 = vmatpush.msra.mxu0 0.0
        %3663 = vmatpush.msra.mxu0 0.0
        %v3664 = vand.u32 %v2550, 4294901760
        %v3665 = vsub.f32 %v2550, %v3664
        %v3666 = vand.u32 %v3665, 4294901760
        %v3667 = vsub.f32 %v3665, %v3666
        %v3668 = vand.u32 %v3667, 4294901760
        %3669 = vmatpush.msra.mxu0 %v3668
        %v3670 = vand.u32 %v2546, 4294901760
        %v3671 = vsub.f32 %v2546, %v3670
        %v3672 = vand.u32 %v3671, 4294901760
        %v3673 = vsub.f32 %v3671, %v3672
        %v3674 = vand.u32 %v3673, 4294901760
        %3675 = vmatpush.msra.mxu0 %v3674
        %v3676 = vand.u32 %v3144, 4294901760
        %3677 = vmatmul.f32.gmra.mxu0 %v3676
        %v3678 = vpop.f32.mrf.mxu0
        %v3679 = vadd.f32 %v3648, %v3678
        %3680 = vdwg.mxu0
        %3681 = vmatpush.msra.mxu0 0.0
        %3682 = vmatpush.msra.mxu0 0.0
        %3683 = vmatpush.msra.mxu0 0.0
        %3684 = vmatpush.msra.mxu0 0.0
        %3685 = vmatpush.msra.mxu0 0.0
        %3686 = vmatpush.msra.mxu0 0.0
        %3687 = vmatpush.msra.mxu0 0.0
        %3688 = vmatpush.msra.mxu0 0.0
        %3689 = vmatpush.msra.mxu0 0.0
        %3690 = vmatpush.msra.mxu0 0.0
        %3691 = vmatpush.msra.mxu0 0.0
        %3692 = vmatpush.msra.mxu0 0.0
        %3693 = vmatpush.msra.mxu0 0.0
        %3694 = vmatpush.msra.mxu0 0.0
        %v3695 = vand.u32 %v2550, 4294901760
        %v3696 = vsub.f32 %v2550, %v3695
        %3697 = vmatpush.msra.mxu0 %v3696
        %v3698 = vand.u32 %v2546, 4294901760
        %v3699 = vsub.f32 %v2546, %v3698
        %3700 = vmatpush.msra.mxu0 %v3699
        %v3701 = vand.u32 %v3144, 4294901760
        %v3702 = vsub.f32 %v3144, %v3701
        %3703 = vmatmul.f32.gmra.mxu0 %v3702
        %v3704 = vpop.f32.mrf.mxu0
        %v3705 = vadd.f32 %v3679, %v3704
        %3706 = vdwg.mxu0
        %3707 = vmatpush.msra.mxu0 0.0
        %3708 = vmatpush.msra.mxu0 0.0
        %3709 = vmatpush.msra.mxu0 0.0
        %3710 = vmatpush.msra.mxu0 0.0
        %3711 = vmatpush.msra.mxu0 0.0
        %3712 = vmatpush.msra.mxu0 0.0
        %3713 = vmatpush.msra.mxu0 0.0
        %3714 = vmatpush.msra.mxu0 0.0
        %3715 = vmatpush.msra.mxu0 0.0
        %3716 = vmatpush.msra.mxu0 0.0
        %3717 = vmatpush.msra.mxu0 0.0
        %3718 = vmatpush.msra.mxu0 0.0
        %3719 = vmatpush.msra.mxu0 0.0
        %3720 = vmatpush.msra.mxu0 0.0
        %v3721 = vand.u32 %v2550, 4294901760
        %3722 = vmatpush.msra.mxu0 %v3721
        %v3723 = vand.u32 %v2546, 4294901760
        %3724 = vmatpush.msra.mxu0 %v3723
        %v3725 = vand.u32 %v3144, 4294901760
        %v3726 = vsub.f32 %v3144, %v3725
        %v3727 = vand.u32 %v3726, 4294901760
        %3728 = vmatmul.f32.gmra.mxu0 %v3727
        %v3729 = vpop.f32.mrf.mxu0
        %v3730 = vadd.f32 %v3705, %v3729
        %3731 = vdwg.mxu0
        %3732 = vmatpush.msra.mxu0 0.0
        %3733 = vmatpush.msra.mxu0 0.0
        %3734 = vmatpush.msra.mxu0 0.0
        %3735 = vmatpush.msra.mxu0 0.0
        %3736 = vmatpush.msra.mxu0 0.0
        %3737 = vmatpush.msra.mxu0 0.0
        %3738 = vmatpush.msra.mxu0 0.0
        %3739 = vmatpush.msra.mxu0 0.0
        %3740 = vmatpush.msra.mxu0 0.0
        %3741 = vmatpush.msra.mxu0 0.0
        %3742 = vmatpush.msra.mxu0 0.0
        %3743 = vmatpush.msra.mxu0 0.0
        %3744 = vmatpush.msra.mxu0 0.0
        %3745 = vmatpush.msra.mxu0 0.0
        %v3746 = vand.u32 %v2550, 4294901760
        %v3747 = vsub.f32 %v2550, %v3746
        %v3748 = vand.u32 %v3747, 4294901760
        %3749 = vmatpush.msra.mxu0 %v3748
        %v3750 = vand.u32 %v2546, 4294901760
        %v3751 = vsub.f32 %v2546, %v3750
        %v3752 = vand.u32 %v3751, 4294901760
        %3753 = vmatpush.msra.mxu0 %v3752
        %v3754 = vand.u32 %v3144, 4294901760
        %3755 = vmatmul.f32.gmra.mxu0 %v3754
        %v3756 = vpop.f32.mrf.mxu0
        %v3757 = vadd.f32 %v3730, %v3756
        %3758 = vdwg.mxu0
        %3759 = vmatpush.msra.mxu0 0.0
        %3760 = vmatpush.msra.mxu0 0.0
        %3761 = vmatpush.msra.mxu0 0.0
        %3762 = vmatpush.msra.mxu0 0.0
        %3763 = vmatpush.msra.mxu0 0.0
        %3764 = vmatpush.msra.mxu0 0.0
        %3765 = vmatpush.msra.mxu0 0.0
        %3766 = vmatpush.msra.mxu0 0.0
        %3767 = vmatpush.msra.mxu0 0.0
        %3768 = vmatpush.msra.mxu0 0.0
        %3769 = vmatpush.msra.mxu0 0.0
        %3770 = vmatpush.msra.mxu0 0.0
        %3771 = vmatpush.msra.mxu0 0.0
        %3772 = vmatpush.msra.mxu0 0.0
        %v3773 = vand.u32 %v2550, 4294901760
        %3774 = vmatpush.msra.mxu0 %v3773
        %v3775 = vand.u32 %v2546, 4294901760
        %3776 = vmatpush.msra.mxu0 %v3775
        %v3777 = vand.u32 %v3144, 4294901760
        %3778 = vmatmul.f32.gmra.mxu0 %v3777
        %v3779 = vpop.f32.mrf.mxu0
        %v3780 = vadd.f32 %v3757, %v3779
        %3781 = vdwg.mxu0
        %3782 = vmatpush.msra.mxu0 0.0
        %3783 = vmatpush.msra.mxu0 0.0
        %3784 = vmatpush.msra.mxu0 0.0
        %3785 = vmatpush.msra.mxu0 0.0
        %3786 = vmatpush.msra.mxu0 0.0
        %3787 = vmatpush.msra.mxu0 0.0
        %3788 = vmatpush.msra.mxu0 0.0
        %3789 = vmatpush.msra.mxu0 0.0
        %3790 = vmatpush.msra.mxu0 0.0
        %3791 = vmatpush.msra.mxu0 0.0
        %3792 = vmatpush.msra.mxu0 0.0
        %3793 = vmatpush.msra.mxu0 0.0
        %3794 = vmatpush.msra.mxu0 0.0
        %3795 = vmatpush.msra.mxu0 0.0
        %v3796 = vand.u32 %v3116, 4294901760
        %3797 = vmatpush.msra.mxu0 %v3796
        %v3798 = vand.u32 %v3112, 4294901760
        %3799 = vmatpush.msra.mxu0 %v3798
        %v3800 = vand.u32 %v3144, 4294901760
        %v3801 = vsub.f32 %v3144, %v3800
        %v3802 = vand.u32 %v3801, 4294901760
        %v3803 = vsub.f32 %v3801, %v3802
        %v3804 = vand.u32 %v3803, 4294901760
        %3805 = vmatmul.f32.gmra.mxu0 %v3804
        %v3806 = vpop.f32.mrf.mxu0
        %v3807 = vadd.f32 0.0, %v3806
        %3808 = vdwg.mxu0
        %3809 = vmatpush.msra.mxu0 0.0
        %3810 = vmatpush.msra.mxu0 0.0
        %3811 = vmatpush.msra.mxu0 0.0
        %3812 = vmatpush.msra.mxu0 0.0
        %3813 = vmatpush.msra.mxu0 0.0
        %3814 = vmatpush.msra.mxu0 0.0
        %3815 = vmatpush.msra.mxu0 0.0
        %3816 = vmatpush.msra.mxu0 0.0
        %3817 = vmatpush.msra.mxu0 0.0
        %3818 = vmatpush.msra.mxu0 0.0
        %3819 = vmatpush.msra.mxu0 0.0
        %3820 = vmatpush.msra.mxu0 0.0
        %3821 = vmatpush.msra.mxu0 0.0
        %3822 = vmatpush.msra.mxu0 0.0
        %v3823 = vand.u32 %v3116, 4294901760
        %v3824 = vsub.f32 %v3116, %v3823
        %v3825 = vand.u32 %v3824, 4294901760
        %v3826 = vsub.f32 %v3824, %v3825
        %v3827 = vand.u32 %v3826, 4294901760
        %3828 = vmatpush.msra.mxu0 %v3827
        %v3829 = vand.u32 %v3112, 4294901760
        %v3830 = vsub.f32 %v3112, %v3829
        %v3831 = vand.u32 %v3830, 4294901760
        %v3832 = vsub.f32 %v3830, %v3831
        %v3833 = vand.u32 %v3832, 4294901760
        %3834 = vmatpush.msra.mxu0 %v3833
        %v3835 = vand.u32 %v3144, 4294901760
        %3836 = vmatmul.f32.gmra.mxu0 %v3835
        %v3837 = vpop.f32.mrf.mxu0
        %v3838 = vadd.f32 %v3807, %v3837
        %3839 = vdwg.mxu0
        %3840 = vmatpush.msra.mxu0 0.0
        %3841 = vmatpush.msra.mxu0 0.0
        %3842 = vmatpush.msra.mxu0 0.0
        %3843 = vmatpush.msra.mxu0 0.0
        %3844 = vmatpush.msra.mxu0 0.0
        %3845 = vmatpush.msra.mxu0 0.0
        %3846 = vmatpush.msra.mxu0 0.0
        %3847 = vmatpush.msra.mxu0 0.0
        %3848 = vmatpush.msra.mxu0 0.0
        %3849 = vmatpush.msra.mxu0 0.0
        %3850 = vmatpush.msra.mxu0 0.0
        %3851 = vmatpush.msra.mxu0 0.0
        %3852 = vmatpush.msra.mxu0 0.0
        %3853 = vmatpush.msra.mxu0 0.0
        %v3854 = vand.u32 %v3116, 4294901760
        %v3855 = vsub.f32 %v3116, %v3854
        %3856 = vmatpush.msra.mxu0 %v3855
        %v3857 = vand.u32 %v3112, 4294901760
        %v3858 = vsub.f32 %v3112, %v3857
        %3859 = vmatpush.msra.mxu0 %v3858
        %v3860 = vand.u32 %v3144, 4294901760
        %v3861 = vsub.f32 %v3144, %v3860
        %3862 = vmatmul.f32.gmra.mxu0 %v3861
        %v3863 = vpop.f32.mrf.mxu0
        %v3864 = vadd.f32 %v3838, %v3863
        %3865 = vdwg.mxu0
        %3866 = vmatpush.msra.mxu0 0.0
        %3867 = vmatpush.msra.mxu0 0.0
        %3868 = vmatpush.msra.mxu0 0.0
        %3869 = vmatpush.msra.mxu0 0.0
        %3870 = vmatpush.msra.mxu0 0.0
        %3871 = vmatpush.msra.mxu0 0.0
        %3872 = vmatpush.msra.mxu0 0.0
        %3873 = vmatpush.msra.mxu0 0.0
        %3874 = vmatpush.msra.mxu0 0.0
        %3875 = vmatpush.msra.mxu0 0.0
        %3876 = vmatpush.msra.mxu0 0.0
        %3877 = vmatpush.msra.mxu0 0.0
        %3878 = vmatpush.msra.mxu0 0.0
        %3879 = vmatpush.msra.mxu0 0.0
        %v3880 = vand.u32 %v3116, 4294901760
        %3881 = vmatpush.msra.mxu0 %v3880
        %v3882 = vand.u32 %v3112, 4294901760
        %3883 = vmatpush.msra.mxu0 %v3882
        %v3884 = vand.u32 %v3144, 4294901760
        %v3885 = vsub.f32 %v3144, %v3884
        %v3886 = vand.u32 %v3885, 4294901760
        %3887 = vmatmul.f32.gmra.mxu0 %v3886
        %v3888 = vpop.f32.mrf.mxu0
        %v3889 = vadd.f32 %v3864, %v3888
        %3890 = vdwg.mxu0
        %3891 = vmatpush.msra.mxu0 0.0
        %3892 = vmatpush.msra.mxu0 0.0
        %3893 = vmatpush.msra.mxu0 0.0
        %3894 = vmatpush.msra.mxu0 0.0
        %3895 = vmatpush.msra.mxu0 0.0
        %3896 = vmatpush.msra.mxu0 0.0
        %3897 = vmatpush.msra.mxu0 0.0
        %3898 = vmatpush.msra.mxu0 0.0
        %3899 = vmatpush.msra.mxu0 0.0
        %3900 = vmatpush.msra.mxu0 0.0
        %3901 = vmatpush.msra.mxu0 0.0
        %3902 = vmatpush.msra.mxu0 0.0
        %3903 = vmatpush.msra.mxu0 0.0
        %3904 = vmatpush.msra.mxu0 0.0
        %v3905 = vand.u32 %v3116, 4294901760
        %v3906 = vsub.f32 %v3116, %v3905
        %v3907 = vand.u32 %v3906, 4294901760
        %3908 = vmatpush.msra.mxu0 %v3907
        %v3909 = vand.u32 %v3112, 4294901760
        %v3910 = vsub.f32 %v3112, %v3909
        %v3911 = vand.u32 %v3910, 4294901760
        %3912 = vmatpush.msra.mxu0 %v3911
        %v3913 = vand.u32 %v3144, 4294901760
        %3914 = vmatmul.f32.gmra.mxu0 %v3913
        %v3915 = vpop.f32.mrf.mxu0
        %v3916 = vadd.f32 %v3889, %v3915
        %3917 = vdwg.mxu0
        %3918 = vmatpush.msra.mxu0 0.0
        %3919 = vmatpush.msra.mxu0 0.0
        %3920 = vmatpush.msra.mxu0 0.0
        %3921 = vmatpush.msra.mxu0 0.0
        %3922 = vmatpush.msra.mxu0 0.0
        %3923 = vmatpush.msra.mxu0 0.0
        %3924 = vmatpush.msra.mxu0 0.0
        %3925 = vmatpush.msra.mxu0 0.0
        %3926 = vmatpush.msra.mxu0 0.0
        %3927 = vmatpush.msra.mxu0 0.0
        %3928 = vmatpush.msra.mxu0 0.0
        %3929 = vmatpush.msra.mxu0 0.0
        %3930 = vmatpush.msra.mxu0 0.0
        %3931 = vmatpush.msra.mxu0 0.0
        %v3932 = vand.u32 %v3116, 4294901760
        %3933 = vmatpush.msra.mxu0 %v3932
        %v3934 = vand.u32 %v3112, 4294901760
        %3935 = vmatpush.msra.mxu0 %v3934
        %v3936 = vand.u32 %v3144, 4294901760
        %3937 = vmatmul.f32.gmra.mxu0 %v3936
        %v3938 = vpop.f32.mrf.mxu0
        %v3939 = vadd.f32 %v3916, %v3938
        %3940 = vdwg.mxu0
        %v3941 = vmul.f32 %v3303, %v3303
        %v3942 = vmul.f32 %v3462, %v3462
        %v3943 = vmul.f32 %v3303, %v3462
        %v3944 = vsub.f32 %v3621, %v3941
        %v3945 = vsub.f32 %v3780, %v3942
        %v3946 = vsub.f32 %v3939, %v3943
        %v3947 = vmul.f32 %v3943, 2.0
        %v3948 = vadd.f32 %v3947, 0.0001
        %v3949 = vmul.f32 %v3946, 2.0
        %v3950 = vadd.f32 %v3949, 0.0009
        %v3951 = vmul.f32 %v3948, %v3950
        %v3952 = vadd.f32 %v3941, %v3942
        %v3953 = vadd.f32 %v3952, 0.0001
        %v3954 = vadd.f32 %v3944, %v3945
        %v3955 = vadd.f32 %v3954, 0.0009
        %v3956 = vmul.f32 %v3953, %v3955
        %v3957 = vrcp.pop %v3956
        %v3958 = vmul.f32 %v3956, %v3957
        %v3959 = vsub.f32 2.0, %v3958
        %v3960 = vmul.f32 %v3957, %v3959
        %v3961 = vmul.f32 %v3951, %v3960
        %v3962 = vadd.f32 %v3961, 0.0
        %3963 = vmatpush.msra.mxu0 0.0
        %3964 = vmatpush.msra.mxu0 0.0
        %3965 = vmatpush.msra.mxu0 0.0
        %3966 = vmatpush.msra.mxu0 0.0
        %3967 = vmatpush.msra.mxu0 0.0
        %3968 = vmatpush.msra.mxu0 0.0
        %3969 = vmatpush.msra.mxu0 0.0
        %3970 = vmatpush.msra.mxu0 0.0
        %3971 = vmatpush.msra.mxu0 0.0
        %3972 = vmatpush.msra.mxu0 0.0
        %3973 = vmatpush.msra.mxu0 0.0
        %3974 = vmatpush.msra.mxu0 0.0
        %3975 = vmatpush.msra.mxu0 0.0
        %3976 = vmatpush.msra.mxu0 0.0
        %v3977 = vand.u32 %v868, 4294901760
        %3978 = vmatpush.msra.mxu0 %v3977
        %v3979 = vand.u32 %v864, 4294901760
        %3980 = vmatpush.msra.mxu0 %v3979
        %v3981 = vand.u32 %v3144, 4294901760
        %v3982 = vsub.f32 %v3144, %v3981
        %v3983 = vand.u32 %v3982, 4294901760
        %v3984 = vsub.f32 %v3982, %v3983
        %v3985 = vand.u32 %v3984, 4294901760
        %3986 = vmatmul.f32.gmra.mxu0 %v3985
        %v3987 = vpop.f32.mrf.mxu0
        %v3988 = vadd.f32 0.0, %v3987
        %3989 = vdwg.mxu0
        %3990 = vmatpush.msra.mxu0 0.0
        %3991 = vmatpush.msra.mxu0 0.0
        %3992 = vmatpush.msra.mxu0 0.0
        %3993 = vmatpush.msra.mxu0 0.0
        %3994 = vmatpush.msra.mxu0 0.0
        %3995 = vmatpush.msra.mxu0 0.0
        %3996 = vmatpush.msra.mxu0 0.0
        %3997 = vmatpush.msra.mxu0 0.0
        %3998 = vmatpush.msra.mxu0 0.0
        %3999 = vmatpush.msra.mxu0 0.0
        %4000 = vmatpush.msra.mxu0 0.0
        %4001 = vmatpush.msra.mxu0 0.0
        %4002 = vmatpush.msra.mxu0 0.0
        %4003 = vmatpush.msra.mxu0 0.0
        %v4004 = vand.u32 %v868, 4294901760
        %v4005 = vsub.f32 %v868, %v4004
        %v4006 = vand.u32 %v4005, 4294901760
        %v4007 = vsub.f32 %v4005, %v4006
        %v4008 = vand.u32 %v4007, 4294901760
        %4009 = vmatpush.msra.mxu0 %v4008
        %v4010 = vand.u32 %v864, 4294901760
        %v4011 = vsub.f32 %v864, %v4010
        %v4012 = vand.u32 %v4011, 4294901760
        %v4013 = vsub.f32 %v4011, %v4012
        %v4014 = vand.u32 %v4013, 4294901760
        %4015 = vmatpush.msra.mxu0 %v4014
        %v4016 = vand.u32 %v3144, 4294901760
        %4017 = vmatmul.f32.gmra.mxu0 %v4016
        %v4018 = vpop.f32.mrf.mxu0
        %v4019 = vadd.f32 %v3988, %v4018
        %4020 = vdwg.mxu0
        %4021 = vmatpush.msra.mxu0 0.0
        %4022 = vmatpush.msra.mxu0 0.0
        %4023 = vmatpush.msra.mxu0 0.0
        %4024 = vmatpush.msra.mxu0 0.0
        %4025 = vmatpush.msra.mxu0 0.0
        %4026 = vmatpush.msra.mxu0 0.0
        %4027 = vmatpush.msra.mxu0 0.0
        %4028 = vmatpush.msra.mxu0 0.0
        %4029 = vmatpush.msra.mxu0 0.0
        %4030 = vmatpush.msra.mxu0 0.0
        %4031 = vmatpush.msra.mxu0 0.0
        %4032 = vmatpush.msra.mxu0 0.0
        %4033 = vmatpush.msra.mxu0 0.0
        %4034 = vmatpush.msra.mxu0 0.0
        %v4035 = vand.u32 %v868, 4294901760
        %v4036 = vsub.f32 %v868, %v4035
        %4037 = vmatpush.msra.mxu0 %v4036
        %v4038 = vand.u32 %v864, 4294901760
        %v4039 = vsub.f32 %v864, %v4038
        %4040 = vmatpush.msra.mxu0 %v4039
        %v4041 = vand.u32 %v3144, 4294901760
        %v4042 = vsub.f32 %v3144, %v4041
        %4043 = vmatmul.f32.gmra.mxu0 %v4042
        %v4044 = vpop.f32.mrf.mxu0
        %v4045 = vadd.f32 %v4019, %v4044
        %4046 = vdwg.mxu0
        %4047 = vmatpush.msra.mxu0 0.0
        %4048 = vmatpush.msra.mxu0 0.0
        %4049 = vmatpush.msra.mxu0 0.0
        %4050 = vmatpush.msra.mxu0 0.0
        %4051 = vmatpush.msra.mxu0 0.0
        %4052 = vmatpush.msra.mxu0 0.0
        %4053 = vmatpush.msra.mxu0 0.0
        %4054 = vmatpush.msra.mxu0 0.0
        %4055 = vmatpush.msra.mxu0 0.0
        %4056 = vmatpush.msra.mxu0 0.0
        %4057 = vmatpush.msra.mxu0 0.0
        %4058 = vmatpush.msra.mxu0 0.0
        %4059 = vmatpush.msra.mxu0 0.0
        %4060 = vmatpush.msra.mxu0 0.0
        %v4061 = vand.u32 %v868, 4294901760
        %4062 = vmatpush.msra.mxu0 %v4061
        %v4063 = vand.u32 %v864, 4294901760
        %4064 = vmatpush.msra.mxu0 %v4063
        %v4065 = vand.u32 %v3144, 4294901760
        %v4066 = vsub.f32 %v3144, %v4065
        %v4067 = vand.u32 %v4066, 4294901760
        %4068 = vmatmul.f32.gmra.mxu0 %v4067
        %v4069 = vpop.f32.mrf.mxu0
        %v4070 = vadd.f32 %v4045, %v4069
        %4071 = vdwg.mxu0
        %4072 = vmatpush.msra.mxu0 0.0
        %4073 = vmatpush.msra.mxu0 0.0
        %4074 = vmatpush.msra.mxu0 0.0
        %4075 = vmatpush.msra.mxu0 0.0
        %4076 = vmatpush.msra.mxu0 0.0
        %4077 = vmatpush.msra.mxu0 0.0
        %4078 = vmatpush.msra.mxu0 0.0
        %4079 = vmatpush.msra.mxu0 0.0
        %4080 = vmatpush.msra.mxu0 0.0
        %4081 = vmatpush.msra.mxu0 0.0
        %4082 = vmatpush.msra.mxu0 0.0
        %4083 = vmatpush.msra.mxu0 0.0
        %4084 = vmatpush.msra.mxu0 0.0
        %4085 = vmatpush.msra.mxu0 0.0
        %v4086 = vand.u32 %v868, 4294901760
        %v4087 = vsub.f32 %v868, %v4086
        %v4088 = vand.u32 %v4087, 4294901760
        %4089 = vmatpush.msra.mxu0 %v4088
        %v4090 = vand.u32 %v864, 4294901760
        %v4091 = vsub.f32 %v864, %v4090
        %v4092 = vand.u32 %v4091, 4294901760
        %4093 = vmatpush.msra.mxu0 %v4092
        %v4094 = vand.u32 %v3144, 4294901760
        %4095 = vmatmul.f32.gmra.mxu0 %v4094
        %v4096 = vpop.f32.mrf.mxu0
        %v4097 = vadd.f32 %v4070, %v4096
        %4098 = vdwg.mxu0
        %4099 = vmatpush.msra.mxu0 0.0
        %4100 = vmatpush.msra.mxu0 0.0
        %4101 = vmatpush.msra.mxu0 0.0
        %4102 = vmatpush.msra.mxu0 0.0
        %4103 = vmatpush.msra.mxu0 0.0
        %4104 = vmatpush.msra.mxu0 0.0
        %4105 = vmatpush.msra.mxu0 0.0
        %4106 = vmatpush.msra.mxu0 0.0
        %4107 = vmatpush.msra.mxu0 0.0
        %4108 = vmatpush.msra.mxu0 0.0
        %4109 = vmatpush.msra.mxu0 0.0
        %4110 = vmatpush.msra.mxu0 0.0
        %4111 = vmatpush.msra.mxu0 0.0
        %4112 = vmatpush.msra.mxu0 0.0
        %v4113 = vand.u32 %v868, 4294901760
        %4114 = vmatpush.msra.mxu0 %v4113
        %v4115 = vand.u32 %v864, 4294901760
        %4116 = vmatpush.msra.mxu0 %v4115
        %v4117 = vand.u32 %v3144, 4294901760
        %4118 = vmatmul.f32.gmra.mxu0 %v4117
        %v4119 = vpop.f32.mrf.mxu0
        %v4120 = vadd.f32 %v4097, %v4119
        %4121 = vdwg.mxu0
        %4122 = vmatpush.msra.mxu0 0.0
        %4123 = vmatpush.msra.mxu0 0.0
        %4124 = vmatpush.msra.mxu0 0.0
        %4125 = vmatpush.msra.mxu0 0.0
        %4126 = vmatpush.msra.mxu0 0.0
        %4127 = vmatpush.msra.mxu0 0.0
        %4128 = vmatpush.msra.mxu0 0.0
        %4129 = vmatpush.msra.mxu0 0.0
        %4130 = vmatpush.msra.mxu0 0.0
        %4131 = vmatpush.msra.mxu0 0.0
        %4132 = vmatpush.msra.mxu0 0.0
        %4133 = vmatpush.msra.mxu0 0.0
        %4134 = vmatpush.msra.mxu0 0.0
        %4135 = vmatpush.msra.mxu0 0.0
        %v4136 = vand.u32 %v1426, 4294901760
        %4137 = vmatpush.msra.mxu0 %v4136
        %v4138 = vand.u32 %v1422, 4294901760
        %4139 = vmatpush.msra.mxu0 %v4138
        %v4140 = vand.u32 %v3144, 4294901760
        %v4141 = vsub.f32 %v3144, %v4140
        %v4142 = vand.u32 %v4141, 4294901760
        %v4143 = vsub.f32 %v4141, %v4142
        %v4144 = vand.u32 %v4143, 4294901760
        %4145 = vmatmul.f32.gmra.mxu0 %v4144
        %v4146 = vpop.f32.mrf.mxu0
        %v4147 = vadd.f32 0.0, %v4146
        %4148 = vdwg.mxu0
        %4149 = vmatpush.msra.mxu0 0.0
        %4150 = vmatpush.msra.mxu0 0.0
        %4151 = vmatpush.msra.mxu0 0.0
        %4152 = vmatpush.msra.mxu0 0.0
        %4153 = vmatpush.msra.mxu0 0.0
        %4154 = vmatpush.msra.mxu0 0.0
        %4155 = vmatpush.msra.mxu0 0.0
        %4156 = vmatpush.msra.mxu0 0.0
        %4157 = vmatpush.msra.mxu0 0.0
        %4158 = vmatpush.msra.mxu0 0.0
        %4159 = vmatpush.msra.mxu0 0.0
        %4160 = vmatpush.msra.mxu0 0.0
        %4161 = vmatpush.msra.mxu0 0.0
        %4162 = vmatpush.msra.mxu0 0.0
        %v4163 = vand.u32 %v1426, 4294901760
        %v4164 = vsub.f32 %v1426, %v4163
        %v4165 = vand.u32 %v4164, 4294901760
        %v4166 = vsub.f32 %v4164, %v4165
        %v4167 = vand.u32 %v4166, 4294901760
        %4168 = vmatpush.msra.mxu0 %v4167
        %v4169 = vand.u32 %v1422, 4294901760
        %v4170 = vsub.f32 %v1422, %v4169
        %v4171 = vand.u32 %v4170, 4294901760
        %v4172 = vsub.f32 %v4170, %v4171
        %v4173 = vand.u32 %v4172, 4294901760
        %4174 = vmatpush.msra.mxu0 %v4173
        %v4175 = vand.u32 %v3144, 4294901760
        %4176 = vmatmul.f32.gmra.mxu0 %v4175
        %v4177 = vpop.f32.mrf.mxu0
        %v4178 = vadd.f32 %v4147, %v4177
        %4179 = vdwg.mxu0
        %4180 = vmatpush.msra.mxu0 0.0
        %4181 = vmatpush.msra.mxu0 0.0
        %4182 = vmatpush.msra.mxu0 0.0
        %4183 = vmatpush.msra.mxu0 0.0
        %4184 = vmatpush.msra.mxu0 0.0
        %4185 = vmatpush.msra.mxu0 0.0
        %4186 = vmatpush.msra.mxu0 0.0
        %4187 = vmatpush.msra.mxu0 0.0
        %4188 = vmatpush.msra.mxu0 0.0
        %4189 = vmatpush.msra.mxu0 0.0
        %4190 = vmatpush.msra.mxu0 0.0
        %4191 = vmatpush.msra.mxu0 0.0
        %4192 = vmatpush.msra.mxu0 0.0
        %4193 = vmatpush.msra.mxu0 0.0
        %v4194 = vand.u32 %v1426, 4294901760
        %v4195 = vsub.f32 %v1426, %v4194
        %4196 = vmatpush.msra.mxu0 %v4195
        %v4197 = vand.u32 %v1422, 4294901760
        %v4198 = vsub.f32 %v1422, %v4197
        %4199 = vmatpush.msra.mxu0 %v4198
        %v4200 = vand.u32 %v3144, 4294901760
        %v4201 = vsub.f32 %v3144, %v4200
        %4202 = vmatmul.f32.gmra.mxu0 %v4201
        %v4203 = vpop.f32.mrf.mxu0
        %v4204 = vadd.f32 %v4178, %v4203
        %4205 = vdwg.mxu0
        %4206 = vmatpush.msra.mxu0 0.0
        %4207 = vmatpush.msra.mxu0 0.0
        %4208 = vmatpush.msra.mxu0 0.0
        %4209 = vmatpush.msra.mxu0 0.0
        %4210 = vmatpush.msra.mxu0 0.0
        %4211 = vmatpush.msra.mxu0 0.0
        %4212 = vmatpush.msra.mxu0 0.0
        %4213 = vmatpush.msra.mxu0 0.0
        %4214 = vmatpush.msra.mxu0 0.0
        %4215 = vmatpush.msra.mxu0 0.0
        %4216 = vmatpush.msra.mxu0 0.0
        %4217 = vmatpush.msra.mxu0 0.0
        %4218 = vmatpush.msra.mxu0 0.0
        %4219 = vmatpush.msra.mxu0 0.0
        %v4220 = vand.u32 %v1426, 4294901760
        %4221 = vmatpush.msra.mxu0 %v4220
        %v4222 = vand.u32 %v1422, 4294901760
        %4223 = vmatpush.msra.mxu0 %v4222
        %v4224 = vand.u32 %v3144, 4294901760
        %v4225 = vsub.f32 %v3144, %v4224
        %v4226 = vand.u32 %v4225, 4294901760
        %4227 = vmatmul.f32.gmra.mxu0 %v4226
        %v4228 = vpop.f32.mrf.mxu0
        %v4229 = vadd.f32 %v4204, %v4228
        %4230 = vdwg.mxu0
        %4231 = vmatpush.msra.mxu0 0.0
        %4232 = vmatpush.msra.mxu0 0.0
        %4233 = vmatpush.msra.mxu0 0.0
        %4234 = vmatpush.msra.mxu0 0.0
        %4235 = vmatpush.msra.mxu0 0.0
        %4236 = vmatpush.msra.mxu0 0.0
        %4237 = vmatpush.msra.mxu0 0.0
        %4238 = vmatpush.msra.mxu0 0.0
        %4239 = vmatpush.msra.mxu0 0.0
        %4240 = vmatpush.msra.mxu0 0.0
        %4241 = vmatpush.msra.mxu0 0.0
        %4242 = vmatpush.msra.mxu0 0.0
        %4243 = vmatpush.msra.mxu0 0.0
        %4244 = vmatpush.msra.mxu0 0.0
        %v4245 = vand.u32 %v1426, 4294901760
        %v4246 = vsub.f32 %v1426, %v4245
        %v4247 = vand.u32 %v4246, 4294901760
        %4248 = vmatpush.msra.mxu0 %v4247
        %v4249 = vand.u32 %v1422, 4294901760
        %v4250 = vsub.f32 %v1422, %v4249
        %v4251 = vand.u32 %v4250, 4294901760
        %4252 = vmatpush.msra.mxu0 %v4251
        %v4253 = vand.u32 %v3144, 4294901760
        %4254 = vmatmul.f32.gmra.mxu0 %v4253
        %v4255 = vpop.f32.mrf.mxu0
        %v4256 = vadd.f32 %v4229, %v4255
        %4257 = vdwg.mxu0
        %4258 = vmatpush.msra.mxu0 0.0
        %4259 = vmatpush.msra.mxu0 0.0
        %4260 = vmatpush.msra.mxu0 0.0
        %4261 = vmatpush.msra.mxu0 0.0
        %4262 = vmatpush.msra.mxu0 0.0
        %4263 = vmatpush.msra.mxu0 0.0
        %4264 = vmatpush.msra.mxu0 0.0
        %4265 = vmatpush.msra.mxu0 0.0
        %4266 = vmatpush.msra.mxu0 0.0
        %4267 = vmatpush.msra.mxu0 0.0
        %4268 = vmatpush.msra.mxu0 0.0
        %4269 = vmatpush.msra.mxu0 0.0
        %4270 = vmatpush.msra.mxu0 0.0
        %4271 = vmatpush.msra.mxu0 0.0
        %v4272 = vand.u32 %v1426, 4294901760
        %4273 = vmatpush.msra.mxu0 %v4272
        %v4274 = vand.u32 %v1422, 4294901760
        %4275 = vmatpush.msra.mxu0 %v4274
        %v4276 = vand.u32 %v3144, 4294901760
        %4277 = vmatmul.f32.gmra.mxu0 %v4276
        %v4278 = vpop.f32.mrf.mxu0
        %v4279 = vadd.f32 %v4256, %v4278
        %4280 = vdwg.mxu0
        %4281 = vmatpush.msra.mxu0 0.0
        %4282 = vmatpush.msra.mxu0 0.0
        %4283 = vmatpush.msra.mxu0 0.0
        %4284 = vmatpush.msra.mxu0 0.0
        %4285 = vmatpush.msra.mxu0 0.0
        %4286 = vmatpush.msra.mxu0 0.0
        %4287 = vmatpush.msra.mxu0 0.0
        %4288 = vmatpush.msra.mxu0 0.0
        %4289 = vmatpush.msra.mxu0 0.0
        %4290 = vmatpush.msra.mxu0 0.0
        %4291 = vmatpush.msra.mxu0 0.0
        %4292 = vmatpush.msra.mxu0 0.0
        %4293 = vmatpush.msra.mxu0 0.0
        %4294 = vmatpush.msra.mxu0 0.0
        %v4295 = vand.u32 %v1992, 4294901760
        %4296 = vmatpush.msra.mxu0 %v4295
        %v4297 = vand.u32 %v1988, 4294901760
        %4298 = vmatpush.msra.mxu0 %v4297
        %v4299 = vand.u32 %v3144, 4294901760
        %v4300 = vsub.f32 %v3144, %v4299
        %v4301 = vand.u32 %v4300, 4294901760
        %v4302 = vsub.f32 %v4300, %v4301
        %v4303 = vand.u32 %v4302, 4294901760
        %4304 = vmatmul.f32.gmra.mxu0 %v4303
        %v4305 = vpop.f32.mrf.mxu0
        %v4306 = vadd.f32 0.0, %v4305
        %4307 = vdwg.mxu0
        %4308 = vmatpush.msra.mxu0 0.0
        %4309 = vmatpush.msra.mxu0 0.0
        %4310 = vmatpush.msra.mxu0 0.0
        %4311 = vmatpush.msra.mxu0 0.0
        %4312 = vmatpush.msra.mxu0 0.0
        %4313 = vmatpush.msra.mxu0 0.0
        %4314 = vmatpush.msra.mxu0 0.0
        %4315 = vmatpush.msra.mxu0 0.0
        %4316 = vmatpush.msra.mxu0 0.0
        %4317 = vmatpush.msra.mxu0 0.0
        %4318 = vmatpush.msra.mxu0 0.0
        %4319 = vmatpush.msra.mxu0 0.0
        %4320 = vmatpush.msra.mxu0 0.0
        %4321 = vmatpush.msra.mxu0 0.0
        %v4322 = vand.u32 %v1992, 4294901760
        %v4323 = vsub.f32 %v1992, %v4322
        %v4324 = vand.u32 %v4323, 4294901760
        %v4325 = vsub.f32 %v4323, %v4324
        %v4326 = vand.u32 %v4325, 4294901760
        %4327 = vmatpush.msra.mxu0 %v4326
        %v4328 = vand.u32 %v1988, 4294901760
        %v4329 = vsub.f32 %v1988, %v4328
        %v4330 = vand.u32 %v4329, 4294901760
        %v4331 = vsub.f32 %v4329, %v4330
        %v4332 = vand.u32 %v4331, 4294901760
        %4333 = vmatpush.msra.mxu0 %v4332
        %v4334 = vand.u32 %v3144, 4294901760
        %4335 = vmatmul.f32.gmra.mxu0 %v4334
        %v4336 = vpop.f32.mrf.mxu0
        %v4337 = vadd.f32 %v4306, %v4336
        %4338 = vdwg.mxu0
        %4339 = vmatpush.msra.mxu0 0.0
        %4340 = vmatpush.msra.mxu0 0.0
        %4341 = vmatpush.msra.mxu0 0.0
        %4342 = vmatpush.msra.mxu0 0.0
        %4343 = vmatpush.msra.mxu0 0.0
        %4344 = vmatpush.msra.mxu0 0.0
        %4345 = vmatpush.msra.mxu0 0.0
        %4346 = vmatpush.msra.mxu0 0.0
        %4347 = vmatpush.msra.mxu0 0.0
        %4348 = vmatpush.msra.mxu0 0.0
        %4349 = vmatpush.msra.mxu0 0.0
        %4350 = vmatpush.msra.mxu0 0.0
        %4351 = vmatpush.msra.mxu0 0.0
        %4352 = vmatpush.msra.mxu0 0.0
        %v4353 = vand.u32 %v1992, 4294901760
        %v4354 = vsub.f32 %v1992, %v4353
        %4355 = vmatpush.msra.mxu0 %v4354
        %v4356 = vand.u32 %v1988, 4294901760
        %v4357 = vsub.f32 %v1988, %v4356
        %4358 = vmatpush.msra.mxu0 %v4357
        %v4359 = vand.u32 %v3144, 4294901760
        %v4360 = vsub.f32 %v3144, %v4359
        %4361 = vmatmul.f32.gmra.mxu0 %v4360
        %v4362 = vpop.f32.mrf.mxu0
        %v4363 = vadd.f32 %v4337, %v4362
        %4364 = vdwg.mxu0
        %4365 = vmatpush.msra.mxu0 0.0
        %4366 = vmatpush.msra.mxu0 0.0
        %4367 = vmatpush.msra.mxu0 0.0
        %4368 = vmatpush.msra.mxu0 0.0
        %4369 = vmatpush.msra.mxu0 0.0
        %4370 = vmatpush.msra.mxu0 0.0
        %4371 = vmatpush.msra.mxu0 0.0
        %4372 = vmatpush.msra.mxu0 0.0
        %4373 = vmatpush.msra.mxu0 0.0
        %4374 = vmatpush.msra.mxu0 0.0
        %4375 = vmatpush.msra.mxu0 0.0
        %4376 = vmatpush.msra.mxu0 0.0
        %4377 = vmatpush.msra.mxu0 0.0
        %4378 = vmatpush.msra.mxu0 0.0
        %v4379 = vand.u32 %v1992, 4294901760
        %4380 = vmatpush.msra.mxu0 %v4379
        %v4381 = vand.u32 %v1988, 4294901760
        %4382 = vmatpush.msra.mxu0 %v4381
        %v4383 = vand.u32 %v3144, 4294901760
        %v4384 = vsub.f32 %v3144, %v4383
        %v4385 = vand.u32 %v4384, 4294901760
        %4386 = vmatmul.f32.gmra.mxu0 %v4385
        %v4387 = vpop.f32.mrf.mxu0
        %v4388 = vadd.f32 %v4363, %v4387
        %4389 = vdwg.mxu0
        %4390 = vmatpush.msra.mxu0 0.0
        %4391 = vmatpush.msra.mxu0 0.0
        %4392 = vmatpush.msra.mxu0 0.0
        %4393 = vmatpush.msra.mxu0 0.0
        %4394 = vmatpush.msra.mxu0 0.0
        %4395 = vmatpush.msra.mxu0 0.0
        %4396 = vmatpush.msra.mxu0 0.0
        %4397 = vmatpush.msra.mxu0 0.0
        %4398 = vmatpush.msra.mxu0 0.0
        %4399 = vmatpush.msra.mxu0 0.0
        %4400 = vmatpush.msra.mxu0 0.0
        %4401 = vmatpush.msra.mxu0 0.0
        %4402 = vmatpush.msra.mxu0 0.0
        %4403 = vmatpush.msra.mxu0 0.0
        %v4404 = vand.u32 %v1992, 4294901760
        %v4405 = vsub.f32 %v1992, %v4404
        %v4406 = vand.u32 %v4405, 4294901760
        %4407 = vmatpush.msra.mxu0 %v4406
        %v4408 = vand.u32 %v1988, 4294901760
        %v4409 = vsub.f32 %v1988, %v4408
        %v4410 = vand.u32 %v4409, 4294901760
        %4411 = vmatpush.msra.mxu0 %v4410
        %v4412 = vand.u32 %v3144, 4294901760
        %4413 = vmatmul.f32.gmra.mxu0 %v4412
        %v4414 = vpop.f32.mrf.mxu0
        %v4415 = vadd.f32 %v4388, %v4414
        %4416 = vdwg.mxu0
        %4417 = vmatpush.msra.mxu0 0.0
        %4418 = vmatpush.msra.mxu0 0.0
        %4419 = vmatpush.msra.mxu0 0.0
        %4420 = vmatpush.msra.mxu0 0.0
        %4421 = vmatpush.msra.mxu0 0.0
        %4422 = vmatpush.msra.mxu0 0.0
        %4423 = vmatpush.msra.mxu0 0.0
        %4424 = vmatpush.msra.mxu0 0.0
        %4425 = vmatpush.msra.mxu0 0.0
        %4426 = vmatpush.msra.mxu0 0.0
        %4427 = vmatpush.msra.mxu0 0.0
        %4428 = vmatpush.msra.mxu0 0.0
        %4429 = vmatpush.msra.mxu0 0.0
        %4430 = vmatpush.msra.mxu0 0.0
        %v4431 = vand.u32 %v1992, 4294901760
        %4432 = vmatpush.msra.mxu0 %v4431
        %v4433 = vand.u32 %v1988, 4294901760
        %4434 = vmatpush.msra.mxu0 %v4433
        %v4435 = vand.u32 %v3144, 4294901760
        %4436 = vmatmul.f32.gmra.mxu0 %v4435
        %v4437 = vpop.f32.mrf.mxu0
        %v4438 = vadd.f32 %v4415, %v4437
        %4439 = vdwg.mxu0
        %4440 = vmatpush.msra.mxu0 0.0
        %4441 = vmatpush.msra.mxu0 0.0
        %4442 = vmatpush.msra.mxu0 0.0
        %4443 = vmatpush.msra.mxu0 0.0
        %4444 = vmatpush.msra.mxu0 0.0
        %4445 = vmatpush.msra.mxu0 0.0
        %4446 = vmatpush.msra.mxu0 0.0
        %4447 = vmatpush.msra.mxu0 0.0
        %4448 = vmatpush.msra.mxu0 0.0
        %4449 = vmatpush.msra.mxu0 0.0
        %4450 = vmatpush.msra.mxu0 0.0
        %4451 = vmatpush.msra.mxu0 0.0
        %4452 = vmatpush.msra.mxu0 0.0
        %4453 = vmatpush.msra.mxu0 0.0
        %v4454 = vand.u32 %v2558, 4294901760
        %4455 = vmatpush.msra.mxu0 %v4454
        %v4456 = vand.u32 %v2554, 4294901760
        %4457 = vmatpush.msra.mxu0 %v4456
        %v4458 = vand.u32 %v3144, 4294901760
        %v4459 = vsub.f32 %v3144, %v4458
        %v4460 = vand.u32 %v4459, 4294901760
        %v4461 = vsub.f32 %v4459, %v4460
        %v4462 = vand.u32 %v4461, 4294901760
        %4463 = vmatmul.f32.gmra.mxu0 %v4462
        %v4464 = vpop.f32.mrf.mxu0
        %v4465 = vadd.f32 0.0, %v4464
        %4466 = vdwg.mxu0
        %4467 = vmatpush.msra.mxu0 0.0
        %4468 = vmatpush.msra.mxu0 0.0
        %4469 = vmatpush.msra.mxu0 0.0
        %4470 = vmatpush.msra.mxu0 0.0
        %4471 = vmatpush.msra.mxu0 0.0
        %4472 = vmatpush.msra.mxu0 0.0
        %4473 = vmatpush.msra.mxu0 0.0
        %4474 = vmatpush.msra.mxu0 0.0
        %4475 = vmatpush.msra.mxu0 0.0
        %4476 = vmatpush.msra.mxu0 0.0
        %4477 = vmatpush.msra.mxu0 0.0
        %4478 = vmatpush.msra.mxu0 0.0
        %4479 = vmatpush.msra.mxu0 0.0
        %4480 = vmatpush.msra.mxu0 0.0
        %v4481 = vand.u32 %v2558, 4294901760
        %v4482 = vsub.f32 %v2558, %v4481
        %v4483 = vand.u32 %v4482, 4294901760
        %v4484 = vsub.f32 %v4482, %v4483
        %v4485 = vand.u32 %v4484, 4294901760
        %4486 = vmatpush.msra.mxu0 %v4485
        %v4487 = vand.u32 %v2554, 4294901760
        %v4488 = vsub.f32 %v2554, %v4487
        %v4489 = vand.u32 %v4488, 4294901760
        %v4490 = vsub.f32 %v4488, %v4489
        %v4491 = vand.u32 %v4490, 4294901760
        %4492 = vmatpush.msra.mxu0 %v4491
        %v4493 = vand.u32 %v3144, 4294901760
        %4494 = vmatmul.f32.gmra.mxu0 %v4493
        %v4495 = vpop.f32.mrf.mxu0
        %v4496 = vadd.f32 %v4465, %v4495
        %4497 = vdwg.mxu0
        %4498 = vmatpush.msra.mxu0 0.0
        %4499 = vmatpush.msra.mxu0 0.0
        %4500 = vmatpush.msra.mxu0 0.0
        %4501 = vmatpush.msra.mxu0 0.0
        %4502 = vmatpush.msra.mxu0 0.0
        %4503 = vmatpush.msra.mxu0 0.0
        %4504 = vmatpush.msra.mxu0 0.0
        %4505 = vmatpush.msra.mxu0 0.0
        %4506 = vmatpush.msra.mxu0 0.0
        %4507 = vmatpush.msra.mxu0 0.0
        %4508 = vmatpush.msra.mxu0 0.0
        %4509 = vmatpush.msra.mxu0 0.0
        %4510 = vmatpush.msra.mxu0 0.0
        %4511 = vmatpush.msra.mxu0 0.0
        %v4512 = vand.u32 %v2558, 4294901760
        %v4513 = vsub.f32 %v2558, %v4512
        %4514 = vmatpush.msra.mxu0 %v4513
        %v4515 = vand.u32 %v2554, 4294901760
        %v4516 = vsub.f32 %v2554, %v4515
        %4517 = vmatpush.msra.mxu0 %v4516
        %v4518 = vand.u32 %v3144, 4294901760
        %v4519 = vsub.f32 %v3144, %v4518
        %4520 = vmatmul.f32.gmra.mxu0 %v4519
        %v4521 = vpop.f32.mrf.mxu0
        %v4522 = vadd.f32 %v4496, %v4521
        %4523 = vdwg.mxu0
        %4524 = vmatpush.msra.mxu0 0.0
        %4525 = vmatpush.msra.mxu0 0.0
        %4526 = vmatpush.msra.mxu0 0.0
        %4527 = vmatpush.msra.mxu0 0.0
        %4528 = vmatpush.msra.mxu0 0.0
        %4529 = vmatpush.msra.mxu0 0.0
        %4530 = vmatpush.msra.mxu0 0.0
        %4531 = vmatpush.msra.mxu0 0.0
        %4532 = vmatpush.msra.mxu0 0.0
        %4533 = vmatpush.msra.mxu0 0.0
        %4534 = vmatpush.msra.mxu0 0.0
        %4535 = vmatpush.msra.mxu0 0.0
        %4536 = vmatpush.msra.mxu0 0.0
        %4537 = vmatpush.msra.mxu0 0.0
        %v4538 = vand.u32 %v2558, 4294901760
        %4539 = vmatpush.msra.mxu0 %v4538
        %v4540 = vand.u32 %v2554, 4294901760
        %4541 = vmatpush.msra.mxu0 %v4540
        %v4542 = vand.u32 %v3144, 4294901760
        %v4543 = vsub.f32 %v3144, %v4542
        %v4544 = vand.u32 %v4543, 4294901760
        %4545 = vmatmul.f32.gmra.mxu0 %v4544
        %v4546 = vpop.f32.mrf.mxu0
        %v4547 = vadd.f32 %v4522, %v4546
        %4548 = vdwg.mxu0
        %4549 = vmatpush.msra.mxu0 0.0
        %4550 = vmatpush.msra.mxu0 0.0
        %4551 = vmatpush.msra.mxu0 0.0
        %4552 = vmatpush.msra.mxu0 0.0
        %4553 = vmatpush.msra.mxu0 0.0
        %4554 = vmatpush.msra.mxu0 0.0
        %4555 = vmatpush.msra.mxu0 0.0
        %4556 = vmatpush.msra.mxu0 0.0
        %4557 = vmatpush.msra.mxu0 0.0
        %4558 = vmatpush.msra.mxu0 0.0
        %4559 = vmatpush.msra.mxu0 0.0
        %4560 = vmatpush.msra.mxu0 0.0
        %4561 = vmatpush.msra.mxu0 0.0
        %4562 = vmatpush.msra.mxu0 0.0
        %v4563 = vand.u32 %v2558, 4294901760
        %v4564 = vsub.f32 %v2558, %v4563
        %v4565 = vand.u32 %v4564, 4294901760
        %4566 = vmatpush.msra.mxu0 %v4565
        %v4567 = vand.u32 %v2554, 4294901760
        %v4568 = vsub.f32 %v2554, %v4567
        %v4569 = vand.u32 %v4568, 4294901760
        %4570 = vmatpush.msra.mxu0 %v4569
        %v4571 = vand.u32 %v3144, 4294901760
        %4572 = vmatmul.f32.gmra.mxu0 %v4571
        %v4573 = vpop.f32.mrf.mxu0
        %v4574 = vadd.f32 %v4547, %v4573
        %4575 = vdwg.mxu0
        %4576 = vmatpush.msra.mxu0 0.0
        %4577 = vmatpush.msra.mxu0 0.0
        %4578 = vmatpush.msra.mxu0 0.0
        %4579 = vmatpush.msra.mxu0 0.0
        %4580 = vmatpush.msra.mxu0 0.0
        %4581 = vmatpush.msra.mxu0 0.0
        %4582 = vmatpush.msra.mxu0 0.0
        %4583 = vmatpush.msra.mxu0 0.0
        %4584 = vmatpush.msra.mxu0 0.0
        %4585 = vmatpush.msra.mxu0 0.0
        %4586 = vmatpush.msra.mxu0 0.0
        %4587 = vmatpush.msra.mxu0 0.0
        %4588 = vmatpush.msra.mxu0 0.0
        %4589 = vmatpush.msra.mxu0 0.0
        %v4590 = vand.u32 %v2558, 4294901760
        %4591 = vmatpush.msra.mxu0 %v4590
        %v4592 = vand.u32 %v2554, 4294901760
        %4593 = vmatpush.msra.mxu0 %v4592
        %v4594 = vand.u32 %v3144, 4294901760
        %4595 = vmatmul.f32.gmra.mxu0 %v4594
        %v4596 = vpop.f32.mrf.mxu0
        %v4597 = vadd.f32 %v4574, %v4596
        %4598 = vdwg.mxu0
        %4599 = vmatpush.msra.mxu0 0.0
        %4600 = vmatpush.msra.mxu0 0.0
        %4601 = vmatpush.msra.mxu0 0.0
        %4602 = vmatpush.msra.mxu0 0.0
        %4603 = vmatpush.msra.mxu0 0.0
        %4604 = vmatpush.msra.mxu0 0.0
        %4605 = vmatpush.msra.mxu0 0.0
        %4606 = vmatpush.msra.mxu0 0.0
        %4607 = vmatpush.msra.mxu0 0.0
        %4608 = vmatpush.msra.mxu0 0.0
        %4609 = vmatpush.msra.mxu0 0.0
        %4610 = vmatpush.msra.mxu0 0.0
        %4611 = vmatpush.msra.mxu0 0.0
        %4612 = vmatpush.msra.mxu0 0.0
        %v4613 = vand.u32 %v3124, 4294901760
        %4614 = vmatpush.msra.mxu0 %v4613
        %v4615 = vand.u32 %v3120, 4294901760
        %4616 = vmatpush.msra.mxu0 %v4615
        %v4617 = vand.u32 %v3144, 4294901760
        %v4618 = vsub.f32 %v3144, %v4617
        %v4619 = vand.u32 %v4618, 4294901760
        %v4620 = vsub.f32 %v4618, %v4619
        %v4621 = vand.u32 %v4620, 4294901760
        %4622 = vmatmul.f32.gmra.mxu0 %v4621
        %v4623 = vpop.f32.mrf.mxu0
        %v4624 = vadd.f32 0.0, %v4623
        %4625 = vdwg.mxu0
        %4626 = vmatpush.msra.mxu0 0.0
        %4627 = vmatpush.msra.mxu0 0.0
        %4628 = vmatpush.msra.mxu0 0.0
        %4629 = vmatpush.msra.mxu0 0.0
        %4630 = vmatpush.msra.mxu0 0.0
        %4631 = vmatpush.msra.mxu0 0.0
        %4632 = vmatpush.msra.mxu0 0.0
        %4633 = vmatpush.msra.mxu0 0.0
        %4634 = vmatpush.msra.mxu0 0.0
        %4635 = vmatpush.msra.mxu0 0.0
        %4636 = vmatpush.msra.mxu0 0.0
        %4637 = vmatpush.msra.mxu0 0.0
        %4638 = vmatpush.msra.mxu0 0.0
        %4639 = vmatpush.msra.mxu0 0.0
        %v4640 = vand.u32 %v3124, 4294901760
        %v4641 = vsub.f32 %v3124, %v4640
        %v4642 = vand.u32 %v4641, 4294901760
        %v4643 = vsub.f32 %v4641, %v4642
        %v4644 = vand.u32 %v4643, 4294901760
        %4645 = vmatpush.msra.mxu0 %v4644
        %v4646 = vand.u32 %v3120, 4294901760
        %v4647 = vsub.f32 %v3120, %v4646
        %v4648 = vand.u32 %v4647, 4294901760
        %v4649 = vsub.f32 %v4647, %v4648
        %v4650 = vand.u32 %v4649, 4294901760
        %4651 = vmatpush.msra.mxu0 %v4650
        %v4652 = vand.u32 %v3144, 4294901760
        %4653 = vmatmul.f32.gmra.mxu0 %v4652
        %v4654 = vpop.f32.mrf.mxu0
        %v4655 = vadd.f32 %v4624, %v4654
        %4656 = vdwg.mxu0
        %4657 = vmatpush.msra.mxu0 0.0
        %4658 = vmatpush.msra.mxu0 0.0
        %4659 = vmatpush.msra.mxu0 0.0
        %4660 = vmatpush.msra.mxu0 0.0
        %4661 = vmatpush.msra.mxu0 0.0
        %4662 = vmatpush.msra.mxu0 0.0
        %4663 = vmatpush.msra.mxu0 0.0
        %4664 = vmatpush.msra.mxu0 0.0
        %4665 = vmatpush.msra.mxu0 0.0
        %4666 = vmatpush.msra.mxu0 0.0
        %4667 = vmatpush.msra.mxu0 0.0
        %4668 = vmatpush.msra.mxu0 0.0
        %4669 = vmatpush.msra.mxu0 0.0
        %4670 = vmatpush.msra.mxu0 0.0
        %v4671 = vand.u32 %v3124, 4294901760
        %v4672 = vsub.f32 %v3124, %v4671
        %4673 = vmatpush.msra.mxu0 %v4672
        %v4674 = vand.u32 %v3120, 4294901760
        %v4675 = vsub.f32 %v3120, %v4674
        %4676 = vmatpush.msra.mxu0 %v4675
        %v4677 = vand.u32 %v3144, 4294901760
        %v4678 = vsub.f32 %v3144, %v4677
        %4679 = vmatmul.f32.gmra.mxu0 %v4678
        %v4680 = vpop.f32.mrf.mxu0
        %v4681 = vadd.f32 %v4655, %v4680
        %4682 = vdwg.mxu0
        %4683 = vmatpush.msra.mxu0 0.0
        %4684 = vmatpush.msra.mxu0 0.0
        %4685 = vmatpush.msra.mxu0 0.0
        %4686 = vmatpush.msra.mxu0 0.0
        %4687 = vmatpush.msra.mxu0 0.0
        %4688 = vmatpush.msra.mxu0 0.0
        %4689 = vmatpush.msra.mxu0 0.0
        %4690 = vmatpush.msra.mxu0 0.0
        %4691 = vmatpush.msra.mxu0 0.0
        %4692 = vmatpush.msra.mxu0 0.0
        %4693 = vmatpush.msra.mxu0 0.0
        %4694 = vmatpush.msra.mxu0 0.0
        %4695 = vmatpush.msra.mxu0 0.0
        %4696 = vmatpush.msra.mxu0 0.0
        %v4697 = vand.u32 %v3124, 4294901760
        %4698 = vmatpush.msra.mxu0 %v4697
        %v4699 = vand.u32 %v3120, 4294901760
        %4700 = vmatpush.msra.mxu0 %v4699
        %v4701 = vand.u32 %v3144, 4294901760
        %v4702 = vsub.f32 %v3144, %v4701
        %v4703 = vand.u32 %v4702, 4294901760
        %4704 = vmatmul.f32.gmra.mxu0 %v4703
        %v4705 = vpop.f32.mrf.mxu0
        %v4706 = vadd.f32 %v4681, %v4705
        %4707 = vdwg.mxu0
        %4708 = vmatpush.msra.mxu0 0.0
        %4709 = vmatpush.msra.mxu0 0.0
        %4710 = vmatpush.msra.mxu0 0.0
        %4711 = vmatpush.msra.mxu0 0.0
        %4712 = vmatpush.msra.mxu0 0.0
        %4713 = vmatpush.msra.mxu0 0.0
        %4714 = vmatpush.msra.mxu0 0.0
        %4715 = vmatpush.msra.mxu0 0.0
        %4716 = vmatpush.msra.mxu0 0.0
        %4717 = vmatpush.msra.mxu0 0.0
        %4718 = vmatpush.msra.mxu0 0.0
        %4719 = vmatpush.msra.mxu0 0.0
        %4720 = vmatpush.msra.mxu0 0.0
        %4721 = vmatpush.msra.mxu0 0.0
        %v4722 = vand.u32 %v3124, 4294901760
        %v4723 = vsub.f32 %v3124, %v4722
        %v4724 = vand.u32 %v4723, 4294901760
        %4725 = vmatpush.msra.mxu0 %v4724
        %v4726 = vand.u32 %v3120, 4294901760
        %v4727 = vsub.f32 %v3120, %v4726
        %v4728 = vand.u32 %v4727, 4294901760
        %4729 = vmatpush.msra.mxu0 %v4728
        %v4730 = vand.u32 %v3144, 4294901760
        %4731 = vmatmul.f32.gmra.mxu0 %v4730
        %v4732 = vpop.f32.mrf.mxu0
        %v4733 = vadd.f32 %v4706, %v4732
        %4734 = vdwg.mxu0
        %4735 = vmatpush.msra.mxu0 0.0
        %4736 = vmatpush.msra.mxu0 0.0
        %4737 = vmatpush.msra.mxu0 0.0
        %4738 = vmatpush.msra.mxu0 0.0
        %4739 = vmatpush.msra.mxu0 0.0
        %4740 = vmatpush.msra.mxu0 0.0
        %4741 = vmatpush.msra.mxu0 0.0
        %4742 = vmatpush.msra.mxu0 0.0
        %4743 = vmatpush.msra.mxu0 0.0
        %4744 = vmatpush.msra.mxu0 0.0
        %4745 = vmatpush.msra.mxu0 0.0
        %4746 = vmatpush.msra.mxu0 0.0
        %4747 = vmatpush.msra.mxu0 0.0
        %4748 = vmatpush.msra.mxu0 0.0
        %v4749 = vand.u32 %v3124, 4294901760
        %4750 = vmatpush.msra.mxu0 %v4749
        %v4751 = vand.u32 %v3120, 4294901760
        %4752 = vmatpush.msra.mxu0 %v4751
        %v4753 = vand.u32 %v3144, 4294901760
        %4754 = vmatmul.f32.gmra.mxu0 %v4753
        %v4755 = vpop.f32.mrf.mxu0
        %v4756 = vadd.f32 %v4733, %v4755
        %4757 = vdwg.mxu0
        %v4758 = vmul.f32 %v4120, %v4120
        %v4759 = vmul.f32 %v4279, %v4279
        %v4760 = vmul.f32 %v4120, %v4279
        %v4761 = vsub.f32 %v4438, %v4758
        %v4762 = vsub.f32 %v4597, %v4759
        %v4763 = vsub.f32 %v4756, %v4760
        %v4764 = vmul.f32 %v4760, 2.0
        %v4765 = vadd.f32 %v4764, 0.0001
        %v4766 = vmul.f32 %v4763, 2.0
        %v4767 = vadd.f32 %v4766, 0.0009
        %v4768 = vmul.f32 %v4765, %v4767
        %v4769 = vadd.f32 %v4758, %v4759
        %v4770 = vadd.f32 %v4769, 0.0001
        %v4771 = vadd.f32 %v4761, %v4762
        %v4772 = vadd.f32 %v4771, 0.0009
        %v4773 = vmul.f32 %v4770, %v4772
        %v4774 = vrcp.pop %v4773
        %v4775 = vmul.f32 %v4773, %v4774
        %v4776 = vsub.f32 2.0, %v4775
        %v4777 = vmul.f32 %v4774, %v4776
        %v4778 = vmul.f32 %v4768, %v4777
        %v4779 = vadd.f32 %v3962, %v4778
        %4780 = vmatpush.msra.mxu0 0.0
        %4781 = vmatpush.msra.mxu0 0.0
        %4782 = vmatpush.msra.mxu0 0.0
        %4783 = vmatpush.msra.mxu0 0.0
        %4784 = vmatpush.msra.mxu0 0.0
        %4785 = vmatpush.msra.mxu0 0.0
        %4786 = vmatpush.msra.mxu0 0.0
        %4787 = vmatpush.msra.mxu0 0.0
        %4788 = vmatpush.msra.mxu0 0.0
        %4789 = vmatpush.msra.mxu0 0.0
        %4790 = vmatpush.msra.mxu0 0.0
        %4791 = vmatpush.msra.mxu0 0.0
        %4792 = vmatpush.msra.mxu0 0.0
        %4793 = vmatpush.msra.mxu0 0.0
        %v4794 = vand.u32 %v876, 4294901760
        %4795 = vmatpush.msra.mxu0 %v4794
        %v4796 = vand.u32 %v872, 4294901760
        %4797 = vmatpush.msra.mxu0 %v4796
        %v4798 = vand.u32 %v3144, 4294901760
        %v4799 = vsub.f32 %v3144, %v4798
        %v4800 = vand.u32 %v4799, 4294901760
        %v4801 = vsub.f32 %v4799, %v4800
        %v4802 = vand.u32 %v4801, 4294901760
        %4803 = vmatmul.f32.gmra.mxu0 %v4802
        %v4804 = vpop.f32.mrf.mxu0
        %v4805 = vadd.f32 0.0, %v4804
        %4806 = vdwg.mxu0
        %4807 = vmatpush.msra.mxu0 0.0
        %4808 = vmatpush.msra.mxu0 0.0
        %4809 = vmatpush.msra.mxu0 0.0
        %4810 = vmatpush.msra.mxu0 0.0
        %4811 = vmatpush.msra.mxu0 0.0
        %4812 = vmatpush.msra.mxu0 0.0
        %4813 = vmatpush.msra.mxu0 0.0
        %4814 = vmatpush.msra.mxu0 0.0
        %4815 = vmatpush.msra.mxu0 0.0
        %4816 = vmatpush.msra.mxu0 0.0
        %4817 = vmatpush.msra.mxu0 0.0
        %4818 = vmatpush.msra.mxu0 0.0
        %4819 = vmatpush.msra.mxu0 0.0
        %4820 = vmatpush.msra.mxu0 0.0
        %v4821 = vand.u32 %v876, 4294901760
        %v4822 = vsub.f32 %v876, %v4821
        %v4823 = vand.u32 %v4822, 4294901760
        %v4824 = vsub.f32 %v4822, %v4823
        %v4825 = vand.u32 %v4824, 4294901760
        %4826 = vmatpush.msra.mxu0 %v4825
        %v4827 = vand.u32 %v872, 4294901760
        %v4828 = vsub.f32 %v872, %v4827
        %v4829 = vand.u32 %v4828, 4294901760
        %v4830 = vsub.f32 %v4828, %v4829
        %v4831 = vand.u32 %v4830, 4294901760
        %4832 = vmatpush.msra.mxu0 %v4831
        %v4833 = vand.u32 %v3144, 4294901760
        %4834 = vmatmul.f32.gmra.mxu0 %v4833
        %v4835 = vpop.f32.mrf.mxu0
        %v4836 = vadd.f32 %v4805, %v4835
        %4837 = vdwg.mxu0
        %4838 = vmatpush.msra.mxu0 0.0
        %4839 = vmatpush.msra.mxu0 0.0
        %4840 = vmatpush.msra.mxu0 0.0
        %4841 = vmatpush.msra.mxu0 0.0
        %4842 = vmatpush.msra.mxu0 0.0
        %4843 = vmatpush.msra.mxu0 0.0
        %4844 = vmatpush.msra.mxu0 0.0
        %4845 = vmatpush.msra.mxu0 0.0
        %4846 = vmatpush.msra.mxu0 0.0
        %4847 = vmatpush.msra.mxu0 0.0
        %4848 = vmatpush.msra.mxu0 0.0
        %4849 = vmatpush.msra.mxu0 0.0
        %4850 = vmatpush.msra.mxu0 0.0
        %4851 = vmatpush.msra.mxu0 0.0
        %v4852 = vand.u32 %v876, 4294901760
        %v4853 = vsub.f32 %v876, %v4852
        %4854 = vmatpush.msra.mxu0 %v4853
        %v4855 = vand.u32 %v872, 4294901760
        %v4856 = vsub.f32 %v872, %v4855
        %4857 = vmatpush.msra.mxu0 %v4856
        %v4858 = vand.u32 %v3144, 4294901760
        %v4859 = vsub.f32 %v3144, %v4858
        %4860 = vmatmul.f32.gmra.mxu0 %v4859
        %v4861 = vpop.f32.mrf.mxu0
        %v4862 = vadd.f32 %v4836, %v4861
        %4863 = vdwg.mxu0
        %4864 = vmatpush.msra.mxu0 0.0
        %4865 = vmatpush.msra.mxu0 0.0
        %4866 = vmatpush.msra.mxu0 0.0
        %4867 = vmatpush.msra.mxu0 0.0
        %4868 = vmatpush.msra.mxu0 0.0
        %4869 = vmatpush.msra.mxu0 0.0
        %4870 = vmatpush.msra.mxu0 0.0
        %4871 = vmatpush.msra.mxu0 0.0
        %4872 = vmatpush.msra.mxu0 0.0
        %4873 = vmatpush.msra.mxu0 0.0
        %4874 = vmatpush.msra.mxu0 0.0
        %4875 = vmatpush.msra.mxu0 0.0
        %4876 = vmatpush.msra.mxu0 0.0
        %4877 = vmatpush.msra.mxu0 0.0
        %v4878 = vand.u32 %v876, 4294901760
        %4879 = vmatpush.msra.mxu0 %v4878
        %v4880 = vand.u32 %v872, 4294901760
        %4881 = vmatpush.msra.mxu0 %v4880
        %v4882 = vand.u32 %v3144, 4294901760
        %v4883 = vsub.f32 %v3144, %v4882
        %v4884 = vand.u32 %v4883, 4294901760
        %4885 = vmatmul.f32.gmra.mxu0 %v4884
        %v4886 = vpop.f32.mrf.mxu0
        %v4887 = vadd.f32 %v4862, %v4886
        %4888 = vdwg.mxu0
        %4889 = vmatpush.msra.mxu0 0.0
        %4890 = vmatpush.msra.mxu0 0.0
        %4891 = vmatpush.msra.mxu0 0.0
        %4892 = vmatpush.msra.mxu0 0.0
        %4893 = vmatpush.msra.mxu0 0.0
        %4894 = vmatpush.msra.mxu0 0.0
        %4895 = vmatpush.msra.mxu0 0.0
        %4896 = vmatpush.msra.mxu0 0.0
        %4897 = vmatpush.msra.mxu0 0.0
        %4898 = vmatpush.msra.mxu0 0.0
        %4899 = vmatpush.msra.mxu0 0.0
        %4900 = vmatpush.msra.mxu0 0.0
        %4901 = vmatpush.msra.mxu0 0.0
        %4902 = vmatpush.msra.mxu0 0.0
        %v4903 = vand.u32 %v876, 4294901760
        %v4904 = vsub.f32 %v876, %v4903
        %v4905 = vand.u32 %v4904, 4294901760
        %4906 = vmatpush.msra.mxu0 %v4905
        %v4907 = vand.u32 %v872, 4294901760
        %v4908 = vsub.f32 %v872, %v4907
        %v4909 = vand.u32 %v4908, 4294901760
        %4910 = vmatpush.msra.mxu0 %v4909
        %v4911 = vand.u32 %v3144, 4294901760
        %4912 = vmatmul.f32.gmra.mxu0 %v4911
        %v4913 = vpop.f32.mrf.mxu0
        %v4914 = vadd.f32 %v4887, %v4913
        %4915 = vdwg.mxu0
        %4916 = vmatpush.msra.mxu0 0.0
        %4917 = vmatpush.msra.mxu0 0.0
        %4918 = vmatpush.msra.mxu0 0.0
        %4919 = vmatpush.msra.mxu0 0.0
        %4920 = vmatpush.msra.mxu0 0.0
        %4921 = vmatpush.msra.mxu0 0.0
        %4922 = vmatpush.msra.mxu0 0.0
        %4923 = vmatpush.msra.mxu0 0.0
        %4924 = vmatpush.msra.mxu0 0.0
        %4925 = vmatpush.msra.mxu0 0.0
        %4926 = vmatpush.msra.mxu0 0.0
        %4927 = vmatpush.msra.mxu0 0.0
        %4928 = vmatpush.msra.mxu0 0.0
        %4929 = vmatpush.msra.mxu0 0.0
        %v4930 = vand.u32 %v876, 4294901760
        %4931 = vmatpush.msra.mxu0 %v4930
        %v4932 = vand.u32 %v872, 4294901760
        %4933 = vmatpush.msra.mxu0 %v4932
        %v4934 = vand.u32 %v3144, 4294901760
        %4935 = vmatmul.f32.gmra.mxu0 %v4934
        %v4936 = vpop.f32.mrf.mxu0
        %v4937 = vadd.f32 %v4914, %v4936
        %4938 = vdwg.mxu0
        %4939 = vmatpush.msra.mxu0 0.0
        %4940 = vmatpush.msra.mxu0 0.0
        %4941 = vmatpush.msra.mxu0 0.0
        %4942 = vmatpush.msra.mxu0 0.0
        %4943 = vmatpush.msra.mxu0 0.0
        %4944 = vmatpush.msra.mxu0 0.0
        %4945 = vmatpush.msra.mxu0 0.0
        %4946 = vmatpush.msra.mxu0 0.0
        %4947 = vmatpush.msra.mxu0 0.0
        %4948 = vmatpush.msra.mxu0 0.0
        %4949 = vmatpush.msra.mxu0 0.0
        %4950 = vmatpush.msra.mxu0 0.0
        %4951 = vmatpush.msra.mxu0 0.0
        %4952 = vmatpush.msra.mxu0 0.0
        %v4953 = vand.u32 %v1434, 4294901760
        %4954 = vmatpush.msra.mxu0 %v4953
        %v4955 = vand.u32 %v1430, 4294901760
        %4956 = vmatpush.msra.mxu0 %v4955
        %v4957 = vand.u32 %v3144, 4294901760
        %v4958 = vsub.f32 %v3144, %v4957
        %v4959 = vand.u32 %v4958, 4294901760
        %v4960 = vsub.f32 %v4958, %v4959
        %v4961 = vand.u32 %v4960, 4294901760
        %4962 = vmatmul.f32.gmra.mxu0 %v4961
        %v4963 = vpop.f32.mrf.mxu0
        %v4964 = vadd.f32 0.0, %v4963
        %4965 = vdwg.mxu0
        %4966 = vmatpush.msra.mxu0 0.0
        %4967 = vmatpush.msra.mxu0 0.0
        %4968 = vmatpush.msra.mxu0 0.0
        %4969 = vmatpush.msra.mxu0 0.0
        %4970 = vmatpush.msra.mxu0 0.0
        %4971 = vmatpush.msra.mxu0 0.0
        %4972 = vmatpush.msra.mxu0 0.0
        %4973 = vmatpush.msra.mxu0 0.0
        %4974 = vmatpush.msra.mxu0 0.0
        %4975 = vmatpush.msra.mxu0 0.0
        %4976 = vmatpush.msra.mxu0 0.0
        %4977 = vmatpush.msra.mxu0 0.0
        %4978 = vmatpush.msra.mxu0 0.0
        %4979 = vmatpush.msra.mxu0 0.0
        %v4980 = vand.u32 %v1434, 4294901760
        %v4981 = vsub.f32 %v1434, %v4980
        %v4982 = vand.u32 %v4981, 4294901760
        %v4983 = vsub.f32 %v4981, %v4982
        %v4984 = vand.u32 %v4983, 4294901760
        %4985 = vmatpush.msra.mxu0 %v4984
        %v4986 = vand.u32 %v1430, 4294901760
        %v4987 = vsub.f32 %v1430, %v4986
        %v4988 = vand.u32 %v4987, 4294901760
        %v4989 = vsub.f32 %v4987, %v4988
        %v4990 = vand.u32 %v4989, 4294901760
        %4991 = vmatpush.msra.mxu0 %v4990
        %v4992 = vand.u32 %v3144, 4294901760
        %4993 = vmatmul.f32.gmra.mxu0 %v4992
        %v4994 = vpop.f32.mrf.mxu0
        %v4995 = vadd.f32 %v4964, %v4994
        %4996 = vdwg.mxu0
        %4997 = vmatpush.msra.mxu0 0.0
        %4998 = vmatpush.msra.mxu0 0.0
        %4999 = vmatpush.msra.mxu0 0.0
        %5000 = vmatpush.msra.mxu0 0.0
        %5001 = vmatpush.msra.mxu0 0.0
        %5002 = vmatpush.msra.mxu0 0.0
        %5003 = vmatpush.msra.mxu0 0.0
        %5004 = vmatpush.msra.mxu0 0.0
        %5005 = vmatpush.msra.mxu0 0.0
        %5006 = vmatpush.msra.mxu0 0.0
        %5007 = vmatpush.msra.mxu0 0.0
        %5008 = vmatpush.msra.mxu0 0.0
        %5009 = vmatpush.msra.mxu0 0.0
        %5010 = vmatpush.msra.mxu0 0.0
        %v5011 = vand.u32 %v1434, 4294901760
        %v5012 = vsub.f32 %v1434, %v5011
        %5013 = vmatpush.msra.mxu0 %v5012
        %v5014 = vand.u32 %v1430, 4294901760
        %v5015 = vsub.f32 %v1430, %v5014
        %5016 = vmatpush.msra.mxu0 %v5015
        %v5017 = vand.u32 %v3144, 4294901760
        %v5018 = vsub.f32 %v3144, %v5017
        %5019 = vmatmul.f32.gmra.mxu0 %v5018
        %v5020 = vpop.f32.mrf.mxu0
        %v5021 = vadd.f32 %v4995, %v5020
        %5022 = vdwg.mxu0
        %5023 = vmatpush.msra.mxu0 0.0
        %5024 = vmatpush.msra.mxu0 0.0
        %5025 = vmatpush.msra.mxu0 0.0
        %5026 = vmatpush.msra.mxu0 0.0
        %5027 = vmatpush.msra.mxu0 0.0
        %5028 = vmatpush.msra.mxu0 0.0
        %5029 = vmatpush.msra.mxu0 0.0
        %5030 = vmatpush.msra.mxu0 0.0
        %5031 = vmatpush.msra.mxu0 0.0
        %5032 = vmatpush.msra.mxu0 0.0
        %5033 = vmatpush.msra.mxu0 0.0
        %5034 = vmatpush.msra.mxu0 0.0
        %5035 = vmatpush.msra.mxu0 0.0
        %5036 = vmatpush.msra.mxu0 0.0
        %v5037 = vand.u32 %v1434, 4294901760
        %5038 = vmatpush.msra.mxu0 %v5037
        %v5039 = vand.u32 %v1430, 4294901760
        %5040 = vmatpush.msra.mxu0 %v5039
        %v5041 = vand.u32 %v3144, 4294901760
        %v5042 = vsub.f32 %v3144, %v5041
        %v5043 = vand.u32 %v5042, 4294901760
        %5044 = vmatmul.f32.gmra.mxu0 %v5043
        %v5045 = vpop.f32.mrf.mxu0
        %v5046 = vadd.f32 %v5021, %v5045
        %5047 = vdwg.mxu0
        %5048 = vmatpush.msra.mxu0 0.0
        %5049 = vmatpush.msra.mxu0 0.0
        %5050 = vmatpush.msra.mxu0 0.0
        %5051 = vmatpush.msra.mxu0 0.0
        %5052 = vmatpush.msra.mxu0 0.0
        %5053 = vmatpush.msra.mxu0 0.0
        %5054 = vmatpush.msra.mxu0 0.0
        %5055 = vmatpush.msra.mxu0 0.0
        %5056 = vmatpush.msra.mxu0 0.0
        %5057 = vmatpush.msra.mxu0 0.0
        %5058 = vmatpush.msra.mxu0 0.0
        %5059 = vmatpush.msra.mxu0 0.0
        %5060 = vmatpush.msra.mxu0 0.0
        %5061 = vmatpush.msra.mxu0 0.0
        %v5062 = vand.u32 %v1434, 4294901760
        %v5063 = vsub.f32 %v1434, %v5062
        %v5064 = vand.u32 %v5063, 4294901760
        %5065 = vmatpush.msra.mxu0 %v5064
        %v5066 = vand.u32 %v1430, 4294901760
        %v5067 = vsub.f32 %v1430, %v5066
        %v5068 = vand.u32 %v5067, 4294901760
        %5069 = vmatpush.msra.mxu0 %v5068
        %v5070 = vand.u32 %v3144, 4294901760
        %5071 = vmatmul.f32.gmra.mxu0 %v5070
        %v5072 = vpop.f32.mrf.mxu0
        %v5073 = vadd.f32 %v5046, %v5072
        %5074 = vdwg.mxu0
        %5075 = vmatpush.msra.mxu0 0.0
        %5076 = vmatpush.msra.mxu0 0.0
        %5077 = vmatpush.msra.mxu0 0.0
        %5078 = vmatpush.msra.mxu0 0.0
        %5079 = vmatpush.msra.mxu0 0.0
        %5080 = vmatpush.msra.mxu0 0.0
        %5081 = vmatpush.msra.mxu0 0.0
        %5082 = vmatpush.msra.mxu0 0.0
        %5083 = vmatpush.msra.mxu0 0.0
        %5084 = vmatpush.msra.mxu0 0.0
        %5085 = vmatpush.msra.mxu0 0.0
        %5086 = vmatpush.msra.mxu0 0.0
        %5087 = vmatpush.msra.mxu0 0.0
        %5088 = vmatpush.msra.mxu0 0.0
        %v5089 = vand.u32 %v1434, 4294901760
        %5090 = vmatpush.msra.mxu0 %v5089
        %v5091 = vand.u32 %v1430, 4294901760
        %5092 = vmatpush.msra.mxu0 %v5091
        %v5093 = vand.u32 %v3144, 4294901760
        %5094 = vmatmul.f32.gmra.mxu0 %v5093
        %v5095 = vpop.f32.mrf.mxu0
        %v5096 = vadd.f32 %v5073, %v5095
        %5097 = vdwg.mxu0
        %5098 = vmatpush.msra.mxu0 0.0
        %5099 = vmatpush.msra.mxu0 0.0
        %5100 = vmatpush.msra.mxu0 0.0
        %5101 = vmatpush.msra.mxu0 0.0
        %5102 = vmatpush.msra.mxu0 0.0
        %5103 = vmatpush.msra.mxu0 0.0
        %5104 = vmatpush.msra.mxu0 0.0
        %5105 = vmatpush.msra.mxu0 0.0
        %5106 = vmatpush.msra.mxu0 0.0
        %5107 = vmatpush.msra.mxu0 0.0
        %5108 = vmatpush.msra.mxu0 0.0
        %5109 = vmatpush.msra.mxu0 0.0
        %5110 = vmatpush.msra.mxu0 0.0
        %5111 = vmatpush.msra.mxu0 0.0
        %v5112 = vand.u32 %v2000, 4294901760
        %5113 = vmatpush.msra.mxu0 %v5112
        %v5114 = vand.u32 %v1996, 4294901760
        %5115 = vmatpush.msra.mxu0 %v5114
        %v5116 = vand.u32 %v3144, 4294901760
        %v5117 = vsub.f32 %v3144, %v5116
        %v5118 = vand.u32 %v5117, 4294901760
        %v5119 = vsub.f32 %v5117, %v5118
        %v5120 = vand.u32 %v5119, 4294901760
        %5121 = vmatmul.f32.gmra.mxu0 %v5120
        %v5122 = vpop.f32.mrf.mxu0
        %v5123 = vadd.f32 0.0, %v5122
        %5124 = vdwg.mxu0
        %5125 = vmatpush.msra.mxu0 0.0
        %5126 = vmatpush.msra.mxu0 0.0
        %5127 = vmatpush.msra.mxu0 0.0
        %5128 = vmatpush.msra.mxu0 0.0
        %5129 = vmatpush.msra.mxu0 0.0
        %5130 = vmatpush.msra.mxu0 0.0
        %5131 = vmatpush.msra.mxu0 0.0
        %5132 = vmatpush.msra.mxu0 0.0
        %5133 = vmatpush.msra.mxu0 0.0
        %5134 = vmatpush.msra.mxu0 0.0
        %5135 = vmatpush.msra.mxu0 0.0
        %5136 = vmatpush.msra.mxu0 0.0
        %5137 = vmatpush.msra.mxu0 0.0
        %5138 = vmatpush.msra.mxu0 0.0
        %v5139 = vand.u32 %v2000, 4294901760
        %v5140 = vsub.f32 %v2000, %v5139
        %v5141 = vand.u32 %v5140, 4294901760
        %v5142 = vsub.f32 %v5140, %v5141
        %v5143 = vand.u32 %v5142, 4294901760
        %5144 = vmatpush.msra.mxu0 %v5143
        %v5145 = vand.u32 %v1996, 4294901760
        %v5146 = vsub.f32 %v1996, %v5145
        %v5147 = vand.u32 %v5146, 4294901760
        %v5148 = vsub.f32 %v5146, %v5147
        %v5149 = vand.u32 %v5148, 4294901760
        %5150 = vmatpush.msra.mxu0 %v5149
        %v5151 = vand.u32 %v3144, 4294901760
        %5152 = vmatmul.f32.gmra.mxu0 %v5151
        %v5153 = vpop.f32.mrf.mxu0
        %v5154 = vadd.f32 %v5123, %v5153
        %5155 = vdwg.mxu0
        %5156 = vmatpush.msra.mxu0 0.0
        %5157 = vmatpush.msra.mxu0 0.0
        %5158 = vmatpush.msra.mxu0 0.0
        %5159 = vmatpush.msra.mxu0 0.0
        %5160 = vmatpush.msra.mxu0 0.0
        %5161 = vmatpush.msra.mxu0 0.0
        %5162 = vmatpush.msra.mxu0 0.0
        %5163 = vmatpush.msra.mxu0 0.0
        %5164 = vmatpush.msra.mxu0 0.0
        %5165 = vmatpush.msra.mxu0 0.0
        %5166 = vmatpush.msra.mxu0 0.0
        %5167 = vmatpush.msra.mxu0 0.0
        %5168 = vmatpush.msra.mxu0 0.0
        %5169 = vmatpush.msra.mxu0 0.0
        %v5170 = vand.u32 %v2000, 4294901760
        %v5171 = vsub.f32 %v2000, %v5170
        %5172 = vmatpush.msra.mxu0 %v5171
        %v5173 = vand.u32 %v1996, 4294901760
        %v5174 = vsub.f32 %v1996, %v5173
        %5175 = vmatpush.msra.mxu0 %v5174
        %v5176 = vand.u32 %v3144, 4294901760
        %v5177 = vsub.f32 %v3144, %v5176
        %5178 = vmatmul.f32.gmra.mxu0 %v5177
        %v5179 = vpop.f32.mrf.mxu0
        %v5180 = vadd.f32 %v5154, %v5179
        %5181 = vdwg.mxu0
        %5182 = vmatpush.msra.mxu0 0.0
        %5183 = vmatpush.msra.mxu0 0.0
        %5184 = vmatpush.msra.mxu0 0.0
        %5185 = vmatpush.msra.mxu0 0.0
        %5186 = vmatpush.msra.mxu0 0.0
        %5187 = vmatpush.msra.mxu0 0.0
        %5188 = vmatpush.msra.mxu0 0.0
        %5189 = vmatpush.msra.mxu0 0.0
        %5190 = vmatpush.msra.mxu0 0.0
        %5191 = vmatpush.msra.mxu0 0.0
        %5192 = vmatpush.msra.mxu0 0.0
        %5193 = vmatpush.msra.mxu0 0.0
        %5194 = vmatpush.msra.mxu0 0.0
        %5195 = vmatpush.msra.mxu0 0.0
        %v5196 = vand.u32 %v2000, 4294901760
        %5197 = vmatpush.msra.mxu0 %v5196
        %v5198 = vand.u32 %v1996, 4294901760
        %5199 = vmatpush.msra.mxu0 %v5198
        %v5200 = vand.u32 %v3144, 4294901760
        %v5201 = vsub.f32 %v3144, %v5200
        %v5202 = vand.u32 %v5201, 4294901760
        %5203 = vmatmul.f32.gmra.mxu0 %v5202
        %v5204 = vpop.f32.mrf.mxu0
        %v5205 = vadd.f32 %v5180, %v5204
        %5206 = vdwg.mxu0
        %5207 = vmatpush.msra.mxu0 0.0
        %5208 = vmatpush.msra.mxu0 0.0
        %5209 = vmatpush.msra.mxu0 0.0
        %5210 = vmatpush.msra.mxu0 0.0
        %5211 = vmatpush.msra.mxu0 0.0
        %5212 = vmatpush.msra.mxu0 0.0
        %5213 = vmatpush.msra.mxu0 0.0
        %5214 = vmatpush.msra.mxu0 0.0
        %5215 = vmatpush.msra.mxu0 0.0
        %5216 = vmatpush.msra.mxu0 0.0
        %5217 = vmatpush.msra.mxu0 0.0
        %5218 = vmatpush.msra.mxu0 0.0
        %5219 = vmatpush.msra.mxu0 0.0
        %5220 = vmatpush.msra.mxu0 0.0
        %v5221 = vand.u32 %v2000, 4294901760
        %v5222 = vsub.f32 %v2000, %v5221
        %v5223 = vand.u32 %v5222, 4294901760
        %5224 = vmatpush.msra.mxu0 %v5223
        %v5225 = vand.u32 %v1996, 4294901760
        %v5226 = vsub.f32 %v1996, %v5225
        %v5227 = vand.u32 %v5226, 4294901760
        %5228 = vmatpush.msra.mxu0 %v5227
        %v5229 = vand.u32 %v3144, 4294901760
        %5230 = vmatmul.f32.gmra.mxu0 %v5229
        %v5231 = vpop.f32.mrf.mxu0
        %v5232 = vadd.f32 %v5205, %v5231
        %5233 = vdwg.mxu0
        %5234 = vmatpush.msra.mxu0 0.0
        %5235 = vmatpush.msra.mxu0 0.0
        %5236 = vmatpush.msra.mxu0 0.0
        %5237 = vmatpush.msra.mxu0 0.0
        %5238 = vmatpush.msra.mxu0 0.0
        %5239 = vmatpush.msra.mxu0 0.0
        %5240 = vmatpush.msra.mxu0 0.0
        %5241 = vmatpush.msra.mxu0 0.0
        %5242 = vmatpush.msra.mxu0 0.0
        %5243 = vmatpush.msra.mxu0 0.0
        %5244 = vmatpush.msra.mxu0 0.0
        %5245 = vmatpush.msra.mxu0 0.0
        %5246 = vmatpush.msra.mxu0 0.0
        %5247 = vmatpush.msra.mxu0 0.0
        %v5248 = vand.u32 %v2000, 4294901760
        %5249 = vmatpush.msra.mxu0 %v5248
        %v5250 = vand.u32 %v1996, 4294901760
        %5251 = vmatpush.msra.mxu0 %v5250
        %v5252 = vand.u32 %v3144, 4294901760
        %5253 = vmatmul.f32.gmra.mxu0 %v5252
        %v5254 = vpop.f32.mrf.mxu0
        %v5255 = vadd.f32 %v5232, %v5254
        %5256 = vdwg.mxu0
        %5257 = vmatpush.msra.mxu0 0.0
        %5258 = vmatpush.msra.mxu0 0.0
        %5259 = vmatpush.msra.mxu0 0.0
        %5260 = vmatpush.msra.mxu0 0.0
        %5261 = vmatpush.msra.mxu0 0.0
        %5262 = vmatpush.msra.mxu0 0.0
        %5263 = vmatpush.msra.mxu0 0.0
        %5264 = vmatpush.msra.mxu0 0.0
        %5265 = vmatpush.msra.mxu0 0.0
        %5266 = vmatpush.msra.mxu0 0.0
        %5267 = vmatpush.msra.mxu0 0.0
        %5268 = vmatpush.msra.mxu0 0.0
        %5269 = vmatpush.msra.mxu0 0.0
        %5270 = vmatpush.msra.mxu0 0.0
        %v5271 = vand.u32 %v2566, 4294901760
        %5272 = vmatpush.msra.mxu0 %v5271
        %v5273 = vand.u32 %v2562, 4294901760
        %5274 = vmatpush.msra.mxu0 %v5273
        %v5275 = vand.u32 %v3144, 4294901760
        %v5276 = vsub.f32 %v3144, %v5275
        %v5277 = vand.u32 %v5276, 4294901760
        %v5278 = vsub.f32 %v5276, %v5277
        %v5279 = vand.u32 %v5278, 4294901760
        %5280 = vmatmul.f32.gmra.mxu0 %v5279
        %v5281 = vpop.f32.mrf.mxu0
        %v5282 = vadd.f32 0.0, %v5281
        %5283 = vdwg.mxu0
        %5284 = vmatpush.msra.mxu0 0.0
        %5285 = vmatpush.msra.mxu0 0.0
        %5286 = vmatpush.msra.mxu0 0.0
        %5287 = vmatpush.msra.mxu0 0.0
        %5288 = vmatpush.msra.mxu0 0.0
        %5289 = vmatpush.msra.mxu0 0.0
        %5290 = vmatpush.msra.mxu0 0.0
        %5291 = vmatpush.msra.mxu0 0.0
        %5292 = vmatpush.msra.mxu0 0.0
        %5293 = vmatpush.msra.mxu0 0.0
        %5294 = vmatpush.msra.mxu0 0.0
        %5295 = vmatpush.msra.mxu0 0.0
        %5296 = vmatpush.msra.mxu0 0.0
        %5297 = vmatpush.msra.mxu0 0.0
        %v5298 = vand.u32 %v2566, 4294901760
        %v5299 = vsub.f32 %v2566, %v5298
        %v5300 = vand.u32 %v5299, 4294901760
        %v5301 = vsub.f32 %v5299, %v5300
        %v5302 = vand.u32 %v5301, 4294901760
        %5303 = vmatpush.msra.mxu0 %v5302
        %v5304 = vand.u32 %v2562, 4294901760
        %v5305 = vsub.f32 %v2562, %v5304
        %v5306 = vand.u32 %v5305, 4294901760
        %v5307 = vsub.f32 %v5305, %v5306
        %v5308 = vand.u32 %v5307, 4294901760
        %5309 = vmatpush.msra.mxu0 %v5308
        %v5310 = vand.u32 %v3144, 4294901760
        %5311 = vmatmul.f32.gmra.mxu0 %v5310
        %v5312 = vpop.f32.mrf.mxu0
        %v5313 = vadd.f32 %v5282, %v5312
        %5314 = vdwg.mxu0
        %5315 = vmatpush.msra.mxu0 0.0
        %5316 = vmatpush.msra.mxu0 0.0
        %5317 = vmatpush.msra.mxu0 0.0
        %5318 = vmatpush.msra.mxu0 0.0
        %5319 = vmatpush.msra.mxu0 0.0
        %5320 = vmatpush.msra.mxu0 0.0
        %5321 = vmatpush.msra.mxu0 0.0
        %5322 = vmatpush.msra.mxu0 0.0
        %5323 = vmatpush.msra.mxu0 0.0
        %5324 = vmatpush.msra.mxu0 0.0
        %5325 = vmatpush.msra.mxu0 0.0
        %5326 = vmatpush.msra.mxu0 0.0
        %5327 = vmatpush.msra.mxu0 0.0
        %5328 = vmatpush.msra.mxu0 0.0
        %v5329 = vand.u32 %v2566, 4294901760
        %v5330 = vsub.f32 %v2566, %v5329
        %5331 = vmatpush.msra.mxu0 %v5330
        %v5332 = vand.u32 %v2562, 4294901760
        %v5333 = vsub.f32 %v2562, %v5332
        %5334 = vmatpush.msra.mxu0 %v5333
        %v5335 = vand.u32 %v3144, 4294901760
        %v5336 = vsub.f32 %v3144, %v5335
        %5337 = vmatmul.f32.gmra.mxu0 %v5336
        %v5338 = vpop.f32.mrf.mxu0
        %v5339 = vadd.f32 %v5313, %v5338
        %5340 = vdwg.mxu0
        %5341 = vmatpush.msra.mxu0 0.0
        %5342 = vmatpush.msra.mxu0 0.0
        %5343 = vmatpush.msra.mxu0 0.0
        %5344 = vmatpush.msra.mxu0 0.0
        %5345 = vmatpush.msra.mxu0 0.0
        %5346 = vmatpush.msra.mxu0 0.0
        %5347 = vmatpush.msra.mxu0 0.0
        %5348 = vmatpush.msra.mxu0 0.0
        %5349 = vmatpush.msra.mxu0 0.0
        %5350 = vmatpush.msra.mxu0 0.0
        %5351 = vmatpush.msra.mxu0 0.0
        %5352 = vmatpush.msra.mxu0 0.0
        %5353 = vmatpush.msra.mxu0 0.0
        %5354 = vmatpush.msra.mxu0 0.0
        %v5355 = vand.u32 %v2566, 4294901760
        %5356 = vmatpush.msra.mxu0 %v5355
        %v5357 = vand.u32 %v2562, 4294901760
        %5358 = vmatpush.msra.mxu0 %v5357
        %v5359 = vand.u32 %v3144, 4294901760
        %v5360 = vsub.f32 %v3144, %v5359
        %v5361 = vand.u32 %v5360, 4294901760
        %5362 = vmatmul.f32.gmra.mxu0 %v5361
        %v5363 = vpop.f32.mrf.mxu0
        %v5364 = vadd.f32 %v5339, %v5363
        %5365 = vdwg.mxu0
        %5366 = vmatpush.msra.mxu0 0.0
        %5367 = vmatpush.msra.mxu0 0.0
        %5368 = vmatpush.msra.mxu0 0.0
        %5369 = vmatpush.msra.mxu0 0.0
        %5370 = vmatpush.msra.mxu0 0.0
        %5371 = vmatpush.msra.mxu0 0.0
        %5372 = vmatpush.msra.mxu0 0.0
        %5373 = vmatpush.msra.mxu0 0.0
        %5374 = vmatpush.msra.mxu0 0.0
        %5375 = vmatpush.msra.mxu0 0.0
        %5376 = vmatpush.msra.mxu0 0.0
        %5377 = vmatpush.msra.mxu0 0.0
        %5378 = vmatpush.msra.mxu0 0.0
        %5379 = vmatpush.msra.mxu0 0.0
        %v5380 = vand.u32 %v2566, 4294901760
        %v5381 = vsub.f32 %v2566, %v5380
        %v5382 = vand.u32 %v5381, 4294901760
        %5383 = vmatpush.msra.mxu0 %v5382
        %v5384 = vand.u32 %v2562, 4294901760
        %v5385 = vsub.f32 %v2562, %v5384
        %v5386 = vand.u32 %v5385, 4294901760
        %5387 = vmatpush.msra.mxu0 %v5386
        %v5388 = vand.u32 %v3144, 4294901760
        %5389 = vmatmul.f32.gmra.mxu0 %v5388
        %v5390 = vpop.f32.mrf.mxu0
        %v5391 = vadd.f32 %v5364, %v5390
        %5392 = vdwg.mxu0
        %5393 = vmatpush.msra.mxu0 0.0
        %5394 = vmatpush.msra.mxu0 0.0
        %5395 = vmatpush.msra.mxu0 0.0
        %5396 = vmatpush.msra.mxu0 0.0
        %5397 = vmatpush.msra.mxu0 0.0
        %5398 = vmatpush.msra.mxu0 0.0
        %5399 = vmatpush.msra.mxu0 0.0
        %5400 = vmatpush.msra.mxu0 0.0
        %5401 = vmatpush.msra.mxu0 0.0
        %5402 = vmatpush.msra.mxu0 0.0
        %5403 = vmatpush.msra.mxu0 0.0
        %5404 = vmatpush.msra.mxu0 0.0
        %5405 = vmatpush.msra.mxu0 0.0
        %5406 = vmatpush.msra.mxu0 0.0
        %v5407 = vand.u32 %v2566, 4294901760
        %5408 = vmatpush.msra.mxu0 %v5407
        %v5409 = vand.u32 %v2562, 4294901760
        %5410 = vmatpush.msra.mxu0 %v5409
        %v5411 = vand.u32 %v3144, 4294901760
        %5412 = vmatmul.f32.gmra.mxu0 %v5411
        %v5413 = vpop.f32.mrf.mxu0
        %v5414 = vadd.f32 %v5391, %v5413
        %5415 = vdwg.mxu0
        %5416 = vmatpush.msra.mxu0 0.0
        %5417 = vmatpush.msra.mxu0 0.0
        %5418 = vmatpush.msra.mxu0 0.0
        %5419 = vmatpush.msra.mxu0 0.0
        %5420 = vmatpush.msra.mxu0 0.0
        %5421 = vmatpush.msra.mxu0 0.0
        %5422 = vmatpush.msra.mxu0 0.0
        %5423 = vmatpush.msra.mxu0 0.0
        %5424 = vmatpush.msra.mxu0 0.0
        %5425 = vmatpush.msra.mxu0 0.0
        %5426 = vmatpush.msra.mxu0 0.0
        %5427 = vmatpush.msra.mxu0 0.0
        %5428 = vmatpush.msra.mxu0 0.0
        %5429 = vmatpush.msra.mxu0 0.0
        %v5430 = vand.u32 %v3132, 4294901760
        %5431 = vmatpush.msra.mxu0 %v5430
        %v5432 = vand.u32 %v3128, 4294901760
        %5433 = vmatpush.msra.mxu0 %v5432
        %v5434 = vand.u32 %v3144, 4294901760
        %v5435 = vsub.f32 %v3144, %v5434
        %v5436 = vand.u32 %v5435, 4294901760
        %v5437 = vsub.f32 %v5435, %v5436
        %v5438 = vand.u32 %v5437, 4294901760
        %5439 = vmatmul.f32.gmra.mxu0 %v5438
        %v5440 = vpop.f32.mrf.mxu0
        %v5441 = vadd.f32 0.0, %v5440
        %5442 = vdwg.mxu0
        %5443 = vmatpush.msra.mxu0 0.0
        %5444 = vmatpush.msra.mxu0 0.0
        %5445 = vmatpush.msra.mxu0 0.0
        %5446 = vmatpush.msra.mxu0 0.0
        %5447 = vmatpush.msra.mxu0 0.0
        %5448 = vmatpush.msra.mxu0 0.0
        %5449 = vmatpush.msra.mxu0 0.0
        %5450 = vmatpush.msra.mxu0 0.0
        %5451 = vmatpush.msra.mxu0 0.0
        %5452 = vmatpush.msra.mxu0 0.0
        %5453 = vmatpush.msra.mxu0 0.0
        %5454 = vmatpush.msra.mxu0 0.0
        %5455 = vmatpush.msra.mxu0 0.0
        %5456 = vmatpush.msra.mxu0 0.0
        %v5457 = vand.u32 %v3132, 4294901760
        %v5458 = vsub.f32 %v3132, %v5457
        %v5459 = vand.u32 %v5458, 4294901760
        %v5460 = vsub.f32 %v5458, %v5459
        %v5461 = vand.u32 %v5460, 4294901760
        %5462 = vmatpush.msra.mxu0 %v5461
        %v5463 = vand.u32 %v3128, 4294901760
        %v5464 = vsub.f32 %v3128, %v5463
        %v5465 = vand.u32 %v5464, 4294901760
        %v5466 = vsub.f32 %v5464, %v5465
        %v5467 = vand.u32 %v5466, 4294901760
        %5468 = vmatpush.msra.mxu0 %v5467
        %v5469 = vand.u32 %v3144, 4294901760
        %5470 = vmatmul.f32.gmra.mxu0 %v5469
        %v5471 = vpop.f32.mrf.mxu0
        %v5472 = vadd.f32 %v5441, %v5471
        %5473 = vdwg.mxu0
        %5474 = vmatpush.msra.mxu0 0.0
        %5475 = vmatpush.msra.mxu0 0.0
        %5476 = vmatpush.msra.mxu0 0.0
        %5477 = vmatpush.msra.mxu0 0.0
        %5478 = vmatpush.msra.mxu0 0.0
        %5479 = vmatpush.msra.mxu0 0.0
        %5480 = vmatpush.msra.mxu0 0.0
        %5481 = vmatpush.msra.mxu0 0.0
        %5482 = vmatpush.msra.mxu0 0.0
        %5483 = vmatpush.msra.mxu0 0.0
        %5484 = vmatpush.msra.mxu0 0.0
        %5485 = vmatpush.msra.mxu0 0.0
        %5486 = vmatpush.msra.mxu0 0.0
        %5487 = vmatpush.msra.mxu0 0.0
        %v5488 = vand.u32 %v3132, 4294901760
        %v5489 = vsub.f32 %v3132, %v5488
        %5490 = vmatpush.msra.mxu0 %v5489
        %v5491 = vand.u32 %v3128, 4294901760
        %v5492 = vsub.f32 %v3128, %v5491
        %5493 = vmatpush.msra.mxu0 %v5492
        %v5494 = vand.u32 %v3144, 4294901760
        %v5495 = vsub.f32 %v3144, %v5494
        %5496 = vmatmul.f32.gmra.mxu0 %v5495
        %v5497 = vpop.f32.mrf.mxu0
        %v5498 = vadd.f32 %v5472, %v5497
        %5499 = vdwg.mxu0
        %5500 = vmatpush.msra.mxu0 0.0
        %5501 = vmatpush.msra.mxu0 0.0
        %5502 = vmatpush.msra.mxu0 0.0
        %5503 = vmatpush.msra.mxu0 0.0
        %5504 = vmatpush.msra.mxu0 0.0
        %5505 = vmatpush.msra.mxu0 0.0
        %5506 = vmatpush.msra.mxu0 0.0
        %5507 = vmatpush.msra.mxu0 0.0
        %5508 = vmatpush.msra.mxu0 0.0
        %5509 = vmatpush.msra.mxu0 0.0
        %5510 = vmatpush.msra.mxu0 0.0
        %5511 = vmatpush.msra.mxu0 0.0
        %5512 = vmatpush.msra.mxu0 0.0
        %5513 = vmatpush.msra.mxu0 0.0
        %v5514 = vand.u32 %v3132, 4294901760
        %5515 = vmatpush.msra.mxu0 %v5514
        %v5516 = vand.u32 %v3128, 4294901760
        %5517 = vmatpush.msra.mxu0 %v5516
        %v5518 = vand.u32 %v3144, 4294901760
        %v5519 = vsub.f32 %v3144, %v5518
        %v5520 = vand.u32 %v5519, 4294901760
        %5521 = vmatmul.f32.gmra.mxu0 %v5520
        %v5522 = vpop.f32.mrf.mxu0
        %v5523 = vadd.f32 %v5498, %v5522
        %5524 = vdwg.mxu0
        %5525 = vmatpush.msra.mxu0 0.0
        %5526 = vmatpush.msra.mxu0 0.0
        %5527 = vmatpush.msra.mxu0 0.0
        %5528 = vmatpush.msra.mxu0 0.0
        %5529 = vmatpush.msra.mxu0 0.0
        %5530 = vmatpush.msra.mxu0 0.0
        %5531 = vmatpush.msra.mxu0 0.0
        %5532 = vmatpush.msra.mxu0 0.0
        %5533 = vmatpush.msra.mxu0 0.0
        %5534 = vmatpush.msra.mxu0 0.0
        %5535 = vmatpush.msra.mxu0 0.0
        %5536 = vmatpush.msra.mxu0 0.0
        %5537 = vmatpush.msra.mxu0 0.0
        %5538 = vmatpush.msra.mxu0 0.0
        %v5539 = vand.u32 %v3132, 4294901760
        %v5540 = vsub.f32 %v3132, %v5539
        %v5541 = vand.u32 %v5540, 4294901760
        %5542 = vmatpush.msra.mxu0 %v5541
        %v5543 = vand.u32 %v3128, 4294901760
        %v5544 = vsub.f32 %v3128, %v5543
        %v5545 = vand.u32 %v5544, 4294901760
        %5546 = vmatpush.msra.mxu0 %v5545
        %v5547 = vand.u32 %v3144, 4294901760
        %5548 = vmatmul.f32.gmra.mxu0 %v5547
        %v5549 = vpop.f32.mrf.mxu0
        %v5550 = vadd.f32 %v5523, %v5549
        %5551 = vdwg.mxu0
        %5552 = vmatpush.msra.mxu0 0.0
        %5553 = vmatpush.msra.mxu0 0.0
        %5554 = vmatpush.msra.mxu0 0.0
        %5555 = vmatpush.msra.mxu0 0.0
        %5556 = vmatpush.msra.mxu0 0.0
        %5557 = vmatpush.msra.mxu0 0.0
        %5558 = vmatpush.msra.mxu0 0.0
        %5559 = vmatpush.msra.mxu0 0.0
        %5560 = vmatpush.msra.mxu0 0.0
        %5561 = vmatpush.msra.mxu0 0.0
        %5562 = vmatpush.msra.mxu0 0.0
        %5563 = vmatpush.msra.mxu0 0.0
        %5564 = vmatpush.msra.mxu0 0.0
        %5565 = vmatpush.msra.mxu0 0.0
        %v5566 = vand.u32 %v3132, 4294901760
        %5567 = vmatpush.msra.mxu0 %v5566
        %v5568 = vand.u32 %v3128, 4294901760
        %5569 = vmatpush.msra.mxu0 %v5568
        %v5570 = vand.u32 %v3144, 4294901760
        %5571 = vmatmul.f32.gmra.mxu0 %v5570
        %v5572 = vpop.f32.mrf.mxu0
        %v5573 = vadd.f32 %v5550, %v5572
        %5574 = vdwg.mxu0
        %v5575 = vmul.f32 %v4937, %v4937
        %v5576 = vmul.f32 %v5096, %v5096
        %v5577 = vmul.f32 %v4937, %v5096
        %v5578 = vsub.f32 %v5255, %v5575
        %v5579 = vsub.f32 %v5414, %v5576
        %v5580 = vsub.f32 %v5573, %v5577
        %v5581 = vmul.f32 %v5577, 2.0
        %v5582 = vadd.f32 %v5581, 0.0001
        %v5583 = vmul.f32 %v5580, 2.0
        %v5584 = vadd.f32 %v5583, 0.0009
        %v5585 = vmul.f32 %v5582, %v5584
        %v5586 = vadd.f32 %v5575, %v5576
        %v5587 = vadd.f32 %v5586, 0.0001
        %v5588 = vadd.f32 %v5578, %v5579
        %v5589 = vadd.f32 %v5588, 0.0009
        %v5590 = vmul.f32 %v5587, %v5589
        %v5591 = vrcp.pop %v5590
        %v5592 = vmul.f32 %v5590, %v5591
        %v5593 = vsub.f32 2.0, %v5592
        %v5594 = vmul.f32 %v5591, %v5593
        %v5595 = vmul.f32 %v5585, %v5594
        %v5596 = vadd.f32 %v4779, %v5595
        %5597 = vmatpush.msra.mxu0 0.0
        %5598 = vmatpush.msra.mxu0 0.0
        %5599 = vmatpush.msra.mxu0 0.0
        %5600 = vmatpush.msra.mxu0 0.0
        %5601 = vmatpush.msra.mxu0 0.0
        %5602 = vmatpush.msra.mxu0 0.0
        %5603 = vmatpush.msra.mxu0 0.0
        %5604 = vmatpush.msra.mxu0 0.0
        %5605 = vmatpush.msra.mxu0 0.0
        %5606 = vmatpush.msra.mxu0 0.0
        %5607 = vmatpush.msra.mxu0 0.0
        %5608 = vmatpush.msra.mxu0 0.0
        %5609 = vmatpush.msra.mxu0 0.0
        %5610 = vmatpush.msra.mxu0 0.0
        %v5611 = vand.u32 %v884, 4294901760
        %5612 = vmatpush.msra.mxu0 %v5611
        %v5613 = vand.u32 %v880, 4294901760
        %5614 = vmatpush.msra.mxu0 %v5613
        %v5615 = vand.u32 %v3144, 4294901760
        %v5616 = vsub.f32 %v3144, %v5615
        %v5617 = vand.u32 %v5616, 4294901760
        %v5618 = vsub.f32 %v5616, %v5617
        %v5619 = vand.u32 %v5618, 4294901760
        %5620 = vmatmul.f32.gmra.mxu0 %v5619
        %v5621 = vpop.f32.mrf.mxu0
        %v5622 = vadd.f32 0.0, %v5621
        %5623 = vdwg.mxu0
        %5624 = vmatpush.msra.mxu0 0.0
        %5625 = vmatpush.msra.mxu0 0.0
        %5626 = vmatpush.msra.mxu0 0.0
        %5627 = vmatpush.msra.mxu0 0.0
        %5628 = vmatpush.msra.mxu0 0.0
        %5629 = vmatpush.msra.mxu0 0.0
        %5630 = vmatpush.msra.mxu0 0.0
        %5631 = vmatpush.msra.mxu0 0.0
        %5632 = vmatpush.msra.mxu0 0.0
        %5633 = vmatpush.msra.mxu0 0.0
        %5634 = vmatpush.msra.mxu0 0.0
        %5635 = vmatpush.msra.mxu0 0.0
        %5636 = vmatpush.msra.mxu0 0.0
        %5637 = vmatpush.msra.mxu0 0.0
        %v5638 = vand.u32 %v884, 4294901760
        %v5639 = vsub.f32 %v884, %v5638
        %v5640 = vand.u32 %v5639, 4294901760
        %v5641 = vsub.f32 %v5639, %v5640
        %v5642 = vand.u32 %v5641, 4294901760
        %5643 = vmatpush.msra.mxu0 %v5642
        %v5644 = vand.u32 %v880, 4294901760
        %v5645 = vsub.f32 %v880, %v5644
        %v5646 = vand.u32 %v5645, 4294901760
        %v5647 = vsub.f32 %v5645, %v5646
        %v5648 = vand.u32 %v5647, 4294901760
        %5649 = vmatpush.msra.mxu0 %v5648
        %v5650 = vand.u32 %v3144, 4294901760
        %5651 = vmatmul.f32.gmra.mxu0 %v5650
        %v5652 = vpop.f32.mrf.mxu0
        %v5653 = vadd.f32 %v5622, %v5652
        %5654 = vdwg.mxu0
        %5655 = vmatpush.msra.mxu0 0.0
        %5656 = vmatpush.msra.mxu0 0.0
        %5657 = vmatpush.msra.mxu0 0.0
        %5658 = vmatpush.msra.mxu0 0.0
        %5659 = vmatpush.msra.mxu0 0.0
        %5660 = vmatpush.msra.mxu0 0.0
        %5661 = vmatpush.msra.mxu0 0.0
        %5662 = vmatpush.msra.mxu0 0.0
        %5663 = vmatpush.msra.mxu0 0.0
        %5664 = vmatpush.msra.mxu0 0.0
        %5665 = vmatpush.msra.mxu0 0.0
        %5666 = vmatpush.msra.mxu0 0.0
        %5667 = vmatpush.msra.mxu0 0.0
        %5668 = vmatpush.msra.mxu0 0.0
        %v5669 = vand.u32 %v884, 4294901760
        %v5670 = vsub.f32 %v884, %v5669
        %5671 = vmatpush.msra.mxu0 %v5670
        %v5672 = vand.u32 %v880, 4294901760
        %v5673 = vsub.f32 %v880, %v5672
        %5674 = vmatpush.msra.mxu0 %v5673
        %v5675 = vand.u32 %v3144, 4294901760
        %v5676 = vsub.f32 %v3144, %v5675
        %5677 = vmatmul.f32.gmra.mxu0 %v5676
        %v5678 = vpop.f32.mrf.mxu0
        %v5679 = vadd.f32 %v5653, %v5678
        %5680 = vdwg.mxu0
        %5681 = vmatpush.msra.mxu0 0.0
        %5682 = vmatpush.msra.mxu0 0.0
        %5683 = vmatpush.msra.mxu0 0.0
        %5684 = vmatpush.msra.mxu0 0.0
        %5685 = vmatpush.msra.mxu0 0.0
        %5686 = vmatpush.msra.mxu0 0.0
        %5687 = vmatpush.msra.mxu0 0.0
        %5688 = vmatpush.msra.mxu0 0.0
        %5689 = vmatpush.msra.mxu0 0.0
        %5690 = vmatpush.msra.mxu0 0.0
        %5691 = vmatpush.msra.mxu0 0.0
        %5692 = vmatpush.msra.mxu0 0.0
        %5693 = vmatpush.msra.mxu0 0.0
        %5694 = vmatpush.msra.mxu0 0.0
        %v5695 = vand.u32 %v884, 4294901760
        %5696 = vmatpush.msra.mxu0 %v5695
        %v5697 = vand.u32 %v880, 4294901760
        %5698 = vmatpush.msra.mxu0 %v5697
        %v5699 = vand.u32 %v3144, 4294901760
        %v5700 = vsub.f32 %v3144, %v5699
        %v5701 = vand.u32 %v5700, 4294901760
        %5702 = vmatmul.f32.gmra.mxu0 %v5701
        %v5703 = vpop.f32.mrf.mxu0
        %v5704 = vadd.f32 %v5679, %v5703
        %5705 = vdwg.mxu0
        %5706 = vmatpush.msra.mxu0 0.0
        %5707 = vmatpush.msra.mxu0 0.0
        %5708 = vmatpush.msra.mxu0 0.0
        %5709 = vmatpush.msra.mxu0 0.0
        %5710 = vmatpush.msra.mxu0 0.0
        %5711 = vmatpush.msra.mxu0 0.0
        %5712 = vmatpush.msra.mxu0 0.0
        %5713 = vmatpush.msra.mxu0 0.0
        %5714 = vmatpush.msra.mxu0 0.0
        %5715 = vmatpush.msra.mxu0 0.0
        %5716 = vmatpush.msra.mxu0 0.0
        %5717 = vmatpush.msra.mxu0 0.0
        %5718 = vmatpush.msra.mxu0 0.0
        %5719 = vmatpush.msra.mxu0 0.0
        %v5720 = vand.u32 %v884, 4294901760
        %v5721 = vsub.f32 %v884, %v5720
        %v5722 = vand.u32 %v5721, 4294901760
        %5723 = vmatpush.msra.mxu0 %v5722
        %v5724 = vand.u32 %v880, 4294901760
        %v5725 = vsub.f32 %v880, %v5724
        %v5726 = vand.u32 %v5725, 4294901760
        %5727 = vmatpush.msra.mxu0 %v5726
        %v5728 = vand.u32 %v3144, 4294901760
        %5729 = vmatmul.f32.gmra.mxu0 %v5728
        %v5730 = vpop.f32.mrf.mxu0
        %v5731 = vadd.f32 %v5704, %v5730
        %5732 = vdwg.mxu0
        %5733 = vmatpush.msra.mxu0 0.0
        %5734 = vmatpush.msra.mxu0 0.0
        %5735 = vmatpush.msra.mxu0 0.0
        %5736 = vmatpush.msra.mxu0 0.0
        %5737 = vmatpush.msra.mxu0 0.0
        %5738 = vmatpush.msra.mxu0 0.0
        %5739 = vmatpush.msra.mxu0 0.0
        %5740 = vmatpush.msra.mxu0 0.0
        %5741 = vmatpush.msra.mxu0 0.0
        %5742 = vmatpush.msra.mxu0 0.0
        %5743 = vmatpush.msra.mxu0 0.0
        %5744 = vmatpush.msra.mxu0 0.0
        %5745 = vmatpush.msra.mxu0 0.0
        %5746 = vmatpush.msra.mxu0 0.0
        %v5747 = vand.u32 %v884, 4294901760
        %5748 = vmatpush.msra.mxu0 %v5747
        %v5749 = vand.u32 %v880, 4294901760
        %5750 = vmatpush.msra.mxu0 %v5749
        %v5751 = vand.u32 %v3144, 4294901760
        %5752 = vmatmul.f32.gmra.mxu0 %v5751
        %v5753 = vpop.f32.mrf.mxu0
        %v5754 = vadd.f32 %v5731, %v5753
        %5755 = vdwg.mxu0
        %5756 = vmatpush.msra.mxu0 0.0
        %5757 = vmatpush.msra.mxu0 0.0
        %5758 = vmatpush.msra.mxu0 0.0
        %5759 = vmatpush.msra.mxu0 0.0
        %5760 = vmatpush.msra.mxu0 0.0
        %5761 = vmatpush.msra.mxu0 0.0
        %5762 = vmatpush.msra.mxu0 0.0
        %5763 = vmatpush.msra.mxu0 0.0
        %5764 = vmatpush.msra.mxu0 0.0
        %5765 = vmatpush.msra.mxu0 0.0
        %5766 = vmatpush.msra.mxu0 0.0
        %5767 = vmatpush.msra.mxu0 0.0
        %5768 = vmatpush.msra.mxu0 0.0
        %5769 = vmatpush.msra.mxu0 0.0
        %v5770 = vand.u32 %v1442, 4294901760
        %5771 = vmatpush.msra.mxu0 %v5770
        %v5772 = vand.u32 %v1438, 4294901760
        %5773 = vmatpush.msra.mxu0 %v5772
        %v5774 = vand.u32 %v3144, 4294901760
        %v5775 = vsub.f32 %v3144, %v5774
        %v5776 = vand.u32 %v5775, 4294901760
        %v5777 = vsub.f32 %v5775, %v5776
        %v5778 = vand.u32 %v5777, 4294901760
        %5779 = vmatmul.f32.gmra.mxu0 %v5778
        %v5780 = vpop.f32.mrf.mxu0
        %v5781 = vadd.f32 0.0, %v5780
        %5782 = vdwg.mxu0
        %5783 = vmatpush.msra.mxu0 0.0
        %5784 = vmatpush.msra.mxu0 0.0
        %5785 = vmatpush.msra.mxu0 0.0
        %5786 = vmatpush.msra.mxu0 0.0
        %5787 = vmatpush.msra.mxu0 0.0
        %5788 = vmatpush.msra.mxu0 0.0
        %5789 = vmatpush.msra.mxu0 0.0
        %5790 = vmatpush.msra.mxu0 0.0
        %5791 = vmatpush.msra.mxu0 0.0
        %5792 = vmatpush.msra.mxu0 0.0
        %5793 = vmatpush.msra.mxu0 0.0
        %5794 = vmatpush.msra.mxu0 0.0
        %5795 = vmatpush.msra.mxu0 0.0
        %5796 = vmatpush.msra.mxu0 0.0
        %v5797 = vand.u32 %v1442, 4294901760
        %v5798 = vsub.f32 %v1442, %v5797
        %v5799 = vand.u32 %v5798, 4294901760
        %v5800 = vsub.f32 %v5798, %v5799
        %v5801 = vand.u32 %v5800, 4294901760
        %5802 = vmatpush.msra.mxu0 %v5801
        %v5803 = vand.u32 %v1438, 4294901760
        %v5804 = vsub.f32 %v1438, %v5803
        %v5805 = vand.u32 %v5804, 4294901760
        %v5806 = vsub.f32 %v5804, %v5805
        %v5807 = vand.u32 %v5806, 4294901760
        %5808 = vmatpush.msra.mxu0 %v5807
        %v5809 = vand.u32 %v3144, 4294901760
        %5810 = vmatmul.f32.gmra.mxu0 %v5809
        %v5811 = vpop.f32.mrf.mxu0
        %v5812 = vadd.f32 %v5781, %v5811
        %5813 = vdwg.mxu0
        %5814 = vmatpush.msra.mxu0 0.0
        %5815 = vmatpush.msra.mxu0 0.0
        %5816 = vmatpush.msra.mxu0 0.0
        %5817 = vmatpush.msra.mxu0 0.0
        %5818 = vmatpush.msra.mxu0 0.0
        %5819 = vmatpush.msra.mxu0 0.0
        %5820 = vmatpush.msra.mxu0 0.0
        %5821 = vmatpush.msra.mxu0 0.0
        %5822 = vmatpush.msra.mxu0 0.0
        %5823 = vmatpush.msra.mxu0 0.0
        %5824 = vmatpush.msra.mxu0 0.0
        %5825 = vmatpush.msra.mxu0 0.0
        %5826 = vmatpush.msra.mxu0 0.0
        %5827 = vmatpush.msra.mxu0 0.0
        %v5828 = vand.u32 %v1442, 4294901760
        %v5829 = vsub.f32 %v1442, %v5828
        %5830 = vmatpush.msra.mxu0 %v5829
        %v5831 = vand.u32 %v1438, 4294901760
        %v5832 = vsub.f32 %v1438, %v5831
        %5833 = vmatpush.msra.mxu0 %v5832
        %v5834 = vand.u32 %v3144, 4294901760
        %v5835 = vsub.f32 %v3144, %v5834
        %5836 = vmatmul.f32.gmra.mxu0 %v5835
        %v5837 = vpop.f32.mrf.mxu0
        %v5838 = vadd.f32 %v5812, %v5837
        %5839 = vdwg.mxu0
        %5840 = vmatpush.msra.mxu0 0.0
        %5841 = vmatpush.msra.mxu0 0.0
        %5842 = vmatpush.msra.mxu0 0.0
        %5843 = vmatpush.msra.mxu0 0.0
        %5844 = vmatpush.msra.mxu0 0.0
        %5845 = vmatpush.msra.mxu0 0.0
        %5846 = vmatpush.msra.mxu0 0.0
        %5847 = vmatpush.msra.mxu0 0.0
        %5848 = vmatpush.msra.mxu0 0.0
        %5849 = vmatpush.msra.mxu0 0.0
        %5850 = vmatpush.msra.mxu0 0.0
        %5851 = vmatpush.msra.mxu0 0.0
        %5852 = vmatpush.msra.mxu0 0.0
        %5853 = vmatpush.msra.mxu0 0.0
        %v5854 = vand.u32 %v1442, 4294901760
        %5855 = vmatpush.msra.mxu0 %v5854
        %v5856 = vand.u32 %v1438, 4294901760
        %5857 = vmatpush.msra.mxu0 %v5856
        %v5858 = vand.u32 %v3144, 4294901760
        %v5859 = vsub.f32 %v3144, %v5858
        %v5860 = vand.u32 %v5859, 4294901760
        %5861 = vmatmul.f32.gmra.mxu0 %v5860
        %v5862 = vpop.f32.mrf.mxu0
        %v5863 = vadd.f32 %v5838, %v5862
        %5864 = vdwg.mxu0
        %5865 = vmatpush.msra.mxu0 0.0
        %5866 = vmatpush.msra.mxu0 0.0
        %5867 = vmatpush.msra.mxu0 0.0
        %5868 = vmatpush.msra.mxu0 0.0
        %5869 = vmatpush.msra.mxu0 0.0
        %5870 = vmatpush.msra.mxu0 0.0
        %5871 = vmatpush.msra.mxu0 0.0
        %5872 = vmatpush.msra.mxu0 0.0
        %5873 = vmatpush.msra.mxu0 0.0
        %5874 = vmatpush.msra.mxu0 0.0
        %5875 = vmatpush.msra.mxu0 0.0
        %5876 = vmatpush.msra.mxu0 0.0
        %5877 = vmatpush.msra.mxu0 0.0
        %5878 = vmatpush.msra.mxu0 0.0
        %v5879 = vand.u32 %v1442, 4294901760
        %v5880 = vsub.f32 %v1442, %v5879
        %v5881 = vand.u32 %v5880, 4294901760
        %5882 = vmatpush.msra.mxu0 %v5881
        %v5883 = vand.u32 %v1438, 4294901760
        %v5884 = vsub.f32 %v1438, %v5883
        %v5885 = vand.u32 %v5884, 4294901760
        %5886 = vmatpush.msra.mxu0 %v5885
        %v5887 = vand.u32 %v3144, 4294901760
        %5888 = vmatmul.f32.gmra.mxu0 %v5887
        %v5889 = vpop.f32.mrf.mxu0
        %v5890 = vadd.f32 %v5863, %v5889
        %5891 = vdwg.mxu0
        %5892 = vmatpush.msra.mxu0 0.0
        %5893 = vmatpush.msra.mxu0 0.0
        %5894 = vmatpush.msra.mxu0 0.0
        %5895 = vmatpush.msra.mxu0 0.0
        %5896 = vmatpush.msra.mxu0 0.0
        %5897 = vmatpush.msra.mxu0 0.0
        %5898 = vmatpush.msra.mxu0 0.0
        %5899 = vmatpush.msra.mxu0 0.0
        %5900 = vmatpush.msra.mxu0 0.0
        %5901 = vmatpush.msra.mxu0 0.0
        %5902 = vmatpush.msra.mxu0 0.0
        %5903 = vmatpush.msra.mxu0 0.0
        %5904 = vmatpush.msra.mxu0 0.0
        %5905 = vmatpush.msra.mxu0 0.0
        %v5906 = vand.u32 %v1442, 4294901760
        %5907 = vmatpush.msra.mxu0 %v5906
        %v5908 = vand.u32 %v1438, 4294901760
        %5909 = vmatpush.msra.mxu0 %v5908
        %v5910 = vand.u32 %v3144, 4294901760
        %5911 = vmatmul.f32.gmra.mxu0 %v5910
        %v5912 = vpop.f32.mrf.mxu0
        %v5913 = vadd.f32 %v5890, %v5912
        %5914 = vdwg.mxu0
        %5915 = vmatpush.msra.mxu0 0.0
        %5916 = vmatpush.msra.mxu0 0.0
        %5917 = vmatpush.msra.mxu0 0.0
        %5918 = vmatpush.msra.mxu0 0.0
        %5919 = vmatpush.msra.mxu0 0.0
        %5920 = vmatpush.msra.mxu0 0.0
        %5921 = vmatpush.msra.mxu0 0.0
        %5922 = vmatpush.msra.mxu0 0.0
        %5923 = vmatpush.msra.mxu0 0.0
        %5924 = vmatpush.msra.mxu0 0.0
        %5925 = vmatpush.msra.mxu0 0.0
        %5926 = vmatpush.msra.mxu0 0.0
        %5927 = vmatpush.msra.mxu0 0.0
        %5928 = vmatpush.msra.mxu0 0.0
        %v5929 = vand.u32 %v2008, 4294901760
        %5930 = vmatpush.msra.mxu0 %v5929
        %v5931 = vand.u32 %v2004, 4294901760
        %5932 = vmatpush.msra.mxu0 %v5931
        %v5933 = vand.u32 %v3144, 4294901760
        %v5934 = vsub.f32 %v3144, %v5933
        %v5935 = vand.u32 %v5934, 4294901760
        %v5936 = vsub.f32 %v5934, %v5935
        %v5937 = vand.u32 %v5936, 4294901760
        %5938 = vmatmul.f32.gmra.mxu0 %v5937
        %v5939 = vpop.f32.mrf.mxu0
        %v5940 = vadd.f32 0.0, %v5939
        %5941 = vdwg.mxu0
        %5942 = vmatpush.msra.mxu0 0.0
        %5943 = vmatpush.msra.mxu0 0.0
        %5944 = vmatpush.msra.mxu0 0.0
        %5945 = vmatpush.msra.mxu0 0.0
        %5946 = vmatpush.msra.mxu0 0.0
        %5947 = vmatpush.msra.mxu0 0.0
        %5948 = vmatpush.msra.mxu0 0.0
        %5949 = vmatpush.msra.mxu0 0.0
        %5950 = vmatpush.msra.mxu0 0.0
        %5951 = vmatpush.msra.mxu0 0.0
        %5952 = vmatpush.msra.mxu0 0.0
        %5953 = vmatpush.msra.mxu0 0.0
        %5954 = vmatpush.msra.mxu0 0.0
        %5955 = vmatpush.msra.mxu0 0.0
        %v5956 = vand.u32 %v2008, 4294901760
        %v5957 = vsub.f32 %v2008, %v5956
        %v5958 = vand.u32 %v5957, 4294901760
        %v5959 = vsub.f32 %v5957, %v5958
        %v5960 = vand.u32 %v5959, 4294901760
        %5961 = vmatpush.msra.mxu0 %v5960
        %v5962 = vand.u32 %v2004, 4294901760
        %v5963 = vsub.f32 %v2004, %v5962
        %v5964 = vand.u32 %v5963, 4294901760
        %v5965 = vsub.f32 %v5963, %v5964
        %v5966 = vand.u32 %v5965, 4294901760
        %5967 = vmatpush.msra.mxu0 %v5966
        %v5968 = vand.u32 %v3144, 4294901760
        %5969 = vmatmul.f32.gmra.mxu0 %v5968
        %v5970 = vpop.f32.mrf.mxu0
        %v5971 = vadd.f32 %v5940, %v5970
        %5972 = vdwg.mxu0
        %5973 = vmatpush.msra.mxu0 0.0
        %5974 = vmatpush.msra.mxu0 0.0
        %5975 = vmatpush.msra.mxu0 0.0
        %5976 = vmatpush.msra.mxu0 0.0
        %5977 = vmatpush.msra.mxu0 0.0
        %5978 = vmatpush.msra.mxu0 0.0
        %5979 = vmatpush.msra.mxu0 0.0
        %5980 = vmatpush.msra.mxu0 0.0
        %5981 = vmatpush.msra.mxu0 0.0
        %5982 = vmatpush.msra.mxu0 0.0
        %5983 = vmatpush.msra.mxu0 0.0
        %5984 = vmatpush.msra.mxu0 0.0
        %5985 = vmatpush.msra.mxu0 0.0
        %5986 = vmatpush.msra.mxu0 0.0
        %v5987 = vand.u32 %v2008, 4294901760
        %v5988 = vsub.f32 %v2008, %v5987
        %5989 = vmatpush.msra.mxu0 %v5988
        %v5990 = vand.u32 %v2004, 4294901760
        %v5991 = vsub.f32 %v2004, %v5990
        %5992 = vmatpush.msra.mxu0 %v5991
        %v5993 = vand.u32 %v3144, 4294901760
        %v5994 = vsub.f32 %v3144, %v5993
        %5995 = vmatmul.f32.gmra.mxu0 %v5994
        %v5996 = vpop.f32.mrf.mxu0
        %v5997 = vadd.f32 %v5971, %v5996
        %5998 = vdwg.mxu0
        %5999 = vmatpush.msra.mxu0 0.0
        %6000 = vmatpush.msra.mxu0 0.0
        %6001 = vmatpush.msra.mxu0 0.0
        %6002 = vmatpush.msra.mxu0 0.0
        %6003 = vmatpush.msra.mxu0 0.0
        %6004 = vmatpush.msra.mxu0 0.0
        %6005 = vmatpush.msra.mxu0 0.0
        %6006 = vmatpush.msra.mxu0 0.0
        %6007 = vmatpush.msra.mxu0 0.0
        %6008 = vmatpush.msra.mxu0 0.0
        %6009 = vmatpush.msra.mxu0 0.0
        %6010 = vmatpush.msra.mxu0 0.0
        %6011 = vmatpush.msra.mxu0 0.0
        %6012 = vmatpush.msra.mxu0 0.0
        %v6013 = vand.u32 %v2008, 4294901760
        %6014 = vmatpush.msra.mxu0 %v6013
        %v6015 = vand.u32 %v2004, 4294901760
        %6016 = vmatpush.msra.mxu0 %v6015
        %v6017 = vand.u32 %v3144, 4294901760
        %v6018 = vsub.f32 %v3144, %v6017
        %v6019 = vand.u32 %v6018, 4294901760
        %6020 = vmatmul.f32.gmra.mxu0 %v6019
        %v6021 = vpop.f32.mrf.mxu0
        %v6022 = vadd.f32 %v5997, %v6021
        %6023 = vdwg.mxu0
        %6024 = vmatpush.msra.mxu0 0.0
        %6025 = vmatpush.msra.mxu0 0.0
        %6026 = vmatpush.msra.mxu0 0.0
        %6027 = vmatpush.msra.mxu0 0.0
        %6028 = vmatpush.msra.mxu0 0.0
        %6029 = vmatpush.msra.mxu0 0.0
        %6030 = vmatpush.msra.mxu0 0.0
        %6031 = vmatpush.msra.mxu0 0.0
        %6032 = vmatpush.msra.mxu0 0.0
        %6033 = vmatpush.msra.mxu0 0.0
        %6034 = vmatpush.msra.mxu0 0.0
        %6035 = vmatpush.msra.mxu0 0.0
        %6036 = vmatpush.msra.mxu0 0.0
        %6037 = vmatpush.msra.mxu0 0.0
        %v6038 = vand.u32 %v2008, 4294901760
        %v6039 = vsub.f32 %v2008, %v6038
        %v6040 = vand.u32 %v6039, 4294901760
        %6041 = vmatpush.msra.mxu0 %v6040
        %v6042 = vand.u32 %v2004, 4294901760
        %v6043 = vsub.f32 %v2004, %v6042
        %v6044 = vand.u32 %v6043, 4294901760
        %6045 = vmatpush.msra.mxu0 %v6044
        %v6046 = vand.u32 %v3144, 4294901760
        %6047 = vmatmul.f32.gmra.mxu0 %v6046
        %v6048 = vpop.f32.mrf.mxu0
        %v6049 = vadd.f32 %v6022, %v6048
        %6050 = vdwg.mxu0
        %6051 = vmatpush.msra.mxu0 0.0
        %6052 = vmatpush.msra.mxu0 0.0
        %6053 = vmatpush.msra.mxu0 0.0
        %6054 = vmatpush.msra.mxu0 0.0
        %6055 = vmatpush.msra.mxu0 0.0
        %6056 = vmatpush.msra.mxu0 0.0
        %6057 = vmatpush.msra.mxu0 0.0
        %6058 = vmatpush.msra.mxu0 0.0
        %6059 = vmatpush.msra.mxu0 0.0
        %6060 = vmatpush.msra.mxu0 0.0
        %6061 = vmatpush.msra.mxu0 0.0
        %6062 = vmatpush.msra.mxu0 0.0
        %6063 = vmatpush.msra.mxu0 0.0
        %6064 = vmatpush.msra.mxu0 0.0
        %v6065 = vand.u32 %v2008, 4294901760
        %6066 = vmatpush.msra.mxu0 %v6065
        %v6067 = vand.u32 %v2004, 4294901760
        %6068 = vmatpush.msra.mxu0 %v6067
        %v6069 = vand.u32 %v3144, 4294901760
        %6070 = vmatmul.f32.gmra.mxu0 %v6069
        %v6071 = vpop.f32.mrf.mxu0
        %v6072 = vadd.f32 %v6049, %v6071
        %6073 = vdwg.mxu0
        %6074 = vmatpush.msra.mxu0 0.0
        %6075 = vmatpush.msra.mxu0 0.0
        %6076 = vmatpush.msra.mxu0 0.0
        %6077 = vmatpush.msra.mxu0 0.0
        %6078 = vmatpush.msra.mxu0 0.0
        %6079 = vmatpush.msra.mxu0 0.0
        %6080 = vmatpush.msra.mxu0 0.0
        %6081 = vmatpush.msra.mxu0 0.0
        %6082 = vmatpush.msra.mxu0 0.0
        %6083 = vmatpush.msra.mxu0 0.0
        %6084 = vmatpush.msra.mxu0 0.0
        %6085 = vmatpush.msra.mxu0 0.0
        %6086 = vmatpush.msra.mxu0 0.0
        %6087 = vmatpush.msra.mxu0 0.0
        %v6088 = vand.u32 %v2574, 4294901760
        %6089 = vmatpush.msra.mxu0 %v6088
        %v6090 = vand.u32 %v2570, 4294901760
        %6091 = vmatpush.msra.mxu0 %v6090
        %v6092 = vand.u32 %v3144, 4294901760
        %v6093 = vsub.f32 %v3144, %v6092
        %v6094 = vand.u32 %v6093, 4294901760
        %v6095 = vsub.f32 %v6093, %v6094
        %v6096 = vand.u32 %v6095, 4294901760
        %6097 = vmatmul.f32.gmra.mxu0 %v6096
        %v6098 = vpop.f32.mrf.mxu0
        %v6099 = vadd.f32 0.0, %v6098
        %6100 = vdwg.mxu0
        %6101 = vmatpush.msra.mxu0 0.0
        %6102 = vmatpush.msra.mxu0 0.0
        %6103 = vmatpush.msra.mxu0 0.0
        %6104 = vmatpush.msra.mxu0 0.0
        %6105 = vmatpush.msra.mxu0 0.0
        %6106 = vmatpush.msra.mxu0 0.0
        %6107 = vmatpush.msra.mxu0 0.0
        %6108 = vmatpush.msra.mxu0 0.0
        %6109 = vmatpush.msra.mxu0 0.0
        %6110 = vmatpush.msra.mxu0 0.0
        %6111 = vmatpush.msra.mxu0 0.0
        %6112 = vmatpush.msra.mxu0 0.0
        %6113 = vmatpush.msra.mxu0 0.0
        %6114 = vmatpush.msra.mxu0 0.0
        %v6115 = vand.u32 %v2574, 4294901760
        %v6116 = vsub.f32 %v2574, %v6115
        %v6117 = vand.u32 %v6116, 4294901760
        %v6118 = vsub.f32 %v6116, %v6117
        %v6119 = vand.u32 %v6118, 4294901760
        %6120 = vmatpush.msra.mxu0 %v6119
        %v6121 = vand.u32 %v2570, 4294901760
        %v6122 = vsub.f32 %v2570, %v6121
        %v6123 = vand.u32 %v6122, 4294901760
        %v6124 = vsub.f32 %v6122, %v6123
        %v6125 = vand.u32 %v6124, 4294901760
        %6126 = vmatpush.msra.mxu0 %v6125
        %v6127 = vand.u32 %v3144, 4294901760
        %6128 = vmatmul.f32.gmra.mxu0 %v6127
        %v6129 = vpop.f32.mrf.mxu0
        %v6130 = vadd.f32 %v6099, %v6129
        %6131 = vdwg.mxu0
        %6132 = vmatpush.msra.mxu0 0.0
        %6133 = vmatpush.msra.mxu0 0.0
        %6134 = vmatpush.msra.mxu0 0.0
        %6135 = vmatpush.msra.mxu0 0.0
        %6136 = vmatpush.msra.mxu0 0.0
        %6137 = vmatpush.msra.mxu0 0.0
        %6138 = vmatpush.msra.mxu0 0.0
        %6139 = vmatpush.msra.mxu0 0.0
        %6140 = vmatpush.msra.mxu0 0.0
        %6141 = vmatpush.msra.mxu0 0.0
        %6142 = vmatpush.msra.mxu0 0.0
        %6143 = vmatpush.msra.mxu0 0.0
        %6144 = vmatpush.msra.mxu0 0.0
        %6145 = vmatpush.msra.mxu0 0.0
        %v6146 = vand.u32 %v2574, 4294901760
        %v6147 = vsub.f32 %v2574, %v6146
        %6148 = vmatpush.msra.mxu0 %v6147
        %v6149 = vand.u32 %v2570, 4294901760
        %v6150 = vsub.f32 %v2570, %v6149
        %6151 = vmatpush.msra.mxu0 %v6150
        %v6152 = vand.u32 %v3144, 4294901760
        %v6153 = vsub.f32 %v3144, %v6152
        %6154 = vmatmul.f32.gmra.mxu0 %v6153
        %v6155 = vpop.f32.mrf.mxu0
        %v6156 = vadd.f32 %v6130, %v6155
        %6157 = vdwg.mxu0
        %6158 = vmatpush.msra.mxu0 0.0
        %6159 = vmatpush.msra.mxu0 0.0
        %6160 = vmatpush.msra.mxu0 0.0
        %6161 = vmatpush.msra.mxu0 0.0
        %6162 = vmatpush.msra.mxu0 0.0
        %6163 = vmatpush.msra.mxu0 0.0
        %6164 = vmatpush.msra.mxu0 0.0
        %6165 = vmatpush.msra.mxu0 0.0
        %6166 = vmatpush.msra.mxu0 0.0
        %6167 = vmatpush.msra.mxu0 0.0
        %6168 = vmatpush.msra.mxu0 0.0
        %6169 = vmatpush.msra.mxu0 0.0
        %6170 = vmatpush.msra.mxu0 0.0
        %6171 = vmatpush.msra.mxu0 0.0
        %v6172 = vand.u32 %v2574, 4294901760
        %6173 = vmatpush.msra.mxu0 %v6172
        %v6174 = vand.u32 %v2570, 4294901760
        %6175 = vmatpush.msra.mxu0 %v6174
        %v6176 = vand.u32 %v3144, 4294901760
        %v6177 = vsub.f32 %v3144, %v6176
        %v6178 = vand.u32 %v6177, 4294901760
        %6179 = vmatmul.f32.gmra.mxu0 %v6178
        %v6180 = vpop.f32.mrf.mxu0
        %v6181 = vadd.f32 %v6156, %v6180
        %6182 = vdwg.mxu0
        %6183 = vmatpush.msra.mxu0 0.0
        %6184 = vmatpush.msra.mxu0 0.0
        %6185 = vmatpush.msra.mxu0 0.0
        %6186 = vmatpush.msra.mxu0 0.0
        %6187 = vmatpush.msra.mxu0 0.0
        %6188 = vmatpush.msra.mxu0 0.0
        %6189 = vmatpush.msra.mxu0 0.0
        %6190 = vmatpush.msra.mxu0 0.0
        %6191 = vmatpush.msra.mxu0 0.0
        %6192 = vmatpush.msra.mxu0 0.0
        %6193 = vmatpush.msra.mxu0 0.0
        %6194 = vmatpush.msra.mxu0 0.0
        %6195 = vmatpush.msra.mxu0 0.0
        %6196 = vmatpush.msra.mxu0 0.0
        %v6197 = vand.u32 %v2574, 4294901760
        %v6198 = vsub.f32 %v2574, %v6197
        %v6199 = vand.u32 %v6198, 4294901760
        %6200 = vmatpush.msra.mxu0 %v6199
        %v6201 = vand.u32 %v2570, 4294901760
        %v6202 = vsub.f32 %v2570, %v6201
        %v6203 = vand.u32 %v6202, 4294901760
        %6204 = vmatpush.msra.mxu0 %v6203
        %v6205 = vand.u32 %v3144, 4294901760
        %6206 = vmatmul.f32.gmra.mxu0 %v6205
        %v6207 = vpop.f32.mrf.mxu0
        %v6208 = vadd.f32 %v6181, %v6207
        %6209 = vdwg.mxu0
        %6210 = vmatpush.msra.mxu0 0.0
        %6211 = vmatpush.msra.mxu0 0.0
        %6212 = vmatpush.msra.mxu0 0.0
        %6213 = vmatpush.msra.mxu0 0.0
        %6214 = vmatpush.msra.mxu0 0.0
        %6215 = vmatpush.msra.mxu0 0.0
        %6216 = vmatpush.msra.mxu0 0.0
        %6217 = vmatpush.msra.mxu0 0.0
        %6218 = vmatpush.msra.mxu0 0.0
        %6219 = vmatpush.msra.mxu0 0.0
        %6220 = vmatpush.msra.mxu0 0.0
        %6221 = vmatpush.msra.mxu0 0.0
        %6222 = vmatpush.msra.mxu0 0.0
        %6223 = vmatpush.msra.mxu0 0.0
        %v6224 = vand.u32 %v2574, 4294901760
        %6225 = vmatpush.msra.mxu0 %v6224
        %v6226 = vand.u32 %v2570, 4294901760
        %6227 = vmatpush.msra.mxu0 %v6226
        %v6228 = vand.u32 %v3144, 4294901760
        %6229 = vmatmul.f32.gmra.mxu0 %v6228
        %v6230 = vpop.f32.mrf.mxu0
        %v6231 = vadd.f32 %v6208, %v6230
        %6232 = vdwg.mxu0
        %6233 = vmatpush.msra.mxu0 0.0
        %6234 = vmatpush.msra.mxu0 0.0
        %6235 = vmatpush.msra.mxu0 0.0
        %6236 = vmatpush.msra.mxu0 0.0
        %6237 = vmatpush.msra.mxu0 0.0
        %6238 = vmatpush.msra.mxu0 0.0
        %6239 = vmatpush.msra.mxu0 0.0
        %6240 = vmatpush.msra.mxu0 0.0
        %6241 = vmatpush.msra.mxu0 0.0
        %6242 = vmatpush.msra.mxu0 0.0
        %6243 = vmatpush.msra.mxu0 0.0
        %6244 = vmatpush.msra.mxu0 0.0
        %6245 = vmatpush.msra.mxu0 0.0
        %6246 = vmatpush.msra.mxu0 0.0
        %v6247 = vand.u32 %v3140, 4294901760
        %6248 = vmatpush.msra.mxu0 %v6247
        %v6249 = vand.u32 %v3136, 4294901760
        %6250 = vmatpush.msra.mxu0 %v6249
        %v6251 = vand.u32 %v3144, 4294901760
        %v6252 = vsub.f32 %v3144, %v6251
        %v6253 = vand.u32 %v6252, 4294901760
        %v6254 = vsub.f32 %v6252, %v6253
        %v6255 = vand.u32 %v6254, 4294901760
        %6256 = vmatmul.f32.gmra.mxu0 %v6255
        %v6257 = vpop.f32.mrf.mxu0
        %v6258 = vadd.f32 0.0, %v6257
        %6259 = vdwg.mxu0
        %6260 = vmatpush.msra.mxu0 0.0
        %6261 = vmatpush.msra.mxu0 0.0
        %6262 = vmatpush.msra.mxu0 0.0
        %6263 = vmatpush.msra.mxu0 0.0
        %6264 = vmatpush.msra.mxu0 0.0
        %6265 = vmatpush.msra.mxu0 0.0
        %6266 = vmatpush.msra.mxu0 0.0
        %6267 = vmatpush.msra.mxu0 0.0
        %6268 = vmatpush.msra.mxu0 0.0
        %6269 = vmatpush.msra.mxu0 0.0
        %6270 = vmatpush.msra.mxu0 0.0
        %6271 = vmatpush.msra.mxu0 0.0
        %6272 = vmatpush.msra.mxu0 0.0
        %6273 = vmatpush.msra.mxu0 0.0
        %v6274 = vand.u32 %v3140, 4294901760
        %v6275 = vsub.f32 %v3140, %v6274
        %v6276 = vand.u32 %v6275, 4294901760
        %v6277 = vsub.f32 %v6275, %v6276
        %v6278 = vand.u32 %v6277, 4294901760
        %6279 = vmatpush.msra.mxu0 %v6278
        %v6280 = vand.u32 %v3136, 4294901760
        %v6281 = vsub.f32 %v3136, %v6280
        %v6282 = vand.u32 %v6281, 4294901760
        %v6283 = vsub.f32 %v6281, %v6282
        %v6284 = vand.u32 %v6283, 4294901760
        %6285 = vmatpush.msra.mxu0 %v6284
        %v6286 = vand.u32 %v3144, 4294901760
        %6287 = vmatmul.f32.gmra.mxu0 %v6286
        %v6288 = vpop.f32.mrf.mxu0
        %v6289 = vadd.f32 %v6258, %v6288
        %6290 = vdwg.mxu0
        %6291 = vmatpush.msra.mxu0 0.0
        %6292 = vmatpush.msra.mxu0 0.0
        %6293 = vmatpush.msra.mxu0 0.0
        %6294 = vmatpush.msra.mxu0 0.0
        %6295 = vmatpush.msra.mxu0 0.0
        %6296 = vmatpush.msra.mxu0 0.0
        %6297 = vmatpush.msra.mxu0 0.0
        %6298 = vmatpush.msra.mxu0 0.0
        %6299 = vmatpush.msra.mxu0 0.0
        %6300 = vmatpush.msra.mxu0 0.0
        %6301 = vmatpush.msra.mxu0 0.0
        %6302 = vmatpush.msra.mxu0 0.0
        %6303 = vmatpush.msra.mxu0 0.0
        %6304 = vmatpush.msra.mxu0 0.0
        %v6305 = vand.u32 %v3140, 4294901760
        %v6306 = vsub.f32 %v3140, %v6305
        %6307 = vmatpush.msra.mxu0 %v6306
        %v6308 = vand.u32 %v3136, 4294901760
        %v6309 = vsub.f32 %v3136, %v6308
        %6310 = vmatpush.msra.mxu0 %v6309
        %v6311 = vand.u32 %v3144, 4294901760
        %v6312 = vsub.f32 %v3144, %v6311
        %6313 = vmatmul.f32.gmra.mxu0 %v6312
        %v6314 = vpop.f32.mrf.mxu0
        %v6315 = vadd.f32 %v6289, %v6314
        %6316 = vdwg.mxu0
        %6317 = vmatpush.msra.mxu0 0.0
        %6318 = vmatpush.msra.mxu0 0.0
        %6319 = vmatpush.msra.mxu0 0.0
        %6320 = vmatpush.msra.mxu0 0.0
        %6321 = vmatpush.msra.mxu0 0.0
        %6322 = vmatpush.msra.mxu0 0.0
        %6323 = vmatpush.msra.mxu0 0.0
        %6324 = vmatpush.msra.mxu0 0.0
        %6325 = vmatpush.msra.mxu0 0.0
        %6326 = vmatpush.msra.mxu0 0.0
        %6327 = vmatpush.msra.mxu0 0.0
        %6328 = vmatpush.msra.mxu0 0.0
        %6329 = vmatpush.msra.mxu0 0.0
        %6330 = vmatpush.msra.mxu0 0.0
        %v6331 = vand.u32 %v3140, 4294901760
        %6332 = vmatpush.msra.mxu0 %v6331
        %v6333 = vand.u32 %v3136, 4294901760
        %6334 = vmatpush.msra.mxu0 %v6333
        %v6335 = vand.u32 %v3144, 4294901760
        %v6336 = vsub.f32 %v3144, %v6335
        %v6337 = vand.u32 %v6336, 4294901760
        %6338 = vmatmul.f32.gmra.mxu0 %v6337
        %v6339 = vpop.f32.mrf.mxu0
        %v6340 = vadd.f32 %v6315, %v6339
        %6341 = vdwg.mxu0
        %6342 = vmatpush.msra.mxu0 0.0
        %6343 = vmatpush.msra.mxu0 0.0
        %6344 = vmatpush.msra.mxu0 0.0
        %6345 = vmatpush.msra.mxu0 0.0
        %6346 = vmatpush.msra.mxu0 0.0
        %6347 = vmatpush.msra.mxu0 0.0
        %6348 = vmatpush.msra.mxu0 0.0
        %6349 = vmatpush.msra.mxu0 0.0
        %6350 = vmatpush.msra.mxu0 0.0
        %6351 = vmatpush.msra.mxu0 0.0
        %6352 = vmatpush.msra.mxu0 0.0
        %6353 = vmatpush.msra.mxu0 0.0
        %6354 = vmatpush.msra.mxu0 0.0
        %6355 = vmatpush.msra.mxu0 0.0
        %v6356 = vand.u32 %v3140, 4294901760
        %v6357 = vsub.f32 %v3140, %v6356
        %v6358 = vand.u32 %v6357, 4294901760
        %6359 = vmatpush.msra.mxu0 %v6358
        %v6360 = vand.u32 %v3136, 4294901760
        %v6361 = vsub.f32 %v3136, %v6360
        %v6362 = vand.u32 %v6361, 4294901760
        %6363 = vmatpush.msra.mxu0 %v6362
        %v6364 = vand.u32 %v3144, 4294901760
        %6365 = vmatmul.f32.gmra.mxu0 %v6364
        %v6366 = vpop.f32.mrf.mxu0
        %v6367 = vadd.f32 %v6340, %v6366
        %6368 = vdwg.mxu0
        %6369 = vmatpush.msra.mxu0 0.0
        %6370 = vmatpush.msra.mxu0 0.0
        %6371 = vmatpush.msra.mxu0 0.0
        %6372 = vmatpush.msra.mxu0 0.0
        %6373 = vmatpush.msra.mxu0 0.0
        %6374 = vmatpush.msra.mxu0 0.0
        %6375 = vmatpush.msra.mxu0 0.0
        %6376 = vmatpush.msra.mxu0 0.0
        %6377 = vmatpush.msra.mxu0 0.0
        %6378 = vmatpush.msra.mxu0 0.0
        %6379 = vmatpush.msra.mxu0 0.0
        %6380 = vmatpush.msra.mxu0 0.0
        %6381 = vmatpush.msra.mxu0 0.0
        %6382 = vmatpush.msra.mxu0 0.0
        %v6383 = vand.u32 %v3140, 4294901760
        %6384 = vmatpush.msra.mxu0 %v6383
        %v6385 = vand.u32 %v3136, 4294901760
        %6386 = vmatpush.msra.mxu0 %v6385
        %v6387 = vand.u32 %v3144, 4294901760
        %6388 = vmatmul.f32.gmra.mxu0 %v6387
        %v6389 = vpop.f32.mrf.mxu0
        %v6390 = vadd.f32 %v6367, %v6389
        %6391 = vdwg.mxu0
        %v6392 = vmul.f32 %v5754, %v5754
        %v6393 = vmul.f32 %v5913, %v5913
        %v6394 = vmul.f32 %v5754, %v5913
        %v6395 = vsub.f32 %v6072, %v6392
        %v6396 = vsub.f32 %v6231, %v6393
        %v6397 = vsub.f32 %v6390, %v6394
        %v6398 = vmul.f32 %v6394, 2.0
        %v6399 = vadd.f32 %v6398, 0.0001
        %v6400 = vmul.f32 %v6397, 2.0
        %v6401 = vadd.f32 %v6400, 0.0009
        %v6402 = vmul.f32 %v6399, %v6401
        %v6403 = vadd.f32 %v6392, %v6393
        %v6404 = vadd.f32 %v6403, 0.0001
        %v6405 = vadd.f32 %v6395, %v6396
        %v6406 = vadd.f32 %v6405, 0.0009
        %v6407 = vmul.f32 %v6404, %v6406
        %v6408 = vrcp.pop %v6407
        %v6409 = vmul.f32 %v6407, %v6408
        %v6410 = vsub.f32 2.0, %v6409
        %v6411 = vmul.f32 %v6408, %v6410
        %v6412 = vmul.f32 %v6402, %v6411
        %v6413 = vadd.f32 %v5596, %v6412
        %v6414 = vlaneseq
        %v6415 = vshrl.u32 %v6414, 7
        %v6416 = vlaneseq
        %v6417 = vand.u32 %v6416, 127
        %vm6418 = vcmp.lt.s32.totalorder %v6415, 6
        %vm6419 = vcmp.lt.s32.totalorder %v6417, 6
        %vm6420 = vmand %vm6418, %vm6419
        %v6421 = vsel %vm6420, %v6413, 0.0
        %v6422 = vadd.f32 %v6421, 0.0
        %6423 = vst [vmem:[%s292] sm:$0xff] %v6422
        %s6424 = sand.u32 %s127, 1
        %s6425 = scalar_lea.sflag [#allocation4], %s6424
        %s6426 = sand.u32 %s127, 1
        %s6427 = smul.addr %s6426, 8
        %s6428 = scalar_lea.vmem [#allocation10], %s6427
        // Predicated region
        $region53: #{tpu_custom_call.1} parent=35 // pred_check
          %p6429 = pneg %p137
        $region54: #{tpu_custom_call.1} parent=35 // pred_check_branch
          %6431 = sbr.rel (%p6429) target = $region56
        $region55: #{tpu_custom_call.1} parent=35 // pred_region
          %6433 = vsyncadd %s6425, 0
          %s6434 = smul.addr %s25, 8
          %s6435 = scalar_lea.hbm %s4, %s6434
          %s6437 = sshll.u32 %s6428, 4
          %s6438 = int_to_ptr.vmem [resolvable:$true] %s6437
          %s6439 = sshll.u32 %s6435, 4
          %s6440 = int_to_ptr.hbm [resolvable:$true] %s6439
          %6442 = dma.vmem_to_hbm [thread:$0]  %s6438, 128, %s6440, %s6425
        $region56: #{tpu_custom_call.1} parent=35 // pred_fallthru
          _
      $region36: #{tpu_custom_call.1} parent=5 // pred_fallthru
        _
      %p6443 = scmp.le.s32.totalorder 2, %s20
      // Predicated region
      $region57: #{tpu_custom_call.1} parent=5 // pred_check
        %p6444 = pneg %p6443
      $region58: #{tpu_custom_call.1} parent=5 // pred_check_branch
        %6446 = sbr.rel (%p6444) target = $region60
      $region59: #{tpu_custom_call.1} parent=5 // pred_region
        %s6447 = ssub.s32 %s20, 2
        // Predicated region
        $region61: #{tpu_custom_call.1} parent=59 // pred_check
          %p6448 = pneg %p143
        $region62: #{tpu_custom_call.1} parent=59 // pred_check_branch
          %6450 = sbr.rel (%p6448) target = $region64
        $region63: #{tpu_custom_call.1} parent=59 // pred_region
          %s6451 = sand.u32 %s128, 1
          %s6452 = scalar_lea.sflag [#allocation4], %s6451
          %s6453 = sand.u32 %s128, 1
          %s6454 = smul.addr %s6453, 8
          %s6455 = scalar_lea.vmem [#allocation10], %s6454
          %6457 = dma.done %s6452, 128
        $region64: #{tpu_custom_call.1} parent=59 // pred_fallthru
          _
      $region60: #{tpu_custom_call.1} parent=5 // pred_fallthru
        _
    $region6: #{tpu_custom_call.1} parent=1 // loop_footer
      %s24 = sadd.s32 1, %s20
    $region7: #{tpu_custom_call.1} parent=1 // loop_footer_branch
      %19 = sbr.rel target = $region3
    $region8: #{tpu_custom_call.1} parent=1 // loop_exit
      _
    %6458 = vsyncpa [#allocation3], 1
    %s6459 = scalar_lea.sflag [#allocation3], 1
    %6460 = vsyncpa %s6459, 1
    %6461 = vsyncpa [#allocation6], 1
    %s6462 = scalar_lea.sflag [#allocation6], 1
    %6463 = vsyncpa %s6462, 1
    %6464 = vsyncpa [#allocation9], 1
    %6465 = vsyncpa [#allocation4], 1
    %s6466 = scalar_lea.sflag [#allocation4], 1
    %6467 = vsyncpa %s6466, 1

</llo_original>
